<compile_context>
chip_gen: v6e
topology: v6e:2x2x1
jax: 0.10.0
libtpu: 0.0.40
codegen_flags: <defaults>
</compile_context>

<pallas_src>
import math

import jax
import jax.numpy as jnp
from jax.experimental import pallas as pl
from jax.experimental.pallas import tpu as pltpu  # noqa: F401  (TPU backend)

# ----------------------------- configuration -------------------------------
B = 2        # batch
N = 16       # number of cloth points (module default 400; small for demo)
E = 32       # input_embedding_dim
H = 4        # num_latent_heads
DEPTH = 2    # depth
F = 2 * E    # FeedForward hidden dim
HEAD_DIM = E // H
SCALE = 1.0 / math.sqrt(HEAD_DIM)

BIAS_W = F                      # widest bias row (ff hidden)
HEAD_B1_ROW = 2 + 6 * DEPTH     # fused output-head first-layer bias row
HEAD_B2_ROW = HEAD_B1_ROW + 1   # fused output-head second-layer bias row
NUM_BIAS_ROWS = HEAD_B2_ROW + 1


# ------------------------------- kernel ------------------------------------
def dagger_kernel(x_ref, emb_w1_ref, emb_w2_ref, wqkv_ref, wo_ref,
                  ffw1_ref, ffw2_ref, head_w1_ref, head_w2_ref, bias_ref,
                  out_ref):
    f32 = jnp.float32
    M = B * N

    def bias(row, width):                       # (1, width) bias slab
        return bias_ref[row:row + 1, 0:width]

    x = x_ref[...]                              # (M, 3)

    # input_embedding: Linear(3, E/2) -> ReLU -> Linear(E/2, E)
    h = jnp.maximum(
        jnp.dot(x, emb_w1_ref[...], preferred_element_type=f32) + bias(0, E // 2),
        0.0)
    h = jnp.dot(h, emb_w2_ref[...], preferred_element_type=f32) + bias(1, E)

    for d in range(DEPTH):
        r = 2 + 6 * d
        # ---------------- multi-head self-attention --------------------
        attn = jnp.zeros((M, E), f32)
        for hh in range(H):
            lo = hh * HEAD_DIM
            hi = lo + HEAD_DIM
            # per-head projections over all tokens (scale folded into Wq/bq)
            q = (jnp.dot(h, wqkv_ref[(d * 3 + 0) * H + hh],
                         preferred_element_type=f32)
                 + bias_ref[r + 0:r + 1, lo:hi])           # (M, HD)
            k = (jnp.dot(h, wqkv_ref[(d * 3 + 1) * H + hh],
                         preferred_element_type=f32)
                 + bias_ref[r + 1:r + 2, lo:hi])
            v = (jnp.dot(h, wqkv_ref[(d * 3 + 2) * H + hh],
                         preferred_element_type=f32)
                 + bias_ref[r + 2:r + 3, lo:hi])
            o_parts = []
            for b in range(B):                             # per-sample scores
                sl = slice(b * N, (b + 1) * N)
                s = jax.lax.dot_general(
                    q[sl], k[sl], (((1,), (1,)), ((), ())),
                    preferred_element_type=f32)            # (N, N)
                s = s - jnp.max(s, axis=-1, keepdims=True)
                e = jnp.exp(s)
                p = e * pl.reciprocal(jnp.sum(e, axis=-1, keepdims=True),
                                      approx=True)
                o_parts.append(jnp.dot(p, v[sl], preferred_element_type=f32))
            o = jnp.concatenate(o_parts, axis=0)           # (M, HD) sublane cat
            # fold the head-concat into the out-projection (sum of per-head)
            attn = attn + jnp.dot(o, wo_ref[d * H + hh],
                                  preferred_element_type=f32)
        h = attn + bias(r + 3, E)

        # ---------------- feed-forward + residual -----------------------
        ff = jnp.maximum(
            jnp.dot(h, ffw1_ref[d], preferred_element_type=f32) + bias(r + 4, F),
            0.0)
        ff = jnp.dot(ff, ffw2_ref[d], preferred_element_type=f32) + bias(r + 5, E)
        h = ff + h

    # ---------------- fused output heads (prob | action) -----------------
    hid = jnp.maximum(
        jnp.dot(h, head_w1_ref[...], preferred_element_type=f32)
        + bias(HEAD_B1_ROW, E), 0.0)
    out3 = (jnp.dot(hid, head_w2_ref[...], preferred_element_type=f32)
            + bias(HEAD_B2_ROW, 3))                        # (M, 3)
    col = jax.lax.broadcasted_iota(jnp.int32, out3.shape, 1)
    out_ref[...] = jnp.where(col >= 1, jnp.tanh(out3), out3)


# --------------------------- parameter packing -------------------------------
def pack_params(p):
    """Pack natural (PyTorch-layout) params into a few DMA-friendly slabs."""
    wq = p["attn_in_w"][:, :, 0:E] * SCALE          # fold 1/sqrt(hd) into Wq
    wk = p["attn_in_w"][:, :, E:2 * E]
    wv = p["attn_in_w"][:, :, 2 * E:3 * E]

    def per_head(w):                                 # (D,E,E) -> (D,H,E,HD)
        return w.reshape(DEPTH, E, H, HEAD_DIM).transpose(0, 2, 1, 3)

    wqkv = jnp.stack([per_head(wq), per_head(wk), per_head(wv)], axis=1)
    wqkv = wqkv.reshape(DEPTH * 3 * H, E, HEAD_DIM)  # [(d*3+proj)*H + h]
    wo = p["attn_out_w"].reshape(DEPTH, H, HEAD_DIM, E).reshape(
        DEPTH * H, HEAD_DIM, E)                      # [d*H + h]

    # fused output heads: first layer concat, second layer block-diagonal
    head_w1 = jnp.concatenate([p["p_w1"], p["a_w1"]], axis=1)        # (E, E)
    head_w2 = jnp.zeros((E, 3), jnp.float32)
    head_w2 = head_w2.at[:E // 2, 0:1].set(p["p_w2"])
    head_w2 = head_w2.at[E // 2:, 1:3].set(p["a_w2"])

    bq = p["attn_in_b"][:, 0:E] * SCALE              # fold scale into q bias
    bk = p["attn_in_b"][:, E:2 * E]
    bv = p["attn_in_b"][:, 2 * E:3 * E]

    bias = jnp.zeros((NUM_BIAS_ROWS, BIAS_W), jnp.float32)

    def put(bm, row, vec):
        return bm.at[row, :vec.shape[0]].set(vec)

    bias = put(bias, 0, p["emb_b1"])
    bias = put(bias, 1, p["emb_b2"])
    for d in range(DEPTH):
        r = 2 + 6 * d
        bias = put(bias, r + 0, bq[d])
        bias = put(bias, r + 1, bk[d])
        bias = put(bias, r + 2, bv[d])
        bias = put(bias, r + 3, p["attn_out_b"][d])
        bias = put(bias, r + 4, p["ff_b1"][d])
        bias = put(bias, r + 5, p["ff_b2"][d])
    bias = put(bias, HEAD_B1_ROW, jnp.concatenate([p["p_b1"], p["a_b1"]]))
    bias = put(bias, HEAD_B2_ROW, jnp.concatenate([p["p_b2"], p["a_b2"]]))

    return (p["emb_w1"], p["emb_w2"], wqkv, wo, p["ff_w1"], p["ff_w2"],
            head_w1, head_w2, bias)


# ------------------------------- wrapper ------------------------------------
@jax.jit
def dagger_forward(x, params):
    packed = pack_params(params)
    out = pl.pallas_call(
        dagger_kernel,
        out_shape=jax.ShapeDtypeStruct((B * N, 3), jnp.float32),
    )(x.reshape(B * N, 3), *packed)
    out = out.reshape(B, N, 3)
    return out[..., 0:1], out[..., 1:3]


# --------------------------- parameter init ---------------------------------
def init_params(key):
    ks = iter(jax.random.split(key, 32))

    def w(shape, scale=0.1):
        return scale * jax.random.normal(next(ks), shape, dtype=jnp.float32)

    return {
        "emb_w1": w((3, E // 2)), "emb_b1": w((E // 2,)),
        "emb_w2": w((E // 2, E)), "emb_b2": w((E,)),
        "attn_in_w": w((DEPTH, E, 3 * E)), "attn_in_b": w((DEPTH, 3 * E)),
        "attn_out_w": w((DEPTH, E, E)), "attn_out_b": w((DEPTH, E)),
        "ff_w1": w((DEPTH, E, F)), "ff_b1": w((DEPTH, F)),
        "ff_w2": w((DEPTH, F, E)), "ff_b2": w((DEPTH, E)),
        "p_w1": w((E, E // 2)), "p_b1": w((E // 2,)),
        "p_w2": w((E // 2, 1)), "p_b2": w((1,)),
        "a_w1": w((E, E // 2)), "a_b1": w((E // 2,)),
        "a_w2": w((E // 2, 2)), "a_b2": w((2,)),
    }


# --------------------------- pure-JAX reference ------------------------------
def ref_forward(x, p):
    h = jnp.maximum(x @ p["emb_w1"] + p["emb_b1"], 0.0) @ p["emb_w2"] + p["emb_b2"]
    for d in range(DEPTH):
        qkv = h @ p["attn_in_w"][d] + p["attn_in_b"][d]           # (B, N, 3E)
        q, k, v = qkv[..., :E], qkv[..., E:2 * E], qkv[..., 2 * E:]

        def split_heads(t):
            return t.reshape(B, N, H, HEAD_DIM).transpose(0, 2, 1, 3)

        qh, kh, vh = split_heads(q), split_heads(k), split_heads(v)
        s = jnp.einsum("bhnd,bhmd->bhnm", qh, kh) * SCALE
        att = jax.nn.softmax(s, axis=-1)
        o = jnp.einsum("bhnm,bhmd->bhnd", att, vh)
        o = o.transpose(0, 2, 1, 3).reshape(B, N, E)
        h = o @ p["attn_out_w"][d] + p["attn_out_b"][d]
        ff = (jnp.maximum(h @ p["ff_w1"][d] + p["ff_b1"][d], 0.0)
              @ p["ff_w2"][d] + p["ff_b2"][d])
        h = ff + h
    prob = jnp.maximum(h @ p["p_w1"] + p["p_b1"], 0.0) @ p["p_w2"] + p["p_b2"]
    act = jnp.tanh(jnp.maximum(h @ p["a_w1"] + p["a_b1"], 0.0) @ p["a_w2"] + p["a_b2"])
    return prob, act


# --------------------------------- main --------------------------------------
if __name__ == "__main__":
    key = jax.random.PRNGKey(0)
    k_x, k_p = jax.random.split(key)
    x = jax.random.normal(k_x, (B, N, 3), dtype=jnp.float32)
    params = init_params(k_p)

    p_out, a_out = dagger_forward(x, params)
    p_out = jax.block_until_ready(p_out)
    a_out = jax.block_until_ready(a_out)

    p_ref, a_ref = ref_forward(x, params)
    assert p_out.shape == (B, N, 1) and a_out.shape == (B, N, 2)
    # approx reciprocal in the in-kernel softmax -> slightly looser tolerance
    assert jnp.allclose(p_out, p_ref, atol=2e-3, rtol=2e-3)
    assert jnp.allclose(a_out, a_ref, atol=2e-3, rtol=2e-3)

    print("KERNEL_OK")
</pallas_src>

<mosaic_0001>
module attributes {stable_mosaic.version = 11 : i64} {
  func.func @dagger_kernel(%arg0: memref<32x3xf32, #tpu.memory_space<vmem>>, %arg1: memref<3x16xf32, #tpu.memory_space<vmem>>, %arg2: memref<16x32xf32, #tpu.memory_space<vmem>>, %arg3: memref<24x32x8xf32, #tpu.memory_space<vmem>>, %arg4: memref<8x8x32xf32, #tpu.memory_space<vmem>>, %arg5: memref<2x32x64xf32, #tpu.memory_space<vmem>>, %arg6: memref<2x64x32xf32, #tpu.memory_space<vmem>>, %arg7: memref<32x32xf32, #tpu.memory_space<vmem>>, %arg8: memref<32x3xf32, #tpu.memory_space<vmem>>, %arg9: memref<16x64xf32, #tpu.memory_space<vmem>>, %arg10: memref<32x3xf32, #tpu.memory_space<vmem>>) attributes {dimension_semantics = [], scalar_prefetch = 0 : i64, scratch_operands = 0 : i64, tpu.core_type = #tpu.core_type<tc>} {
    %c0 = arith.constant 0 : index
    %c0_0 = arith.constant 0 : index
    %0 = vector.load %arg0[%c0, %c0_0] : memref<32x3xf32, #tpu.memory_space<vmem>>, vector<32x3xf32>
    %c0_1 = arith.constant 0 : index
    %c0_2 = arith.constant 0 : index
    %1 = vector.load %arg1[%c0_1, %c0_2] : memref<3x16xf32, #tpu.memory_space<vmem>>, vector<3x16xf32>
    %cst = arith.constant dense<0.000000e+00> : vector<32x16xf32>
    %2 = tpu.matmul %0, %1, %cst {dimension_numbers = #tpu.dot_dimension_numbers<[1], [0], [0], [1], [0, 0, 1, 1], [], []>} : vector<32x3xf32>, vector<3x16xf32>, vector<32x16xf32> -> vector<32x16xf32>
    %c0_3 = arith.constant 0 : index
    %c0_4 = arith.constant 0 : index
    %3 = vector.load %arg9[%c0_3, %c0_4] : memref<16x64xf32, #tpu.memory_space<vmem>>, vector<1x16xf32>
    %4 = vector.broadcast %3 : vector<1x16xf32> to vector<32x16xf32>
    %5 = arith.addf %2, %4 : vector<32x16xf32>
    %cst_5 = arith.constant 0.000000e+00 : f32
    %6 = vector.broadcast %cst_5 : f32 to vector<32x16xf32>
    %7 = arith.maximumf %5, %6 : vector<32x16xf32>
    %c0_6 = arith.constant 0 : index
    %c0_7 = arith.constant 0 : index
    %8 = vector.load %arg2[%c0_6, %c0_7] : memref<16x32xf32, #tpu.memory_space<vmem>>, vector<16x32xf32>
    %cst_8 = arith.constant dense<0.000000e+00> : vector<32x32xf32>
    %9 = tpu.matmul %7, %8, %cst_8 {dimension_numbers = #tpu.dot_dimension_numbers<[1], [0], [0], [1], [0, 0, 1, 1], [], []>} : vector<32x16xf32>, vector<16x32xf32>, vector<32x32xf32> -> vector<32x32xf32>
    %c1 = arith.constant 1 : index
    %c0_9 = arith.constant 0 : index
    %10 = vector.load %arg9[%c1, %c0_9] : memref<16x64xf32, #tpu.memory_space<vmem>>, vector<1x32xf32>
    %11 = vector.broadcast %10 : vector<1x32xf32> to vector<32x32xf32>
    %12 = arith.addf %9, %11 : vector<32x32xf32>
    %cst_10 = arith.constant 0.000000e+00 : f32
    %13 = vector.broadcast %cst_10 : f32 to vector<32x32xf32>
    %c0_11 = arith.constant 0 : index
    %c0_12 = arith.constant 0 : index
    %c0_13 = arith.constant 0 : index
    %14 = vector.load %arg3[%c0_11, %c0_12, %c0_13] : memref<24x32x8xf32, #tpu.memory_space<vmem>>, vector<1x32x8xf32>
    %15 = vector.shape_cast %14 : vector<1x32x8xf32> to vector<32x8xf32>
    %cst_14 = arith.constant dense<0.000000e+00> : vector<32x8xf32>
    %16 = tpu.matmul %12, %15, %cst_14 {dimension_numbers = #tpu.dot_dimension_numbers<[1], [0], [0], [1], [0, 0, 1, 1], [], []>} : vector<32x32xf32>, vector<32x8xf32>, vector<32x8xf32> -> vector<32x8xf32>
    %c2 = arith.constant 2 : index
    %c0_15 = arith.constant 0 : index
    %17 = vector.load %arg9[%c2, %c0_15] : memref<16x64xf32, #tpu.memory_space<vmem>>, vector<1x8xf32>
    %18 = vector.broadcast %17 : vector<1x8xf32> to vector<32x8xf32>
    %19 = arith.addf %16, %18 : vector<32x8xf32>
    %c4 = arith.constant 4 : index
    %c0_16 = arith.constant 0 : index
    %c0_17 = arith.constant 0 : index
    %20 = vector.load %arg3[%c4, %c0_16, %c0_17] : memref<24x32x8xf32, #tpu.memory_space<vmem>>, vector<1x32x8xf32>
    %21 = vector.shape_cast %20 : vector<1x32x8xf32> to vector<32x8xf32>
    %cst_18 = arith.constant dense<0.000000e+00> : vector<32x8xf32>
    %22 = tpu.matmul %12, %21, %cst_18 {dimension_numbers = #tpu.dot_dimension_numbers<[1], [0], [0], [1], [0, 0, 1, 1], [], []>} : vector<32x32xf32>, vector<32x8xf32>, vector<32x8xf32> -> vector<32x8xf32>
    %c3 = arith.constant 3 : index
    %c0_19 = arith.constant 0 : index
    %23 = vector.load %arg9[%c3, %c0_19] : memref<16x64xf32, #tpu.memory_space<vmem>>, vector<1x8xf32>
    %24 = vector.broadcast %23 : vector<1x8xf32> to vector<32x8xf32>
    %25 = arith.addf %22, %24 : vector<32x8xf32>
    %c8 = arith.constant 8 : index
    %c0_20 = arith.constant 0 : index
    %c0_21 = arith.constant 0 : index
    %26 = vector.load %arg3[%c8, %c0_20, %c0_21] : memref<24x32x8xf32, #tpu.memory_space<vmem>>, vector<1x32x8xf32>
    %27 = vector.shape_cast %26 : vector<1x32x8xf32> to vector<32x8xf32>
    %cst_22 = arith.constant dense<0.000000e+00> : vector<32x8xf32>
    %28 = tpu.matmul %12, %27, %cst_22 {dimension_numbers = #tpu.dot_dimension_numbers<[1], [0], [0], [1], [0, 0, 1, 1], [], []>} : vector<32x32xf32>, vector<32x8xf32>, vector<32x8xf32> -> vector<32x8xf32>
    %c4_23 = arith.constant 4 : index
    %c0_24 = arith.constant 0 : index
    %29 = vector.load %arg9[%c4_23, %c0_24] : memref<16x64xf32, #tpu.memory_space<vmem>>, vector<1x8xf32>
    %30 = vector.broadcast %29 : vector<1x8xf32> to vector<32x8xf32>
    %31 = arith.addf %28, %30 : vector<32x8xf32>
    %32 = vector.extract_strided_slice %19 {offsets = [0, 0], sizes = [16, 8], strides = [1, 1]} : vector<32x8xf32> to vector<16x8xf32>
    %33 = vector.extract_strided_slice %25 {offsets = [0, 0], sizes = [16, 8], strides = [1, 1]} : vector<32x8xf32> to vector<16x8xf32>
    %cst_25 = arith.constant dense<0.000000e+00> : vector<16x16xf32>
    %34 = tpu.matmul %32, %33, %cst_25 {dimension_numbers = #tpu.dot_dimension_numbers<[1], [1], [0], [0], [0, 0, 1, 0], [], []>} : vector<16x8xf32>, vector<16x8xf32>, vector<16x16xf32> -> vector<16x16xf32>
    %cst_26 = arith.constant dense<0xFF800000> : vector<16xf32>
    %35 = vector.multi_reduction <maximumf>, %34, %cst_26 [1] : vector<16x16xf32> to vector<16xf32>
    %36 = vector.shape_cast %35 : vector<16xf32> to vector<16x1xf32>
    %37 = vector.broadcast %36 : vector<16x1xf32> to vector<16x16xf32>
    %38 = arith.subf %34, %37 : vector<16x16xf32>
    %39 = math.exp %38 : vector<16x16xf32>
    %cst_27 = arith.constant dense<0.000000e+00> : vector<16xf32>
    %40 = vector.multi_reduction <add>, %39, %cst_27 [1] : vector<16x16xf32> to vector<16xf32>
    %41 = vector.shape_cast %40 : vector<16xf32> to vector<16x1xf32>
    %42 = tpu.reciprocal %41 {approx = true} : vector<16x1xf32> -> vector<16x1xf32>
    %43 = vector.broadcast %42 : vector<16x1xf32> to vector<16x16xf32>
    %44 = arith.mulf %39, %43 : vector<16x16xf32>
    %45 = vector.extract_strided_slice %31 {offsets = [0, 0], sizes = [16, 8], strides = [1, 1]} : vector<32x8xf32> to vector<16x8xf32>
    %cst_28 = arith.constant dense<0.000000e+00> : vector<16x8xf32>
    %46 = tpu.matmul %44, %45, %cst_28 {dimension_numbers = #tpu.dot_dimension_numbers<[1], [0], [0], [1], [0, 0, 1, 1], [], []>} : vector<16x16xf32>, vector<16x8xf32>, vector<16x8xf32> -> vector<16x8xf32>
    %47 = vector.extract_strided_slice %19 {offsets = [16, 0], sizes = [16, 8], strides = [1, 1]} : vector<32x8xf32> to vector<16x8xf32>
    %48 = vector.extract_strided_slice %25 {offsets = [16, 0], sizes = [16, 8], strides = [1, 1]} : vector<32x8xf32> to vector<16x8xf32>
    %cst_29 = arith.constant dense<0.000000e+00> : vector<16x16xf32>
    %49 = tpu.matmul %47, %48, %cst_29 {dimension_numbers = #tpu.dot_dimension_numbers<[1], [1], [0], [0], [0, 0, 1, 0], [], []>} : vector<16x8xf32>, vector<16x8xf32>, vector<16x16xf32> -> vector<16x16xf32>
    %cst_30 = arith.constant dense<0xFF800000> : vector<16xf32>
    %50 = vector.multi_reduction <maximumf>, %49, %cst_30 [1] : vector<16x16xf32> to vector<16xf32>
    %51 = vector.shape_cast %50 : vector<16xf32> to vector<16x1xf32>
    %52 = vector.broadcast %51 : vector<16x1xf32> to vector<16x16xf32>
    %53 = arith.subf %49, %52 : vector<16x16xf32>
    %54 = math.exp %53 : vector<16x16xf32>
    %cst_31 = arith.constant dense<0.000000e+00> : vector<16xf32>
    %55 = vector.multi_reduction <add>, %54, %cst_31 [1] : vector<16x16xf32> to vector<16xf32>
    %56 = vector.shape_cast %55 : vector<16xf32> to vector<16x1xf32>
    %57 = tpu.reciprocal %56 {approx = true} : vector<16x1xf32> -> vector<16x1xf32>
    %58 = vector.broadcast %57 : vector<16x1xf32> to vector<16x16xf32>
    %59 = arith.mulf %54, %58 : vector<16x16xf32>
    %60 = vector.extract_strided_slice %31 {offsets = [16, 0], sizes = [16, 8], strides = [1, 1]} : vector<32x8xf32> to vector<16x8xf32>
    %cst_32 = arith.constant dense<0.000000e+00> : vector<16x8xf32>
    %61 = tpu.matmul %59, %60, %cst_32 {dimension_numbers = #tpu.dot_dimension_numbers<[1], [0], [0], [1], [0, 0, 1, 1], [], []>} : vector<16x16xf32>, vector<16x8xf32>, vector<16x8xf32> -> vector<16x8xf32>
    %62 = tpu.concatenate %46, %61 in 0 : vector<16x8xf32>, vector<16x8xf32> -> vector<32x8xf32>
    %c0_33 = arith.constant 0 : index
    %c0_34 = arith.constant 0 : index
    %c0_35 = arith.constant 0 : index
    %63 = vector.load %arg4[%c0_33, %c0_34, %c0_35] : memref<8x8x32xf32, #tpu.memory_space<vmem>>, vector<1x8x32xf32>
    %64 = vector.shape_cast %63 : vector<1x8x32xf32> to vector<8x32xf32>
    %cst_36 = arith.constant dense<0.000000e+00> : vector<32x32xf32>
    %65 = tpu.matmul %62, %64, %cst_36 {dimension_numbers = #tpu.dot_dimension_numbers<[1], [0], [0], [1], [0, 0, 1, 1], [], []>} : vector<32x8xf32>, vector<8x32xf32>, vector<32x32xf32> -> vector<32x32xf32>
    %66 = arith.addf %13, %65 : vector<32x32xf32>
    %c1_37 = arith.constant 1 : index
    %c0_38 = arith.constant 0 : index
    %c0_39 = arith.constant 0 : index
    %67 = vector.load %arg3[%c1_37, %c0_38, %c0_39] : memref<24x32x8xf32, #tpu.memory_space<vmem>>, vector<1x32x8xf32>
    %68 = vector.shape_cast %67 : vector<1x32x8xf32> to vector<32x8xf32>
    %cst_40 = arith.constant dense<0.000000e+00> : vector<32x8xf32>
    %69 = tpu.matmul %12, %68, %cst_40 {dimension_numbers = #tpu.dot_dimension_numbers<[1], [0], [0], [1], [0, 0, 1, 1], [], []>} : vector<32x32xf32>, vector<32x8xf32>, vector<32x8xf32> -> vector<32x8xf32>
    %c2_41 = arith.constant 2 : index
    %c8_42 = arith.constant 8 : index
    %70 = vector.load %arg9[%c2_41, %c8_42] : memref<16x64xf32, #tpu.memory_space<vmem>>, vector<1x8xf32>
    %71 = vector.broadcast %70 : vector<1x8xf32> to vector<32x8xf32>
    %72 = arith.addf %69, %71 : vector<32x8xf32>
    %c5 = arith.constant 5 : index
    %c0_43 = arith.constant 0 : index
    %c0_44 = arith.constant 0 : index
    %73 = vector.load %arg3[%c5, %c0_43, %c0_44] : memref<24x32x8xf32, #tpu.memory_space<vmem>>, vector<1x32x8xf32>
    %74 = vector.shape_cast %73 : vector<1x32x8xf32> to vector<32x8xf32>
    %cst_45 = arith.constant dense<0.000000e+00> : vector<32x8xf32>
    %75 = tpu.matmul %12, %74, %cst_45 {dimension_numbers = #tpu.dot_dimension_numbers<[1], [0], [0], [1], [0, 0, 1, 1], [], []>} : vector<32x32xf32>, vector<32x8xf32>, vector<32x8xf32> -> vector<32x8xf32>
    %c3_46 = arith.constant 3 : index
    %c8_47 = arith.constant 8 : index
    %76 = vector.load %arg9[%c3_46, %c8_47] : memref<16x64xf32, #tpu.memory_space<vmem>>, vector<1x8xf32>
    %77 = vector.broadcast %76 : vector<1x8xf32> to vector<32x8xf32>
    %78 = arith.addf %75, %77 : vector<32x8xf32>
    %c9 = arith.constant 9 : index
    %c0_48 = arith.constant 0 : index
    %c0_49 = arith.constant 0 : index
    %79 = vector.load %arg3[%c9, %c0_48, %c0_49] : memref<24x32x8xf32, #tpu.memory_space<vmem>>, vector<1x32x8xf32>
    %80 = vector.shape_cast %79 : vector<1x32x8xf32> to vector<32x8xf32>
    %cst_50 = arith.constant dense<0.000000e+00> : vector<32x8xf32>
    %81 = tpu.matmul %12, %80, %cst_50 {dimension_numbers = #tpu.dot_dimension_numbers<[1], [0], [0], [1], [0, 0, 1, 1], [], []>} : vector<32x32xf32>, vector<32x8xf32>, vector<32x8xf32> -> vector<32x8xf32>
    %c4_51 = arith.constant 4 : index
    %c8_52 = arith.constant 8 : index
    %82 = vector.load %arg9[%c4_51, %c8_52] : memref<16x64xf32, #tpu.memory_space<vmem>>, vector<1x8xf32>
    %83 = vector.broadcast %82 : vector<1x8xf32> to vector<32x8xf32>
    %84 = arith.addf %81, %83 : vector<32x8xf32>
    %85 = vector.extract_strided_slice %72 {offsets = [0, 0], sizes = [16, 8], strides = [1, 1]} : vector<32x8xf32> to vector<16x8xf32>
    %86 = vector.extract_strided_slice %78 {offsets = [0, 0], sizes = [16, 8], strides = [1, 1]} : vector<32x8xf32> to vector<16x8xf32>
    %cst_53 = arith.constant dense<0.000000e+00> : vector<16x16xf32>
    %87 = tpu.matmul %85, %86, %cst_53 {dimension_numbers = #tpu.dot_dimension_numbers<[1], [1], [0], [0], [0, 0, 1, 0], [], []>} : vector<16x8xf32>, vector<16x8xf32>, vector<16x16xf32> -> vector<16x16xf32>
    %cst_54 = arith.constant dense<0xFF800000> : vector<16xf32>
    %88 = vector.multi_reduction <maximumf>, %87, %cst_54 [1] : vector<16x16xf32> to vector<16xf32>
    %89 = vector.shape_cast %88 : vector<16xf32> to vector<16x1xf32>
    %90 = vector.broadcast %89 : vector<16x1xf32> to vector<16x16xf32>
    %91 = arith.subf %87, %90 : vector<16x16xf32>
    %92 = math.exp %91 : vector<16x16xf32>
    %cst_55 = arith.constant dense<0.000000e+00> : vector<16xf32>
    %93 = vector.multi_reduction <add>, %92, %cst_55 [1] : vector<16x16xf32> to vector<16xf32>
    %94 = vector.shape_cast %93 : vector<16xf32> to vector<16x1xf32>
    %95 = tpu.reciprocal %94 {approx = true} : vector<16x1xf32> -> vector<16x1xf32>
    %96 = vector.broadcast %95 : vector<16x1xf32> to vector<16x16xf32>
    %97 = arith.mulf %92, %96 : vector<16x16xf32>
    %98 = vector.extract_strided_slice %84 {offsets = [0, 0], sizes = [16, 8], strides = [1, 1]} : vector<32x8xf32> to vector<16x8xf32>
    %cst_56 = arith.constant dense<0.000000e+00> : vector<16x8xf32>
    %99 = tpu.matmul %97, %98, %cst_56 {dimension_numbers = #tpu.dot_dimension_numbers<[1], [0], [0], [1], [0, 0, 1, 1], [], []>} : vector<16x16xf32>, vector<16x8xf32>, vector<16x8xf32> -> vector<16x8xf32>
    %100 = vector.extract_strided_slice %72 {offsets = [16, 0], sizes = [16, 8], strides = [1, 1]} : vector<32x8xf32> to vector<16x8xf32>
    %101 = vector.extract_strided_slice %78 {offsets = [16, 0], sizes = [16, 8], strides = [1, 1]} : vector<32x8xf32> to vector<16x8xf32>
    %cst_57 = arith.constant dense<0.000000e+00> : vector<16x16xf32>
    %102 = tpu.matmul %100, %101, %cst_57 {dimension_numbers = #tpu.dot_dimension_numbers<[1], [1], [0], [0], [0, 0, 1, 0], [], []>} : vector<16x8xf32>, vector<16x8xf32>, vector<16x16xf32> -> vector<16x16xf32>
    %cst_58 = arith.constant dense<0xFF800000> : vector<16xf32>
    %103 = vector.multi_reduction <maximumf>, %102, %cst_58 [1] : vector<16x16xf32> to vector<16xf32>
    %104 = vector.shape_cast %103 : vector<16xf32> to vector<16x1xf32>
    %105 = vector.broadcast %104 : vector<16x1xf32> to vector<16x16xf32>
    %106 = arith.subf %102, %105 : vector<16x16xf32>
    %107 = math.exp %106 : vector<16x16xf32>
    %cst_59 = arith.constant dense<0.000000e+00> : vector<16xf32>
    %108 = vector.multi_reduction <add>, %107, %cst_59 [1] : vector<16x16xf32> to vector<16xf32>
    %109 = vector.shape_cast %108 : vector<16xf32> to vector<16x1xf32>
    %110 = tpu.reciprocal %109 {approx = true} : vector<16x1xf32> -> vector<16x1xf32>
    %111 = vector.broadcast %110 : vector<16x1xf32> to vector<16x16xf32>
    %112 = arith.mulf %107, %111 : vector<16x16xf32>
    %113 = vector.extract_strided_slice %84 {offsets = [16, 0], sizes = [16, 8], strides = [1, 1]} : vector<32x8xf32> to vector<16x8xf32>
    %cst_60 = arith.constant dense<0.000000e+00> : vector<16x8xf32>
    %114 = tpu.matmul %112, %113, %cst_60 {dimension_numbers = #tpu.dot_dimension_numbers<[1], [0], [0], [1], [0, 0, 1, 1], [], []>} : vector<16x16xf32>, vector<16x8xf32>, vector<16x8xf32> -> vector<16x8xf32>
    %115 = tpu.concatenate %99, %114 in 0 : vector<16x8xf32>, vector<16x8xf32> -> vector<32x8xf32>
    %c1_61 = arith.constant 1 : index
    %c0_62 = arith.constant 0 : index
    %c0_63 = arith.constant 0 : index
    %116 = vector.load %arg4[%c1_61, %c0_62, %c0_63] : memref<8x8x32xf32, #tpu.memory_space<vmem>>, vector<1x8x32xf32>
    %117 = vector.shape_cast %116 : vector<1x8x32xf32> to vector<8x32xf32>
    %cst_64 = arith.constant dense<0.000000e+00> : vector<32x32xf32>
    %118 = tpu.matmul %115, %117, %cst_64 {dimension_numbers = #tpu.dot_dimension_numbers<[1], [0], [0], [1], [0, 0, 1, 1], [], []>} : vector<32x8xf32>, vector<8x32xf32>, vector<32x32xf32> -> vector<32x32xf32>
    %119 = arith.addf %66, %118 : vector<32x32xf32>
    %c2_65 = arith.constant 2 : index
    %c0_66 = arith.constant 0 : index
    %c0_67 = arith.constant 0 : index
    %120 = vector.load %arg3[%c2_65, %c0_66, %c0_67] : memref<24x32x8xf32, #tpu.memory_space<vmem>>, vector<1x32x8xf32>
    %121 = vector.shape_cast %120 : vector<1x32x8xf32> to vector<32x8xf32>
    %cst_68 = arith.constant dense<0.000000e+00> : vector<32x8xf32>
    %122 = tpu.matmul %12, %121, %cst_68 {dimension_numbers = #tpu.dot_dimension_numbers<[1], [0], [0], [1], [0, 0, 1, 1], [], []>} : vector<32x32xf32>, vector<32x8xf32>, vector<32x8xf32> -> vector<32x8xf32>
    %c2_69 = arith.constant 2 : index
    %c16 = arith.constant 16 : index
    %123 = vector.load %arg9[%c2_69, %c16] : memref<16x64xf32, #tpu.memory_space<vmem>>, vector<1x8xf32>
    %124 = vector.broadcast %123 : vector<1x8xf32> to vector<32x8xf32>
    %125 = arith.addf %122, %124 : vector<32x8xf32>
    %c6 = arith.constant 6 : index
    %c0_70 = arith.constant 0 : index
    %c0_71 = arith.constant 0 : index
    %126 = vector.load %arg3[%c6, %c0_70, %c0_71] : memref<24x32x8xf32, #tpu.memory_space<vmem>>, vector<1x32x8xf32>
    %127 = vector.shape_cast %126 : vector<1x32x8xf32> to vector<32x8xf32>
    %cst_72 = arith.constant dense<0.000000e+00> : vector<32x8xf32>
    %128 = tpu.matmul %12, %127, %cst_72 {dimension_numbers = #tpu.dot_dimension_numbers<[1], [0], [0], [1], [0, 0, 1, 1], [], []>} : vector<32x32xf32>, vector<32x8xf32>, vector<32x8xf32> -> vector<32x8xf32>
    %c3_73 = arith.constant 3 : index
    %c16_74 = arith.constant 16 : index
    %129 = vector.load %arg9[%c3_73, %c16_74] : memref<16x64xf32, #tpu.memory_space<vmem>>, vector<1x8xf32>
    %130 = vector.broadcast %129 : vector<1x8xf32> to vector<32x8xf32>
    %131 = arith.addf %128, %130 : vector<32x8xf32>
    %c10 = arith.constant 10 : index
    %c0_75 = arith.constant 0 : index
    %c0_76 = arith.constant 0 : index
    %132 = vector.load %arg3[%c10, %c0_75, %c0_76] : memref<24x32x8xf32, #tpu.memory_space<vmem>>, vector<1x32x8xf32>
    %133 = vector.shape_cast %132 : vector<1x32x8xf32> to vector<32x8xf32>
    %cst_77 = arith.constant dense<0.000000e+00> : vector<32x8xf32>
    %134 = tpu.matmul %12, %133, %cst_77 {dimension_numbers = #tpu.dot_dimension_numbers<[1], [0], [0], [1], [0, 0, 1, 1], [], []>} : vector<32x32xf32>, vector<32x8xf32>, vector<32x8xf32> -> vector<32x8xf32>
    %c4_78 = arith.constant 4 : index
    %c16_79 = arith.constant 16 : index
    %135 = vector.load %arg9[%c4_78, %c16_79] : memref<16x64xf32, #tpu.memory_space<vmem>>, vector<1x8xf32>
    %136 = vector.broadcast %135 : vector<1x8xf32> to vector<32x8xf32>
    %137 = arith.addf %134, %136 : vector<32x8xf32>
    %138 = vector.extract_strided_slice %125 {offsets = [0, 0], sizes = [16, 8], strides = [1, 1]} : vector<32x8xf32> to vector<16x8xf32>
    %139 = vector.extract_strided_slice %131 {offsets = [0, 0], sizes = [16, 8], strides = [1, 1]} : vector<32x8xf32> to vector<16x8xf32>
    %cst_80 = arith.constant dense<0.000000e+00> : vector<16x16xf32>
    %140 = tpu.matmul %138, %139, %cst_80 {dimension_numbers = #tpu.dot_dimension_numbers<[1], [1], [0], [0], [0, 0, 1, 0], [], []>} : vector<16x8xf32>, vector<16x8xf32>, vector<16x16xf32> -> vector<16x16xf32>
    %cst_81 = arith.constant dense<0xFF800000> : vector<16xf32>
    %141 = vector.multi_reduction <maximumf>, %140, %cst_81 [1] : vector<16x16xf32> to vector<16xf32>
    %142 = vector.shape_cast %141 : vector<16xf32> to vector<16x1xf32>
    %143 = vector.broadcast %142 : vector<16x1xf32> to vector<16x16xf32>
    %144 = arith.subf %140, %143 : vector<16x16xf32>
    %145 = math.exp %144 : vector<16x16xf32>
    %cst_82 = arith.constant dense<0.000000e+00> : vector<16xf32>
    %146 = vector.multi_reduction <add>, %145, %cst_82 [1] : vector<16x16xf32> to vector<16xf32>
    %147 = vector.shape_cast %146 : vector<16xf32> to vector<16x1xf32>
    %148 = tpu.reciprocal %147 {approx = true} : vector<16x1xf32> -> vector<16x1xf32>
    %149 = vector.broadcast %148 : vector<16x1xf32> to vector<16x16xf32>
    %150 = arith.mulf %145, %149 : vector<16x16xf32>
    %151 = vector.extract_strided_slice %137 {offsets = [0, 0], sizes = [16, 8], strides = [1, 1]} : vector<32x8xf32> to vector<16x8xf32>
    %cst_83 = arith.constant dense<0.000000e+00> : vector<16x8xf32>
    %152 = tpu.matmul %150, %151, %cst_83 {dimension_numbers = #tpu.dot_dimension_numbers<[1], [0], [0], [1], [0, 0, 1, 1], [], []>} : vector<16x16xf32>, vector<16x8xf32>, vector<16x8xf32> -> vector<16x8xf32>
    %153 = vector.extract_strided_slice %125 {offsets = [16, 0], sizes = [16, 8], strides = [1, 1]} : vector<32x8xf32> to vector<16x8xf32>
    %154 = vector.extract_strided_slice %131 {offsets = [16, 0], sizes = [16, 8], strides = [1, 1]} : vector<32x8xf32> to vector<16x8xf32>
    %cst_84 = arith.constant dense<0.000000e+00> : vector<16x16xf32>
    %155 = tpu.matmul %153, %154, %cst_84 {dimension_numbers = #tpu.dot_dimension_numbers<[1], [1], [0], [0], [0, 0, 1, 0], [], []>} : vector<16x8xf32>, vector<16x8xf32>, vector<16x16xf32> -> vector<16x16xf32>
    %cst_85 = arith.constant dense<0xFF800000> : vector<16xf32>
    %156 = vector.multi_reduction <maximumf>, %155, %cst_85 [1] : vector<16x16xf32> to vector<16xf32>
    %157 = vector.shape_cast %156 : vector<16xf32> to vector<16x1xf32>
    %158 = vector.broadcast %157 : vector<16x1xf32> to vector<16x16xf32>
    %159 = arith.subf %155, %158 : vector<16x16xf32>
    %160 = math.exp %159 : vector<16x16xf32>
    %cst_86 = arith.constant dense<0.000000e+00> : vector<16xf32>
    %161 = vector.multi_reduction <add>, %160, %cst_86 [1] : vector<16x16xf32> to vector<16xf32>
    %162 = vector.shape_cast %161 : vector<16xf32> to vector<16x1xf32>
    %163 = tpu.reciprocal %162 {approx = true} : vector<16x1xf32> -> vector<16x1xf32>
    %164 = vector.broadcast %163 : vector<16x1xf32> to vector<16x16xf32>
    %165 = arith.mulf %160, %164 : vector<16x16xf32>
    %166 = vector.extract_strided_slice %137 {offsets = [16, 0], sizes = [16, 8], strides = [1, 1]} : vector<32x8xf32> to vector<16x8xf32>
    %cst_87 = arith.constant dense<0.000000e+00> : vector<16x8xf32>
    %167 = tpu.matmul %165, %166, %cst_87 {dimension_numbers = #tpu.dot_dimension_numbers<[1], [0], [0], [1], [0, 0, 1, 1], [], []>} : vector<16x16xf32>, vector<16x8xf32>, vector<16x8xf32> -> vector<16x8xf32>
    %168 = tpu.concatenate %152, %167 in 0 : vector<16x8xf32>, vector<16x8xf32> -> vector<32x8xf32>
    %c2_88 = arith.constant 2 : index
    %c0_89 = arith.constant 0 : index
    %c0_90 = arith.constant 0 : index
    %169 = vector.load %arg4[%c2_88, %c0_89, %c0_90] : memref<8x8x32xf32, #tpu.memory_space<vmem>>, vector<1x8x32xf32>
    %170 = vector.shape_cast %169 : vector<1x8x32xf32> to vector<8x32xf32>
    %cst_91 = arith.constant dense<0.000000e+00> : vector<32x32xf32>
    %171 = tpu.matmul %168, %170, %cst_91 {dimension_numbers = #tpu.dot_dimension_numbers<[1], [0], [0], [1], [0, 0, 1, 1], [], []>} : vector<32x8xf32>, vector<8x32xf32>, vector<32x32xf32> -> vector<32x32xf32>
    %172 = arith.addf %119, %171 : vector<32x32xf32>
    %c3_92 = arith.constant 3 : index
    %c0_93 = arith.constant 0 : index
    %c0_94 = arith.constant 0 : index
    %173 = vector.load %arg3[%c3_92, %c0_93, %c0_94] : memref<24x32x8xf32, #tpu.memory_space<vmem>>, vector<1x32x8xf32>
    %174 = vector.shape_cast %173 : vector<1x32x8xf32> to vector<32x8xf32>
    %cst_95 = arith.constant dense<0.000000e+00> : vector<32x8xf32>
    %175 = tpu.matmul %12, %174, %cst_95 {dimension_numbers = #tpu.dot_dimension_numbers<[1], [0], [0], [1], [0, 0, 1, 1], [], []>} : vector<32x32xf32>, vector<32x8xf32>, vector<32x8xf32> -> vector<32x8xf32>
    %c2_96 = arith.constant 2 : index
    %c24 = arith.constant 24 : index
    %176 = vector.load %arg9[%c2_96, %c24] : memref<16x64xf32, #tpu.memory_space<vmem>>, vector<1x8xf32>
    %177 = vector.broadcast %176 : vector<1x8xf32> to vector<32x8xf32>
    %178 = arith.addf %175, %177 : vector<32x8xf32>
    %c7 = arith.constant 7 : index
    %c0_97 = arith.constant 0 : index
    %c0_98 = arith.constant 0 : index
    %179 = vector.load %arg3[%c7, %c0_97, %c0_98] : memref<24x32x8xf32, #tpu.memory_space<vmem>>, vector<1x32x8xf32>
    %180 = vector.shape_cast %179 : vector<1x32x8xf32> to vector<32x8xf32>
    %cst_99 = arith.constant dense<0.000000e+00> : vector<32x8xf32>
    %181 = tpu.matmul %12, %180, %cst_99 {dimension_numbers = #tpu.dot_dimension_numbers<[1], [0], [0], [1], [0, 0, 1, 1], [], []>} : vector<32x32xf32>, vector<32x8xf32>, vector<32x8xf32> -> vector<32x8xf32>
    %c3_100 = arith.constant 3 : index
    %c24_101 = arith.constant 24 : index
    %182 = vector.load %arg9[%c3_100, %c24_101] : memref<16x64xf32, #tpu.memory_space<vmem>>, vector<1x8xf32>
    %183 = vector.broadcast %182 : vector<1x8xf32> to vector<32x8xf32>
    %184 = arith.addf %181, %183 : vector<32x8xf32>
    %c11 = arith.constant 11 : index
    %c0_102 = arith.constant 0 : index
    %c0_103 = arith.constant 0 : index
    %185 = vector.load %arg3[%c11, %c0_102, %c0_103] : memref<24x32x8xf32, #tpu.memory_space<vmem>>, vector<1x32x8xf32>
    %186 = vector.shape_cast %185 : vector<1x32x8xf32> to vector<32x8xf32>
    %cst_104 = arith.constant dense<0.000000e+00> : vector<32x8xf32>
    %187 = tpu.matmul %12, %186, %cst_104 {dimension_numbers = #tpu.dot_dimension_numbers<[1], [0], [0], [1], [0, 0, 1, 1], [], []>} : vector<32x32xf32>, vector<32x8xf32>, vector<32x8xf32> -> vector<32x8xf32>
    %c4_105 = arith.constant 4 : index
    %c24_106 = arith.constant 24 : index
    %188 = vector.load %arg9[%c4_105, %c24_106] : memref<16x64xf32, #tpu.memory_space<vmem>>, vector<1x8xf32>
    %189 = vector.broadcast %188 : vector<1x8xf32> to vector<32x8xf32>
    %190 = arith.addf %187, %189 : vector<32x8xf32>
    %191 = vector.extract_strided_slice %178 {offsets = [0, 0], sizes = [16, 8], strides = [1, 1]} : vector<32x8xf32> to vector<16x8xf32>
    %192 = vector.extract_strided_slice %184 {offsets = [0, 0], sizes = [16, 8], strides = [1, 1]} : vector<32x8xf32> to vector<16x8xf32>
    %cst_107 = arith.constant dense<0.000000e+00> : vector<16x16xf32>
    %193 = tpu.matmul %191, %192, %cst_107 {dimension_numbers = #tpu.dot_dimension_numbers<[1], [1], [0], [0], [0, 0, 1, 0], [], []>} : vector<16x8xf32>, vector<16x8xf32>, vector<16x16xf32> -> vector<16x16xf32>
    %cst_108 = arith.constant dense<0xFF800000> : vector<16xf32>
    %194 = vector.multi_reduction <maximumf>, %193, %cst_108 [1] : vector<16x16xf32> to vector<16xf32>
    %195 = vector.shape_cast %194 : vector<16xf32> to vector<16x1xf32>
    %196 = vector.broadcast %195 : vector<16x1xf32> to vector<16x16xf32>
    %197 = arith.subf %193, %196 : vector<16x16xf32>
    %198 = math.exp %197 : vector<16x16xf32>
    %cst_109 = arith.constant dense<0.000000e+00> : vector<16xf32>
    %199 = vector.multi_reduction <add>, %198, %cst_109 [1] : vector<16x16xf32> to vector<16xf32>
    %200 = vector.shape_cast %199 : vector<16xf32> to vector<16x1xf32>
    %201 = tpu.reciprocal %200 {approx = true} : vector<16x1xf32> -> vector<16x1xf32>
    %202 = vector.broadcast %201 : vector<16x1xf32> to vector<16x16xf32>
    %203 = arith.mulf %198, %202 : vector<16x16xf32>
    %204 = vector.extract_strided_slice %190 {offsets = [0, 0], sizes = [16, 8], strides = [1, 1]} : vector<32x8xf32> to vector<16x8xf32>
    %cst_110 = arith.constant dense<0.000000e+00> : vector<16x8xf32>
    %205 = tpu.matmul %203, %204, %cst_110 {dimension_numbers = #tpu.dot_dimension_numbers<[1], [0], [0], [1], [0, 0, 1, 1], [], []>} : vector<16x16xf32>, vector<16x8xf32>, vector<16x8xf32> -> vector<16x8xf32>
    %206 = vector.extract_strided_slice %178 {offsets = [16, 0], sizes = [16, 8], strides = [1, 1]} : vector<32x8xf32> to vector<16x8xf32>
    %207 = vector.extract_strided_slice %184 {offsets = [16, 0], sizes = [16, 8], strides = [1, 1]} : vector<32x8xf32> to vector<16x8xf32>
    %cst_111 = arith.constant dense<0.000000e+00> : vector<16x16xf32>
    %208 = tpu.matmul %206, %207, %cst_111 {dimension_numbers = #tpu.dot_dimension_numbers<[1], [1], [0], [0], [0, 0, 1, 0], [], []>} : vector<16x8xf32>, vector<16x8xf32>, vector<16x16xf32> -> vector<16x16xf32>
    %cst_112 = arith.constant dense<0xFF800000> : vector<16xf32>
    %209 = vector.multi_reduction <maximumf>, %208, %cst_112 [1] : vector<16x16xf32> to vector<16xf32>
    %210 = vector.shape_cast %209 : vector<16xf32> to vector<16x1xf32>
    %211 = vector.broadcast %210 : vector<16x1xf32> to vector<16x16xf32>
    %212 = arith.subf %208, %211 : vector<16x16xf32>
    %213 = math.exp %212 : vector<16x16xf32>
    %cst_113 = arith.constant dense<0.000000e+00> : vector<16xf32>
    %214 = vector.multi_reduction <add>, %213, %cst_113 [1] : vector<16x16xf32> to vector<16xf32>
    %215 = vector.shape_cast %214 : vector<16xf32> to vector<16x1xf32>
    %216 = tpu.reciprocal %215 {approx = true} : vector<16x1xf32> -> vector<16x1xf32>
    %217 = vector.broadcast %216 : vector<16x1xf32> to vector<16x16xf32>
    %218 = arith.mulf %213, %217 : vector<16x16xf32>
    %219 = vector.extract_strided_slice %190 {offsets = [16, 0], sizes = [16, 8], strides = [1, 1]} : vector<32x8xf32> to vector<16x8xf32>
    %cst_114 = arith.constant dense<0.000000e+00> : vector<16x8xf32>
    %220 = tpu.matmul %218, %219, %cst_114 {dimension_numbers = #tpu.dot_dimension_numbers<[1], [0], [0], [1], [0, 0, 1, 1], [], []>} : vector<16x16xf32>, vector<16x8xf32>, vector<16x8xf32> -> vector<16x8xf32>
    %221 = tpu.concatenate %205, %220 in 0 : vector<16x8xf32>, vector<16x8xf32> -> vector<32x8xf32>
    %c3_115 = arith.constant 3 : index
    %c0_116 = arith.constant 0 : index
    %c0_117 = arith.constant 0 : index
    %222 = vector.load %arg4[%c3_115, %c0_116, %c0_117] : memref<8x8x32xf32, #tpu.memory_space<vmem>>, vector<1x8x32xf32>
    %223 = vector.shape_cast %222 : vector<1x8x32xf32> to vector<8x32xf32>
    %cst_118 = arith.constant dense<0.000000e+00> : vector<32x32xf32>
    %224 = tpu.matmul %221, %223, %cst_118 {dimension_numbers = #tpu.dot_dimension_numbers<[1], [0], [0], [1], [0, 0, 1, 1], [], []>} : vector<32x8xf32>, vector<8x32xf32>, vector<32x32xf32> -> vector<32x32xf32>
    %225 = arith.addf %172, %224 : vector<32x32xf32>
    %c5_119 = arith.constant 5 : index
    %c0_120 = arith.constant 0 : index
    %226 = vector.load %arg9[%c5_119, %c0_120] : memref<16x64xf32, #tpu.memory_space<vmem>>, vector<1x32xf32>
    %227 = vector.broadcast %226 : vector<1x32xf32> to vector<32x32xf32>
    %228 = arith.addf %225, %227 : vector<32x32xf32>
    %c0_121 = arith.constant 0 : index
    %c0_122 = arith.constant 0 : index
    %c0_123 = arith.constant 0 : index
    %229 = vector.load %arg5[%c0_121, %c0_122, %c0_123] : memref<2x32x64xf32, #tpu.memory_space<vmem>>, vector<1x32x64xf32>
    %230 = vector.shape_cast %229 : vector<1x32x64xf32> to vector<32x64xf32>
    %cst_124 = arith.constant dense<0.000000e+00> : vector<32x64xf32>
    %231 = tpu.matmul %228, %230, %cst_124 {dimension_numbers = #tpu.dot_dimension_numbers<[1], [0], [0], [1], [0, 0, 1, 1], [], []>} : vector<32x32xf32>, vector<32x64xf32>, vector<32x64xf32> -> vector<32x64xf32>
    %c6_125 = arith.constant 6 : index
    %c0_126 = arith.constant 0 : index
    %232 = vector.load %arg9[%c6_125, %c0_126] : memref<16x64xf32, #tpu.memory_space<vmem>>, vector<1x64xf32>
    %233 = vector.broadcast %232 : vector<1x64xf32> to vector<32x64xf32>
    %234 = arith.addf %231, %233 : vector<32x64xf32>
    %cst_127 = arith.constant 0.000000e+00 : f32
    %235 = vector.broadcast %cst_127 : f32 to vector<32x64xf32>
    %236 = arith.maximumf %234, %235 : vector<32x64xf32>
    %c0_128 = arith.constant 0 : index
    %c0_129 = arith.constant 0 : index
    %c0_130 = arith.constant 0 : index
    %237 = vector.load %arg6[%c0_128, %c0_129, %c0_130] : memref<2x64x32xf32, #tpu.memory_space<vmem>>, vector<1x64x32xf32>
    %238 = vector.shape_cast %237 : vector<1x64x32xf32> to vector<64x32xf32>
    %cst_131 = arith.constant dense<0.000000e+00> : vector<32x32xf32>
    %239 = tpu.matmul %236, %238, %cst_131 {dimension_numbers = #tpu.dot_dimension_numbers<[1], [0], [0], [1], [0, 0, 1, 1], [], []>} : vector<32x64xf32>, vector<64x32xf32>, vector<32x32xf32> -> vector<32x32xf32>
    %c7_132 = arith.constant 7 : index
    %c0_133 = arith.constant 0 : index
    %240 = vector.load %arg9[%c7_132, %c0_133] : memref<16x64xf32, #tpu.memory_space<vmem>>, vector<1x32xf32>
    %241 = vector.broadcast %240 : vector<1x32xf32> to vector<32x32xf32>
    %242 = arith.addf %239, %241 : vector<32x32xf32>
    %243 = arith.addf %242, %228 : vector<32x32xf32>
    %cst_134 = arith.constant 0.000000e+00 : f32
    %244 = vector.broadcast %cst_134 : f32 to vector<32x32xf32>
    %c12 = arith.constant 12 : index
    %c0_135 = arith.constant 0 : index
    %c0_136 = arith.constant 0 : index
    %245 = vector.load %arg3[%c12, %c0_135, %c0_136] : memref<24x32x8xf32, #tpu.memory_space<vmem>>, vector<1x32x8xf32>
    %246 = vector.shape_cast %245 : vector<1x32x8xf32> to vector<32x8xf32>
    %cst_137 = arith.constant dense<0.000000e+00> : vector<32x8xf32>
    %247 = tpu.matmul %243, %246, %cst_137 {dimension_numbers = #tpu.dot_dimension_numbers<[1], [0], [0], [1], [0, 0, 1, 1], [], []>} : vector<32x32xf32>, vector<32x8xf32>, vector<32x8xf32> -> vector<32x8xf32>
    %c8_138 = arith.constant 8 : index
    %c0_139 = arith.constant 0 : index
    %248 = vector.load %arg9[%c8_138, %c0_139] : memref<16x64xf32, #tpu.memory_space<vmem>>, vector<1x8xf32>
    %249 = vector.broadcast %248 : vector<1x8xf32> to vector<32x8xf32>
    %250 = arith.addf %247, %249 : vector<32x8xf32>
    %c16_140 = arith.constant 16 : index
    %c0_141 = arith.constant 0 : index
    %c0_142 = arith.constant 0 : index
    %251 = vector.load %arg3[%c16_140, %c0_141, %c0_142] : memref<24x32x8xf32, #tpu.memory_space<vmem>>, vector<1x32x8xf32>
    %252 = vector.shape_cast %251 : vector<1x32x8xf32> to vector<32x8xf32>
    %cst_143 = arith.constant dense<0.000000e+00> : vector<32x8xf32>
    %253 = tpu.matmul %243, %252, %cst_143 {dimension_numbers = #tpu.dot_dimension_numbers<[1], [0], [0], [1], [0, 0, 1, 1], [], []>} : vector<32x32xf32>, vector<32x8xf32>, vector<32x8xf32> -> vector<32x8xf32>
    %c9_144 = arith.constant 9 : index
    %c0_145 = arith.constant 0 : index
    %254 = vector.load %arg9[%c9_144, %c0_145] : memref<16x64xf32, #tpu.memory_space<vmem>>, vector<1x8xf32>
    %255 = vector.broadcast %254 : vector<1x8xf32> to vector<32x8xf32>
    %256 = arith.addf %253, %255 : vector<32x8xf32>
    %c20 = arith.constant 20 : index
    %c0_146 = arith.constant 0 : index
    %c0_147 = arith.constant 0 : index
    %257 = vector.load %arg3[%c20, %c0_146, %c0_147] : memref<24x32x8xf32, #tpu.memory_space<vmem>>, vector<1x32x8xf32>
    %258 = vector.shape_cast %257 : vector<1x32x8xf32> to vector<32x8xf32>
    %cst_148 = arith.constant dense<0.000000e+00> : vector<32x8xf32>
    %259 = tpu.matmul %243, %258, %cst_148 {dimension_numbers = #tpu.dot_dimension_numbers<[1], [0], [0], [1], [0, 0, 1, 1], [], []>} : vector<32x32xf32>, vector<32x8xf32>, vector<32x8xf32> -> vector<32x8xf32>
    %c10_149 = arith.constant 10 : index
    %c0_150 = arith.constant 0 : index
    %260 = vector.load %arg9[%c10_149, %c0_150] : memref<16x64xf32, #tpu.memory_space<vmem>>, vector<1x8xf32>
    %261 = vector.broadcast %260 : vector<1x8xf32> to vector<32x8xf32>
    %262 = arith.addf %259, %261 : vector<32x8xf32>
    %263 = vector.extract_strided_slice %250 {offsets = [0, 0], sizes = [16, 8], strides = [1, 1]} : vector<32x8xf32> to vector<16x8xf32>
    %264 = vector.extract_strided_slice %256 {offsets = [0, 0], sizes = [16, 8], strides = [1, 1]} : vector<32x8xf32> to vector<16x8xf32>
    %cst_151 = arith.constant dense<0.000000e+00> : vector<16x16xf32>
    %265 = tpu.matmul %263, %264, %cst_151 {dimension_numbers = #tpu.dot_dimension_numbers<[1], [1], [0], [0], [0, 0, 1, 0], [], []>} : vector<16x8xf32>, vector<16x8xf32>, vector<16x16xf32> -> vector<16x16xf32>
    %cst_152 = arith.constant dense<0xFF800000> : vector<16xf32>
    %266 = vector.multi_reduction <maximumf>, %265, %cst_152 [1] : vector<16x16xf32> to vector<16xf32>
    %267 = vector.shape_cast %266 : vector<16xf32> to vector<16x1xf32>
    %268 = vector.broadcast %267 : vector<16x1xf32> to vector<16x16xf32>
    %269 = arith.subf %265, %268 : vector<16x16xf32>
    %270 = math.exp %269 : vector<16x16xf32>
    %cst_153 = arith.constant dense<0.000000e+00> : vector<16xf32>
    %271 = vector.multi_reduction <add>, %270, %cst_153 [1] : vector<16x16xf32> to vector<16xf32>
    %272 = vector.shape_cast %271 : vector<16xf32> to vector<16x1xf32>
    %273 = tpu.reciprocal %272 {approx = true} : vector<16x1xf32> -> vector<16x1xf32>
    %274 = vector.broadcast %273 : vector<16x1xf32> to vector<16x16xf32>
    %275 = arith.mulf %270, %274 : vector<16x16xf32>
    %276 = vector.extract_strided_slice %262 {offsets = [0, 0], sizes = [16, 8], strides = [1, 1]} : vector<32x8xf32> to vector<16x8xf32>
    %cst_154 = arith.constant dense<0.000000e+00> : vector<16x8xf32>
    %277 = tpu.matmul %275, %276, %cst_154 {dimension_numbers = #tpu.dot_dimension_numbers<[1], [0], [0], [1], [0, 0, 1, 1], [], []>} : vector<16x16xf32>, vector<16x8xf32>, vector<16x8xf32> -> vector<16x8xf32>
    %278 = vector.extract_strided_slice %250 {offsets = [16, 0], sizes = [16, 8], strides = [1, 1]} : vector<32x8xf32> to vector<16x8xf32>
    %279 = vector.extract_strided_slice %256 {offsets = [16, 0], sizes = [16, 8], strides = [1, 1]} : vector<32x8xf32> to vector<16x8xf32>
    %cst_155 = arith.constant dense<0.000000e+00> : vector<16x16xf32>
    %280 = tpu.matmul %278, %279, %cst_155 {dimension_numbers = #tpu.dot_dimension_numbers<[1], [1], [0], [0], [0, 0, 1, 0], [], []>} : vector<16x8xf32>, vector<16x8xf32>, vector<16x16xf32> -> vector<16x16xf32>
    %cst_156 = arith.constant dense<0xFF800000> : vector<16xf32>
    %281 = vector.multi_reduction <maximumf>, %280, %cst_156 [1] : vector<16x16xf32> to vector<16xf32>
    %282 = vector.shape_cast %281 : vector<16xf32> to vector<16x1xf32>
    %283 = vector.broadcast %282 : vector<16x1xf32> to vector<16x16xf32>
    %284 = arith.subf %280, %283 : vector<16x16xf32>
    %285 = math.exp %284 : vector<16x16xf32>
    %cst_157 = arith.constant dense<0.000000e+00> : vector<16xf32>
    %286 = vector.multi_reduction <add>, %285, %cst_157 [1] : vector<16x16xf32> to vector<16xf32>
    %287 = vector.shape_cast %286 : vector<16xf32> to vector<16x1xf32>
    %288 = tpu.reciprocal %287 {approx = true} : vector<16x1xf32> -> vector<16x1xf32>
    %289 = vector.broadcast %288 : vector<16x1xf32> to vector<16x16xf32>
    %290 = arith.mulf %285, %289 : vector<16x16xf32>
    %291 = vector.extract_strided_slice %262 {offsets = [16, 0], sizes = [16, 8], strides = [1, 1]} : vector<32x8xf32> to vector<16x8xf32>
    %cst_158 = arith.constant dense<0.000000e+00> : vector<16x8xf32>
    %292 = tpu.matmul %290, %291, %cst_158 {dimension_numbers = #tpu.dot_dimension_numbers<[1], [0], [0], [1], [0, 0, 1, 1], [], []>} : vector<16x16xf32>, vector<16x8xf32>, vector<16x8xf32> -> vector<16x8xf32>
    %293 = tpu.concatenate %277, %292 in 0 : vector<16x8xf32>, vector<16x8xf32> -> vector<32x8xf32>
    %c4_159 = arith.constant 4 : index
    %c0_160 = arith.constant 0 : index
    %c0_161 = arith.constant 0 : index
    %294 = vector.load %arg4[%c4_159, %c0_160, %c0_161] : memref<8x8x32xf32, #tpu.memory_space<vmem>>, vector<1x8x32xf32>
    %295 = vector.shape_cast %294 : vector<1x8x32xf32> to vector<8x32xf32>
    %cst_162 = arith.constant dense<0.000000e+00> : vector<32x32xf32>
    %296 = tpu.matmul %293, %295, %cst_162 {dimension_numbers = #tpu.dot_dimension_numbers<[1], [0], [0], [1], [0, 0, 1, 1], [], []>} : vector<32x8xf32>, vector<8x32xf32>, vector<32x32xf32> -> vector<32x32xf32>
    %297 = arith.addf %244, %296 : vector<32x32xf32>
    %c13 = arith.constant 13 : index
    %c0_163 = arith.constant 0 : index
    %c0_164 = arith.constant 0 : index
    %298 = vector.load %arg3[%c13, %c0_163, %c0_164] : memref<24x32x8xf32, #tpu.memory_space<vmem>>, vector<1x32x8xf32>
    %299 = vector.shape_cast %298 : vector<1x32x8xf32> to vector<32x8xf32>
    %cst_165 = arith.constant dense<0.000000e+00> : vector<32x8xf32>
    %300 = tpu.matmul %243, %299, %cst_165 {dimension_numbers = #tpu.dot_dimension_numbers<[1], [0], [0], [1], [0, 0, 1, 1], [], []>} : vector<32x32xf32>, vector<32x8xf32>, vector<32x8xf32> -> vector<32x8xf32>
    %c8_166 = arith.constant 8 : index
    %c8_167 = arith.constant 8 : index
    %301 = vector.load %arg9[%c8_166, %c8_167] : memref<16x64xf32, #tpu.memory_space<vmem>>, vector<1x8xf32>
    %302 = vector.broadcast %301 : vector<1x8xf32> to vector<32x8xf32>
    %303 = arith.addf %300, %302 : vector<32x8xf32>
    %c17 = arith.constant 17 : index
    %c0_168 = arith.constant 0 : index
    %c0_169 = arith.constant 0 : index
    %304 = vector.load %arg3[%c17, %c0_168, %c0_169] : memref<24x32x8xf32, #tpu.memory_space<vmem>>, vector<1x32x8xf32>
    %305 = vector.shape_cast %304 : vector<1x32x8xf32> to vector<32x8xf32>
    %cst_170 = arith.constant dense<0.000000e+00> : vector<32x8xf32>
    %306 = tpu.matmul %243, %305, %cst_170 {dimension_numbers = #tpu.dot_dimension_numbers<[1], [0], [0], [1], [0, 0, 1, 1], [], []>} : vector<32x32xf32>, vector<32x8xf32>, vector<32x8xf32> -> vector<32x8xf32>
    %c9_171 = arith.constant 9 : index
    %c8_172 = arith.constant 8 : index
    %307 = vector.load %arg9[%c9_171, %c8_172] : memref<16x64xf32, #tpu.memory_space<vmem>>, vector<1x8xf32>
    %308 = vector.broadcast %307 : vector<1x8xf32> to vector<32x8xf32>
    %309 = arith.addf %306, %308 : vector<32x8xf32>
    %c21 = arith.constant 21 : index
    %c0_173 = arith.constant 0 : index
    %c0_174 = arith.constant 0 : index
    %310 = vector.load %arg3[%c21, %c0_173, %c0_174] : memref<24x32x8xf32, #tpu.memory_space<vmem>>, vector<1x32x8xf32>
    %311 = vector.shape_cast %310 : vector<1x32x8xf32> to vector<32x8xf32>
    %cst_175 = arith.constant dense<0.000000e+00> : vector<32x8xf32>
    %312 = tpu.matmul %243, %311, %cst_175 {dimension_numbers = #tpu.dot_dimension_numbers<[1], [0], [0], [1], [0, 0, 1, 1], [], []>} : vector<32x32xf32>, vector<32x8xf32>, vector<32x8xf32> -> vector<32x8xf32>
    %c10_176 = arith.constant 10 : index
    %c8_177 = arith.constant 8 : index
    %313 = vector.load %arg9[%c10_176, %c8_177] : memref<16x64xf32, #tpu.memory_space<vmem>>, vector<1x8xf32>
    %314 = vector.broadcast %313 : vector<1x8xf32> to vector<32x8xf32>
    %315 = arith.addf %312, %314 : vector<32x8xf32>
    %316 = vector.extract_strided_slice %303 {offsets = [0, 0], sizes = [16, 8], strides = [1, 1]} : vector<32x8xf32> to vector<16x8xf32>
    %317 = vector.extract_strided_slice %309 {offsets = [0, 0], sizes = [16, 8], strides = [1, 1]} : vector<32x8xf32> to vector<16x8xf32>
    %cst_178 = arith.constant dense<0.000000e+00> : vector<16x16xf32>
    %318 = tpu.matmul %316, %317, %cst_178 {dimension_numbers = #tpu.dot_dimension_numbers<[1], [1], [0], [0], [0, 0, 1, 0], [], []>} : vector<16x8xf32>, vector<16x8xf32>, vector<16x16xf32> -> vector<16x16xf32>
    %cst_179 = arith.constant dense<0xFF800000> : vector<16xf32>
    %319 = vector.multi_reduction <maximumf>, %318, %cst_179 [1] : vector<16x16xf32> to vector<16xf32>
    %320 = vector.shape_cast %319 : vector<16xf32> to vector<16x1xf32>
    %321 = vector.broadcast %320 : vector<16x1xf32> to vector<16x16xf32>
    %322 = arith.subf %318, %321 : vector<16x16xf32>
    %323 = math.exp %322 : vector<16x16xf32>
    %cst_180 = arith.constant dense<0.000000e+00> : vector<16xf32>
    %324 = vector.multi_reduction <add>, %323, %cst_180 [1] : vector<16x16xf32> to vector<16xf32>
    %325 = vector.shape_cast %324 : vector<16xf32> to vector<16x1xf32>
    %326 = tpu.reciprocal %325 {approx = true} : vector<16x1xf32> -> vector<16x1xf32>
    %327 = vector.broadcast %326 : vector<16x1xf32> to vector<16x16xf32>
    %328 = arith.mulf %323, %327 : vector<16x16xf32>
    %329 = vector.extract_strided_slice %315 {offsets = [0, 0], sizes = [16, 8], strides = [1, 1]} : vector<32x8xf32> to vector<16x8xf32>
    %cst_181 = arith.constant dense<0.000000e+00> : vector<16x8xf32>
    %330 = tpu.matmul %328, %329, %cst_181 {dimension_numbers = #tpu.dot_dimension_numbers<[1], [0], [0], [1], [0, 0, 1, 1], [], []>} : vector<16x16xf32>, vector<16x8xf32>, vector<16x8xf32> -> vector<16x8xf32>
    %331 = vector.extract_strided_slice %303 {offsets = [16, 0], sizes = [16, 8], strides = [1, 1]} : vector<32x8xf32> to vector<16x8xf32>
    %332 = vector.extract_strided_slice %309 {offsets = [16, 0], sizes = [16, 8], strides = [1, 1]} : vector<32x8xf32> to vector<16x8xf32>
    %cst_182 = arith.constant dense<0.000000e+00> : vector<16x16xf32>
    %333 = tpu.matmul %331, %332, %cst_182 {dimension_numbers = #tpu.dot_dimension_numbers<[1], [1], [0], [0], [0, 0, 1, 0], [], []>} : vector<16x8xf32>, vector<16x8xf32>, vector<16x16xf32> -> vector<16x16xf32>
    %cst_183 = arith.constant dense<0xFF800000> : vector<16xf32>
    %334 = vector.multi_reduction <maximumf>, %333, %cst_183 [1] : vector<16x16xf32> to vector<16xf32>
    %335 = vector.shape_cast %334 : vector<16xf32> to vector<16x1xf32>
    %336 = vector.broadcast %335 : vector<16x1xf32> to vector<16x16xf32>
    %337 = arith.subf %333, %336 : vector<16x16xf32>
    %338 = math.exp %337 : vector<16x16xf32>
    %cst_184 = arith.constant dense<0.000000e+00> : vector<16xf32>
    %339 = vector.multi_reduction <add>, %338, %cst_184 [1] : vector<16x16xf32> to vector<16xf32>
    %340 = vector.shape_cast %339 : vector<16xf32> to vector<16x1xf32>
    %341 = tpu.reciprocal %340 {approx = true} : vector<16x1xf32> -> vector<16x1xf32>
    %342 = vector.broadcast %341 : vector<16x1xf32> to vector<16x16xf32>
    %343 = arith.mulf %338, %342 : vector<16x16xf32>
    %344 = vector.extract_strided_slice %315 {offsets = [16, 0], sizes = [16, 8], strides = [1, 1]} : vector<32x8xf32> to vector<16x8xf32>
    %cst_185 = arith.constant dense<0.000000e+00> : vector<16x8xf32>
    %345 = tpu.matmul %343, %344, %cst_185 {dimension_numbers = #tpu.dot_dimension_numbers<[1], [0], [0], [1], [0, 0, 1, 1], [], []>} : vector<16x16xf32>, vector<16x8xf32>, vector<16x8xf32> -> vector<16x8xf32>
    %346 = tpu.concatenate %330, %345 in 0 : vector<16x8xf32>, vector<16x8xf32> -> vector<32x8xf32>
    %c5_186 = arith.constant 5 : index
    %c0_187 = arith.constant 0 : index
    %c0_188 = arith.constant 0 : index
    %347 = vector.load %arg4[%c5_186, %c0_187, %c0_188] : memref<8x8x32xf32, #tpu.memory_space<vmem>>, vector<1x8x32xf32>
    %348 = vector.shape_cast %347 : vector<1x8x32xf32> to vector<8x32xf32>
    %cst_189 = arith.constant dense<0.000000e+00> : vector<32x32xf32>
    %349 = tpu.matmul %346, %348, %cst_189 {dimension_numbers = #tpu.dot_dimension_numbers<[1], [0], [0], [1], [0, 0, 1, 1], [], []>} : vector<32x8xf32>, vector<8x32xf32>, vector<32x32xf32> -> vector<32x32xf32>
    %350 = arith.addf %297, %349 : vector<32x32xf32>
    %c14 = arith.constant 14 : index
    %c0_190 = arith.constant 0 : index
    %c0_191 = arith.constant 0 : index
    %351 = vector.load %arg3[%c14, %c0_190, %c0_191] : memref<24x32x8xf32, #tpu.memory_space<vmem>>, vector<1x32x8xf32>
    %352 = vector.shape_cast %351 : vector<1x32x8xf32> to vector<32x8xf32>
    %cst_192 = arith.constant dense<0.000000e+00> : vector<32x8xf32>
    %353 = tpu.matmul %243, %352, %cst_192 {dimension_numbers = #tpu.dot_dimension_numbers<[1], [0], [0], [1], [0, 0, 1, 1], [], []>} : vector<32x32xf32>, vector<32x8xf32>, vector<32x8xf32> -> vector<32x8xf32>
    %c8_193 = arith.constant 8 : index
    %c16_194 = arith.constant 16 : index
    %354 = vector.load %arg9[%c8_193, %c16_194] : memref<16x64xf32, #tpu.memory_space<vmem>>, vector<1x8xf32>
    %355 = vector.broadcast %354 : vector<1x8xf32> to vector<32x8xf32>
    %356 = arith.addf %353, %355 : vector<32x8xf32>
    %c18 = arith.constant 18 : index
    %c0_195 = arith.constant 0 : index
    %c0_196 = arith.constant 0 : index
    %357 = vector.load %arg3[%c18, %c0_195, %c0_196] : memref<24x32x8xf32, #tpu.memory_space<vmem>>, vector<1x32x8xf32>
    %358 = vector.shape_cast %357 : vector<1x32x8xf32> to vector<32x8xf32>
    %cst_197 = arith.constant dense<0.000000e+00> : vector<32x8xf32>
    %359 = tpu.matmul %243, %358, %cst_197 {dimension_numbers = #tpu.dot_dimension_numbers<[1], [0], [0], [1], [0, 0, 1, 1], [], []>} : vector<32x32xf32>, vector<32x8xf32>, vector<32x8xf32> -> vector<32x8xf32>
    %c9_198 = arith.constant 9 : index
    %c16_199 = arith.constant 16 : index
    %360 = vector.load %arg9[%c9_198, %c16_199] : memref<16x64xf32, #tpu.memory_space<vmem>>, vector<1x8xf32>
    %361 = vector.broadcast %360 : vector<1x8xf32> to vector<32x8xf32>
    %362 = arith.addf %359, %361 : vector<32x8xf32>
    %c22 = arith.constant 22 : index
    %c0_200 = arith.constant 0 : index
    %c0_201 = arith.constant 0 : index
    %363 = vector.load %arg3[%c22, %c0_200, %c0_201] : memref<24x32x8xf32, #tpu.memory_space<vmem>>, vector<1x32x8xf32>
    %364 = vector.shape_cast %363 : vector<1x32x8xf32> to vector<32x8xf32>
    %cst_202 = arith.constant dense<0.000000e+00> : vector<32x8xf32>
    %365 = tpu.matmul %243, %364, %cst_202 {dimension_numbers = #tpu.dot_dimension_numbers<[1], [0], [0], [1], [0, 0, 1, 1], [], []>} : vector<32x32xf32>, vector<32x8xf32>, vector<32x8xf32> -> vector<32x8xf32>
    %c10_203 = arith.constant 10 : index
    %c16_204 = arith.constant 16 : index
    %366 = vector.load %arg9[%c10_203, %c16_204] : memref<16x64xf32, #tpu.memory_space<vmem>>, vector<1x8xf32>
    %367 = vector.broadcast %366 : vector<1x8xf32> to vector<32x8xf32>
    %368 = arith.addf %365, %367 : vector<32x8xf32>
    %369 = vector.extract_strided_slice %356 {offsets = [0, 0], sizes = [16, 8], strides = [1, 1]} : vector<32x8xf32> to vector<16x8xf32>
    %370 = vector.extract_strided_slice %362 {offsets = [0, 0], sizes = [16, 8], strides = [1, 1]} : vector<32x8xf32> to vector<16x8xf32>
    %cst_205 = arith.constant dense<0.000000e+00> : vector<16x16xf32>
    %371 = tpu.matmul %369, %370, %cst_205 {dimension_numbers = #tpu.dot_dimension_numbers<[1], [1], [0], [0], [0, 0, 1, 0], [], []>} : vector<16x8xf32>, vector<16x8xf32>, vector<16x16xf32> -> vector<16x16xf32>
    %cst_206 = arith.constant dense<0xFF800000> : vector<16xf32>
    %372 = vector.multi_reduction <maximumf>, %371, %cst_206 [1] : vector<16x16xf32> to vector<16xf32>
    %373 = vector.shape_cast %372 : vector<16xf32> to vector<16x1xf32>
    %374 = vector.broadcast %373 : vector<16x1xf32> to vector<16x16xf32>
    %375 = arith.subf %371, %374 : vector<16x16xf32>
    %376 = math.exp %375 : vector<16x16xf32>
    %cst_207 = arith.constant dense<0.000000e+00> : vector<16xf32>
    %377 = vector.multi_reduction <add>, %376, %cst_207 [1] : vector<16x16xf32> to vector<16xf32>
    %378 = vector.shape_cast %377 : vector<16xf32> to vector<16x1xf32>
    %379 = tpu.reciprocal %378 {approx = true} : vector<16x1xf32> -> vector<16x1xf32>
    %380 = vector.broadcast %379 : vector<16x1xf32> to vector<16x16xf32>
    %381 = arith.mulf %376, %380 : vector<16x16xf32>
    %382 = vector.extract_strided_slice %368 {offsets = [0, 0], sizes = [16, 8], strides = [1, 1]} : vector<32x8xf32> to vector<16x8xf32>
    %cst_208 = arith.constant dense<0.000000e+00> : vector<16x8xf32>
    %383 = tpu.matmul %381, %382, %cst_208 {dimension_numbers = #tpu.dot_dimension_numbers<[1], [0], [0], [1], [0, 0, 1, 1], [], []>} : vector<16x16xf32>, vector<16x8xf32>, vector<16x8xf32> -> vector<16x8xf32>
    %384 = vector.extract_strided_slice %356 {offsets = [16, 0], sizes = [16, 8], strides = [1, 1]} : vector<32x8xf32> to vector<16x8xf32>
    %385 = vector.extract_strided_slice %362 {offsets = [16, 0], sizes = [16, 8], strides = [1, 1]} : vector<32x8xf32> to vector<16x8xf32>
    %cst_209 = arith.constant dense<0.000000e+00> : vector<16x16xf32>
    %386 = tpu.matmul %384, %385, %cst_209 {dimension_numbers = #tpu.dot_dimension_numbers<[1], [1], [0], [0], [0, 0, 1, 0], [], []>} : vector<16x8xf32>, vector<16x8xf32>, vector<16x16xf32> -> vector<16x16xf32>
    %cst_210 = arith.constant dense<0xFF800000> : vector<16xf32>
    %387 = vector.multi_reduction <maximumf>, %386, %cst_210 [1] : vector<16x16xf32> to vector<16xf32>
    %388 = vector.shape_cast %387 : vector<16xf32> to vector<16x1xf32>
    %389 = vector.broadcast %388 : vector<16x1xf32> to vector<16x16xf32>
    %390 = arith.subf %386, %389 : vector<16x16xf32>
    %391 = math.exp %390 : vector<16x16xf32>
    %cst_211 = arith.constant dense<0.000000e+00> : vector<16xf32>
    %392 = vector.multi_reduction <add>, %391, %cst_211 [1] : vector<16x16xf32> to vector<16xf32>
    %393 = vector.shape_cast %392 : vector<16xf32> to vector<16x1xf32>
    %394 = tpu.reciprocal %393 {approx = true} : vector<16x1xf32> -> vector<16x1xf32>
    %395 = vector.broadcast %394 : vector<16x1xf32> to vector<16x16xf32>
    %396 = arith.mulf %391, %395 : vector<16x16xf32>
    %397 = vector.extract_strided_slice %368 {offsets = [16, 0], sizes = [16, 8], strides = [1, 1]} : vector<32x8xf32> to vector<16x8xf32>
    %cst_212 = arith.constant dense<0.000000e+00> : vector<16x8xf32>
    %398 = tpu.matmul %396, %397, %cst_212 {dimension_numbers = #tpu.dot_dimension_numbers<[1], [0], [0], [1], [0, 0, 1, 1], [], []>} : vector<16x16xf32>, vector<16x8xf32>, vector<16x8xf32> -> vector<16x8xf32>
    %399 = tpu.concatenate %383, %398 in 0 : vector<16x8xf32>, vector<16x8xf32> -> vector<32x8xf32>
    %c6_213 = arith.constant 6 : index
    %c0_214 = arith.constant 0 : index
    %c0_215 = arith.constant 0 : index
    %400 = vector.load %arg4[%c6_213, %c0_214, %c0_215] : memref<8x8x32xf32, #tpu.memory_space<vmem>>, vector<1x8x32xf32>
    %401 = vector.shape_cast %400 : vector<1x8x32xf32> to vector<8x32xf32>
    %cst_216 = arith.constant dense<0.000000e+00> : vector<32x32xf32>
    %402 = tpu.matmul %399, %401, %cst_216 {dimension_numbers = #tpu.dot_dimension_numbers<[1], [0], [0], [1], [0, 0, 1, 1], [], []>} : vector<32x8xf32>, vector<8x32xf32>, vector<32x32xf32> -> vector<32x32xf32>
    %403 = arith.addf %350, %402 : vector<32x32xf32>
    %c15 = arith.constant 15 : index
    %c0_217 = arith.constant 0 : index
    %c0_218 = arith.constant 0 : index
    %404 = vector.load %arg3[%c15, %c0_217, %c0_218] : memref<24x32x8xf32, #tpu.memory_space<vmem>>, vector<1x32x8xf32>
    %405 = vector.shape_cast %404 : vector<1x32x8xf32> to vector<32x8xf32>
    %cst_219 = arith.constant dense<0.000000e+00> : vector<32x8xf32>
    %406 = tpu.matmul %243, %405, %cst_219 {dimension_numbers = #tpu.dot_dimension_numbers<[1], [0], [0], [1], [0, 0, 1, 1], [], []>} : vector<32x32xf32>, vector<32x8xf32>, vector<32x8xf32> -> vector<32x8xf32>
    %c8_220 = arith.constant 8 : index
    %c24_221 = arith.constant 24 : index
    %407 = vector.load %arg9[%c8_220, %c24_221] : memref<16x64xf32, #tpu.memory_space<vmem>>, vector<1x8xf32>
    %408 = vector.broadcast %407 : vector<1x8xf32> to vector<32x8xf32>
    %409 = arith.addf %406, %408 : vector<32x8xf32>
    %c19 = arith.constant 19 : index
    %c0_222 = arith.constant 0 : index
    %c0_223 = arith.constant 0 : index
    %410 = vector.load %arg3[%c19, %c0_222, %c0_223] : memref<24x32x8xf32, #tpu.memory_space<vmem>>, vector<1x32x8xf32>
    %411 = vector.shape_cast %410 : vector<1x32x8xf32> to vector<32x8xf32>
    %cst_224 = arith.constant dense<0.000000e+00> : vector<32x8xf32>
    %412 = tpu.matmul %243, %411, %cst_224 {dimension_numbers = #tpu.dot_dimension_numbers<[1], [0], [0], [1], [0, 0, 1, 1], [], []>} : vector<32x32xf32>, vector<32x8xf32>, vector<32x8xf32> -> vector<32x8xf32>
    %c9_225 = arith.constant 9 : index
    %c24_226 = arith.constant 24 : index
    %413 = vector.load %arg9[%c9_225, %c24_226] : memref<16x64xf32, #tpu.memory_space<vmem>>, vector<1x8xf32>
    %414 = vector.broadcast %413 : vector<1x8xf32> to vector<32x8xf32>
    %415 = arith.addf %412, %414 : vector<32x8xf32>
    %c23 = arith.constant 23 : index
    %c0_227 = arith.constant 0 : index
    %c0_228 = arith.constant 0 : index
    %416 = vector.load %arg3[%c23, %c0_227, %c0_228] : memref<24x32x8xf32, #tpu.memory_space<vmem>>, vector<1x32x8xf32>
    %417 = vector.shape_cast %416 : vector<1x32x8xf32> to vector<32x8xf32>
    %cst_229 = arith.constant dense<0.000000e+00> : vector<32x8xf32>
    %418 = tpu.matmul %243, %417, %cst_229 {dimension_numbers = #tpu.dot_dimension_numbers<[1], [0], [0], [1], [0, 0, 1, 1], [], []>} : vector<32x32xf32>, vector<32x8xf32>, vector<32x8xf32> -> vector<32x8xf32>
    %c10_230 = arith.constant 10 : index
    %c24_231 = arith.constant 24 : index
    %419 = vector.load %arg9[%c10_230, %c24_231] : memref<16x64xf32, #tpu.memory_space<vmem>>, vector<1x8xf32>
    %420 = vector.broadcast %419 : vector<1x8xf32> to vector<32x8xf32>
    %421 = arith.addf %418, %420 : vector<32x8xf32>
    %422 = vector.extract_strided_slice %409 {offsets = [0, 0], sizes = [16, 8], strides = [1, 1]} : vector<32x8xf32> to vector<16x8xf32>
    %423 = vector.extract_strided_slice %415 {offsets = [0, 0], sizes = [16, 8], strides = [1, 1]} : vector<32x8xf32> to vector<16x8xf32>
    %cst_232 = arith.constant dense<0.000000e+00> : vector<16x16xf32>
    %424 = tpu.matmul %422, %423, %cst_232 {dimension_numbers = #tpu.dot_dimension_numbers<[1], [1], [0], [0], [0, 0, 1, 0], [], []>} : vector<16x8xf32>, vector<16x8xf32>, vector<16x16xf32> -> vector<16x16xf32>
    %cst_233 = arith.constant dense<0xFF800000> : vector<16xf32>
    %425 = vector.multi_reduction <maximumf>, %424, %cst_233 [1] : vector<16x16xf32> to vector<16xf32>
    %426 = vector.shape_cast %425 : vector<16xf32> to vector<16x1xf32>
    %427 = vector.broadcast %426 : vector<16x1xf32> to vector<16x16xf32>
    %428 = arith.subf %424, %427 : vector<16x16xf32>
    %429 = math.exp %428 : vector<16x16xf32>
    %cst_234 = arith.constant dense<0.000000e+00> : vector<16xf32>
    %430 = vector.multi_reduction <add>, %429, %cst_234 [1] : vector<16x16xf32> to vector<16xf32>
    %431 = vector.shape_cast %430 : vector<16xf32> to vector<16x1xf32>
    %432 = tpu.reciprocal %431 {approx = true} : vector<16x1xf32> -> vector<16x1xf32>
    %433 = vector.broadcast %432 : vector<16x1xf32> to vector<16x16xf32>
    %434 = arith.mulf %429, %433 : vector<16x16xf32>
    %435 = vector.extract_strided_slice %421 {offsets = [0, 0], sizes = [16, 8], strides = [1, 1]} : vector<32x8xf32> to vector<16x8xf32>
    %cst_235 = arith.constant dense<0.000000e+00> : vector<16x8xf32>
    %436 = tpu.matmul %434, %435, %cst_235 {dimension_numbers = #tpu.dot_dimension_numbers<[1], [0], [0], [1], [0, 0, 1, 1], [], []>} : vector<16x16xf32>, vector<16x8xf32>, vector<16x8xf32> -> vector<16x8xf32>
    %437 = vector.extract_strided_slice %409 {offsets = [16, 0], sizes = [16, 8], strides = [1, 1]} : vector<32x8xf32> to vector<16x8xf32>
    %438 = vector.extract_strided_slice %415 {offsets = [16, 0], sizes = [16, 8], strides = [1, 1]} : vector<32x8xf32> to vector<16x8xf32>
    %cst_236 = arith.constant dense<0.000000e+00> : vector<16x16xf32>
    %439 = tpu.matmul %437, %438, %cst_236 {dimension_numbers = #tpu.dot_dimension_numbers<[1], [1], [0], [0], [0, 0, 1, 0], [], []>} : vector<16x8xf32>, vector<16x8xf32>, vector<16x16xf32> -> vector<16x16xf32>
    %cst_237 = arith.constant dense<0xFF800000> : vector<16xf32>
    %440 = vector.multi_reduction <maximumf>, %439, %cst_237 [1] : vector<16x16xf32> to vector<16xf32>
    %441 = vector.shape_cast %440 : vector<16xf32> to vector<16x1xf32>
    %442 = vector.broadcast %441 : vector<16x1xf32> to vector<16x16xf32>
    %443 = arith.subf %439, %442 : vector<16x16xf32>
    %444 = math.exp %443 : vector<16x16xf32>
    %cst_238 = arith.constant dense<0.000000e+00> : vector<16xf32>
    %445 = vector.multi_reduction <add>, %444, %cst_238 [1] : vector<16x16xf32> to vector<16xf32>
    %446 = vector.shape_cast %445 : vector<16xf32> to vector<16x1xf32>
    %447 = tpu.reciprocal %446 {approx = true} : vector<16x1xf32> -> vector<16x1xf32>
    %448 = vector.broadcast %447 : vector<16x1xf32> to vector<16x16xf32>
    %449 = arith.mulf %444, %448 : vector<16x16xf32>
    %450 = vector.extract_strided_slice %421 {offsets = [16, 0], sizes = [16, 8], strides = [1, 1]} : vector<32x8xf32> to vector<16x8xf32>
    %cst_239 = arith.constant dense<0.000000e+00> : vector<16x8xf32>
    %451 = tpu.matmul %449, %450, %cst_239 {dimension_numbers = #tpu.dot_dimension_numbers<[1], [0], [0], [1], [0, 0, 1, 1], [], []>} : vector<16x16xf32>, vector<16x8xf32>, vector<16x8xf32> -> vector<16x8xf32>
    %452 = tpu.concatenate %436, %451 in 0 : vector<16x8xf32>, vector<16x8xf32> -> vector<32x8xf32>
    %c7_240 = arith.constant 7 : index
    %c0_241 = arith.constant 0 : index
    %c0_242 = arith.constant 0 : index
    %453 = vector.load %arg4[%c7_240, %c0_241, %c0_242] : memref<8x8x32xf32, #tpu.memory_space<vmem>>, vector<1x8x32xf32>
    %454 = vector.shape_cast %453 : vector<1x8x32xf32> to vector<8x32xf32>
    %cst_243 = arith.constant dense<0.000000e+00> : vector<32x32xf32>
    %455 = tpu.matmul %452, %454, %cst_243 {dimension_numbers = #tpu.dot_dimension_numbers<[1], [0], [0], [1], [0, 0, 1, 1], [], []>} : vector<32x8xf32>, vector<8x32xf32>, vector<32x32xf32> -> vector<32x32xf32>
    %456 = arith.addf %403, %455 : vector<32x32xf32>
    %c11_244 = arith.constant 11 : index
    %c0_245 = arith.constant 0 : index
    %457 = vector.load %arg9[%c11_244, %c0_245] : memref<16x64xf32, #tpu.memory_space<vmem>>, vector<1x32xf32>
    %458 = vector.broadcast %457 : vector<1x32xf32> to vector<32x32xf32>
    %459 = arith.addf %456, %458 : vector<32x32xf32>
    %c1_246 = arith.constant 1 : index
    %c0_247 = arith.constant 0 : index
    %c0_248 = arith.constant 0 : index
    %460 = vector.load %arg5[%c1_246, %c0_247, %c0_248] : memref<2x32x64xf32, #tpu.memory_space<vmem>>, vector<1x32x64xf32>
    %461 = vector.shape_cast %460 : vector<1x32x64xf32> to vector<32x64xf32>
    %cst_249 = arith.constant dense<0.000000e+00> : vector<32x64xf32>
    %462 = tpu.matmul %459, %461, %cst_249 {dimension_numbers = #tpu.dot_dimension_numbers<[1], [0], [0], [1], [0, 0, 1, 1], [], []>} : vector<32x32xf32>, vector<32x64xf32>, vector<32x64xf32> -> vector<32x64xf32>
    %c12_250 = arith.constant 12 : index
    %c0_251 = arith.constant 0 : index
    %463 = vector.load %arg9[%c12_250, %c0_251] : memref<16x64xf32, #tpu.memory_space<vmem>>, vector<1x64xf32>
    %464 = vector.broadcast %463 : vector<1x64xf32> to vector<32x64xf32>
    %465 = arith.addf %462, %464 : vector<32x64xf32>
    %cst_252 = arith.constant 0.000000e+00 : f32
    %466 = vector.broadcast %cst_252 : f32 to vector<32x64xf32>
    %467 = arith.maximumf %465, %466 : vector<32x64xf32>
    %c1_253 = arith.constant 1 : index
    %c0_254 = arith.constant 0 : index
    %c0_255 = arith.constant 0 : index
    %468 = vector.load %arg6[%c1_253, %c0_254, %c0_255] : memref<2x64x32xf32, #tpu.memory_space<vmem>>, vector<1x64x32xf32>
    %469 = vector.shape_cast %468 : vector<1x64x32xf32> to vector<64x32xf32>
    %cst_256 = arith.constant dense<0.000000e+00> : vector<32x32xf32>
    %470 = tpu.matmul %467, %469, %cst_256 {dimension_numbers = #tpu.dot_dimension_numbers<[1], [0], [0], [1], [0, 0, 1, 1], [], []>} : vector<32x64xf32>, vector<64x32xf32>, vector<32x32xf32> -> vector<32x32xf32>
    %c13_257 = arith.constant 13 : index
    %c0_258 = arith.constant 0 : index
    %471 = vector.load %arg9[%c13_257, %c0_258] : memref<16x64xf32, #tpu.memory_space<vmem>>, vector<1x32xf32>
    %472 = vector.broadcast %471 : vector<1x32xf32> to vector<32x32xf32>
    %473 = arith.addf %470, %472 : vector<32x32xf32>
    %474 = arith.addf %473, %459 : vector<32x32xf32>
    %c0_259 = arith.constant 0 : index
    %c0_260 = arith.constant 0 : index
    %475 = vector.load %arg7[%c0_259, %c0_260] : memref<32x32xf32, #tpu.memory_space<vmem>>, vector<32x32xf32>
    %cst_261 = arith.constant dense<0.000000e+00> : vector<32x32xf32>
    %476 = tpu.matmul %474, %475, %cst_261 {dimension_numbers = #tpu.dot_dimension_numbers<[1], [0], [0], [1], [0, 0, 1, 1], [], []>} : vector<32x32xf32>, vector<32x32xf32>, vector<32x32xf32> -> vector<32x32xf32>
    %c14_262 = arith.constant 14 : index
    %c0_263 = arith.constant 0 : index
    %477 = vector.load %arg9[%c14_262, %c0_263] : memref<16x64xf32, #tpu.memory_space<vmem>>, vector<1x32xf32>
    %478 = vector.broadcast %477 : vector<1x32xf32> to vector<32x32xf32>
    %479 = arith.addf %476, %478 : vector<32x32xf32>
    %cst_264 = arith.constant 0.000000e+00 : f32
    %480 = vector.broadcast %cst_264 : f32 to vector<32x32xf32>
    %481 = arith.maximumf %479, %480 : vector<32x32xf32>
    %c0_265 = arith.constant 0 : index
    %c0_266 = arith.constant 0 : index
    %482 = vector.load %arg8[%c0_265, %c0_266] : memref<32x3xf32, #tpu.memory_space<vmem>>, vector<32x3xf32>
    %cst_267 = arith.constant dense<0.000000e+00> : vector<32x3xf32>
    %483 = tpu.matmul %481, %482, %cst_267 {dimension_numbers = #tpu.dot_dimension_numbers<[1], [0], [0], [1], [0, 0, 1, 1], [], []>} : vector<32x32xf32>, vector<32x3xf32>, vector<32x3xf32> -> vector<32x3xf32>
    %c15_268 = arith.constant 15 : index
    %c0_269 = arith.constant 0 : index
    %484 = vector.load %arg9[%c15_268, %c0_269] : memref<16x64xf32, #tpu.memory_space<vmem>>, vector<1x3xf32>
    %485 = vector.broadcast %484 : vector<1x3xf32> to vector<32x3xf32>
    %486 = arith.addf %483, %485 : vector<32x3xf32>
    %487 = tpu.iota {dimensions = array<i32: 1>} : vector<32x3xi32>
    %c1_i32 = arith.constant 1 : i32
    %488 = vector.broadcast %c1_i32 : i32 to vector<32x3xi32>
    %489 = arith.cmpi sge, %487, %488 : vector<32x3xi32>
    %490 = math.tanh %486 : vector<32x3xf32>
    %491 = arith.select %489, %490, %486 : vector<32x3xi1>, vector<32x3xf32>
    %c0_270 = arith.constant 0 : index
    %c0_271 = arith.constant 0 : index
    %492 = vector.load %arg10[%c0_270, %c0_271] : memref<32x3xf32, #tpu.memory_space<vmem>>, vector<32x3xf32>
    tpu.vector_store %arg10[%c0_270, %c0_271], %491 {strides = array<i32>} : memref<32x3xf32, #tpu.memory_space<vmem>>, vector<32x3xf32>,
    return
  }
}

</mosaic_0001>

<llo_original>
// kernel: dagger_forward.1
$region0: #{dagger_forward.1}
  #allocation0 [shape = 'u32[]', space=smem, size = 0x4, offset = 0x4, fixed_abs, tag = 'smem constant byte address 0x4 - core index']
  #allocation1 [shape = 'u32[144,128]{1,0:T(1,128)}', space=vmem, size = 0x12000, scoped, tag = 'internal scratch']
  %s0 = inlined_call_operand.vmem [shape: f32[32,3], index: 0, kind: input, shape index: {}]
  %s1 = inlined_call_operand.vmem [shape: f32[3,16], index: 1, kind: input, shape index: {}]
  %s2 = inlined_call_operand.vmem [shape: f32[16,32], index: 2, kind: input, shape index: {}]
  %s3 = inlined_call_operand.vmem [shape: f32[24,32,8], index: 3, kind: input, shape index: {}]
  %s4 = inlined_call_operand.vmem [shape: f32[8,8,32], index: 4, kind: input, shape index: {}]
  %s5 = inlined_call_operand.vmem [shape: f32[2,32,64], index: 5, kind: input, shape index: {}]
  %s6 = inlined_call_operand.vmem [shape: f32[2,64,32], index: 6, kind: input, shape index: {}]
  %s7 = inlined_call_operand.vmem [shape: f32[32,32], index: 7, kind: input, shape index: {}]
  %s8 = inlined_call_operand.vmem [shape: f32[32,3], index: 8, kind: input, shape index: {}]
  %s9 = inlined_call_operand.vmem [shape: f32[16,64], index: 9, kind: input, shape index: {}]
  %s10 = inlined_call_operand.vmem [shape: f32[32,3], index: 10, kind: output, shape index: {}]
  %s11 = sld [smem:[#allocation0]]
  $region50: #{dagger_forward.1} parent=0
    _
  %s13 = ssub.s32 1, %s11
  %s14 = scalar_select 0, %s13, %s11
  // Predicated region
  $region2: #{dagger_forward.1} parent=0 // pred_check
    _
  $region3: #{dagger_forward.1} parent=0 // pred_check_branch
    %16 = sbr.rel (0) target = $region5
  $region4: #{dagger_forward.1} parent=0 // pred_region
    _
  $region5: #{dagger_forward.1} parent=0 // pred_fallthru
    _
  // Predicated region
  $region6: #{dagger_forward.1} parent=0 // pred_check
    _
  $region7: #{dagger_forward.1} parent=0 // pred_check_branch
    %18 = sbr.rel (0) target = $region9
  $region8: #{dagger_forward.1} parent=0 // pred_region
    _
  $region9: #{dagger_forward.1} parent=0 // pred_fallthru
    _
  // Predicated region
  $region10: #{dagger_forward.1} parent=0 // pred_check
    _
  $region11: #{dagger_forward.1} parent=0 // pred_check_branch
    %20 = sbr.rel (0) target = $region13
  $region12: #{dagger_forward.1} parent=0 // pred_region
    _
  $region13: #{dagger_forward.1} parent=0 // pred_fallthru
    _
  // Predicated region
  $region14: #{dagger_forward.1} parent=0 // pred_check
    _
  $region15: #{dagger_forward.1} parent=0 // pred_check_branch
    %22 = sbr.rel (0) target = $region17
  $region16: #{dagger_forward.1} parent=0 // pred_region
    _
  $region17: #{dagger_forward.1} parent=0 // pred_fallthru
    _
  // Predicated region
  $region18: #{dagger_forward.1} parent=0 // pred_check
    _
  $region19: #{dagger_forward.1} parent=0 // pred_check_branch
    %24 = sbr.rel (0) target = $region21
  $region20: #{dagger_forward.1} parent=0 // pred_region
    _
  $region21: #{dagger_forward.1} parent=0 // pred_fallthru
    _
  // Predicated region
  $region22: #{dagger_forward.1} parent=0 // pred_check
    _
  $region23: #{dagger_forward.1} parent=0 // pred_check_branch
    %26 = sbr.rel (0) target = $region25
  $region24: #{dagger_forward.1} parent=0 // pred_region
    _
  $region25: #{dagger_forward.1} parent=0 // pred_fallthru
    _
  // Predicated region
  $region26: #{dagger_forward.1} parent=0 // pred_check
    _
  $region27: #{dagger_forward.1} parent=0 // pred_check_branch
    %28 = sbr.rel (0) target = $region29
  $region28: #{dagger_forward.1} parent=0 // pred_region
    _
  $region29: #{dagger_forward.1} parent=0 // pred_fallthru
    _
  // Predicated region
  $region30: #{dagger_forward.1} parent=0 // pred_check
    _
  $region31: #{dagger_forward.1} parent=0 // pred_check_branch
    %30 = sbr.rel (0) target = $region33
  $region32: #{dagger_forward.1} parent=0 // pred_region
    _
  $region33: #{dagger_forward.1} parent=0 // pred_fallthru
    _
  // Predicated region
  $region34: #{dagger_forward.1} parent=0 // pred_check
    _
  $region35: #{dagger_forward.1} parent=0 // pred_check_branch
    %32 = sbr.rel (0) target = $region37
  $region36: #{dagger_forward.1} parent=0 // pred_region
    _
  $region37: #{dagger_forward.1} parent=0 // pred_fallthru
    _
  // Predicated region
  $region38: #{dagger_forward.1} parent=0 // pred_check
    _
  $region39: #{dagger_forward.1} parent=0 // pred_check_branch
    %34 = sbr.rel (0) target = $region41
  $region40: #{dagger_forward.1} parent=0 // pred_region
    _
  $region41: #{dagger_forward.1} parent=0 // pred_fallthru
    _
  %v35 = vld [vmem:[%s0] sm:$0xff]
  %v36 = vld [vmem:[%s0 + $0x8] sm:$0xff]
  %v37 = vld [vmem:[%s0 + $0x10] sm:$0xff]
  %v38 = vld [vmem:[%s0 + $0x18] sm:$0xff]
  %v39 = vld [vmem:[%s1] sm:$0x7]
  %v40 = vld [vmem:[%s9] sm:$0x1]
  %v41 = vlaneseq
  %v42 = vshrl.u32 %v41, 7
  %v43 = vsub.s32 0, %v42
  %v44 = vrot.slane %v40, %v43
  %vm45 = vcmask 23552
  %v47 = vsel %vm45, %v35, 0
  %v50 = vsel %vm45, %v36, 0
  %v53 = vsel %vm45, %v37, 0
  %v56 = vsel %vm45, %v38, 0
  %vm58 = vcmask 1042432
  %v60 = vsel %vm58, %v39, 0
  %62 = vmatprep.subr.mxu0 0.0
  %63 = vmatpush1.msra.mxu0 0.0
  %64 = vmatprep.subr.mxu0 0.0
  %65 = vmatpush1.msra.mxu0 0.0
  %66 = vmatprep.subr.mxu0 0.0
  %67 = vmatpush1.msra.mxu0 0.0
  %68 = vmatprep.subr.mxu0 0.0
  %69 = vmatpush1.msra.mxu0 0.0
  %70 = vmatprep.subr.mxu0 0.0
  %71 = vmatpush1.msra.mxu0 0.0
  %72 = vmatprep.subr.mxu0 0.0
  %73 = vmatpush1.msra.mxu0 0.0
  %74 = vmatprep.subr.mxu0 0.0
  %75 = vmatpush1.msra.mxu0 0.0
  %76 = vmatprep.subr.mxu0 0.0
  %77 = vmatpush1.msra.mxu0 0.0
  %78 = vmatprep.subr.mxu0 0.0
  %79 = vmatpush1.msra.mxu0 0.0
  %80 = vmatprep.subr.mxu0 0.0
  %81 = vmatpush1.msra.mxu0 0.0
  %82 = vmatprep.subr.mxu0 0.0
  %83 = vmatpush1.msra.mxu0 0.0
  %84 = vmatprep.subr.mxu0 0.0
  %85 = vmatpush1.msra.mxu0 0.0
  %86 = vmatprep.subr.mxu0 0.0
  %87 = vmatpush1.msra.mxu0 0.0
  %88 = vmatprep.subr.mxu0 0.0
  %89 = vmatpush1.msra.mxu0 0.0
  %90 = vmatprep.subr.mxu0 0.0
  %91 = vmatpush1.msra.mxu0 0.0
  %92 = vmatprep.subr.mxu0 0.0
  %93 = vmatpush1.msra.mxu0 %v60
  %94 = vmatprep.subr.mxu0 0.0
  %95 = vmatpush2.msra.mxu0 0.0
  %96 = vmatprep.subr.mxu0 0.0
  %97 = vmatpush2.msra.mxu0 0.0
  %98 = vmatprep.subr.mxu0 0.0
  %99 = vmatpush2.msra.mxu0 0.0
  %100 = vmatprep.subr.mxu0 0.0
  %101 = vmatpush2.msra.mxu0 0.0
  %102 = vmatprep.subr.mxu0 0.0
  %103 = vmatpush2.msra.mxu0 0.0
  %104 = vmatprep.subr.mxu0 0.0
  %105 = vmatpush2.msra.mxu0 0.0
  %106 = vmatprep.subr.mxu0 0.0
  %107 = vmatpush2.msra.mxu0 0.0
  %108 = vmatprep.subr.mxu0 0.0
  %109 = vmatpush2.msra.mxu0 0.0
  %110 = vmatprep.subr.mxu0 0.0
  %111 = vmatpush2.msra.mxu0 0.0
  %112 = vmatprep.subr.mxu0 0.0
  %113 = vmatpush2.msra.mxu0 0.0
  %114 = vmatprep.subr.mxu0 0.0
  %115 = vmatpush2.msra.mxu0 0.0
  %116 = vmatprep.subr.mxu0 0.0
  %117 = vmatpush2.msra.mxu0 0.0
  %118 = vmatprep.subr.mxu0 0.0
  %119 = vmatpush2.msra.mxu0 0.0
  %120 = vmatprep.subr.mxu0 0.0
  %121 = vmatpush2.msra.mxu0 0.0
  %122 = vmatprep.subr.mxu0 0.0
  %123 = vmatpush2.msra.mxu0 0.0
  %124 = vmatprep.subr.mxu0 0.0
  %125 = vmatpush2.msra.mxu0 0.0
  %126 = vmatprep.mubr.f32.mxu0 0.0
  %127 = vmatmul.mubr.f32.gmra.mxu0 %v47
  %v128 = vpop.f32.mrf.mxu0
  %v129 = vadd.f32 %v44, %v128
  %v130 = vpop.f32.mrf.mxu0
  %131 = vmatprep.mubr.f32.mxu0 0.0
  %132 = vmatmul.mubr.f32.gmra.mxu0 %v50
  %v133 = vpop.f32.mrf.mxu0
  %v134 = vadd.f32 %v44, %v133
  %v135 = vpop.f32.mrf.mxu0
  %136 = vmatprep.mubr.f32.mxu0 0.0
  %137 = vmatmul.mubr.f32.gmra.mxu0 %v53
  %v138 = vpop.f32.mrf.mxu0
  %v139 = vadd.f32 %v44, %v138
  %v140 = vpop.f32.mrf.mxu0
  %141 = vmatprep.mubr.f32.mxu0 0.0
  %142 = vmatmul.mubr.f32.gmra.mxu0 %v56
  %v143 = vpop.f32.mrf.mxu0
  %v144 = vadd.f32 %v44, %v143
  %v145 = vpop.f32.mrf.mxu0
  %146 = vdwg.mxu0
  %v147 = vmax.f32 %v129, 0.0
  %v148 = vmax.f32 %v134, 0.0
  %v149 = vmax.f32 %v139, 0.0
  %v150 = vmax.f32 %v144, 0.0
  %v151 = vld [vmem:[%s2] sm:$0xff]
  %v152 = vld [vmem:[%s2 + $0x8] sm:$0xff]
  %v153 = vld [vmem:[%s9 + $0x1] sm:$0x1]
  %v154 = vlaneseq
  %v155 = vshrl.u32 %v154, 7
  %v156 = vsub.s32 0, %v155
  %v157 = vrot.slane %v153, %v156
  %vm158 = vcmask 130048
  %v160 = vsel %vm158, %v147, 0
  %v163 = vsel %vm158, %v148, 0
  %v166 = vsel %vm158, %v149, 0
  %v169 = vsel %vm158, %v150, 0
  %171 = vmatprep.subr.mxu0 0.0
  %172 = vmatpush1.msra.mxu0 0.0
  %173 = vmatprep.subr.mxu0 0.0
  %174 = vmatpush1.msra.mxu0 0.0
  %175 = vmatprep.subr.mxu0 0.0
  %176 = vmatpush1.msra.mxu0 0.0
  %177 = vmatprep.subr.mxu0 0.0
  %178 = vmatpush1.msra.mxu0 0.0
  %179 = vmatprep.subr.mxu0 0.0
  %180 = vmatpush1.msra.mxu0 0.0
  %181 = vmatprep.subr.mxu0 0.0
  %182 = vmatpush1.msra.mxu0 0.0
  %183 = vmatprep.subr.mxu0 0.0
  %184 = vmatpush1.msra.mxu0 0.0
  %185 = vmatprep.subr.mxu0 0.0
  %186 = vmatpush1.msra.mxu0 0.0
  %187 = vmatprep.subr.mxu0 0.0
  %188 = vmatpush1.msra.mxu0 0.0
  %189 = vmatprep.subr.mxu0 0.0
  %190 = vmatpush1.msra.mxu0 0.0
  %191 = vmatprep.subr.mxu0 0.0
  %192 = vmatpush1.msra.mxu0 0.0
  %193 = vmatprep.subr.mxu0 0.0
  %194 = vmatpush1.msra.mxu0 0.0
  %195 = vmatprep.subr.mxu0 0.0
  %196 = vmatpush1.msra.mxu0 0.0
  %197 = vmatprep.subr.mxu0 0.0
  %198 = vmatpush1.msra.mxu0 0.0
  %199 = vmatprep.subr.mxu0 0.0
  %200 = vmatpush1.msra.mxu0 %v152
  %201 = vmatprep.subr.mxu0 0.0
  %202 = vmatpush1.msra.mxu0 %v151
  %203 = vmatprep.subr.mxu0 0.0
  %204 = vmatpush2.msra.mxu0 0.0
  %205 = vmatprep.subr.mxu0 0.0
  %206 = vmatpush2.msra.mxu0 0.0
  %207 = vmatprep.subr.mxu0 0.0
  %208 = vmatpush2.msra.mxu0 0.0
  %209 = vmatprep.subr.mxu0 0.0
  %210 = vmatpush2.msra.mxu0 0.0
  %211 = vmatprep.subr.mxu0 0.0
  %212 = vmatpush2.msra.mxu0 0.0
  %213 = vmatprep.subr.mxu0 0.0
  %214 = vmatpush2.msra.mxu0 0.0
  %215 = vmatprep.subr.mxu0 0.0
  %216 = vmatpush2.msra.mxu0 0.0
  %217 = vmatprep.subr.mxu0 0.0
  %218 = vmatpush2.msra.mxu0 0.0
  %219 = vmatprep.subr.mxu0 0.0
  %220 = vmatpush2.msra.mxu0 0.0
  %221 = vmatprep.subr.mxu0 0.0
  %222 = vmatpush2.msra.mxu0 0.0
  %223 = vmatprep.subr.mxu0 0.0
  %224 = vmatpush2.msra.mxu0 0.0
  %225 = vmatprep.subr.mxu0 0.0
  %226 = vmatpush2.msra.mxu0 0.0
  %227 = vmatprep.subr.mxu0 0.0
  %228 = vmatpush2.msra.mxu0 0.0
  %229 = vmatprep.subr.mxu0 0.0
  %230 = vmatpush2.msra.mxu0 0.0
  %231 = vmatprep.subr.mxu0 0.0
  %232 = vmatpush2.msra.mxu0 0.0
  %233 = vmatprep.subr.mxu0 0.0
  %234 = vmatpush2.msra.mxu0 0.0
  %235 = vmatprep.mubr.f32.mxu0 0.0
  %236 = vmatmul.mubr.f32.gmra.mxu0 %v160
  %v237 = vpop.f32.mrf.mxu0
  %v238 = vadd.f32 %v157, %v237
  %v239 = vpop.f32.mrf.mxu0
  %240 = vmatprep.mubr.f32.mxu0 0.0
  %241 = vmatmul.mubr.f32.gmra.mxu0 %v163
  %v242 = vpop.f32.mrf.mxu0
  %v243 = vadd.f32 %v157, %v242
  %v244 = vpop.f32.mrf.mxu0
  %245 = vmatprep.mubr.f32.mxu0 0.0
  %246 = vmatmul.mubr.f32.gmra.mxu0 %v166
  %v247 = vpop.f32.mrf.mxu0
  %v248 = vadd.f32 %v157, %v247
  %v249 = vpop.f32.mrf.mxu0
  %250 = vmatprep.mubr.f32.mxu0 0.0
  %251 = vmatmul.mubr.f32.gmra.mxu0 %v169
  %v252 = vpop.f32.mrf.mxu0
  %v253 = vadd.f32 %v157, %v252
  %v254 = vpop.f32.mrf.mxu0
  %255 = vdwg.mxu0
  %v256 = vld [vmem:[%s3] sm:$0xff]
  %v257 = vld [vmem:[%s3 + $0x8] sm:$0xff]
  %v258 = vld [vmem:[%s3 + $0x10] sm:$0xff]
  %v259 = vld [vmem:[%s3 + $0x18] sm:$0xff]
  %v260 = vld [vmem:[%s9 + $0x2] sm:$0x1]
  %v261 = vlaneseq
  %v262 = vshrl.u32 %v261, 7
  %v263 = vsub.s32 0, %v262
  %v264 = vrot.slane %v260, %v263
  %vm265 = vcmask 261120
  %v267 = vsel %vm265, %v238, 0
  %v270 = vsel %vm265, %v243, 0
  %v273 = vsel %vm265, %v248, 0
  %v276 = vsel %vm265, %v253, 0
  %278 = vmatprep.subr.mxu0 0.0
  %279 = vmatpush1.msra.mxu0 0.0
  %280 = vmatprep.subr.mxu0 0.0
  %281 = vmatpush1.msra.mxu0 0.0
  %282 = vmatprep.subr.mxu0 0.0
  %283 = vmatpush1.msra.mxu0 0.0
  %284 = vmatprep.subr.mxu0 0.0
  %285 = vmatpush1.msra.mxu0 0.0
  %286 = vmatprep.subr.mxu0 0.0
  %287 = vmatpush1.msra.mxu0 0.0
  %288 = vmatprep.subr.mxu0 0.0
  %289 = vmatpush1.msra.mxu0 0.0
  %290 = vmatprep.subr.mxu0 0.0
  %291 = vmatpush1.msra.mxu0 0.0
  %292 = vmatprep.subr.mxu0 0.0
  %293 = vmatpush1.msra.mxu0 0.0
  %294 = vmatprep.subr.mxu0 0.0
  %295 = vmatpush1.msra.mxu0 0.0
  %296 = vmatprep.subr.mxu0 0.0
  %297 = vmatpush1.msra.mxu0 0.0
  %298 = vmatprep.subr.mxu0 0.0
  %299 = vmatpush1.msra.mxu0 0.0
  %300 = vmatprep.subr.mxu0 0.0
  %301 = vmatpush1.msra.mxu0 0.0
  %302 = vmatprep.subr.mxu0 0.0
  %303 = vmatpush1.msra.mxu0 %v259
  %304 = vmatprep.subr.mxu0 0.0
  %305 = vmatpush1.msra.mxu0 %v258
  %306 = vmatprep.subr.mxu0 0.0
  %307 = vmatpush1.msra.mxu0 %v257
  %308 = vmatprep.subr.mxu0 0.0
  %309 = vmatpush1.msra.mxu0 %v256
  %310 = vmatprep.subr.mxu0 0.0
  %311 = vmatpush2.msra.mxu0 0.0
  %312 = vmatprep.subr.mxu0 0.0
  %313 = vmatpush2.msra.mxu0 0.0
  %314 = vmatprep.subr.mxu0 0.0
  %315 = vmatpush2.msra.mxu0 0.0
  %316 = vmatprep.subr.mxu0 0.0
  %317 = vmatpush2.msra.mxu0 0.0
  %318 = vmatprep.subr.mxu0 0.0
  %319 = vmatpush2.msra.mxu0 0.0
  %320 = vmatprep.subr.mxu0 0.0
  %321 = vmatpush2.msra.mxu0 0.0
  %322 = vmatprep.subr.mxu0 0.0
  %323 = vmatpush2.msra.mxu0 0.0
  %324 = vmatprep.subr.mxu0 0.0
  %325 = vmatpush2.msra.mxu0 0.0
  %326 = vmatprep.subr.mxu0 0.0
  %327 = vmatpush2.msra.mxu0 0.0
  %328 = vmatprep.subr.mxu0 0.0
  %329 = vmatpush2.msra.mxu0 0.0
  %330 = vmatprep.subr.mxu0 0.0
  %331 = vmatpush2.msra.mxu0 0.0
  %332 = vmatprep.subr.mxu0 0.0
  %333 = vmatpush2.msra.mxu0 0.0
  %334 = vmatprep.subr.mxu0 0.0
  %335 = vmatpush2.msra.mxu0 0.0
  %336 = vmatprep.subr.mxu0 0.0
  %337 = vmatpush2.msra.mxu0 0.0
  %338 = vmatprep.subr.mxu0 0.0
  %339 = vmatpush2.msra.mxu0 0.0
  %340 = vmatprep.subr.mxu0 0.0
  %341 = vmatpush2.msra.mxu0 0.0
  %342 = vmatprep.mubr.f32.mxu0 0.0
  %343 = vmatmul.mubr.f32.gmra.mxu0 %v267
  %v344 = vpop.f32.mrf.mxu0
  %v345 = vadd.f32 %v264, %v344
  %v346 = vpop.f32.mrf.mxu0
  %347 = vmatprep.mubr.f32.mxu0 0.0
  %348 = vmatmul.mubr.f32.gmra.mxu0 %v270
  %v349 = vpop.f32.mrf.mxu0
  %v350 = vadd.f32 %v264, %v349
  %v351 = vpop.f32.mrf.mxu0
  %352 = vmatprep.mubr.f32.mxu0 0.0
  %353 = vmatmul.mubr.f32.gmra.mxu0 %v273
  %v354 = vpop.f32.mrf.mxu0
  %v355 = vadd.f32 %v264, %v354
  %v356 = vpop.f32.mrf.mxu0
  %357 = vmatprep.mubr.f32.mxu0 0.0
  %358 = vmatmul.mubr.f32.gmra.mxu0 %v276
  %v359 = vpop.f32.mrf.mxu0
  %v360 = vadd.f32 %v264, %v359
  %v361 = vpop.f32.mrf.mxu0
  %362 = vdwg.mxu0
  %s363 = scalar_lea.vmem %s3, 128
  %v364 = vld [vmem:[%s363] sm:$0xff]
  %v365 = vld [vmem:[%s363 + $0x8] sm:$0xff]
  %v366 = vld [vmem:[%s363 + $0x10] sm:$0xff]
  %v367 = vld [vmem:[%s363 + $0x18] sm:$0xff]
  %v368 = vld [vmem:[%s9 + $0x3] sm:$0x1]
  %v369 = vlaneseq
  %v370 = vshrl.u32 %v369, 7
  %v371 = vsub.s32 0, %v370
  %v372 = vrot.slane %v368, %v371
  %373 = vmatprep.subr.mxu0 0.0
  %374 = vmatpush1.msra.mxu0 0.0
  %375 = vmatprep.subr.mxu0 0.0
  %376 = vmatpush1.msra.mxu0 0.0
  %377 = vmatprep.subr.mxu0 0.0
  %378 = vmatpush1.msra.mxu0 0.0
  %379 = vmatprep.subr.mxu0 0.0
  %380 = vmatpush1.msra.mxu0 0.0
  %381 = vmatprep.subr.mxu0 0.0
  %382 = vmatpush1.msra.mxu0 0.0
  %383 = vmatprep.subr.mxu0 0.0
  %384 = vmatpush1.msra.mxu0 0.0
  %385 = vmatprep.subr.mxu0 0.0
  %386 = vmatpush1.msra.mxu0 0.0
  %387 = vmatprep.subr.mxu0 0.0
  %388 = vmatpush1.msra.mxu0 0.0
  %389 = vmatprep.subr.mxu0 0.0
  %390 = vmatpush1.msra.mxu0 0.0
  %391 = vmatprep.subr.mxu0 0.0
  %392 = vmatpush1.msra.mxu0 0.0
  %393 = vmatprep.subr.mxu0 0.0
  %394 = vmatpush1.msra.mxu0 0.0
  %395 = vmatprep.subr.mxu0 0.0
  %396 = vmatpush1.msra.mxu0 0.0
  %397 = vmatprep.subr.mxu0 0.0
  %398 = vmatpush1.msra.mxu0 %v367
  %399 = vmatprep.subr.mxu0 0.0
  %400 = vmatpush1.msra.mxu0 %v366
  %401 = vmatprep.subr.mxu0 0.0
  %402 = vmatpush1.msra.mxu0 %v365
  %403 = vmatprep.subr.mxu0 0.0
  %404 = vmatpush1.msra.mxu0 %v364
  %405 = vmatprep.subr.mxu0 0.0
  %406 = vmatpush2.msra.mxu0 0.0
  %407 = vmatprep.subr.mxu0 0.0
  %408 = vmatpush2.msra.mxu0 0.0
  %409 = vmatprep.subr.mxu0 0.0
  %410 = vmatpush2.msra.mxu0 0.0
  %411 = vmatprep.subr.mxu0 0.0
  %412 = vmatpush2.msra.mxu0 0.0
  %413 = vmatprep.subr.mxu0 0.0
  %414 = vmatpush2.msra.mxu0 0.0
  %415 = vmatprep.subr.mxu0 0.0
  %416 = vmatpush2.msra.mxu0 0.0
  %417 = vmatprep.subr.mxu0 0.0
  %418 = vmatpush2.msra.mxu0 0.0
  %419 = vmatprep.subr.mxu0 0.0
  %420 = vmatpush2.msra.mxu0 0.0
  %421 = vmatprep.subr.mxu0 0.0
  %422 = vmatpush2.msra.mxu0 0.0
  %423 = vmatprep.subr.mxu0 0.0
  %424 = vmatpush2.msra.mxu0 0.0
  %425 = vmatprep.subr.mxu0 0.0
  %426 = vmatpush2.msra.mxu0 0.0
  %427 = vmatprep.subr.mxu0 0.0
  %428 = vmatpush2.msra.mxu0 0.0
  %429 = vmatprep.subr.mxu0 0.0
  %430 = vmatpush2.msra.mxu0 0.0
  %431 = vmatprep.subr.mxu0 0.0
  %432 = vmatpush2.msra.mxu0 0.0
  %433 = vmatprep.subr.mxu0 0.0
  %434 = vmatpush2.msra.mxu0 0.0
  %435 = vmatprep.subr.mxu0 0.0
  %436 = vmatpush2.msra.mxu0 0.0
  %437 = vmatprep.mubr.f32.mxu0 0.0
  %438 = vmatmul.mubr.f32.gmra.mxu0 %v267
  %v439 = vpop.f32.mrf.mxu0
  %v440 = vadd.f32 %v372, %v439
  %v441 = vpop.f32.mrf.mxu0
  %442 = vmatprep.mubr.f32.mxu0 0.0
  %443 = vmatmul.mubr.f32.gmra.mxu0 %v270
  %v444 = vpop.f32.mrf.mxu0
  %v445 = vadd.f32 %v372, %v444
  %v446 = vpop.f32.mrf.mxu0
  %447 = vmatprep.mubr.f32.mxu0 0.0
  %448 = vmatmul.mubr.f32.gmra.mxu0 %v273
  %v449 = vpop.f32.mrf.mxu0
  %v450 = vadd.f32 %v372, %v449
  %v451 = vpop.f32.mrf.mxu0
  %452 = vmatprep.mubr.f32.mxu0 0.0
  %453 = vmatmul.mubr.f32.gmra.mxu0 %v276
  %v454 = vpop.f32.mrf.mxu0
  %v455 = vadd.f32 %v372, %v454
  %v456 = vpop.f32.mrf.mxu0
  %457 = vdwg.mxu0
  %s458 = scalar_lea.vmem %s3, 256
  %v459 = vld [vmem:[%s458] sm:$0xff]
  %v460 = vld [vmem:[%s458 + $0x8] sm:$0xff]
  %v461 = vld [vmem:[%s458 + $0x10] sm:$0xff]
  %v462 = vld [vmem:[%s458 + $0x18] sm:$0xff]
  %v463 = vld [vmem:[%s9 + $0x4] sm:$0x1]
  %v464 = vlaneseq
  %v465 = vshrl.u32 %v464, 7
  %v466 = vsub.s32 0, %v465
  %v467 = vrot.slane %v463, %v466
  %468 = vmatprep.subr.mxu0 0.0
  %469 = vmatpush1.msra.mxu0 0.0
  %470 = vmatprep.subr.mxu0 0.0
  %471 = vmatpush1.msra.mxu0 0.0
  %472 = vmatprep.subr.mxu0 0.0
  %473 = vmatpush1.msra.mxu0 0.0
  %474 = vmatprep.subr.mxu0 0.0
  %475 = vmatpush1.msra.mxu0 0.0
  %476 = vmatprep.subr.mxu0 0.0
  %477 = vmatpush1.msra.mxu0 0.0
  %478 = vmatprep.subr.mxu0 0.0
  %479 = vmatpush1.msra.mxu0 0.0
  %480 = vmatprep.subr.mxu0 0.0
  %481 = vmatpush1.msra.mxu0 0.0
  %482 = vmatprep.subr.mxu0 0.0
  %483 = vmatpush1.msra.mxu0 0.0
  %484 = vmatprep.subr.mxu0 0.0
  %485 = vmatpush1.msra.mxu0 0.0
  %486 = vmatprep.subr.mxu0 0.0
  %487 = vmatpush1.msra.mxu0 0.0
  %488 = vmatprep.subr.mxu0 0.0
  %489 = vmatpush1.msra.mxu0 0.0
  %490 = vmatprep.subr.mxu0 0.0
  %491 = vmatpush1.msra.mxu0 0.0
  %492 = vmatprep.subr.mxu0 0.0
  %493 = vmatpush1.msra.mxu0 %v462
  %494 = vmatprep.subr.mxu0 0.0
  %495 = vmatpush1.msra.mxu0 %v461
  %496 = vmatprep.subr.mxu0 0.0
  %497 = vmatpush1.msra.mxu0 %v460
  %498 = vmatprep.subr.mxu0 0.0
  %499 = vmatpush1.msra.mxu0 %v459
  %500 = vmatprep.subr.mxu0 0.0
  %501 = vmatpush2.msra.mxu0 0.0
  %502 = vmatprep.subr.mxu0 0.0
  %503 = vmatpush2.msra.mxu0 0.0
  %504 = vmatprep.subr.mxu0 0.0
  %505 = vmatpush2.msra.mxu0 0.0
  %506 = vmatprep.subr.mxu0 0.0
  %507 = vmatpush2.msra.mxu0 0.0
  %508 = vmatprep.subr.mxu0 0.0
  %509 = vmatpush2.msra.mxu0 0.0
  %510 = vmatprep.subr.mxu0 0.0
  %511 = vmatpush2.msra.mxu0 0.0
  %512 = vmatprep.subr.mxu0 0.0
  %513 = vmatpush2.msra.mxu0 0.0
  %514 = vmatprep.subr.mxu0 0.0
  %515 = vmatpush2.msra.mxu0 0.0
  %516 = vmatprep.subr.mxu0 0.0
  %517 = vmatpush2.msra.mxu0 0.0
  %518 = vmatprep.subr.mxu0 0.0
  %519 = vmatpush2.msra.mxu0 0.0
  %520 = vmatprep.subr.mxu0 0.0
  %521 = vmatpush2.msra.mxu0 0.0
  %522 = vmatprep.subr.mxu0 0.0
  %523 = vmatpush2.msra.mxu0 0.0
  %524 = vmatprep.subr.mxu0 0.0
  %525 = vmatpush2.msra.mxu0 0.0
  %526 = vmatprep.subr.mxu0 0.0
  %527 = vmatpush2.msra.mxu0 0.0
  %528 = vmatprep.subr.mxu0 0.0
  %529 = vmatpush2.msra.mxu0 0.0
  %530 = vmatprep.subr.mxu0 0.0
  %531 = vmatpush2.msra.mxu0 0.0
  %532 = vmatprep.mubr.f32.mxu0 0.0
  %533 = vmatmul.mubr.f32.gmra.mxu0 %v267
  %v534 = vpop.f32.mrf.mxu0
  %v535 = vadd.f32 %v467, %v534
  %v536 = vpop.f32.mrf.mxu0
  %537 = vmatprep.mubr.f32.mxu0 0.0
  %538 = vmatmul.mubr.f32.gmra.mxu0 %v270
  %v539 = vpop.f32.mrf.mxu0
  %v540 = vadd.f32 %v467, %v539
  %v541 = vpop.f32.mrf.mxu0
  %542 = vmatprep.mubr.f32.mxu0 0.0
  %543 = vmatmul.mubr.f32.gmra.mxu0 %v273
  %v544 = vpop.f32.mrf.mxu0
  %v545 = vadd.f32 %v467, %v544
  %v546 = vpop.f32.mrf.mxu0
  %547 = vmatprep.mubr.f32.mxu0 0.0
  %548 = vmatmul.mubr.f32.gmra.mxu0 %v276
  %v549 = vpop.f32.mrf.mxu0
  %v550 = vadd.f32 %v467, %v549
  %v551 = vpop.f32.mrf.mxu0
  %552 = vdwg.mxu0
  %vm553 = vcmask 64512
  %v555 = vsel %vm553, %v345, 0
  %v558 = vsel %vm553, %v350, 0
  %v561 = vsel %vm553, %v440, 0
  %v564 = vsel %vm553, %v445, 0
  %566 = vmatprep.subr.mxu0 0.0
  %567 = vmatpush1.xpose.msra.mxu0 0.0
  %568 = vmatprep.subr.mxu0 0.0
  %569 = vmatpush1.xpose.msra.mxu0 0.0
  %570 = vmatprep.subr.mxu0 0.0
  %571 = vmatpush1.xpose.msra.mxu0 0.0
  %572 = vmatprep.subr.mxu0 0.0
  %573 = vmatpush1.xpose.msra.mxu0 0.0
  %574 = vmatprep.subr.mxu0 0.0
  %575 = vmatpush1.xpose.msra.mxu0 0.0
  %576 = vmatprep.subr.mxu0 0.0
  %577 = vmatpush1.xpose.msra.mxu0 0.0
  %578 = vmatprep.subr.mxu0 0.0
  %579 = vmatpush1.xpose.msra.mxu0 0.0
  %580 = vmatprep.subr.mxu0 0.0
  %581 = vmatpush1.xpose.msra.mxu0 0.0
  %582 = vmatprep.subr.mxu0 0.0
  %583 = vmatpush1.xpose.msra.mxu0 0.0
  %584 = vmatprep.subr.mxu0 0.0
  %585 = vmatpush1.xpose.msra.mxu0 0.0
  %586 = vmatprep.subr.mxu0 0.0
  %587 = vmatpush1.xpose.msra.mxu0 0.0
  %588 = vmatprep.subr.mxu0 0.0
  %589 = vmatpush1.xpose.msra.mxu0 0.0
  %590 = vmatprep.subr.mxu0 0.0
  %591 = vmatpush1.xpose.msra.mxu0 0.0
  %592 = vmatprep.subr.mxu0 0.0
  %593 = vmatpush1.xpose.msra.mxu0 0.0
  %594 = vmatprep.subr.mxu0 0.0
  %595 = vmatpush1.xpose.msra.mxu0 %v564
  %596 = vmatprep.subr.mxu0 0.0
  %597 = vmatpush1.xpose.msra.mxu0 %v561
  %598 = vmatprep.subr.mxu0 0.0
  %599 = vmatpush2.xpose.msra.mxu0 0.0
  %600 = vmatprep.subr.mxu0 0.0
  %601 = vmatpush2.xpose.msra.mxu0 0.0
  %602 = vmatprep.subr.mxu0 0.0
  %603 = vmatpush2.xpose.msra.mxu0 0.0
  %604 = vmatprep.subr.mxu0 0.0
  %605 = vmatpush2.xpose.msra.mxu0 0.0
  %606 = vmatprep.subr.mxu0 0.0
  %607 = vmatpush2.xpose.msra.mxu0 0.0
  %608 = vmatprep.subr.mxu0 0.0
  %609 = vmatpush2.xpose.msra.mxu0 0.0
  %610 = vmatprep.subr.mxu0 0.0
  %611 = vmatpush2.xpose.msra.mxu0 0.0
  %612 = vmatprep.subr.mxu0 0.0
  %613 = vmatpush2.xpose.msra.mxu0 0.0
  %614 = vmatprep.subr.mxu0 0.0
  %615 = vmatpush2.xpose.msra.mxu0 0.0
  %616 = vmatprep.subr.mxu0 0.0
  %617 = vmatpush2.xpose.msra.mxu0 0.0
  %618 = vmatprep.subr.mxu0 0.0
  %619 = vmatpush2.xpose.msra.mxu0 0.0
  %620 = vmatprep.subr.mxu0 0.0
  %621 = vmatpush2.xpose.msra.mxu0 0.0
  %622 = vmatprep.subr.mxu0 0.0
  %623 = vmatpush2.xpose.msra.mxu0 0.0
  %624 = vmatprep.subr.mxu0 0.0
  %625 = vmatpush2.xpose.msra.mxu0 0.0
  %626 = vmatprep.subr.mxu0 0.0
  %627 = vmatpush2.xpose.msra.mxu0 0.0
  %628 = vmatprep.subr.mxu0 0.0
  %629 = vmatpush2.xpose.msra.mxu0 0.0
  %630 = vmatprep.mubr.f32.mxu0 0.0
  %631 = vmatmul.mubr.f32.gmra.mxu0 %v555
  %v632 = vpop.f32.mrf.mxu0
  %v633 = vadd.f32 0.0, %v632
  %v634 = vpop.f32.mrf.mxu0
  %635 = vmatprep.mubr.f32.mxu0 0.0
  %636 = vmatmul.mubr.f32.gmra.mxu0 %v558
  %v637 = vpop.f32.mrf.mxu0
  %v638 = vadd.f32 0.0, %v637
  %v639 = vpop.f32.mrf.mxu0
  %640 = vdwg.mxu0
  %v641 = vsel %vm158, %v633, -inf
  %642 = vmax.xlane.f32.xlu0 %v641
  %v643 = vpop.xlane.xlu0 %642
  %v644 = vsel %vm158, %v638, -inf
  %645 = vmax.xlane.f32.xlu0 %v644
  %v646 = vpop.xlane.xlu0 %645
  %v647 = vsub.f32 %v633, %v643
  %v648 = vsub.f32 %v638, %v646
  %v649 = vmul.f32 %v647, 1.442695
  %v650 = vpow.pop %v649
  %v651 = vmul.f32 %v648, 1.442695
  %v652 = vpow.pop %v651
  %v653 = vsel %vm158, %v650, 0.0
  %654 = vadd.xlane.f32.xlu0 %v653
  %v655 = vpop.xlane.xlu0 %654
  %v656 = vsel %vm158, %v652, 0.0
  %657 = vadd.xlane.f32.xlu0 %v656
  %v658 = vpop.xlane.xlu0 %657
  %v659 = vrcp.pop %v655
  %v660 = vrcp.pop %v658
  %v661 = vmul.f32 %v650, %v659
  %v662 = vmul.f32 %v652, %v660
  %v664 = vsel %vm158, %v661, 0
  %v667 = vsel %vm158, %v662, 0
  %669 = vmatprep.subr.mxu0 0.0
  %670 = vmatpush1.msra.mxu0 0.0
  %671 = vmatprep.subr.mxu0 0.0
  %672 = vmatpush1.msra.mxu0 0.0
  %673 = vmatprep.subr.mxu0 0.0
  %674 = vmatpush1.msra.mxu0 0.0
  %675 = vmatprep.subr.mxu0 0.0
  %676 = vmatpush1.msra.mxu0 0.0
  %677 = vmatprep.subr.mxu0 0.0
  %678 = vmatpush1.msra.mxu0 0.0
  %679 = vmatprep.subr.mxu0 0.0
  %680 = vmatpush1.msra.mxu0 0.0
  %681 = vmatprep.subr.mxu0 0.0
  %682 = vmatpush1.msra.mxu0 0.0
  %683 = vmatprep.subr.mxu0 0.0
  %684 = vmatpush1.msra.mxu0 0.0
  %685 = vmatprep.subr.mxu0 0.0
  %686 = vmatpush1.msra.mxu0 0.0
  %687 = vmatprep.subr.mxu0 0.0
  %688 = vmatpush1.msra.mxu0 0.0
  %689 = vmatprep.subr.mxu0 0.0
  %690 = vmatpush1.msra.mxu0 0.0
  %691 = vmatprep.subr.mxu0 0.0
  %692 = vmatpush1.msra.mxu0 0.0
  %693 = vmatprep.subr.mxu0 0.0
  %694 = vmatpush1.msra.mxu0 0.0
  %695 = vmatprep.subr.mxu0 0.0
  %696 = vmatpush1.msra.mxu0 0.0
  %697 = vmatprep.subr.mxu0 0.0
  %698 = vmatpush1.msra.mxu0 %v540
  %699 = vmatprep.subr.mxu0 0.0
  %700 = vmatpush1.msra.mxu0 %v535
  %701 = vmatprep.subr.mxu0 0.0
  %702 = vmatpush2.msra.mxu0 0.0
  %703 = vmatprep.subr.mxu0 0.0
  %704 = vmatpush2.msra.mxu0 0.0
  %705 = vmatprep.subr.mxu0 0.0
  %706 = vmatpush2.msra.mxu0 0.0
  %707 = vmatprep.subr.mxu0 0.0
  %708 = vmatpush2.msra.mxu0 0.0
  %709 = vmatprep.subr.mxu0 0.0
  %710 = vmatpush2.msra.mxu0 0.0
  %711 = vmatprep.subr.mxu0 0.0
  %712 = vmatpush2.msra.mxu0 0.0
  %713 = vmatprep.subr.mxu0 0.0
  %714 = vmatpush2.msra.mxu0 0.0
  %715 = vmatprep.subr.mxu0 0.0
  %716 = vmatpush2.msra.mxu0 0.0
  %717 = vmatprep.subr.mxu0 0.0
  %718 = vmatpush2.msra.mxu0 0.0
  %719 = vmatprep.subr.mxu0 0.0
  %720 = vmatpush2.msra.mxu0 0.0
  %721 = vmatprep.subr.mxu0 0.0
  %722 = vmatpush2.msra.mxu0 0.0
  %723 = vmatprep.subr.mxu0 0.0
  %724 = vmatpush2.msra.mxu0 0.0
  %725 = vmatprep.subr.mxu0 0.0
  %726 = vmatpush2.msra.mxu0 0.0
  %727 = vmatprep.subr.mxu0 0.0
  %728 = vmatpush2.msra.mxu0 0.0
  %729 = vmatprep.subr.mxu0 0.0
  %730 = vmatpush2.msra.mxu0 0.0
  %731 = vmatprep.subr.mxu0 0.0
  %732 = vmatpush2.msra.mxu0 0.0
  %733 = vmatprep.mubr.f32.mxu0 0.0
  %734 = vmatmul.mubr.f32.gmra.mxu0 %v664
  %v735 = vpop.f32.mrf.mxu0
  %v736 = vadd.f32 0.0, %v735
  %v737 = vpop.f32.mrf.mxu0
  %738 = vmatprep.mubr.f32.mxu0 0.0
  %739 = vmatmul.mubr.f32.gmra.mxu0 %v667
  %v740 = vpop.f32.mrf.mxu0
  %v741 = vadd.f32 0.0, %v740
  %v742 = vpop.f32.mrf.mxu0
  %743 = vdwg.mxu0
  %v745 = vsel %vm553, %v355, 0
  %v748 = vsel %vm553, %v360, 0
  %v751 = vsel %vm553, %v450, 0
  %v754 = vsel %vm553, %v455, 0
  %756 = vmatprep.subr.mxu0 0.0
  %757 = vmatpush1.xpose.msra.mxu0 0.0
  %758 = vmatprep.subr.mxu0 0.0
  %759 = vmatpush1.xpose.msra.mxu0 0.0
  %760 = vmatprep.subr.mxu0 0.0
  %761 = vmatpush1.xpose.msra.mxu0 0.0
  %762 = vmatprep.subr.mxu0 0.0
  %763 = vmatpush1.xpose.msra.mxu0 0.0
  %764 = vmatprep.subr.mxu0 0.0
  %765 = vmatpush1.xpose.msra.mxu0 0.0
  %766 = vmatprep.subr.mxu0 0.0
  %767 = vmatpush1.xpose.msra.mxu0 0.0
  %768 = vmatprep.subr.mxu0 0.0
  %769 = vmatpush1.xpose.msra.mxu0 0.0
  %770 = vmatprep.subr.mxu0 0.0
  %771 = vmatpush1.xpose.msra.mxu0 0.0
  %772 = vmatprep.subr.mxu0 0.0
  %773 = vmatpush1.xpose.msra.mxu0 0.0
  %774 = vmatprep.subr.mxu0 0.0
  %775 = vmatpush1.xpose.msra.mxu0 0.0
  %776 = vmatprep.subr.mxu0 0.0
  %777 = vmatpush1.xpose.msra.mxu0 0.0
  %778 = vmatprep.subr.mxu0 0.0
  %779 = vmatpush1.xpose.msra.mxu0 0.0
  %780 = vmatprep.subr.mxu0 0.0
  %781 = vmatpush1.xpose.msra.mxu0 0.0
  %782 = vmatprep.subr.mxu0 0.0
  %783 = vmatpush1.xpose.msra.mxu0 0.0
  %784 = vmatprep.subr.mxu0 0.0
  %785 = vmatpush1.xpose.msra.mxu0 %v754
  %786 = vmatprep.subr.mxu0 0.0
  %787 = vmatpush1.xpose.msra.mxu0 %v751
  %788 = vmatprep.subr.mxu0 0.0
  %789 = vmatpush2.xpose.msra.mxu0 0.0
  %790 = vmatprep.subr.mxu0 0.0
  %791 = vmatpush2.xpose.msra.mxu0 0.0
  %792 = vmatprep.subr.mxu0 0.0
  %793 = vmatpush2.xpose.msra.mxu0 0.0
  %794 = vmatprep.subr.mxu0 0.0
  %795 = vmatpush2.xpose.msra.mxu0 0.0
  %796 = vmatprep.subr.mxu0 0.0
  %797 = vmatpush2.xpose.msra.mxu0 0.0
  %798 = vmatprep.subr.mxu0 0.0
  %799 = vmatpush2.xpose.msra.mxu0 0.0
  %800 = vmatprep.subr.mxu0 0.0
  %801 = vmatpush2.xpose.msra.mxu0 0.0
  %802 = vmatprep.subr.mxu0 0.0
  %803 = vmatpush2.xpose.msra.mxu0 0.0
  %804 = vmatprep.subr.mxu0 0.0
  %805 = vmatpush2.xpose.msra.mxu0 0.0
  %806 = vmatprep.subr.mxu0 0.0
  %807 = vmatpush2.xpose.msra.mxu0 0.0
  %808 = vmatprep.subr.mxu0 0.0
  %809 = vmatpush2.xpose.msra.mxu0 0.0
  %810 = vmatprep.subr.mxu0 0.0
  %811 = vmatpush2.xpose.msra.mxu0 0.0
  %812 = vmatprep.subr.mxu0 0.0
  %813 = vmatpush2.xpose.msra.mxu0 0.0
  %814 = vmatprep.subr.mxu0 0.0
  %815 = vmatpush2.xpose.msra.mxu0 0.0
  %816 = vmatprep.subr.mxu0 0.0
  %817 = vmatpush2.xpose.msra.mxu0 0.0
  %818 = vmatprep.subr.mxu0 0.0
  %819 = vmatpush2.xpose.msra.mxu0 0.0
  %820 = vmatprep.mubr.f32.mxu0 0.0
  %821 = vmatmul.mubr.f32.gmra.mxu0 %v745
  %v822 = vpop.f32.mrf.mxu0
  %v823 = vadd.f32 0.0, %v822
  %v824 = vpop.f32.mrf.mxu0
  %825 = vmatprep.mubr.f32.mxu0 0.0
  %826 = vmatmul.mubr.f32.gmra.mxu0 %v748
  %v827 = vpop.f32.mrf.mxu0
  %v828 = vadd.f32 0.0, %v827
  %v829 = vpop.f32.mrf.mxu0
  %830 = vdwg.mxu0
  %v831 = vsel %vm158, %v823, -inf
  %832 = vmax.xlane.f32.xlu0 %v831
  %v833 = vpop.xlane.xlu0 %832
  %v834 = vsel %vm158, %v828, -inf
  %835 = vmax.xlane.f32.xlu0 %v834
  %v836 = vpop.xlane.xlu0 %835
  %v837 = vsub.f32 %v823, %v833
  %v838 = vsub.f32 %v828, %v836
  %v839 = vmul.f32 %v837, 1.442695
  %v840 = vpow.pop %v839
  %v841 = vmul.f32 %v838, 1.442695
  %v842 = vpow.pop %v841
  %v843 = vsel %vm158, %v840, 0.0
  %844 = vadd.xlane.f32.xlu0 %v843
  %v845 = vpop.xlane.xlu0 %844
  %v846 = vsel %vm158, %v842, 0.0
  %847 = vadd.xlane.f32.xlu0 %v846
  %v848 = vpop.xlane.xlu0 %847
  %v849 = vrcp.pop %v845
  %v850 = vrcp.pop %v848
  %v851 = vmul.f32 %v840, %v849
  %v852 = vmul.f32 %v842, %v850
  %v854 = vsel %vm158, %v851, 0
  %v857 = vsel %vm158, %v852, 0
  %859 = vmatprep.subr.mxu0 0.0
  %860 = vmatpush1.msra.mxu0 0.0
  %861 = vmatprep.subr.mxu0 0.0
  %862 = vmatpush1.msra.mxu0 0.0
  %863 = vmatprep.subr.mxu0 0.0
  %864 = vmatpush1.msra.mxu0 0.0
  %865 = vmatprep.subr.mxu0 0.0
  %866 = vmatpush1.msra.mxu0 0.0
  %867 = vmatprep.subr.mxu0 0.0
  %868 = vmatpush1.msra.mxu0 0.0
  %869 = vmatprep.subr.mxu0 0.0
  %870 = vmatpush1.msra.mxu0 0.0
  %871 = vmatprep.subr.mxu0 0.0
  %872 = vmatpush1.msra.mxu0 0.0
  %873 = vmatprep.subr.mxu0 0.0
  %874 = vmatpush1.msra.mxu0 0.0
  %875 = vmatprep.subr.mxu0 0.0
  %876 = vmatpush1.msra.mxu0 0.0
  %877 = vmatprep.subr.mxu0 0.0
  %878 = vmatpush1.msra.mxu0 0.0
  %879 = vmatprep.subr.mxu0 0.0
  %880 = vmatpush1.msra.mxu0 0.0
  %881 = vmatprep.subr.mxu0 0.0
  %882 = vmatpush1.msra.mxu0 0.0
  %883 = vmatprep.subr.mxu0 0.0
  %884 = vmatpush1.msra.mxu0 0.0
  %885 = vmatprep.subr.mxu0 0.0
  %886 = vmatpush1.msra.mxu0 0.0
  %887 = vmatprep.subr.mxu0 0.0
  %888 = vmatpush1.msra.mxu0 %v550
  %889 = vmatprep.subr.mxu0 0.0
  %890 = vmatpush1.msra.mxu0 %v545
  %891 = vmatprep.subr.mxu0 0.0
  %892 = vmatpush2.msra.mxu0 0.0
  %893 = vmatprep.subr.mxu0 0.0
  %894 = vmatpush2.msra.mxu0 0.0
  %895 = vmatprep.subr.mxu0 0.0
  %896 = vmatpush2.msra.mxu0 0.0
  %897 = vmatprep.subr.mxu0 0.0
  %898 = vmatpush2.msra.mxu0 0.0
  %899 = vmatprep.subr.mxu0 0.0
  %900 = vmatpush2.msra.mxu0 0.0
  %901 = vmatprep.subr.mxu0 0.0
  %902 = vmatpush2.msra.mxu0 0.0
  %903 = vmatprep.subr.mxu0 0.0
  %904 = vmatpush2.msra.mxu0 0.0
  %905 = vmatprep.subr.mxu0 0.0
  %906 = vmatpush2.msra.mxu0 0.0
  %907 = vmatprep.subr.mxu0 0.0
  %908 = vmatpush2.msra.mxu0 0.0
  %909 = vmatprep.subr.mxu0 0.0
  %910 = vmatpush2.msra.mxu0 0.0
  %911 = vmatprep.subr.mxu0 0.0
  %912 = vmatpush2.msra.mxu0 0.0
  %913 = vmatprep.subr.mxu0 0.0
  %914 = vmatpush2.msra.mxu0 0.0
  %915 = vmatprep.subr.mxu0 0.0
  %916 = vmatpush2.msra.mxu0 0.0
  %917 = vmatprep.subr.mxu0 0.0
  %918 = vmatpush2.msra.mxu0 0.0
  %919 = vmatprep.subr.mxu0 0.0
  %920 = vmatpush2.msra.mxu0 0.0
  %921 = vmatprep.subr.mxu0 0.0
  %922 = vmatpush2.msra.mxu0 0.0
  %923 = vmatprep.mubr.f32.mxu0 0.0
  %924 = vmatmul.mubr.f32.gmra.mxu0 %v854
  %v925 = vpop.f32.mrf.mxu0
  %v926 = vadd.f32 0.0, %v925
  %v927 = vpop.f32.mrf.mxu0
  %928 = vmatprep.mubr.f32.mxu0 0.0
  %929 = vmatmul.mubr.f32.gmra.mxu0 %v857
  %v930 = vpop.f32.mrf.mxu0
  %v931 = vadd.f32 0.0, %v930
  %v932 = vpop.f32.mrf.mxu0
  %933 = vdwg.mxu0
  %v934 = vld [vmem:[%s4] sm:$0xff]
  %s935 = scalar_lea.vmem %s3, 32
  %v936 = vld [vmem:[%s935] sm:$0xff]
  %v937 = vld [vmem:[%s935 + $0x8] sm:$0xff]
  %v938 = vld [vmem:[%s935 + $0x10] sm:$0xff]
  %v939 = vld [vmem:[%s935 + $0x18] sm:$0xff]
  %941 = vrot.lane.b32.xlu0 %v264, 120
  %v942 = vpop.permute.xlu0 %941
  %944 = vmatprep.subr.mxu0 0.0
  %945 = vmatpush1.msra.mxu0 0.0
  %946 = vmatprep.subr.mxu0 0.0
  %947 = vmatpush1.msra.mxu0 0.0
  %948 = vmatprep.subr.mxu0 0.0
  %949 = vmatpush1.msra.mxu0 0.0
  %950 = vmatprep.subr.mxu0 0.0
  %951 = vmatpush1.msra.mxu0 0.0
  %952 = vmatprep.subr.mxu0 0.0
  %953 = vmatpush1.msra.mxu0 0.0
  %954 = vmatprep.subr.mxu0 0.0
  %955 = vmatpush1.msra.mxu0 0.0
  %956 = vmatprep.subr.mxu0 0.0
  %957 = vmatpush1.msra.mxu0 0.0
  %958 = vmatprep.subr.mxu0 0.0
  %959 = vmatpush1.msra.mxu0 0.0
  %960 = vmatprep.subr.mxu0 0.0
  %961 = vmatpush1.msra.mxu0 0.0
  %962 = vmatprep.subr.mxu0 0.0
  %963 = vmatpush1.msra.mxu0 0.0
  %964 = vmatprep.subr.mxu0 0.0
  %965 = vmatpush1.msra.mxu0 0.0
  %966 = vmatprep.subr.mxu0 0.0
  %967 = vmatpush1.msra.mxu0 0.0
  %968 = vmatprep.subr.mxu0 0.0
  %969 = vmatpush1.msra.mxu0 %v939
  %970 = vmatprep.subr.mxu0 0.0
  %971 = vmatpush1.msra.mxu0 %v938
  %972 = vmatprep.subr.mxu0 0.0
  %973 = vmatpush1.msra.mxu0 %v937
  %974 = vmatprep.subr.mxu0 0.0
  %975 = vmatpush1.msra.mxu0 %v936
  %976 = vmatprep.subr.mxu0 0.0
  %977 = vmatpush2.msra.mxu0 0.0
  %978 = vmatprep.subr.mxu0 0.0
  %979 = vmatpush2.msra.mxu0 0.0
  %980 = vmatprep.subr.mxu0 0.0
  %981 = vmatpush2.msra.mxu0 0.0
  %982 = vmatprep.subr.mxu0 0.0
  %983 = vmatpush2.msra.mxu0 0.0
  %984 = vmatprep.subr.mxu0 0.0
  %985 = vmatpush2.msra.mxu0 0.0
  %986 = vmatprep.subr.mxu0 0.0
  %987 = vmatpush2.msra.mxu0 0.0
  %988 = vmatprep.subr.mxu0 0.0
  %989 = vmatpush2.msra.mxu0 0.0
  %990 = vmatprep.subr.mxu0 0.0
  %991 = vmatpush2.msra.mxu0 0.0
  %992 = vmatprep.subr.mxu0 0.0
  %993 = vmatpush2.msra.mxu0 0.0
  %994 = vmatprep.subr.mxu0 0.0
  %995 = vmatpush2.msra.mxu0 0.0
  %996 = vmatprep.subr.mxu0 0.0
  %997 = vmatpush2.msra.mxu0 0.0
  %998 = vmatprep.subr.mxu0 0.0
  %999 = vmatpush2.msra.mxu0 0.0
  %1000 = vmatprep.subr.mxu0 0.0
  %1001 = vmatpush2.msra.mxu0 0.0
  %1002 = vmatprep.subr.mxu0 0.0
  %1003 = vmatpush2.msra.mxu0 0.0
  %1004 = vmatprep.subr.mxu0 0.0
  %1005 = vmatpush2.msra.mxu0 0.0
  %1006 = vmatprep.subr.mxu0 0.0
  %1007 = vmatpush2.msra.mxu0 0.0
  %1008 = vmatprep.mubr.f32.mxu0 0.0
  %1009 = vmatmul.mubr.f32.gmra.mxu0 %v267
  %v1010 = vpop.f32.mrf.mxu0
  %v1011 = vadd.f32 %v942, %v1010
  %v1012 = vpop.f32.mrf.mxu0
  %1013 = vmatprep.mubr.f32.mxu0 0.0
  %1014 = vmatmul.mubr.f32.gmra.mxu0 %v270
  %v1015 = vpop.f32.mrf.mxu0
  %v1016 = vadd.f32 %v942, %v1015
  %v1017 = vpop.f32.mrf.mxu0
  %1018 = vmatprep.mubr.f32.mxu0 0.0
  %1019 = vmatmul.mubr.f32.gmra.mxu0 %v273
  %v1020 = vpop.f32.mrf.mxu0
  %v1021 = vadd.f32 %v942, %v1020
  %v1022 = vpop.f32.mrf.mxu0
  %1023 = vmatprep.mubr.f32.mxu0 0.0
  %1024 = vmatmul.mubr.f32.gmra.mxu0 %v276
  %v1025 = vpop.f32.mrf.mxu0
  %v1026 = vadd.f32 %v942, %v1025
  %v1027 = vpop.f32.mrf.mxu0
  %1028 = vdwg.mxu0
  %s1029 = scalar_lea.vmem %s3, 160
  %v1030 = vld [vmem:[%s1029] sm:$0xff]
  %v1031 = vld [vmem:[%s1029 + $0x8] sm:$0xff]
  %v1032 = vld [vmem:[%s1029 + $0x10] sm:$0xff]
  %v1033 = vld [vmem:[%s1029 + $0x18] sm:$0xff]
  %1035 = vrot.lane.b32.xlu0 %v372, 120
  %v1036 = vpop.permute.xlu0 %1035
  %1038 = vmatprep.subr.mxu0 0.0
  %1039 = vmatpush1.msra.mxu0 0.0
  %1040 = vmatprep.subr.mxu0 0.0
  %1041 = vmatpush1.msra.mxu0 0.0
  %1042 = vmatprep.subr.mxu0 0.0
  %1043 = vmatpush1.msra.mxu0 0.0
  %1044 = vmatprep.subr.mxu0 0.0
  %1045 = vmatpush1.msra.mxu0 0.0
  %1046 = vmatprep.subr.mxu0 0.0
  %1047 = vmatpush1.msra.mxu0 0.0
  %1048 = vmatprep.subr.mxu0 0.0
  %1049 = vmatpush1.msra.mxu0 0.0
  %1050 = vmatprep.subr.mxu0 0.0
  %1051 = vmatpush1.msra.mxu0 0.0
  %1052 = vmatprep.subr.mxu0 0.0
  %1053 = vmatpush1.msra.mxu0 0.0
  %1054 = vmatprep.subr.mxu0 0.0
  %1055 = vmatpush1.msra.mxu0 0.0
  %1056 = vmatprep.subr.mxu0 0.0
  %1057 = vmatpush1.msra.mxu0 0.0
  %1058 = vmatprep.subr.mxu0 0.0
  %1059 = vmatpush1.msra.mxu0 0.0
  %1060 = vmatprep.subr.mxu0 0.0
  %1061 = vmatpush1.msra.mxu0 0.0
  %1062 = vmatprep.subr.mxu0 0.0
  %1063 = vmatpush1.msra.mxu0 %v1033
  %1064 = vmatprep.subr.mxu0 0.0
  %1065 = vmatpush1.msra.mxu0 %v1032
  %1066 = vmatprep.subr.mxu0 0.0
  %1067 = vmatpush1.msra.mxu0 %v1031
  %1068 = vmatprep.subr.mxu0 0.0
  %1069 = vmatpush1.msra.mxu0 %v1030
  %1070 = vmatprep.subr.mxu0 0.0
  %1071 = vmatpush2.msra.mxu0 0.0
  %1072 = vmatprep.subr.mxu0 0.0
  %1073 = vmatpush2.msra.mxu0 0.0
  %1074 = vmatprep.subr.mxu0 0.0
  %1075 = vmatpush2.msra.mxu0 0.0
  %1076 = vmatprep.subr.mxu0 0.0
  %1077 = vmatpush2.msra.mxu0 0.0
  %1078 = vmatprep.subr.mxu0 0.0
  %1079 = vmatpush2.msra.mxu0 0.0
  %1080 = vmatprep.subr.mxu0 0.0
  %1081 = vmatpush2.msra.mxu0 0.0
  %1082 = vmatprep.subr.mxu0 0.0
  %1083 = vmatpush2.msra.mxu0 0.0
  %1084 = vmatprep.subr.mxu0 0.0
  %1085 = vmatpush2.msra.mxu0 0.0
  %1086 = vmatprep.subr.mxu0 0.0
  %1087 = vmatpush2.msra.mxu0 0.0
  %1088 = vmatprep.subr.mxu0 0.0
  %1089 = vmatpush2.msra.mxu0 0.0
  %1090 = vmatprep.subr.mxu0 0.0
  %1091 = vmatpush2.msra.mxu0 0.0
  %1092 = vmatprep.subr.mxu0 0.0
  %1093 = vmatpush2.msra.mxu0 0.0
  %1094 = vmatprep.subr.mxu0 0.0
  %1095 = vmatpush2.msra.mxu0 0.0
  %1096 = vmatprep.subr.mxu0 0.0
  %1097 = vmatpush2.msra.mxu0 0.0
  %1098 = vmatprep.subr.mxu0 0.0
  %1099 = vmatpush2.msra.mxu0 0.0
  %1100 = vmatprep.subr.mxu0 0.0
  %1101 = vmatpush2.msra.mxu0 0.0
  %1102 = vmatprep.mubr.f32.mxu0 0.0
  %1103 = vmatmul.mubr.f32.gmra.mxu0 %v267
  %v1104 = vpop.f32.mrf.mxu0
  %v1105 = vadd.f32 %v1036, %v1104
  %v1106 = vpop.f32.mrf.mxu0
  %1107 = vmatprep.mubr.f32.mxu0 0.0
  %1108 = vmatmul.mubr.f32.gmra.mxu0 %v270
  %v1109 = vpop.f32.mrf.mxu0
  %v1110 = vadd.f32 %v1036, %v1109
  %v1111 = vpop.f32.mrf.mxu0
  %1112 = vmatprep.mubr.f32.mxu0 0.0
  %1113 = vmatmul.mubr.f32.gmra.mxu0 %v273
  %v1114 = vpop.f32.mrf.mxu0
  %v1115 = vadd.f32 %v1036, %v1114
  %v1116 = vpop.f32.mrf.mxu0
  %1117 = vmatprep.mubr.f32.mxu0 0.0
  %1118 = vmatmul.mubr.f32.gmra.mxu0 %v276
  %v1119 = vpop.f32.mrf.mxu0
  %v1120 = vadd.f32 %v1036, %v1119
  %v1121 = vpop.f32.mrf.mxu0
  %1122 = vdwg.mxu0
  %s1123 = scalar_lea.vmem %s3, 288
  %v1124 = vld [vmem:[%s1123] sm:$0xff]
  %v1125 = vld [vmem:[%s1123 + $0x8] sm:$0xff]
  %v1126 = vld [vmem:[%s1123 + $0x10] sm:$0xff]
  %v1127 = vld [vmem:[%s1123 + $0x18] sm:$0xff]
  %1129 = vrot.lane.b32.xlu0 %v467, 120
  %v1130 = vpop.permute.xlu0 %1129
  %1132 = vmatprep.subr.mxu0 0.0
  %1133 = vmatpush1.msra.mxu0 0.0
  %1134 = vmatprep.subr.mxu0 0.0
  %1135 = vmatpush1.msra.mxu0 0.0
  %1136 = vmatprep.subr.mxu0 0.0
  %1137 = vmatpush1.msra.mxu0 0.0
  %1138 = vmatprep.subr.mxu0 0.0
  %1139 = vmatpush1.msra.mxu0 0.0
  %1140 = vmatprep.subr.mxu0 0.0
  %1141 = vmatpush1.msra.mxu0 0.0
  %1142 = vmatprep.subr.mxu0 0.0
  %1143 = vmatpush1.msra.mxu0 0.0
  %1144 = vmatprep.subr.mxu0 0.0
  %1145 = vmatpush1.msra.mxu0 0.0
  %1146 = vmatprep.subr.mxu0 0.0
  %1147 = vmatpush1.msra.mxu0 0.0
  %1148 = vmatprep.subr.mxu0 0.0
  %1149 = vmatpush1.msra.mxu0 0.0
  %1150 = vmatprep.subr.mxu0 0.0
  %1151 = vmatpush1.msra.mxu0 0.0
  %1152 = vmatprep.subr.mxu0 0.0
  %1153 = vmatpush1.msra.mxu0 0.0
  %1154 = vmatprep.subr.mxu0 0.0
  %1155 = vmatpush1.msra.mxu0 0.0
  %1156 = vmatprep.subr.mxu0 0.0
  %1157 = vmatpush1.msra.mxu0 %v1127
  %1158 = vmatprep.subr.mxu0 0.0
  %1159 = vmatpush1.msra.mxu0 %v1126
  %1160 = vmatprep.subr.mxu0 0.0
  %1161 = vmatpush1.msra.mxu0 %v1125
  %1162 = vmatprep.subr.mxu0 0.0
  %1163 = vmatpush1.msra.mxu0 %v1124
  %1164 = vmatprep.subr.mxu0 0.0
  %1165 = vmatpush2.msra.mxu0 0.0
  %1166 = vmatprep.subr.mxu0 0.0
  %1167 = vmatpush2.msra.mxu0 0.0
  %1168 = vmatprep.subr.mxu0 0.0
  %1169 = vmatpush2.msra.mxu0 0.0
  %1170 = vmatprep.subr.mxu0 0.0
  %1171 = vmatpush2.msra.mxu0 0.0
  %1172 = vmatprep.subr.mxu0 0.0
  %1173 = vmatpush2.msra.mxu0 0.0
  %1174 = vmatprep.subr.mxu0 0.0
  %1175 = vmatpush2.msra.mxu0 0.0
  %1176 = vmatprep.subr.mxu0 0.0
  %1177 = vmatpush2.msra.mxu0 0.0
  %1178 = vmatprep.subr.mxu0 0.0
  %1179 = vmatpush2.msra.mxu0 0.0
  %1180 = vmatprep.subr.mxu0 0.0
  %1181 = vmatpush2.msra.mxu0 0.0
  %1182 = vmatprep.subr.mxu0 0.0
  %1183 = vmatpush2.msra.mxu0 0.0
  %1184 = vmatprep.subr.mxu0 0.0
  %1185 = vmatpush2.msra.mxu0 0.0
  %1186 = vmatprep.subr.mxu0 0.0
  %1187 = vmatpush2.msra.mxu0 0.0
  %1188 = vmatprep.subr.mxu0 0.0
  %1189 = vmatpush2.msra.mxu0 0.0
  %1190 = vmatprep.subr.mxu0 0.0
  %1191 = vmatpush2.msra.mxu0 0.0
  %1192 = vmatprep.subr.mxu0 0.0
  %1193 = vmatpush2.msra.mxu0 0.0
  %1194 = vmatprep.subr.mxu0 0.0
  %1195 = vmatpush2.msra.mxu0 0.0
  %1196 = vmatprep.mubr.f32.mxu0 0.0
  %1197 = vmatmul.mubr.f32.gmra.mxu0 %v267
  %v1198 = vpop.f32.mrf.mxu0
  %v1199 = vadd.f32 %v1130, %v1198
  %v1200 = vpop.f32.mrf.mxu0
  %1201 = vmatprep.mubr.f32.mxu0 0.0
  %1202 = vmatmul.mubr.f32.gmra.mxu0 %v270
  %v1203 = vpop.f32.mrf.mxu0
  %v1204 = vadd.f32 %v1130, %v1203
  %v1205 = vpop.f32.mrf.mxu0
  %1206 = vmatprep.mubr.f32.mxu0 0.0
  %1207 = vmatmul.mubr.f32.gmra.mxu0 %v273
  %v1208 = vpop.f32.mrf.mxu0
  %v1209 = vadd.f32 %v1130, %v1208
  %v1210 = vpop.f32.mrf.mxu0
  %1211 = vmatprep.mubr.f32.mxu0 0.0
  %1212 = vmatmul.mubr.f32.gmra.mxu0 %v276
  %v1213 = vpop.f32.mrf.mxu0
  %v1214 = vadd.f32 %v1130, %v1213
  %v1215 = vpop.f32.mrf.mxu0
  %1216 = vdwg.mxu0
  %v1218 = vsel %vm553, %v1011, 0
  %v1221 = vsel %vm553, %v1016, 0
  %v1224 = vsel %vm553, %v1105, 0
  %v1227 = vsel %vm553, %v1110, 0
  %1229 = vmatprep.subr.mxu0 0.0
  %1230 = vmatpush1.xpose.msra.mxu0 0.0
  %1231 = vmatprep.subr.mxu0 0.0
  %1232 = vmatpush1.xpose.msra.mxu0 0.0
  %1233 = vmatprep.subr.mxu0 0.0
  %1234 = vmatpush1.xpose.msra.mxu0 0.0
  %1235 = vmatprep.subr.mxu0 0.0
  %1236 = vmatpush1.xpose.msra.mxu0 0.0
  %1237 = vmatprep.subr.mxu0 0.0
  %1238 = vmatpush1.xpose.msra.mxu0 0.0
  %1239 = vmatprep.subr.mxu0 0.0
  %1240 = vmatpush1.xpose.msra.mxu0 0.0
  %1241 = vmatprep.subr.mxu0 0.0
  %1242 = vmatpush1.xpose.msra.mxu0 0.0
  %1243 = vmatprep.subr.mxu0 0.0
  %1244 = vmatpush1.xpose.msra.mxu0 0.0
  %1245 = vmatprep.subr.mxu0 0.0
  %1246 = vmatpush1.xpose.msra.mxu0 0.0
  %1247 = vmatprep.subr.mxu0 0.0
  %1248 = vmatpush1.xpose.msra.mxu0 0.0
  %1249 = vmatprep.subr.mxu0 0.0
  %1250 = vmatpush1.xpose.msra.mxu0 0.0
  %1251 = vmatprep.subr.mxu0 0.0
  %1252 = vmatpush1.xpose.msra.mxu0 0.0
  %1253 = vmatprep.subr.mxu0 0.0
  %1254 = vmatpush1.xpose.msra.mxu0 0.0
  %1255 = vmatprep.subr.mxu0 0.0
  %1256 = vmatpush1.xpose.msra.mxu0 0.0
  %1257 = vmatprep.subr.mxu0 0.0
  %1258 = vmatpush1.xpose.msra.mxu0 %v1227
  %1259 = vmatprep.subr.mxu0 0.0
  %1260 = vmatpush1.xpose.msra.mxu0 %v1224
  %1261 = vmatprep.subr.mxu0 0.0
  %1262 = vmatpush2.xpose.msra.mxu0 0.0
  %1263 = vmatprep.subr.mxu0 0.0
  %1264 = vmatpush2.xpose.msra.mxu0 0.0
  %1265 = vmatprep.subr.mxu0 0.0
  %1266 = vmatpush2.xpose.msra.mxu0 0.0
  %1267 = vmatprep.subr.mxu0 0.0
  %1268 = vmatpush2.xpose.msra.mxu0 0.0
  %1269 = vmatprep.subr.mxu0 0.0
  %1270 = vmatpush2.xpose.msra.mxu0 0.0
  %1271 = vmatprep.subr.mxu0 0.0
  %1272 = vmatpush2.xpose.msra.mxu0 0.0
  %1273 = vmatprep.subr.mxu0 0.0
  %1274 = vmatpush2.xpose.msra.mxu0 0.0
  %1275 = vmatprep.subr.mxu0 0.0
  %1276 = vmatpush2.xpose.msra.mxu0 0.0
  %1277 = vmatprep.subr.mxu0 0.0
  %1278 = vmatpush2.xpose.msra.mxu0 0.0
  %1279 = vmatprep.subr.mxu0 0.0
  %1280 = vmatpush2.xpose.msra.mxu0 0.0
  %1281 = vmatprep.subr.mxu0 0.0
  %1282 = vmatpush2.xpose.msra.mxu0 0.0
  %1283 = vmatprep.subr.mxu0 0.0
  %1284 = vmatpush2.xpose.msra.mxu0 0.0
  %1285 = vmatprep.subr.mxu0 0.0
  %1286 = vmatpush2.xpose.msra.mxu0 0.0
  %1287 = vmatprep.subr.mxu0 0.0
  %1288 = vmatpush2.xpose.msra.mxu0 0.0
  %1289 = vmatprep.subr.mxu0 0.0
  %1290 = vmatpush2.xpose.msra.mxu0 0.0
  %1291 = vmatprep.subr.mxu0 0.0
  %1292 = vmatpush2.xpose.msra.mxu0 0.0
  %1293 = vmatprep.mubr.f32.mxu0 0.0
  %1294 = vmatmul.mubr.f32.gmra.mxu0 %v1218
  %v1295 = vpop.f32.mrf.mxu0
  %v1296 = vadd.f32 0.0, %v1295
  %v1297 = vpop.f32.mrf.mxu0
  %1298 = vmatprep.mubr.f32.mxu0 0.0
  %1299 = vmatmul.mubr.f32.gmra.mxu0 %v1221
  %v1300 = vpop.f32.mrf.mxu0
  %v1301 = vadd.f32 0.0, %v1300
  %v1302 = vpop.f32.mrf.mxu0
  %1303 = vdwg.mxu0
  %v1304 = vsel %vm158, %v1296, -inf
  %1305 = vmax.xlane.f32.xlu0 %v1304
  %v1306 = vpop.xlane.xlu0 %1305
  %v1307 = vsel %vm158, %v1301, -inf
  %1308 = vmax.xlane.f32.xlu0 %v1307
  %v1309 = vpop.xlane.xlu0 %1308
  %v1310 = vsub.f32 %v1296, %v1306
  %v1311 = vsub.f32 %v1301, %v1309
  %v1312 = vmul.f32 %v1310, 1.442695
  %v1313 = vpow.pop %v1312
  %v1314 = vmul.f32 %v1311, 1.442695
  %v1315 = vpow.pop %v1314
  %v1316 = vsel %vm158, %v1313, 0.0
  %1317 = vadd.xlane.f32.xlu0 %v1316
  %v1318 = vpop.xlane.xlu0 %1317
  %v1319 = vsel %vm158, %v1315, 0.0
  %1320 = vadd.xlane.f32.xlu0 %v1319
  %v1321 = vpop.xlane.xlu0 %1320
  %v1322 = vrcp.pop %v1318
  %v1323 = vrcp.pop %v1321
  %v1324 = vmul.f32 %v1313, %v1322
  %v1325 = vmul.f32 %v1315, %v1323
  %v1327 = vsel %vm158, %v1324, 0
  %v1330 = vsel %vm158, %v1325, 0
  %1332 = vmatprep.subr.mxu0 0.0
  %1333 = vmatpush1.msra.mxu0 0.0
  %1334 = vmatprep.subr.mxu0 0.0
  %1335 = vmatpush1.msra.mxu0 0.0
  %1336 = vmatprep.subr.mxu0 0.0
  %1337 = vmatpush1.msra.mxu0 0.0
  %1338 = vmatprep.subr.mxu0 0.0
  %1339 = vmatpush1.msra.mxu0 0.0
  %1340 = vmatprep.subr.mxu0 0.0
  %1341 = vmatpush1.msra.mxu0 0.0
  %1342 = vmatprep.subr.mxu0 0.0
  %1343 = vmatpush1.msra.mxu0 0.0
  %1344 = vmatprep.subr.mxu0 0.0
  %1345 = vmatpush1.msra.mxu0 0.0
  %1346 = vmatprep.subr.mxu0 0.0
  %1347 = vmatpush1.msra.mxu0 0.0
  %1348 = vmatprep.subr.mxu0 0.0
  %1349 = vmatpush1.msra.mxu0 0.0
  %1350 = vmatprep.subr.mxu0 0.0
  %1351 = vmatpush1.msra.mxu0 0.0
  %1352 = vmatprep.subr.mxu0 0.0
  %1353 = vmatpush1.msra.mxu0 0.0
  %1354 = vmatprep.subr.mxu0 0.0
  %1355 = vmatpush1.msra.mxu0 0.0
  %1356 = vmatprep.subr.mxu0 0.0
  %1357 = vmatpush1.msra.mxu0 0.0
  %1358 = vmatprep.subr.mxu0 0.0
  %1359 = vmatpush1.msra.mxu0 0.0
  %1360 = vmatprep.subr.mxu0 0.0
  %1361 = vmatpush1.msra.mxu0 %v1204
  %1362 = vmatprep.subr.mxu0 0.0
  %1363 = vmatpush1.msra.mxu0 %v1199
  %1364 = vmatprep.subr.mxu0 0.0
  %1365 = vmatpush2.msra.mxu0 0.0
  %1366 = vmatprep.subr.mxu0 0.0
  %1367 = vmatpush2.msra.mxu0 0.0
  %1368 = vmatprep.subr.mxu0 0.0
  %1369 = vmatpush2.msra.mxu0 0.0
  %1370 = vmatprep.subr.mxu0 0.0
  %1371 = vmatpush2.msra.mxu0 0.0
  %1372 = vmatprep.subr.mxu0 0.0
  %1373 = vmatpush2.msra.mxu0 0.0
  %1374 = vmatprep.subr.mxu0 0.0
  %1375 = vmatpush2.msra.mxu0 0.0
  %1376 = vmatprep.subr.mxu0 0.0
  %1377 = vmatpush2.msra.mxu0 0.0
  %1378 = vmatprep.subr.mxu0 0.0
  %1379 = vmatpush2.msra.mxu0 0.0
  %1380 = vmatprep.subr.mxu0 0.0
  %1381 = vmatpush2.msra.mxu0 0.0
  %1382 = vmatprep.subr.mxu0 0.0
  %1383 = vmatpush2.msra.mxu0 0.0
  %1384 = vmatprep.subr.mxu0 0.0
  %1385 = vmatpush2.msra.mxu0 0.0
  %1386 = vmatprep.subr.mxu0 0.0
  %1387 = vmatpush2.msra.mxu0 0.0
  %1388 = vmatprep.subr.mxu0 0.0
  %1389 = vmatpush2.msra.mxu0 0.0
  %1390 = vmatprep.subr.mxu0 0.0
  %1391 = vmatpush2.msra.mxu0 0.0
  %1392 = vmatprep.subr.mxu0 0.0
  %1393 = vmatpush2.msra.mxu0 0.0
  %1394 = vmatprep.subr.mxu0 0.0
  %1395 = vmatpush2.msra.mxu0 0.0
  %1396 = vmatprep.mubr.f32.mxu0 0.0
  %1397 = vmatmul.mubr.f32.gmra.mxu0 %v1327
  %v1398 = vpop.f32.mrf.mxu0
  %v1399 = vadd.f32 0.0, %v1398
  %v1400 = vpop.f32.mrf.mxu0
  %1401 = vmatprep.mubr.f32.mxu0 0.0
  %1402 = vmatmul.mubr.f32.gmra.mxu0 %v1330
  %v1403 = vpop.f32.mrf.mxu0
  %v1404 = vadd.f32 0.0, %v1403
  %v1405 = vpop.f32.mrf.mxu0
  %1406 = vdwg.mxu0
  %v1408 = vsel %vm553, %v1021, 0
  %v1411 = vsel %vm553, %v1026, 0
  %v1414 = vsel %vm553, %v1115, 0
  %v1417 = vsel %vm553, %v1120, 0
  %1419 = vmatprep.subr.mxu0 0.0
  %1420 = vmatpush1.xpose.msra.mxu0 0.0
  %1421 = vmatprep.subr.mxu0 0.0
  %1422 = vmatpush1.xpose.msra.mxu0 0.0
  %1423 = vmatprep.subr.mxu0 0.0
  %1424 = vmatpush1.xpose.msra.mxu0 0.0
  %1425 = vmatprep.subr.mxu0 0.0
  %1426 = vmatpush1.xpose.msra.mxu0 0.0
  %1427 = vmatprep.subr.mxu0 0.0
  %1428 = vmatpush1.xpose.msra.mxu0 0.0
  %1429 = vmatprep.subr.mxu0 0.0
  %1430 = vmatpush1.xpose.msra.mxu0 0.0
  %1431 = vmatprep.subr.mxu0 0.0
  %1432 = vmatpush1.xpose.msra.mxu0 0.0
  %1433 = vmatprep.subr.mxu0 0.0
  %1434 = vmatpush1.xpose.msra.mxu0 0.0
  %1435 = vmatprep.subr.mxu0 0.0
  %1436 = vmatpush1.xpose.msra.mxu0 0.0
  %1437 = vmatprep.subr.mxu0 0.0
  %1438 = vmatpush1.xpose.msra.mxu0 0.0
  %1439 = vmatprep.subr.mxu0 0.0
  %1440 = vmatpush1.xpose.msra.mxu0 0.0
  %1441 = vmatprep.subr.mxu0 0.0
  %1442 = vmatpush1.xpose.msra.mxu0 0.0
  %1443 = vmatprep.subr.mxu0 0.0
  %1444 = vmatpush1.xpose.msra.mxu0 0.0
  %1445 = vmatprep.subr.mxu0 0.0
  %1446 = vmatpush1.xpose.msra.mxu0 0.0
  %1447 = vmatprep.subr.mxu0 0.0
  %1448 = vmatpush1.xpose.msra.mxu0 %v1417
  %1449 = vmatprep.subr.mxu0 0.0
  %1450 = vmatpush1.xpose.msra.mxu0 %v1414
  %1451 = vmatprep.subr.mxu0 0.0
  %1452 = vmatpush2.xpose.msra.mxu0 0.0
  %1453 = vmatprep.subr.mxu0 0.0
  %1454 = vmatpush2.xpose.msra.mxu0 0.0
  %1455 = vmatprep.subr.mxu0 0.0
  %1456 = vmatpush2.xpose.msra.mxu0 0.0
  %1457 = vmatprep.subr.mxu0 0.0
  %1458 = vmatpush2.xpose.msra.mxu0 0.0
  %1459 = vmatprep.subr.mxu0 0.0
  %1460 = vmatpush2.xpose.msra.mxu0 0.0
  %1461 = vmatprep.subr.mxu0 0.0
  %1462 = vmatpush2.xpose.msra.mxu0 0.0
  %1463 = vmatprep.subr.mxu0 0.0
  %1464 = vmatpush2.xpose.msra.mxu0 0.0
  %1465 = vmatprep.subr.mxu0 0.0
  %1466 = vmatpush2.xpose.msra.mxu0 0.0
  %1467 = vmatprep.subr.mxu0 0.0
  %1468 = vmatpush2.xpose.msra.mxu0 0.0
  %1469 = vmatprep.subr.mxu0 0.0
  %1470 = vmatpush2.xpose.msra.mxu0 0.0
  %1471 = vmatprep.subr.mxu0 0.0
  %1472 = vmatpush2.xpose.msra.mxu0 0.0
  %1473 = vmatprep.subr.mxu0 0.0
  %1474 = vmatpush2.xpose.msra.mxu0 0.0
  %1475 = vmatprep.subr.mxu0 0.0
  %1476 = vmatpush2.xpose.msra.mxu0 0.0
  %1477 = vmatprep.subr.mxu0 0.0
  %1478 = vmatpush2.xpose.msra.mxu0 0.0
  %1479 = vmatprep.subr.mxu0 0.0
  %1480 = vmatpush2.xpose.msra.mxu0 0.0
  %1481 = vmatprep.subr.mxu0 0.0
  %1482 = vmatpush2.xpose.msra.mxu0 0.0
  %1483 = vmatprep.mubr.f32.mxu0 0.0
  %1484 = vmatmul.mubr.f32.gmra.mxu0 %v1408
  %v1485 = vpop.f32.mrf.mxu0
  %v1486 = vadd.f32 0.0, %v1485
  %v1487 = vpop.f32.mrf.mxu0
  %1488 = vmatprep.mubr.f32.mxu0 0.0
  %1489 = vmatmul.mubr.f32.gmra.mxu0 %v1411
  %v1490 = vpop.f32.mrf.mxu0
  %v1491 = vadd.f32 0.0, %v1490
  %v1492 = vpop.f32.mrf.mxu0
  %1493 = vdwg.mxu0
  %v1494 = vsel %vm158, %v1486, -inf
  %1495 = vmax.xlane.f32.xlu0 %v1494
  %v1496 = vpop.xlane.xlu0 %1495
  %v1497 = vsel %vm158, %v1491, -inf
  %1498 = vmax.xlane.f32.xlu0 %v1497
  %v1499 = vpop.xlane.xlu0 %1498
  %v1500 = vsub.f32 %v1486, %v1496
  %v1501 = vsub.f32 %v1491, %v1499
  %v1502 = vmul.f32 %v1500, 1.442695
  %v1503 = vpow.pop %v1502
  %v1504 = vmul.f32 %v1501, 1.442695
  %v1505 = vpow.pop %v1504
  %v1506 = vsel %vm158, %v1503, 0.0
  %1507 = vadd.xlane.f32.xlu0 %v1506
  %v1508 = vpop.xlane.xlu0 %1507
  %v1509 = vsel %vm158, %v1505, 0.0
  %1510 = vadd.xlane.f32.xlu0 %v1509
  %v1511 = vpop.xlane.xlu0 %1510
  %v1512 = vrcp.pop %v1508
  %v1513 = vrcp.pop %v1511
  %v1514 = vmul.f32 %v1503, %v1512
  %v1515 = vmul.f32 %v1505, %v1513
  %v1517 = vsel %vm158, %v1514, 0
  %v1520 = vsel %vm158, %v1515, 0
  %1522 = vmatprep.subr.mxu0 0.0
  %1523 = vmatpush1.msra.mxu0 0.0
  %1524 = vmatprep.subr.mxu0 0.0
  %1525 = vmatpush1.msra.mxu0 0.0
  %1526 = vmatprep.subr.mxu0 0.0
  %1527 = vmatpush1.msra.mxu0 0.0
  %1528 = vmatprep.subr.mxu0 0.0
  %1529 = vmatpush1.msra.mxu0 0.0
  %1530 = vmatprep.subr.mxu0 0.0
  %1531 = vmatpush1.msra.mxu0 0.0
  %1532 = vmatprep.subr.mxu0 0.0
  %1533 = vmatpush1.msra.mxu0 0.0
  %1534 = vmatprep.subr.mxu0 0.0
  %1535 = vmatpush1.msra.mxu0 0.0
  %1536 = vmatprep.subr.mxu0 0.0
  %1537 = vmatpush1.msra.mxu0 0.0
  %1538 = vmatprep.subr.mxu0 0.0
  %1539 = vmatpush1.msra.mxu0 0.0
  %1540 = vmatprep.subr.mxu0 0.0
  %1541 = vmatpush1.msra.mxu0 0.0
  %1542 = vmatprep.subr.mxu0 0.0
  %1543 = vmatpush1.msra.mxu0 0.0
  %1544 = vmatprep.subr.mxu0 0.0
  %1545 = vmatpush1.msra.mxu0 0.0
  %1546 = vmatprep.subr.mxu0 0.0
  %1547 = vmatpush1.msra.mxu0 0.0
  %1548 = vmatprep.subr.mxu0 0.0
  %1549 = vmatpush1.msra.mxu0 0.0
  %1550 = vmatprep.subr.mxu0 0.0
  %1551 = vmatpush1.msra.mxu0 %v1214
  %1552 = vmatprep.subr.mxu0 0.0
  %1553 = vmatpush1.msra.mxu0 %v1209
  %1554 = vmatprep.subr.mxu0 0.0
  %1555 = vmatpush2.msra.mxu0 0.0
  %1556 = vmatprep.subr.mxu0 0.0
  %1557 = vmatpush2.msra.mxu0 0.0
  %1558 = vmatprep.subr.mxu0 0.0
  %1559 = vmatpush2.msra.mxu0 0.0
  %1560 = vmatprep.subr.mxu0 0.0
  %1561 = vmatpush2.msra.mxu0 0.0
  %1562 = vmatprep.subr.mxu0 0.0
  %1563 = vmatpush2.msra.mxu0 0.0
  %1564 = vmatprep.subr.mxu0 0.0
  %1565 = vmatpush2.msra.mxu0 0.0
  %1566 = vmatprep.subr.mxu0 0.0
  %1567 = vmatpush2.msra.mxu0 0.0
  %1568 = vmatprep.subr.mxu0 0.0
  %1569 = vmatpush2.msra.mxu0 0.0
  %1570 = vmatprep.subr.mxu0 0.0
  %1571 = vmatpush2.msra.mxu0 0.0
  %1572 = vmatprep.subr.mxu0 0.0
  %1573 = vmatpush2.msra.mxu0 0.0
  %1574 = vmatprep.subr.mxu0 0.0
  %1575 = vmatpush2.msra.mxu0 0.0
  %1576 = vmatprep.subr.mxu0 0.0
  %1577 = vmatpush2.msra.mxu0 0.0
  %1578 = vmatprep.subr.mxu0 0.0
  %1579 = vmatpush2.msra.mxu0 0.0
  %1580 = vmatprep.subr.mxu0 0.0
  %1581 = vmatpush2.msra.mxu0 0.0
  %1582 = vmatprep.subr.mxu0 0.0
  %1583 = vmatpush2.msra.mxu0 0.0
  %1584 = vmatprep.subr.mxu0 0.0
  %1585 = vmatpush2.msra.mxu0 0.0
  %1586 = vmatprep.mubr.f32.mxu0 0.0
  %1587 = vmatmul.mubr.f32.gmra.mxu0 %v1517
  %v1588 = vpop.f32.mrf.mxu0
  %v1589 = vadd.f32 0.0, %v1588
  %v1590 = vpop.f32.mrf.mxu0
  %1591 = vmatprep.mubr.f32.mxu0 0.0
  %1592 = vmatmul.mubr.f32.gmra.mxu0 %v1520
  %v1593 = vpop.f32.mrf.mxu0
  %v1594 = vadd.f32 0.0, %v1593
  %v1595 = vpop.f32.mrf.mxu0
  %1596 = vdwg.mxu0
  %s1597 = scalar_lea.vmem %s4, 8
  %v1598 = vld [vmem:[%s1597] sm:$0xff]
  %v1600 = vsel %vm553, %v1399, 0
  %v1603 = vsel %vm553, %v1404, 0
  %v1606 = vsel %vm553, %v1589, 0
  %v1609 = vsel %vm553, %v1594, 0
  %1611 = vmatprep.subr.mxu0 0.0
  %1612 = vmatpush1.msra.mxu0 0.0
  %1613 = vmatprep.subr.mxu0 0.0
  %1614 = vmatpush1.msra.mxu0 0.0
  %1615 = vmatprep.subr.mxu0 0.0
  %1616 = vmatpush1.msra.mxu0 0.0
  %1617 = vmatprep.subr.mxu0 0.0
  %1618 = vmatpush1.msra.mxu0 0.0
  %1619 = vmatprep.subr.mxu0 0.0
  %1620 = vmatpush1.msra.mxu0 0.0
  %1621 = vmatprep.subr.mxu0 0.0
  %1622 = vmatpush1.msra.mxu0 0.0
  %1623 = vmatprep.subr.mxu0 0.0
  %1624 = vmatpush1.msra.mxu0 0.0
  %1625 = vmatprep.subr.mxu0 0.0
  %1626 = vmatpush1.msra.mxu0 0.0
  %1627 = vmatprep.subr.mxu0 0.0
  %1628 = vmatpush1.msra.mxu0 0.0
  %1629 = vmatprep.subr.mxu0 0.0
  %1630 = vmatpush1.msra.mxu0 0.0
  %1631 = vmatprep.subr.mxu0 0.0
  %1632 = vmatpush1.msra.mxu0 0.0
  %1633 = vmatprep.subr.mxu0 0.0
  %1634 = vmatpush1.msra.mxu0 0.0
  %1635 = vmatprep.subr.mxu0 0.0
  %1636 = vmatpush1.msra.mxu0 0.0
  %1637 = vmatprep.subr.mxu0 0.0
  %1638 = vmatpush1.msra.mxu0 0.0
  %1639 = vmatprep.subr.mxu0 0.0
  %1640 = vmatpush1.msra.mxu0 0.0
  %1641 = vmatprep.subr.mxu0 0.0
  %1642 = vmatpush1.msra.mxu0 %v1598
  %1643 = vmatprep.subr.mxu0 0.0
  %1644 = vmatpush2.msra.mxu0 0.0
  %1645 = vmatprep.subr.mxu0 0.0
  %1646 = vmatpush2.msra.mxu0 0.0
  %1647 = vmatprep.subr.mxu0 0.0
  %1648 = vmatpush2.msra.mxu0 0.0
  %1649 = vmatprep.subr.mxu0 0.0
  %1650 = vmatpush2.msra.mxu0 0.0
  %1651 = vmatprep.subr.mxu0 0.0
  %1652 = vmatpush2.msra.mxu0 0.0
  %1653 = vmatprep.subr.mxu0 0.0
  %1654 = vmatpush2.msra.mxu0 0.0
  %1655 = vmatprep.subr.mxu0 0.0
  %1656 = vmatpush2.msra.mxu0 0.0
  %1657 = vmatprep.subr.mxu0 0.0
  %1658 = vmatpush2.msra.mxu0 0.0
  %1659 = vmatprep.subr.mxu0 0.0
  %1660 = vmatpush2.msra.mxu0 0.0
  %1661 = vmatprep.subr.mxu0 0.0
  %1662 = vmatpush2.msra.mxu0 0.0
  %1663 = vmatprep.subr.mxu0 0.0
  %1664 = vmatpush2.msra.mxu0 0.0
  %1665 = vmatprep.subr.mxu0 0.0
  %1666 = vmatpush2.msra.mxu0 0.0
  %1667 = vmatprep.subr.mxu0 0.0
  %1668 = vmatpush2.msra.mxu0 0.0
  %1669 = vmatprep.subr.mxu0 0.0
  %1670 = vmatpush2.msra.mxu0 0.0
  %1671 = vmatprep.subr.mxu0 0.0
  %1672 = vmatpush2.msra.mxu0 0.0
  %1673 = vmatprep.subr.mxu0 0.0
  %1674 = vmatpush2.msra.mxu0 0.0
  %1675 = vmatprep.mubr.f32.mxu0 0.0
  %1676 = vmatmul.mubr.f32.gmra.mxu0 %v1600
  %v1677 = vpop.f32.mrf.mxu0
  %v1678 = vadd.f32 0.0, %v1677
  %v1679 = vpop.f32.mrf.mxu0
  %1680 = vmatprep.mubr.f32.mxu0 0.0
  %1681 = vmatmul.mubr.f32.gmra.mxu0 %v1603
  %v1682 = vpop.f32.mrf.mxu0
  %v1683 = vadd.f32 0.0, %v1682
  %v1684 = vpop.f32.mrf.mxu0
  %1685 = vmatprep.mubr.f32.mxu0 0.0
  %1686 = vmatmul.mubr.f32.gmra.mxu0 %v1606
  %v1687 = vpop.f32.mrf.mxu0
  %v1688 = vadd.f32 0.0, %v1687
  %v1689 = vpop.f32.mrf.mxu0
  %1690 = vmatprep.mubr.f32.mxu0 0.0
  %1691 = vmatmul.mubr.f32.gmra.mxu0 %v1609
  %v1692 = vpop.f32.mrf.mxu0
  %v1693 = vadd.f32 0.0, %v1692
  %v1694 = vpop.f32.mrf.mxu0
  %1695 = vdwg.mxu0
  %v1697 = vsel %vm553, %v736, 0
  %v1700 = vsel %vm553, %v741, 0
  %v1703 = vsel %vm553, %v926, 0
  %v1706 = vsel %vm553, %v931, 0
  %1708 = vmatprep.subr.mxu0 0.0
  %1709 = vmatpush1.msra.mxu0 0.0
  %1710 = vmatprep.subr.mxu0 0.0
  %1711 = vmatpush1.msra.mxu0 0.0
  %1712 = vmatprep.subr.mxu0 0.0
  %1713 = vmatpush1.msra.mxu0 0.0
  %1714 = vmatprep.subr.mxu0 0.0
  %1715 = vmatpush1.msra.mxu0 0.0
  %1716 = vmatprep.subr.mxu0 0.0
  %1717 = vmatpush1.msra.mxu0 0.0
  %1718 = vmatprep.subr.mxu0 0.0
  %1719 = vmatpush1.msra.mxu0 0.0
  %1720 = vmatprep.subr.mxu0 0.0
  %1721 = vmatpush1.msra.mxu0 0.0
  %1722 = vmatprep.subr.mxu0 0.0
  %1723 = vmatpush1.msra.mxu0 0.0
  %1724 = vmatprep.subr.mxu0 0.0
  %1725 = vmatpush1.msra.mxu0 0.0
  %1726 = vmatprep.subr.mxu0 0.0
  %1727 = vmatpush1.msra.mxu0 0.0
  %1728 = vmatprep.subr.mxu0 0.0
  %1729 = vmatpush1.msra.mxu0 0.0
  %1730 = vmatprep.subr.mxu0 0.0
  %1731 = vmatpush1.msra.mxu0 0.0
  %1732 = vmatprep.subr.mxu0 0.0
  %1733 = vmatpush1.msra.mxu0 0.0
  %1734 = vmatprep.subr.mxu0 0.0
  %1735 = vmatpush1.msra.mxu0 0.0
  %1736 = vmatprep.subr.mxu0 0.0
  %1737 = vmatpush1.msra.mxu0 0.0
  %1738 = vmatprep.subr.mxu0 0.0
  %1739 = vmatpush1.msra.mxu0 %v934
  %1740 = vmatprep.subr.mxu0 0.0
  %1741 = vmatpush2.msra.mxu0 0.0
  %1742 = vmatprep.subr.mxu0 0.0
  %1743 = vmatpush2.msra.mxu0 0.0
  %1744 = vmatprep.subr.mxu0 0.0
  %1745 = vmatpush2.msra.mxu0 0.0
  %1746 = vmatprep.subr.mxu0 0.0
  %1747 = vmatpush2.msra.mxu0 0.0
  %1748 = vmatprep.subr.mxu0 0.0
  %1749 = vmatpush2.msra.mxu0 0.0
  %1750 = vmatprep.subr.mxu0 0.0
  %1751 = vmatpush2.msra.mxu0 0.0
  %1752 = vmatprep.subr.mxu0 0.0
  %1753 = vmatpush2.msra.mxu0 0.0
  %1754 = vmatprep.subr.mxu0 0.0
  %1755 = vmatpush2.msra.mxu0 0.0
  %1756 = vmatprep.subr.mxu0 0.0
  %1757 = vmatpush2.msra.mxu0 0.0
  %1758 = vmatprep.subr.mxu0 0.0
  %1759 = vmatpush2.msra.mxu0 0.0
  %1760 = vmatprep.subr.mxu0 0.0
  %1761 = vmatpush2.msra.mxu0 0.0
  %1762 = vmatprep.subr.mxu0 0.0
  %1763 = vmatpush2.msra.mxu0 0.0
  %1764 = vmatprep.subr.mxu0 0.0
  %1765 = vmatpush2.msra.mxu0 0.0
  %1766 = vmatprep.subr.mxu0 0.0
  %1767 = vmatpush2.msra.mxu0 0.0
  %1768 = vmatprep.subr.mxu0 0.0
  %1769 = vmatpush2.msra.mxu0 0.0
  %1770 = vmatprep.subr.mxu0 0.0
  %1771 = vmatpush2.msra.mxu0 0.0
  %1772 = vmatprep.mubr.f32.mxu0 0.0
  %1773 = vmatmul.mubr.f32.gmra.mxu0 %v1697
  %v1774 = vpop.f32.mrf.mxu0
  %v1775 = vadd.f32 %v1678, %v1774
  %v1776 = vpop.f32.mrf.mxu0
  %1777 = vmatprep.mubr.f32.mxu0 0.0
  %1778 = vmatmul.mubr.f32.gmra.mxu0 %v1700
  %v1779 = vpop.f32.mrf.mxu0
  %v1780 = vadd.f32 %v1683, %v1779
  %v1781 = vpop.f32.mrf.mxu0
  %1782 = vmatprep.mubr.f32.mxu0 0.0
  %1783 = vmatmul.mubr.f32.gmra.mxu0 %v1703
  %v1784 = vpop.f32.mrf.mxu0
  %v1785 = vadd.f32 %v1688, %v1784
  %v1786 = vpop.f32.mrf.mxu0
  %1787 = vmatprep.mubr.f32.mxu0 0.0
  %1788 = vmatmul.mubr.f32.gmra.mxu0 %v1706
  %v1789 = vpop.f32.mrf.mxu0
  %v1790 = vadd.f32 %v1693, %v1789
  %v1791 = vpop.f32.mrf.mxu0
  %1792 = vdwg.mxu0
  %s1793 = scalar_lea.vmem %s3, 64
  %v1794 = vld [vmem:[%s1793] sm:$0xff]
  %v1795 = vld [vmem:[%s1793 + $0x8] sm:$0xff]
  %v1796 = vld [vmem:[%s1793 + $0x10] sm:$0xff]
  %v1797 = vld [vmem:[%s1793 + $0x18] sm:$0xff]
  %1798 = vrot.lane.b32.xlu0 %v264, 112
  %v1799 = vpop.permute.xlu0 %1798
  %1801 = vmatprep.subr.mxu0 0.0
  %1802 = vmatpush1.msra.mxu0 0.0
  %1803 = vmatprep.subr.mxu0 0.0
  %1804 = vmatpush1.msra.mxu0 0.0
  %1805 = vmatprep.subr.mxu0 0.0
  %1806 = vmatpush1.msra.mxu0 0.0
  %1807 = vmatprep.subr.mxu0 0.0
  %1808 = vmatpush1.msra.mxu0 0.0
  %1809 = vmatprep.subr.mxu0 0.0
  %1810 = vmatpush1.msra.mxu0 0.0
  %1811 = vmatprep.subr.mxu0 0.0
  %1812 = vmatpush1.msra.mxu0 0.0
  %1813 = vmatprep.subr.mxu0 0.0
  %1814 = vmatpush1.msra.mxu0 0.0
  %1815 = vmatprep.subr.mxu0 0.0
  %1816 = vmatpush1.msra.mxu0 0.0
  %1817 = vmatprep.subr.mxu0 0.0
  %1818 = vmatpush1.msra.mxu0 0.0
  %1819 = vmatprep.subr.mxu0 0.0
  %1820 = vmatpush1.msra.mxu0 0.0
  %1821 = vmatprep.subr.mxu0 0.0
  %1822 = vmatpush1.msra.mxu0 0.0
  %1823 = vmatprep.subr.mxu0 0.0
  %1824 = vmatpush1.msra.mxu0 0.0
  %1825 = vmatprep.subr.mxu0 0.0
  %1826 = vmatpush1.msra.mxu0 %v1797
  %1827 = vmatprep.subr.mxu0 0.0
  %1828 = vmatpush1.msra.mxu0 %v1796
  %1829 = vmatprep.subr.mxu0 0.0
  %1830 = vmatpush1.msra.mxu0 %v1795
  %1831 = vmatprep.subr.mxu0 0.0
  %1832 = vmatpush1.msra.mxu0 %v1794
  %1833 = vmatprep.subr.mxu0 0.0
  %1834 = vmatpush2.msra.mxu0 0.0
  %1835 = vmatprep.subr.mxu0 0.0
  %1836 = vmatpush2.msra.mxu0 0.0
  %1837 = vmatprep.subr.mxu0 0.0
  %1838 = vmatpush2.msra.mxu0 0.0
  %1839 = vmatprep.subr.mxu0 0.0
  %1840 = vmatpush2.msra.mxu0 0.0
  %1841 = vmatprep.subr.mxu0 0.0
  %1842 = vmatpush2.msra.mxu0 0.0
  %1843 = vmatprep.subr.mxu0 0.0
  %1844 = vmatpush2.msra.mxu0 0.0
  %1845 = vmatprep.subr.mxu0 0.0
  %1846 = vmatpush2.msra.mxu0 0.0
  %1847 = vmatprep.subr.mxu0 0.0
  %1848 = vmatpush2.msra.mxu0 0.0
  %1849 = vmatprep.subr.mxu0 0.0
  %1850 = vmatpush2.msra.mxu0 0.0
  %1851 = vmatprep.subr.mxu0 0.0
  %1852 = vmatpush2.msra.mxu0 0.0
  %1853 = vmatprep.subr.mxu0 0.0
  %1854 = vmatpush2.msra.mxu0 0.0
  %1855 = vmatprep.subr.mxu0 0.0
  %1856 = vmatpush2.msra.mxu0 0.0
  %1857 = vmatprep.subr.mxu0 0.0
  %1858 = vmatpush2.msra.mxu0 0.0
  %1859 = vmatprep.subr.mxu0 0.0
  %1860 = vmatpush2.msra.mxu0 0.0
  %1861 = vmatprep.subr.mxu0 0.0
  %1862 = vmatpush2.msra.mxu0 0.0
  %1863 = vmatprep.subr.mxu0 0.0
  %1864 = vmatpush2.msra.mxu0 0.0
  %1865 = vmatprep.mubr.f32.mxu0 0.0
  %1866 = vmatmul.mubr.f32.gmra.mxu0 %v267
  %v1867 = vpop.f32.mrf.mxu0
  %v1868 = vadd.f32 %v1799, %v1867
  %v1869 = vpop.f32.mrf.mxu0
  %1870 = vmatprep.mubr.f32.mxu0 0.0
  %1871 = vmatmul.mubr.f32.gmra.mxu0 %v270
  %v1872 = vpop.f32.mrf.mxu0
  %v1873 = vadd.f32 %v1799, %v1872
  %v1874 = vpop.f32.mrf.mxu0
  %1875 = vmatprep.mubr.f32.mxu0 0.0
  %1876 = vmatmul.mubr.f32.gmra.mxu0 %v273
  %v1877 = vpop.f32.mrf.mxu0
  %v1878 = vadd.f32 %v1799, %v1877
  %v1879 = vpop.f32.mrf.mxu0
  %1880 = vmatprep.mubr.f32.mxu0 0.0
  %1881 = vmatmul.mubr.f32.gmra.mxu0 %v276
  %v1882 = vpop.f32.mrf.mxu0
  %v1883 = vadd.f32 %v1799, %v1882
  %v1884 = vpop.f32.mrf.mxu0
  %1885 = vdwg.mxu0
  %s1886 = scalar_lea.vmem %s3, 192
  %v1887 = vld [vmem:[%s1886] sm:$0xff]
  %v1888 = vld [vmem:[%s1886 + $0x8] sm:$0xff]
  %v1889 = vld [vmem:[%s1886 + $0x10] sm:$0xff]
  %v1890 = vld [vmem:[%s1886 + $0x18] sm:$0xff]
  %1891 = vrot.lane.b32.xlu0 %v372, 112
  %v1892 = vpop.permute.xlu0 %1891
  %1894 = vmatprep.subr.mxu0 0.0
  %1895 = vmatpush1.msra.mxu0 0.0
  %1896 = vmatprep.subr.mxu0 0.0
  %1897 = vmatpush1.msra.mxu0 0.0
  %1898 = vmatprep.subr.mxu0 0.0
  %1899 = vmatpush1.msra.mxu0 0.0
  %1900 = vmatprep.subr.mxu0 0.0
  %1901 = vmatpush1.msra.mxu0 0.0
  %1902 = vmatprep.subr.mxu0 0.0
  %1903 = vmatpush1.msra.mxu0 0.0
  %1904 = vmatprep.subr.mxu0 0.0
  %1905 = vmatpush1.msra.mxu0 0.0
  %1906 = vmatprep.subr.mxu0 0.0
  %1907 = vmatpush1.msra.mxu0 0.0
  %1908 = vmatprep.subr.mxu0 0.0
  %1909 = vmatpush1.msra.mxu0 0.0
  %1910 = vmatprep.subr.mxu0 0.0
  %1911 = vmatpush1.msra.mxu0 0.0
  %1912 = vmatprep.subr.mxu0 0.0
  %1913 = vmatpush1.msra.mxu0 0.0
  %1914 = vmatprep.subr.mxu0 0.0
  %1915 = vmatpush1.msra.mxu0 0.0
  %1916 = vmatprep.subr.mxu0 0.0
  %1917 = vmatpush1.msra.mxu0 0.0
  %1918 = vmatprep.subr.mxu0 0.0
  %1919 = vmatpush1.msra.mxu0 %v1890
  %1920 = vmatprep.subr.mxu0 0.0
  %1921 = vmatpush1.msra.mxu0 %v1889
  %1922 = vmatprep.subr.mxu0 0.0
  %1923 = vmatpush1.msra.mxu0 %v1888
  %1924 = vmatprep.subr.mxu0 0.0
  %1925 = vmatpush1.msra.mxu0 %v1887
  %1926 = vmatprep.subr.mxu0 0.0
  %1927 = vmatpush2.msra.mxu0 0.0
  %1928 = vmatprep.subr.mxu0 0.0
  %1929 = vmatpush2.msra.mxu0 0.0
  %1930 = vmatprep.subr.mxu0 0.0
  %1931 = vmatpush2.msra.mxu0 0.0
  %1932 = vmatprep.subr.mxu0 0.0
  %1933 = vmatpush2.msra.mxu0 0.0
  %1934 = vmatprep.subr.mxu0 0.0
  %1935 = vmatpush2.msra.mxu0 0.0
  %1936 = vmatprep.subr.mxu0 0.0
  %1937 = vmatpush2.msra.mxu0 0.0
  %1938 = vmatprep.subr.mxu0 0.0
  %1939 = vmatpush2.msra.mxu0 0.0
  %1940 = vmatprep.subr.mxu0 0.0
  %1941 = vmatpush2.msra.mxu0 0.0
  %1942 = vmatprep.subr.mxu0 0.0
  %1943 = vmatpush2.msra.mxu0 0.0
  %1944 = vmatprep.subr.mxu0 0.0
  %1945 = vmatpush2.msra.mxu0 0.0
  %1946 = vmatprep.subr.mxu0 0.0
  %1947 = vmatpush2.msra.mxu0 0.0
  %1948 = vmatprep.subr.mxu0 0.0
  %1949 = vmatpush2.msra.mxu0 0.0
  %1950 = vmatprep.subr.mxu0 0.0
  %1951 = vmatpush2.msra.mxu0 0.0
  %1952 = vmatprep.subr.mxu0 0.0
  %1953 = vmatpush2.msra.mxu0 0.0
  %1954 = vmatprep.subr.mxu0 0.0
  %1955 = vmatpush2.msra.mxu0 0.0
  %1956 = vmatprep.subr.mxu0 0.0
  %1957 = vmatpush2.msra.mxu0 0.0
  %1958 = vmatprep.mubr.f32.mxu0 0.0
  %1959 = vmatmul.mubr.f32.gmra.mxu0 %v267
  %v1960 = vpop.f32.mrf.mxu0
  %v1961 = vadd.f32 %v1892, %v1960
  %v1962 = vpop.f32.mrf.mxu0
  %1963 = vmatprep.mubr.f32.mxu0 0.0
  %1964 = vmatmul.mubr.f32.gmra.mxu0 %v270
  %v1965 = vpop.f32.mrf.mxu0
  %v1966 = vadd.f32 %v1892, %v1965
  %v1967 = vpop.f32.mrf.mxu0
  %1968 = vmatprep.mubr.f32.mxu0 0.0
  %1969 = vmatmul.mubr.f32.gmra.mxu0 %v273
  %v1970 = vpop.f32.mrf.mxu0
  %v1971 = vadd.f32 %v1892, %v1970
  %v1972 = vpop.f32.mrf.mxu0
  %1973 = vmatprep.mubr.f32.mxu0 0.0
  %1974 = vmatmul.mubr.f32.gmra.mxu0 %v276
  %v1975 = vpop.f32.mrf.mxu0
  %v1976 = vadd.f32 %v1892, %v1975
  %v1977 = vpop.f32.mrf.mxu0
  %1978 = vdwg.mxu0
  %s1979 = scalar_lea.vmem %s3, 320
  %v1980 = vld [vmem:[%s1979] sm:$0xff]
  %v1981 = vld [vmem:[%s1979 + $0x8] sm:$0xff]
  %v1982 = vld [vmem:[%s1979 + $0x10] sm:$0xff]
  %v1983 = vld [vmem:[%s1979 + $0x18] sm:$0xff]
  %1984 = vrot.lane.b32.xlu0 %v467, 112
  %v1985 = vpop.permute.xlu0 %1984
  %1987 = vmatprep.subr.mxu0 0.0
  %1988 = vmatpush1.msra.mxu0 0.0
  %1989 = vmatprep.subr.mxu0 0.0
  %1990 = vmatpush1.msra.mxu0 0.0
  %1991 = vmatprep.subr.mxu0 0.0
  %1992 = vmatpush1.msra.mxu0 0.0
  %1993 = vmatprep.subr.mxu0 0.0
  %1994 = vmatpush1.msra.mxu0 0.0
  %1995 = vmatprep.subr.mxu0 0.0
  %1996 = vmatpush1.msra.mxu0 0.0
  %1997 = vmatprep.subr.mxu0 0.0
  %1998 = vmatpush1.msra.mxu0 0.0
  %1999 = vmatprep.subr.mxu0 0.0
  %2000 = vmatpush1.msra.mxu0 0.0
  %2001 = vmatprep.subr.mxu0 0.0
  %2002 = vmatpush1.msra.mxu0 0.0
  %2003 = vmatprep.subr.mxu0 0.0
  %2004 = vmatpush1.msra.mxu0 0.0
  %2005 = vmatprep.subr.mxu0 0.0
  %2006 = vmatpush1.msra.mxu0 0.0
  %2007 = vmatprep.subr.mxu0 0.0
  %2008 = vmatpush1.msra.mxu0 0.0
  %2009 = vmatprep.subr.mxu0 0.0
  %2010 = vmatpush1.msra.mxu0 0.0
  %2011 = vmatprep.subr.mxu0 0.0
  %2012 = vmatpush1.msra.mxu0 %v1983
  %2013 = vmatprep.subr.mxu0 0.0
  %2014 = vmatpush1.msra.mxu0 %v1982
  %2015 = vmatprep.subr.mxu0 0.0
  %2016 = vmatpush1.msra.mxu0 %v1981
  %2017 = vmatprep.subr.mxu0 0.0
  %2018 = vmatpush1.msra.mxu0 %v1980
  %2019 = vmatprep.subr.mxu0 0.0
  %2020 = vmatpush2.msra.mxu0 0.0
  %2021 = vmatprep.subr.mxu0 0.0
  %2022 = vmatpush2.msra.mxu0 0.0
  %2023 = vmatprep.subr.mxu0 0.0
  %2024 = vmatpush2.msra.mxu0 0.0
  %2025 = vmatprep.subr.mxu0 0.0
  %2026 = vmatpush2.msra.mxu0 0.0
  %2027 = vmatprep.subr.mxu0 0.0
  %2028 = vmatpush2.msra.mxu0 0.0
  %2029 = vmatprep.subr.mxu0 0.0
  %2030 = vmatpush2.msra.mxu0 0.0
  %2031 = vmatprep.subr.mxu0 0.0
  %2032 = vmatpush2.msra.mxu0 0.0
  %2033 = vmatprep.subr.mxu0 0.0
  %2034 = vmatpush2.msra.mxu0 0.0
  %2035 = vmatprep.subr.mxu0 0.0
  %2036 = vmatpush2.msra.mxu0 0.0
  %2037 = vmatprep.subr.mxu0 0.0
  %2038 = vmatpush2.msra.mxu0 0.0
  %2039 = vmatprep.subr.mxu0 0.0
  %2040 = vmatpush2.msra.mxu0 0.0
  %2041 = vmatprep.subr.mxu0 0.0
  %2042 = vmatpush2.msra.mxu0 0.0
  %2043 = vmatprep.subr.mxu0 0.0
  %2044 = vmatpush2.msra.mxu0 0.0
  %2045 = vmatprep.subr.mxu0 0.0
  %2046 = vmatpush2.msra.mxu0 0.0
  %2047 = vmatprep.subr.mxu0 0.0
  %2048 = vmatpush2.msra.mxu0 0.0
  %2049 = vmatprep.subr.mxu0 0.0
  %2050 = vmatpush2.msra.mxu0 0.0
  %2051 = vmatprep.mubr.f32.mxu0 0.0
  %2052 = vmatmul.mubr.f32.gmra.mxu0 %v267
  %v2053 = vpop.f32.mrf.mxu0
  %v2054 = vadd.f32 %v1985, %v2053
  %v2055 = vpop.f32.mrf.mxu0
  %2056 = vmatprep.mubr.f32.mxu0 0.0
  %2057 = vmatmul.mubr.f32.gmra.mxu0 %v270
  %v2058 = vpop.f32.mrf.mxu0
  %v2059 = vadd.f32 %v1985, %v2058
  %v2060 = vpop.f32.mrf.mxu0
  %2061 = vmatprep.mubr.f32.mxu0 0.0
  %2062 = vmatmul.mubr.f32.gmra.mxu0 %v273
  %v2063 = vpop.f32.mrf.mxu0
  %v2064 = vadd.f32 %v1985, %v2063
  %v2065 = vpop.f32.mrf.mxu0
  %2066 = vmatprep.mubr.f32.mxu0 0.0
  %2067 = vmatmul.mubr.f32.gmra.mxu0 %v276
  %v2068 = vpop.f32.mrf.mxu0
  %v2069 = vadd.f32 %v1985, %v2068
  %v2070 = vpop.f32.mrf.mxu0
  %2071 = vdwg.mxu0
  %v2073 = vsel %vm553, %v1868, 0
  %v2076 = vsel %vm553, %v1873, 0
  %v2079 = vsel %vm553, %v1961, 0
  %v2082 = vsel %vm553, %v1966, 0
  %2084 = vmatprep.subr.mxu0 0.0
  %2085 = vmatpush1.xpose.msra.mxu0 0.0
  %2086 = vmatprep.subr.mxu0 0.0
  %2087 = vmatpush1.xpose.msra.mxu0 0.0
  %2088 = vmatprep.subr.mxu0 0.0
  %2089 = vmatpush1.xpose.msra.mxu0 0.0
  %2090 = vmatprep.subr.mxu0 0.0
  %2091 = vmatpush1.xpose.msra.mxu0 0.0
  %2092 = vmatprep.subr.mxu0 0.0
  %2093 = vmatpush1.xpose.msra.mxu0 0.0
  %2094 = vmatprep.subr.mxu0 0.0
  %2095 = vmatpush1.xpose.msra.mxu0 0.0
  %2096 = vmatprep.subr.mxu0 0.0
  %2097 = vmatpush1.xpose.msra.mxu0 0.0
  %2098 = vmatprep.subr.mxu0 0.0
  %2099 = vmatpush1.xpose.msra.mxu0 0.0
  %2100 = vmatprep.subr.mxu0 0.0
  %2101 = vmatpush1.xpose.msra.mxu0 0.0
  %2102 = vmatprep.subr.mxu0 0.0
  %2103 = vmatpush1.xpose.msra.mxu0 0.0
  %2104 = vmatprep.subr.mxu0 0.0
  %2105 = vmatpush1.xpose.msra.mxu0 0.0
  %2106 = vmatprep.subr.mxu0 0.0
  %2107 = vmatpush1.xpose.msra.mxu0 0.0
  %2108 = vmatprep.subr.mxu0 0.0
  %2109 = vmatpush1.xpose.msra.mxu0 0.0
  %2110 = vmatprep.subr.mxu0 0.0
  %2111 = vmatpush1.xpose.msra.mxu0 0.0
  %2112 = vmatprep.subr.mxu0 0.0
  %2113 = vmatpush1.xpose.msra.mxu0 %v2082
  %2114 = vmatprep.subr.mxu0 0.0
  %2115 = vmatpush1.xpose.msra.mxu0 %v2079
  %2116 = vmatprep.subr.mxu0 0.0
  %2117 = vmatpush2.xpose.msra.mxu0 0.0
  %2118 = vmatprep.subr.mxu0 0.0
  %2119 = vmatpush2.xpose.msra.mxu0 0.0
  %2120 = vmatprep.subr.mxu0 0.0
  %2121 = vmatpush2.xpose.msra.mxu0 0.0
  %2122 = vmatprep.subr.mxu0 0.0
  %2123 = vmatpush2.xpose.msra.mxu0 0.0
  %2124 = vmatprep.subr.mxu0 0.0
  %2125 = vmatpush2.xpose.msra.mxu0 0.0
  %2126 = vmatprep.subr.mxu0 0.0
  %2127 = vmatpush2.xpose.msra.mxu0 0.0
  %2128 = vmatprep.subr.mxu0 0.0
  %2129 = vmatpush2.xpose.msra.mxu0 0.0
  %2130 = vmatprep.subr.mxu0 0.0
  %2131 = vmatpush2.xpose.msra.mxu0 0.0
  %2132 = vmatprep.subr.mxu0 0.0
  %2133 = vmatpush2.xpose.msra.mxu0 0.0
  %2134 = vmatprep.subr.mxu0 0.0
  %2135 = vmatpush2.xpose.msra.mxu0 0.0
  %2136 = vmatprep.subr.mxu0 0.0
  %2137 = vmatpush2.xpose.msra.mxu0 0.0
  %2138 = vmatprep.subr.mxu0 0.0
  %2139 = vmatpush2.xpose.msra.mxu0 0.0
  %2140 = vmatprep.subr.mxu0 0.0
  %2141 = vmatpush2.xpose.msra.mxu0 0.0
  %2142 = vmatprep.subr.mxu0 0.0
  %2143 = vmatpush2.xpose.msra.mxu0 0.0
  %2144 = vmatprep.subr.mxu0 0.0
  %2145 = vmatpush2.xpose.msra.mxu0 0.0
  %2146 = vmatprep.subr.mxu0 0.0
  %2147 = vmatpush2.xpose.msra.mxu0 0.0
  %2148 = vmatprep.mubr.f32.mxu0 0.0
  %2149 = vmatmul.mubr.f32.gmra.mxu0 %v2073
  %v2150 = vpop.f32.mrf.mxu0
  %v2151 = vadd.f32 0.0, %v2150
  %v2152 = vpop.f32.mrf.mxu0
  %2153 = vmatprep.mubr.f32.mxu0 0.0
  %2154 = vmatmul.mubr.f32.gmra.mxu0 %v2076
  %v2155 = vpop.f32.mrf.mxu0
  %v2156 = vadd.f32 0.0, %v2155
  %v2157 = vpop.f32.mrf.mxu0
  %2158 = vdwg.mxu0
  %v2159 = vsel %vm158, %v2151, -inf
  %2160 = vmax.xlane.f32.xlu0 %v2159
  %v2161 = vpop.xlane.xlu0 %2160
  %v2162 = vsel %vm158, %v2156, -inf
  %2163 = vmax.xlane.f32.xlu0 %v2162
  %v2164 = vpop.xlane.xlu0 %2163
  %v2165 = vsub.f32 %v2151, %v2161
  %v2166 = vsub.f32 %v2156, %v2164
  %v2167 = vmul.f32 %v2165, 1.442695
  %v2168 = vpow.pop %v2167
  %v2169 = vmul.f32 %v2166, 1.442695
  %v2170 = vpow.pop %v2169
  %v2171 = vsel %vm158, %v2168, 0.0
  %2172 = vadd.xlane.f32.xlu0 %v2171
  %v2173 = vpop.xlane.xlu0 %2172
  %v2174 = vsel %vm158, %v2170, 0.0
  %2175 = vadd.xlane.f32.xlu0 %v2174
  %v2176 = vpop.xlane.xlu0 %2175
  %v2177 = vrcp.pop %v2173
  %v2178 = vrcp.pop %v2176
  %v2179 = vmul.f32 %v2168, %v2177
  %v2180 = vmul.f32 %v2170, %v2178
  %v2182 = vsel %vm158, %v2179, 0
  %v2185 = vsel %vm158, %v2180, 0
  %2187 = vmatprep.subr.mxu0 0.0
  %2188 = vmatpush1.msra.mxu0 0.0
  %2189 = vmatprep.subr.mxu0 0.0
  %2190 = vmatpush1.msra.mxu0 0.0
  %2191 = vmatprep.subr.mxu0 0.0
  %2192 = vmatpush1.msra.mxu0 0.0
  %2193 = vmatprep.subr.mxu0 0.0
  %2194 = vmatpush1.msra.mxu0 0.0
  %2195 = vmatprep.subr.mxu0 0.0
  %2196 = vmatpush1.msra.mxu0 0.0
  %2197 = vmatprep.subr.mxu0 0.0
  %2198 = vmatpush1.msra.mxu0 0.0
  %2199 = vmatprep.subr.mxu0 0.0
  %2200 = vmatpush1.msra.mxu0 0.0
  %2201 = vmatprep.subr.mxu0 0.0
  %2202 = vmatpush1.msra.mxu0 0.0
  %2203 = vmatprep.subr.mxu0 0.0
  %2204 = vmatpush1.msra.mxu0 0.0
  %2205 = vmatprep.subr.mxu0 0.0
  %2206 = vmatpush1.msra.mxu0 0.0
  %2207 = vmatprep.subr.mxu0 0.0
  %2208 = vmatpush1.msra.mxu0 0.0
  %2209 = vmatprep.subr.mxu0 0.0
  %2210 = vmatpush1.msra.mxu0 0.0
  %2211 = vmatprep.subr.mxu0 0.0
  %2212 = vmatpush1.msra.mxu0 0.0
  %2213 = vmatprep.subr.mxu0 0.0
  %2214 = vmatpush1.msra.mxu0 0.0
  %2215 = vmatprep.subr.mxu0 0.0
  %2216 = vmatpush1.msra.mxu0 %v2059
  %2217 = vmatprep.subr.mxu0 0.0
  %2218 = vmatpush1.msra.mxu0 %v2054
  %2219 = vmatprep.subr.mxu0 0.0
  %2220 = vmatpush2.msra.mxu0 0.0
  %2221 = vmatprep.subr.mxu0 0.0
  %2222 = vmatpush2.msra.mxu0 0.0
  %2223 = vmatprep.subr.mxu0 0.0
  %2224 = vmatpush2.msra.mxu0 0.0
  %2225 = vmatprep.subr.mxu0 0.0
  %2226 = vmatpush2.msra.mxu0 0.0
  %2227 = vmatprep.subr.mxu0 0.0
  %2228 = vmatpush2.msra.mxu0 0.0
  %2229 = vmatprep.subr.mxu0 0.0
  %2230 = vmatpush2.msra.mxu0 0.0
  %2231 = vmatprep.subr.mxu0 0.0
  %2232 = vmatpush2.msra.mxu0 0.0
  %2233 = vmatprep.subr.mxu0 0.0
  %2234 = vmatpush2.msra.mxu0 0.0
  %2235 = vmatprep.subr.mxu0 0.0
  %2236 = vmatpush2.msra.mxu0 0.0
  %2237 = vmatprep.subr.mxu0 0.0
  %2238 = vmatpush2.msra.mxu0 0.0
  %2239 = vmatprep.subr.mxu0 0.0
  %2240 = vmatpush2.msra.mxu0 0.0
  %2241 = vmatprep.subr.mxu0 0.0
  %2242 = vmatpush2.msra.mxu0 0.0
  %2243 = vmatprep.subr.mxu0 0.0
  %2244 = vmatpush2.msra.mxu0 0.0
  %2245 = vmatprep.subr.mxu0 0.0
  %2246 = vmatpush2.msra.mxu0 0.0
  %2247 = vmatprep.subr.mxu0 0.0
  %2248 = vmatpush2.msra.mxu0 0.0
  %2249 = vmatprep.subr.mxu0 0.0
  %2250 = vmatpush2.msra.mxu0 0.0
  %2251 = vmatprep.mubr.f32.mxu0 0.0
  %2252 = vmatmul.mubr.f32.gmra.mxu0 %v2182
  %v2253 = vpop.f32.mrf.mxu0
  %v2254 = vadd.f32 0.0, %v2253
  %v2255 = vpop.f32.mrf.mxu0
  %2256 = vmatprep.mubr.f32.mxu0 0.0
  %2257 = vmatmul.mubr.f32.gmra.mxu0 %v2185
  %v2258 = vpop.f32.mrf.mxu0
  %v2259 = vadd.f32 0.0, %v2258
  %v2260 = vpop.f32.mrf.mxu0
  %2261 = vdwg.mxu0
  %v2263 = vsel %vm553, %v1878, 0
  %v2266 = vsel %vm553, %v1883, 0
  %v2269 = vsel %vm553, %v1971, 0
  %v2272 = vsel %vm553, %v1976, 0
  %2274 = vmatprep.subr.mxu0 0.0
  %2275 = vmatpush1.xpose.msra.mxu0 0.0
  %2276 = vmatprep.subr.mxu0 0.0
  %2277 = vmatpush1.xpose.msra.mxu0 0.0
  %2278 = vmatprep.subr.mxu0 0.0
  %2279 = vmatpush1.xpose.msra.mxu0 0.0
  %2280 = vmatprep.subr.mxu0 0.0
  %2281 = vmatpush1.xpose.msra.mxu0 0.0
  %2282 = vmatprep.subr.mxu0 0.0
  %2283 = vmatpush1.xpose.msra.mxu0 0.0
  %2284 = vmatprep.subr.mxu0 0.0
  %2285 = vmatpush1.xpose.msra.mxu0 0.0
  %2286 = vmatprep.subr.mxu0 0.0
  %2287 = vmatpush1.xpose.msra.mxu0 0.0
  %2288 = vmatprep.subr.mxu0 0.0
  %2289 = vmatpush1.xpose.msra.mxu0 0.0
  %2290 = vmatprep.subr.mxu0 0.0
  %2291 = vmatpush1.xpose.msra.mxu0 0.0
  %2292 = vmatprep.subr.mxu0 0.0
  %2293 = vmatpush1.xpose.msra.mxu0 0.0
  %2294 = vmatprep.subr.mxu0 0.0
  %2295 = vmatpush1.xpose.msra.mxu0 0.0
  %2296 = vmatprep.subr.mxu0 0.0
  %2297 = vmatpush1.xpose.msra.mxu0 0.0
  %2298 = vmatprep.subr.mxu0 0.0
  %2299 = vmatpush1.xpose.msra.mxu0 0.0
  %2300 = vmatprep.subr.mxu0 0.0
  %2301 = vmatpush1.xpose.msra.mxu0 0.0
  %2302 = vmatprep.subr.mxu0 0.0
  %2303 = vmatpush1.xpose.msra.mxu0 %v2272
  %2304 = vmatprep.subr.mxu0 0.0
  %2305 = vmatpush1.xpose.msra.mxu0 %v2269
  %2306 = vmatprep.subr.mxu0 0.0
  %2307 = vmatpush2.xpose.msra.mxu0 0.0
  %2308 = vmatprep.subr.mxu0 0.0
  %2309 = vmatpush2.xpose.msra.mxu0 0.0
  %2310 = vmatprep.subr.mxu0 0.0
  %2311 = vmatpush2.xpose.msra.mxu0 0.0
  %2312 = vmatprep.subr.mxu0 0.0
  %2313 = vmatpush2.xpose.msra.mxu0 0.0
  %2314 = vmatprep.subr.mxu0 0.0
  %2315 = vmatpush2.xpose.msra.mxu0 0.0
  %2316 = vmatprep.subr.mxu0 0.0
  %2317 = vmatpush2.xpose.msra.mxu0 0.0
  %2318 = vmatprep.subr.mxu0 0.0
  %2319 = vmatpush2.xpose.msra.mxu0 0.0
  %2320 = vmatprep.subr.mxu0 0.0
  %2321 = vmatpush2.xpose.msra.mxu0 0.0
  %2322 = vmatprep.subr.mxu0 0.0
  %2323 = vmatpush2.xpose.msra.mxu0 0.0
  %2324 = vmatprep.subr.mxu0 0.0
  %2325 = vmatpush2.xpose.msra.mxu0 0.0
  %2326 = vmatprep.subr.mxu0 0.0
  %2327 = vmatpush2.xpose.msra.mxu0 0.0
  %2328 = vmatprep.subr.mxu0 0.0
  %2329 = vmatpush2.xpose.msra.mxu0 0.0
  %2330 = vmatprep.subr.mxu0 0.0
  %2331 = vmatpush2.xpose.msra.mxu0 0.0
  %2332 = vmatprep.subr.mxu0 0.0
  %2333 = vmatpush2.xpose.msra.mxu0 0.0
  %2334 = vmatprep.subr.mxu0 0.0
  %2335 = vmatpush2.xpose.msra.mxu0 0.0
  %2336 = vmatprep.subr.mxu0 0.0
  %2337 = vmatpush2.xpose.msra.mxu0 0.0
  %2338 = vmatprep.mubr.f32.mxu0 0.0
  %2339 = vmatmul.mubr.f32.gmra.mxu0 %v2263
  %v2340 = vpop.f32.mrf.mxu0
  %v2341 = vadd.f32 0.0, %v2340
  %v2342 = vpop.f32.mrf.mxu0
  %2343 = vmatprep.mubr.f32.mxu0 0.0
  %2344 = vmatmul.mubr.f32.gmra.mxu0 %v2266
  %v2345 = vpop.f32.mrf.mxu0
  %v2346 = vadd.f32 0.0, %v2345
  %v2347 = vpop.f32.mrf.mxu0
  %2348 = vdwg.mxu0
  %v2349 = vsel %vm158, %v2341, -inf
  %2350 = vmax.xlane.f32.xlu0 %v2349
  %v2351 = vpop.xlane.xlu0 %2350
  %v2352 = vsel %vm158, %v2346, -inf
  %2353 = vmax.xlane.f32.xlu0 %v2352
  %v2354 = vpop.xlane.xlu0 %2353
  %v2355 = vsub.f32 %v2341, %v2351
  %v2356 = vsub.f32 %v2346, %v2354
  %v2357 = vmul.f32 %v2355, 1.442695
  %v2358 = vpow.pop %v2357
  %v2359 = vmul.f32 %v2356, 1.442695
  %v2360 = vpow.pop %v2359
  %v2361 = vsel %vm158, %v2358, 0.0
  %2362 = vadd.xlane.f32.xlu0 %v2361
  %v2363 = vpop.xlane.xlu0 %2362
  %v2364 = vsel %vm158, %v2360, 0.0
  %2365 = vadd.xlane.f32.xlu0 %v2364
  %v2366 = vpop.xlane.xlu0 %2365
  %v2367 = vrcp.pop %v2363
  %v2368 = vrcp.pop %v2366
  %v2369 = vmul.f32 %v2358, %v2367
  %v2370 = vmul.f32 %v2360, %v2368
  %v2372 = vsel %vm158, %v2369, 0
  %v2375 = vsel %vm158, %v2370, 0
  %2377 = vmatprep.subr.mxu0 0.0
  %2378 = vmatpush1.msra.mxu0 0.0
  %2379 = vmatprep.subr.mxu0 0.0
  %2380 = vmatpush1.msra.mxu0 0.0
  %2381 = vmatprep.subr.mxu0 0.0
  %2382 = vmatpush1.msra.mxu0 0.0
  %2383 = vmatprep.subr.mxu0 0.0
  %2384 = vmatpush1.msra.mxu0 0.0
  %2385 = vmatprep.subr.mxu0 0.0
  %2386 = vmatpush1.msra.mxu0 0.0
  %2387 = vmatprep.subr.mxu0 0.0
  %2388 = vmatpush1.msra.mxu0 0.0
  %2389 = vmatprep.subr.mxu0 0.0
  %2390 = vmatpush1.msra.mxu0 0.0
  %2391 = vmatprep.subr.mxu0 0.0
  %2392 = vmatpush1.msra.mxu0 0.0
  %2393 = vmatprep.subr.mxu0 0.0
  %2394 = vmatpush1.msra.mxu0 0.0
  %2395 = vmatprep.subr.mxu0 0.0
  %2396 = vmatpush1.msra.mxu0 0.0
  %2397 = vmatprep.subr.mxu0 0.0
  %2398 = vmatpush1.msra.mxu0 0.0
  %2399 = vmatprep.subr.mxu0 0.0
  %2400 = vmatpush1.msra.mxu0 0.0
  %2401 = vmatprep.subr.mxu0 0.0
  %2402 = vmatpush1.msra.mxu0 0.0
  %2403 = vmatprep.subr.mxu0 0.0
  %2404 = vmatpush1.msra.mxu0 0.0
  %2405 = vmatprep.subr.mxu0 0.0
  %2406 = vmatpush1.msra.mxu0 %v2069
  %2407 = vmatprep.subr.mxu0 0.0
  %2408 = vmatpush1.msra.mxu0 %v2064
  %2409 = vmatprep.subr.mxu0 0.0
  %2410 = vmatpush2.msra.mxu0 0.0
  %2411 = vmatprep.subr.mxu0 0.0
  %2412 = vmatpush2.msra.mxu0 0.0
  %2413 = vmatprep.subr.mxu0 0.0
  %2414 = vmatpush2.msra.mxu0 0.0
  %2415 = vmatprep.subr.mxu0 0.0
  %2416 = vmatpush2.msra.mxu0 0.0
  %2417 = vmatprep.subr.mxu0 0.0
  %2418 = vmatpush2.msra.mxu0 0.0
  %2419 = vmatprep.subr.mxu0 0.0
  %2420 = vmatpush2.msra.mxu0 0.0
  %2421 = vmatprep.subr.mxu0 0.0
  %2422 = vmatpush2.msra.mxu0 0.0
  %2423 = vmatprep.subr.mxu0 0.0
  %2424 = vmatpush2.msra.mxu0 0.0
  %2425 = vmatprep.subr.mxu0 0.0
  %2426 = vmatpush2.msra.mxu0 0.0
  %2427 = vmatprep.subr.mxu0 0.0
  %2428 = vmatpush2.msra.mxu0 0.0
  %2429 = vmatprep.subr.mxu0 0.0
  %2430 = vmatpush2.msra.mxu0 0.0
  %2431 = vmatprep.subr.mxu0 0.0
  %2432 = vmatpush2.msra.mxu0 0.0
  %2433 = vmatprep.subr.mxu0 0.0
  %2434 = vmatpush2.msra.mxu0 0.0
  %2435 = vmatprep.subr.mxu0 0.0
  %2436 = vmatpush2.msra.mxu0 0.0
  %2437 = vmatprep.subr.mxu0 0.0
  %2438 = vmatpush2.msra.mxu0 0.0
  %2439 = vmatprep.subr.mxu0 0.0
  %2440 = vmatpush2.msra.mxu0 0.0
  %2441 = vmatprep.mubr.f32.mxu0 0.0
  %2442 = vmatmul.mubr.f32.gmra.mxu0 %v2372
  %v2443 = vpop.f32.mrf.mxu0
  %v2444 = vadd.f32 0.0, %v2443
  %v2445 = vpop.f32.mrf.mxu0
  %2446 = vmatprep.mubr.f32.mxu0 0.0
  %2447 = vmatmul.mubr.f32.gmra.mxu0 %v2375
  %v2448 = vpop.f32.mrf.mxu0
  %v2449 = vadd.f32 0.0, %v2448
  %v2450 = vpop.f32.mrf.mxu0
  %2451 = vdwg.mxu0
  %s2452 = scalar_lea.vmem %s4, 16
  %v2453 = vld [vmem:[%s2452] sm:$0xff]
  %v2455 = vsel %vm553, %v2254, 0
  %v2458 = vsel %vm553, %v2259, 0
  %v2461 = vsel %vm553, %v2444, 0
  %v2464 = vsel %vm553, %v2449, 0
  %2466 = vmatprep.subr.mxu0 0.0
  %2467 = vmatpush1.msra.mxu0 0.0
  %2468 = vmatprep.subr.mxu0 0.0
  %2469 = vmatpush1.msra.mxu0 0.0
  %2470 = vmatprep.subr.mxu0 0.0
  %2471 = vmatpush1.msra.mxu0 0.0
  %2472 = vmatprep.subr.mxu0 0.0
  %2473 = vmatpush1.msra.mxu0 0.0
  %2474 = vmatprep.subr.mxu0 0.0
  %2475 = vmatpush1.msra.mxu0 0.0
  %2476 = vmatprep.subr.mxu0 0.0
  %2477 = vmatpush1.msra.mxu0 0.0
  %2478 = vmatprep.subr.mxu0 0.0
  %2479 = vmatpush1.msra.mxu0 0.0
  %2480 = vmatprep.subr.mxu0 0.0
  %2481 = vmatpush1.msra.mxu0 0.0
  %2482 = vmatprep.subr.mxu0 0.0
  %2483 = vmatpush1.msra.mxu0 0.0
  %2484 = vmatprep.subr.mxu0 0.0
  %2485 = vmatpush1.msra.mxu0 0.0
  %2486 = vmatprep.subr.mxu0 0.0
  %2487 = vmatpush1.msra.mxu0 0.0
  %2488 = vmatprep.subr.mxu0 0.0
  %2489 = vmatpush1.msra.mxu0 0.0
  %2490 = vmatprep.subr.mxu0 0.0
  %2491 = vmatpush1.msra.mxu0 0.0
  %2492 = vmatprep.subr.mxu0 0.0
  %2493 = vmatpush1.msra.mxu0 0.0
  %2494 = vmatprep.subr.mxu0 0.0
  %2495 = vmatpush1.msra.mxu0 0.0
  %2496 = vmatprep.subr.mxu0 0.0
  %2497 = vmatpush1.msra.mxu0 %v2453
  %2498 = vmatprep.subr.mxu0 0.0
  %2499 = vmatpush2.msra.mxu0 0.0
  %2500 = vmatprep.subr.mxu0 0.0
  %2501 = vmatpush2.msra.mxu0 0.0
  %2502 = vmatprep.subr.mxu0 0.0
  %2503 = vmatpush2.msra.mxu0 0.0
  %2504 = vmatprep.subr.mxu0 0.0
  %2505 = vmatpush2.msra.mxu0 0.0
  %2506 = vmatprep.subr.mxu0 0.0
  %2507 = vmatpush2.msra.mxu0 0.0
  %2508 = vmatprep.subr.mxu0 0.0
  %2509 = vmatpush2.msra.mxu0 0.0
  %2510 = vmatprep.subr.mxu0 0.0
  %2511 = vmatpush2.msra.mxu0 0.0
  %2512 = vmatprep.subr.mxu0 0.0
  %2513 = vmatpush2.msra.mxu0 0.0
  %2514 = vmatprep.subr.mxu0 0.0
  %2515 = vmatpush2.msra.mxu0 0.0
  %2516 = vmatprep.subr.mxu0 0.0
  %2517 = vmatpush2.msra.mxu0 0.0
  %2518 = vmatprep.subr.mxu0 0.0
  %2519 = vmatpush2.msra.mxu0 0.0
  %2520 = vmatprep.subr.mxu0 0.0
  %2521 = vmatpush2.msra.mxu0 0.0
  %2522 = vmatprep.subr.mxu0 0.0
  %2523 = vmatpush2.msra.mxu0 0.0
  %2524 = vmatprep.subr.mxu0 0.0
  %2525 = vmatpush2.msra.mxu0 0.0
  %2526 = vmatprep.subr.mxu0 0.0
  %2527 = vmatpush2.msra.mxu0 0.0
  %2528 = vmatprep.subr.mxu0 0.0
  %2529 = vmatpush2.msra.mxu0 0.0
  %2530 = vmatprep.mubr.f32.mxu0 0.0
  %2531 = vmatmul.mubr.f32.gmra.mxu0 %v2455
  %v2532 = vpop.f32.mrf.mxu0
  %v2533 = vadd.f32 0.0, %v2532
  %v2534 = vpop.f32.mrf.mxu0
  %2535 = vmatprep.mubr.f32.mxu0 0.0
  %2536 = vmatmul.mubr.f32.gmra.mxu0 %v2458
  %v2537 = vpop.f32.mrf.mxu0
  %v2538 = vadd.f32 0.0, %v2537
  %v2539 = vpop.f32.mrf.mxu0
  %2540 = vmatprep.mubr.f32.mxu0 0.0
  %2541 = vmatmul.mubr.f32.gmra.mxu0 %v2461
  %v2542 = vpop.f32.mrf.mxu0
  %v2543 = vadd.f32 0.0, %v2542
  %v2544 = vpop.f32.mrf.mxu0
  %2545 = vmatprep.mubr.f32.mxu0 0.0
  %2546 = vmatmul.mubr.f32.gmra.mxu0 %v2464
  %v2547 = vpop.f32.mrf.mxu0
  %v2548 = vadd.f32 0.0, %v2547
  %v2549 = vpop.f32.mrf.mxu0
  %2550 = vdwg.mxu0
  %v2551 = vadd.f32 %v1775, %v2533
  %v2552 = vadd.f32 %v1780, %v2538
  %v2553 = vadd.f32 %v1785, %v2543
  %v2554 = vadd.f32 %v1790, %v2548
  %s2555 = scalar_lea.vmem %s3, 96
  %v2556 = vld [vmem:[%s2555] sm:$0xff]
  %v2557 = vld [vmem:[%s2555 + $0x8] sm:$0xff]
  %v2558 = vld [vmem:[%s2555 + $0x10] sm:$0xff]
  %v2559 = vld [vmem:[%s2555 + $0x18] sm:$0xff]
  %2560 = vrot.lane.b32.xlu0 %v264, 104
  %v2561 = vpop.permute.xlu0 %2560
  %2563 = vmatprep.subr.mxu0 0.0
  %2564 = vmatpush1.msra.mxu0 0.0
  %2565 = vmatprep.subr.mxu0 0.0
  %2566 = vmatpush1.msra.mxu0 0.0
  %2567 = vmatprep.subr.mxu0 0.0
  %2568 = vmatpush1.msra.mxu0 0.0
  %2569 = vmatprep.subr.mxu0 0.0
  %2570 = vmatpush1.msra.mxu0 0.0
  %2571 = vmatprep.subr.mxu0 0.0
  %2572 = vmatpush1.msra.mxu0 0.0
  %2573 = vmatprep.subr.mxu0 0.0
  %2574 = vmatpush1.msra.mxu0 0.0
  %2575 = vmatprep.subr.mxu0 0.0
  %2576 = vmatpush1.msra.mxu0 0.0
  %2577 = vmatprep.subr.mxu0 0.0
  %2578 = vmatpush1.msra.mxu0 0.0
  %2579 = vmatprep.subr.mxu0 0.0
  %2580 = vmatpush1.msra.mxu0 0.0
  %2581 = vmatprep.subr.mxu0 0.0
  %2582 = vmatpush1.msra.mxu0 0.0
  %2583 = vmatprep.subr.mxu0 0.0
  %2584 = vmatpush1.msra.mxu0 0.0
  %2585 = vmatprep.subr.mxu0 0.0
  %2586 = vmatpush1.msra.mxu0 0.0
  %2587 = vmatprep.subr.mxu0 0.0
  %2588 = vmatpush1.msra.mxu0 %v2559
  %2589 = vmatprep.subr.mxu0 0.0
  %2590 = vmatpush1.msra.mxu0 %v2558
  %2591 = vmatprep.subr.mxu0 0.0
  %2592 = vmatpush1.msra.mxu0 %v2557
  %2593 = vmatprep.subr.mxu0 0.0
  %2594 = vmatpush1.msra.mxu0 %v2556
  %2595 = vmatprep.subr.mxu0 0.0
  %2596 = vmatpush2.msra.mxu0 0.0
  %2597 = vmatprep.subr.mxu0 0.0
  %2598 = vmatpush2.msra.mxu0 0.0
  %2599 = vmatprep.subr.mxu0 0.0
  %2600 = vmatpush2.msra.mxu0 0.0
  %2601 = vmatprep.subr.mxu0 0.0
  %2602 = vmatpush2.msra.mxu0 0.0
  %2603 = vmatprep.subr.mxu0 0.0
  %2604 = vmatpush2.msra.mxu0 0.0
  %2605 = vmatprep.subr.mxu0 0.0
  %2606 = vmatpush2.msra.mxu0 0.0
  %2607 = vmatprep.subr.mxu0 0.0
  %2608 = vmatpush2.msra.mxu0 0.0
  %2609 = vmatprep.subr.mxu0 0.0
  %2610 = vmatpush2.msra.mxu0 0.0
  %2611 = vmatprep.subr.mxu0 0.0
  %2612 = vmatpush2.msra.mxu0 0.0
  %2613 = vmatprep.subr.mxu0 0.0
  %2614 = vmatpush2.msra.mxu0 0.0
  %2615 = vmatprep.subr.mxu0 0.0
  %2616 = vmatpush2.msra.mxu0 0.0
  %2617 = vmatprep.subr.mxu0 0.0
  %2618 = vmatpush2.msra.mxu0 0.0
  %2619 = vmatprep.subr.mxu0 0.0
  %2620 = vmatpush2.msra.mxu0 0.0
  %2621 = vmatprep.subr.mxu0 0.0
  %2622 = vmatpush2.msra.mxu0 0.0
  %2623 = vmatprep.subr.mxu0 0.0
  %2624 = vmatpush2.msra.mxu0 0.0
  %2625 = vmatprep.subr.mxu0 0.0
  %2626 = vmatpush2.msra.mxu0 0.0
  %2627 = vmatprep.mubr.f32.mxu0 0.0
  %2628 = vmatmul.mubr.f32.gmra.mxu0 %v267
  %v2629 = vpop.f32.mrf.mxu0
  %v2630 = vadd.f32 %v2561, %v2629
  %v2631 = vpop.f32.mrf.mxu0
  %2632 = vmatprep.mubr.f32.mxu0 0.0
  %2633 = vmatmul.mubr.f32.gmra.mxu0 %v270
  %v2634 = vpop.f32.mrf.mxu0
  %v2635 = vadd.f32 %v2561, %v2634
  %v2636 = vpop.f32.mrf.mxu0
  %2637 = vmatprep.mubr.f32.mxu0 0.0
  %2638 = vmatmul.mubr.f32.gmra.mxu0 %v273
  %v2639 = vpop.f32.mrf.mxu0
  %v2640 = vadd.f32 %v2561, %v2639
  %v2641 = vpop.f32.mrf.mxu0
  %2642 = vmatprep.mubr.f32.mxu0 0.0
  %2643 = vmatmul.mubr.f32.gmra.mxu0 %v276
  %v2644 = vpop.f32.mrf.mxu0
  %v2645 = vadd.f32 %v2561, %v2644
  %v2646 = vpop.f32.mrf.mxu0
  %2647 = vdwg.mxu0
  %s2648 = scalar_lea.vmem %s3, 224
  %v2649 = vld [vmem:[%s2648] sm:$0xff]
  %v2650 = vld [vmem:[%s2648 + $0x8] sm:$0xff]
  %v2651 = vld [vmem:[%s2648 + $0x10] sm:$0xff]
  %v2652 = vld [vmem:[%s2648 + $0x18] sm:$0xff]
  %2653 = vrot.lane.b32.xlu0 %v372, 104
  %v2654 = vpop.permute.xlu0 %2653
  %2656 = vmatprep.subr.mxu0 0.0
  %2657 = vmatpush1.msra.mxu0 0.0
  %2658 = vmatprep.subr.mxu0 0.0
  %2659 = vmatpush1.msra.mxu0 0.0
  %2660 = vmatprep.subr.mxu0 0.0
  %2661 = vmatpush1.msra.mxu0 0.0
  %2662 = vmatprep.subr.mxu0 0.0
  %2663 = vmatpush1.msra.mxu0 0.0
  %2664 = vmatprep.subr.mxu0 0.0
  %2665 = vmatpush1.msra.mxu0 0.0
  %2666 = vmatprep.subr.mxu0 0.0
  %2667 = vmatpush1.msra.mxu0 0.0
  %2668 = vmatprep.subr.mxu0 0.0
  %2669 = vmatpush1.msra.mxu0 0.0
  %2670 = vmatprep.subr.mxu0 0.0
  %2671 = vmatpush1.msra.mxu0 0.0
  %2672 = vmatprep.subr.mxu0 0.0
  %2673 = vmatpush1.msra.mxu0 0.0
  %2674 = vmatprep.subr.mxu0 0.0
  %2675 = vmatpush1.msra.mxu0 0.0
  %2676 = vmatprep.subr.mxu0 0.0
  %2677 = vmatpush1.msra.mxu0 0.0
  %2678 = vmatprep.subr.mxu0 0.0
  %2679 = vmatpush1.msra.mxu0 0.0
  %2680 = vmatprep.subr.mxu0 0.0
  %2681 = vmatpush1.msra.mxu0 %v2652
  %2682 = vmatprep.subr.mxu0 0.0
  %2683 = vmatpush1.msra.mxu0 %v2651
  %2684 = vmatprep.subr.mxu0 0.0
  %2685 = vmatpush1.msra.mxu0 %v2650
  %2686 = vmatprep.subr.mxu0 0.0
  %2687 = vmatpush1.msra.mxu0 %v2649
  %2688 = vmatprep.subr.mxu0 0.0
  %2689 = vmatpush2.msra.mxu0 0.0
  %2690 = vmatprep.subr.mxu0 0.0
  %2691 = vmatpush2.msra.mxu0 0.0
  %2692 = vmatprep.subr.mxu0 0.0
  %2693 = vmatpush2.msra.mxu0 0.0
  %2694 = vmatprep.subr.mxu0 0.0
  %2695 = vmatpush2.msra.mxu0 0.0
  %2696 = vmatprep.subr.mxu0 0.0
  %2697 = vmatpush2.msra.mxu0 0.0
  %2698 = vmatprep.subr.mxu0 0.0
  %2699 = vmatpush2.msra.mxu0 0.0
  %2700 = vmatprep.subr.mxu0 0.0
  %2701 = vmatpush2.msra.mxu0 0.0
  %2702 = vmatprep.subr.mxu0 0.0
  %2703 = vmatpush2.msra.mxu0 0.0
  %2704 = vmatprep.subr.mxu0 0.0
  %2705 = vmatpush2.msra.mxu0 0.0
  %2706 = vmatprep.subr.mxu0 0.0
  %2707 = vmatpush2.msra.mxu0 0.0
  %2708 = vmatprep.subr.mxu0 0.0
  %2709 = vmatpush2.msra.mxu0 0.0
  %2710 = vmatprep.subr.mxu0 0.0
  %2711 = vmatpush2.msra.mxu0 0.0
  %2712 = vmatprep.subr.mxu0 0.0
  %2713 = vmatpush2.msra.mxu0 0.0
  %2714 = vmatprep.subr.mxu0 0.0
  %2715 = vmatpush2.msra.mxu0 0.0
  %2716 = vmatprep.subr.mxu0 0.0
  %2717 = vmatpush2.msra.mxu0 0.0
  %2718 = vmatprep.subr.mxu0 0.0
  %2719 = vmatpush2.msra.mxu0 0.0
  %2720 = vmatprep.mubr.f32.mxu0 0.0
  %2721 = vmatmul.mubr.f32.gmra.mxu0 %v267
  %v2722 = vpop.f32.mrf.mxu0
  %v2723 = vadd.f32 %v2654, %v2722
  %v2724 = vpop.f32.mrf.mxu0
  %2725 = vmatprep.mubr.f32.mxu0 0.0
  %2726 = vmatmul.mubr.f32.gmra.mxu0 %v270
  %v2727 = vpop.f32.mrf.mxu0
  %v2728 = vadd.f32 %v2654, %v2727
  %v2729 = vpop.f32.mrf.mxu0
  %2730 = vmatprep.mubr.f32.mxu0 0.0
  %2731 = vmatmul.mubr.f32.gmra.mxu0 %v273
  %v2732 = vpop.f32.mrf.mxu0
  %v2733 = vadd.f32 %v2654, %v2732
  %v2734 = vpop.f32.mrf.mxu0
  %2735 = vmatprep.mubr.f32.mxu0 0.0
  %2736 = vmatmul.mubr.f32.gmra.mxu0 %v276
  %v2737 = vpop.f32.mrf.mxu0
  %v2738 = vadd.f32 %v2654, %v2737
  %v2739 = vpop.f32.mrf.mxu0
  %2740 = vdwg.mxu0
  %s2741 = scalar_lea.vmem %s3, 352
  %v2742 = vld [vmem:[%s2741] sm:$0xff]
  %v2743 = vld [vmem:[%s2741 + $0x8] sm:$0xff]
  %v2744 = vld [vmem:[%s2741 + $0x10] sm:$0xff]
  %v2745 = vld [vmem:[%s2741 + $0x18] sm:$0xff]
  %2746 = vrot.lane.b32.xlu0 %v467, 104
  %v2747 = vpop.permute.xlu0 %2746
  %2749 = vmatprep.subr.mxu0 0.0
  %2750 = vmatpush1.msra.mxu0 0.0
  %2751 = vmatprep.subr.mxu0 0.0
  %2752 = vmatpush1.msra.mxu0 0.0
  %2753 = vmatprep.subr.mxu0 0.0
  %2754 = vmatpush1.msra.mxu0 0.0
  %2755 = vmatprep.subr.mxu0 0.0
  %2756 = vmatpush1.msra.mxu0 0.0
  %2757 = vmatprep.subr.mxu0 0.0
  %2758 = vmatpush1.msra.mxu0 0.0
  %2759 = vmatprep.subr.mxu0 0.0
  %2760 = vmatpush1.msra.mxu0 0.0
  %2761 = vmatprep.subr.mxu0 0.0
  %2762 = vmatpush1.msra.mxu0 0.0
  %2763 = vmatprep.subr.mxu0 0.0
  %2764 = vmatpush1.msra.mxu0 0.0
  %2765 = vmatprep.subr.mxu0 0.0
  %2766 = vmatpush1.msra.mxu0 0.0
  %2767 = vmatprep.subr.mxu0 0.0
  %2768 = vmatpush1.msra.mxu0 0.0
  %2769 = vmatprep.subr.mxu0 0.0
  %2770 = vmatpush1.msra.mxu0 0.0
  %2771 = vmatprep.subr.mxu0 0.0
  %2772 = vmatpush1.msra.mxu0 0.0
  %2773 = vmatprep.subr.mxu0 0.0
  %2774 = vmatpush1.msra.mxu0 %v2745
  %2775 = vmatprep.subr.mxu0 0.0
  %2776 = vmatpush1.msra.mxu0 %v2744
  %2777 = vmatprep.subr.mxu0 0.0
  %2778 = vmatpush1.msra.mxu0 %v2743
  %2779 = vmatprep.subr.mxu0 0.0
  %2780 = vmatpush1.msra.mxu0 %v2742
  %2781 = vmatprep.subr.mxu0 0.0
  %2782 = vmatpush2.msra.mxu0 0.0
  %2783 = vmatprep.subr.mxu0 0.0
  %2784 = vmatpush2.msra.mxu0 0.0
  %2785 = vmatprep.subr.mxu0 0.0
  %2786 = vmatpush2.msra.mxu0 0.0
  %2787 = vmatprep.subr.mxu0 0.0
  %2788 = vmatpush2.msra.mxu0 0.0
  %2789 = vmatprep.subr.mxu0 0.0
  %2790 = vmatpush2.msra.mxu0 0.0
  %2791 = vmatprep.subr.mxu0 0.0
  %2792 = vmatpush2.msra.mxu0 0.0
  %2793 = vmatprep.subr.mxu0 0.0
  %2794 = vmatpush2.msra.mxu0 0.0
  %2795 = vmatprep.subr.mxu0 0.0
  %2796 = vmatpush2.msra.mxu0 0.0
  %2797 = vmatprep.subr.mxu0 0.0
  %2798 = vmatpush2.msra.mxu0 0.0
  %2799 = vmatprep.subr.mxu0 0.0
  %2800 = vmatpush2.msra.mxu0 0.0
  %2801 = vmatprep.subr.mxu0 0.0
  %2802 = vmatpush2.msra.mxu0 0.0
  %2803 = vmatprep.subr.mxu0 0.0
  %2804 = vmatpush2.msra.mxu0 0.0
  %2805 = vmatprep.subr.mxu0 0.0
  %2806 = vmatpush2.msra.mxu0 0.0
  %2807 = vmatprep.subr.mxu0 0.0
  %2808 = vmatpush2.msra.mxu0 0.0
  %2809 = vmatprep.subr.mxu0 0.0
  %2810 = vmatpush2.msra.mxu0 0.0
  %2811 = vmatprep.subr.mxu0 0.0
  %2812 = vmatpush2.msra.mxu0 0.0
  %2813 = vmatprep.mubr.f32.mxu0 0.0
  %2814 = vmatmul.mubr.f32.gmra.mxu0 %v267
  %v2815 = vpop.f32.mrf.mxu0
  %v2816 = vadd.f32 %v2747, %v2815
  %v2817 = vpop.f32.mrf.mxu0
  %2818 = vmatprep.mubr.f32.mxu0 0.0
  %2819 = vmatmul.mubr.f32.gmra.mxu0 %v270
  %v2820 = vpop.f32.mrf.mxu0
  %v2821 = vadd.f32 %v2747, %v2820
  %v2822 = vpop.f32.mrf.mxu0
  %2823 = vmatprep.mubr.f32.mxu0 0.0
  %2824 = vmatmul.mubr.f32.gmra.mxu0 %v273
  %v2825 = vpop.f32.mrf.mxu0
  %v2826 = vadd.f32 %v2747, %v2825
  %v2827 = vpop.f32.mrf.mxu0
  %2828 = vmatprep.mubr.f32.mxu0 0.0
  %2829 = vmatmul.mubr.f32.gmra.mxu0 %v276
  %v2830 = vpop.f32.mrf.mxu0
  %v2831 = vadd.f32 %v2747, %v2830
  %v2832 = vpop.f32.mrf.mxu0
  %2833 = vdwg.mxu0
  %v2835 = vsel %vm553, %v2630, 0
  %v2838 = vsel %vm553, %v2635, 0
  %v2841 = vsel %vm553, %v2723, 0
  %v2844 = vsel %vm553, %v2728, 0
  %2846 = vmatprep.subr.mxu0 0.0
  %2847 = vmatpush1.xpose.msra.mxu0 0.0
  %2848 = vmatprep.subr.mxu0 0.0
  %2849 = vmatpush1.xpose.msra.mxu0 0.0
  %2850 = vmatprep.subr.mxu0 0.0
  %2851 = vmatpush1.xpose.msra.mxu0 0.0
  %2852 = vmatprep.subr.mxu0 0.0
  %2853 = vmatpush1.xpose.msra.mxu0 0.0
  %2854 = vmatprep.subr.mxu0 0.0
  %2855 = vmatpush1.xpose.msra.mxu0 0.0
  %2856 = vmatprep.subr.mxu0 0.0
  %2857 = vmatpush1.xpose.msra.mxu0 0.0
  %2858 = vmatprep.subr.mxu0 0.0
  %2859 = vmatpush1.xpose.msra.mxu0 0.0
  %2860 = vmatprep.subr.mxu0 0.0
  %2861 = vmatpush1.xpose.msra.mxu0 0.0
  %2862 = vmatprep.subr.mxu0 0.0
  %2863 = vmatpush1.xpose.msra.mxu0 0.0
  %2864 = vmatprep.subr.mxu0 0.0
  %2865 = vmatpush1.xpose.msra.mxu0 0.0
  %2866 = vmatprep.subr.mxu0 0.0
  %2867 = vmatpush1.xpose.msra.mxu0 0.0
  %2868 = vmatprep.subr.mxu0 0.0
  %2869 = vmatpush1.xpose.msra.mxu0 0.0
  %2870 = vmatprep.subr.mxu0 0.0
  %2871 = vmatpush1.xpose.msra.mxu0 0.0
  %2872 = vmatprep.subr.mxu0 0.0
  %2873 = vmatpush1.xpose.msra.mxu0 0.0
  %2874 = vmatprep.subr.mxu0 0.0
  %2875 = vmatpush1.xpose.msra.mxu0 %v2844
  %2876 = vmatprep.subr.mxu0 0.0
  %2877 = vmatpush1.xpose.msra.mxu0 %v2841
  %2878 = vmatprep.subr.mxu0 0.0
  %2879 = vmatpush2.xpose.msra.mxu0 0.0
  %2880 = vmatprep.subr.mxu0 0.0
  %2881 = vmatpush2.xpose.msra.mxu0 0.0
  %2882 = vmatprep.subr.mxu0 0.0
  %2883 = vmatpush2.xpose.msra.mxu0 0.0
  %2884 = vmatprep.subr.mxu0 0.0
  %2885 = vmatpush2.xpose.msra.mxu0 0.0
  %2886 = vmatprep.subr.mxu0 0.0
  %2887 = vmatpush2.xpose.msra.mxu0 0.0
  %2888 = vmatprep.subr.mxu0 0.0
  %2889 = vmatpush2.xpose.msra.mxu0 0.0
  %2890 = vmatprep.subr.mxu0 0.0
  %2891 = vmatpush2.xpose.msra.mxu0 0.0
  %2892 = vmatprep.subr.mxu0 0.0
  %2893 = vmatpush2.xpose.msra.mxu0 0.0
  %2894 = vmatprep.subr.mxu0 0.0
  %2895 = vmatpush2.xpose.msra.mxu0 0.0
  %2896 = vmatprep.subr.mxu0 0.0
  %2897 = vmatpush2.xpose.msra.mxu0 0.0
  %2898 = vmatprep.subr.mxu0 0.0
  %2899 = vmatpush2.xpose.msra.mxu0 0.0
  %2900 = vmatprep.subr.mxu0 0.0
  %2901 = vmatpush2.xpose.msra.mxu0 0.0
  %2902 = vmatprep.subr.mxu0 0.0
  %2903 = vmatpush2.xpose.msra.mxu0 0.0
  %2904 = vmatprep.subr.mxu0 0.0
  %2905 = vmatpush2.xpose.msra.mxu0 0.0
  %2906 = vmatprep.subr.mxu0 0.0
  %2907 = vmatpush2.xpose.msra.mxu0 0.0
  %2908 = vmatprep.subr.mxu0 0.0
  %2909 = vmatpush2.xpose.msra.mxu0 0.0
  %2910 = vmatprep.mubr.f32.mxu0 0.0
  %2911 = vmatmul.mubr.f32.gmra.mxu0 %v2835
  %v2912 = vpop.f32.mrf.mxu0
  %v2913 = vadd.f32 0.0, %v2912
  %v2914 = vpop.f32.mrf.mxu0
  %2915 = vmatprep.mubr.f32.mxu0 0.0
  %2916 = vmatmul.mubr.f32.gmra.mxu0 %v2838
  %v2917 = vpop.f32.mrf.mxu0
  %v2918 = vadd.f32 0.0, %v2917
  %v2919 = vpop.f32.mrf.mxu0
  %2920 = vdwg.mxu0
  %v2921 = vsel %vm158, %v2913, -inf
  %2922 = vmax.xlane.f32.xlu0 %v2921
  %v2923 = vpop.xlane.xlu0 %2922
  %v2924 = vsel %vm158, %v2918, -inf
  %2925 = vmax.xlane.f32.xlu0 %v2924
  %v2926 = vpop.xlane.xlu0 %2925
  %v2927 = vsub.f32 %v2913, %v2923
  %v2928 = vsub.f32 %v2918, %v2926
  %v2929 = vmul.f32 %v2927, 1.442695
  %v2930 = vpow.pop %v2929
  %v2931 = vmul.f32 %v2928, 1.442695
  %v2932 = vpow.pop %v2931
  %v2933 = vsel %vm158, %v2930, 0.0
  %2934 = vadd.xlane.f32.xlu0 %v2933
  %v2935 = vpop.xlane.xlu0 %2934
  %v2936 = vsel %vm158, %v2932, 0.0
  %2937 = vadd.xlane.f32.xlu0 %v2936
  %v2938 = vpop.xlane.xlu0 %2937
  %v2939 = vrcp.pop %v2935
  %v2940 = vrcp.pop %v2938
  %v2941 = vmul.f32 %v2930, %v2939
  %v2942 = vmul.f32 %v2932, %v2940
  %v2944 = vsel %vm158, %v2941, 0
  %v2947 = vsel %vm158, %v2942, 0
  %2949 = vmatprep.subr.mxu0 0.0
  %2950 = vmatpush1.msra.mxu0 0.0
  %2951 = vmatprep.subr.mxu0 0.0
  %2952 = vmatpush1.msra.mxu0 0.0
  %2953 = vmatprep.subr.mxu0 0.0
  %2954 = vmatpush1.msra.mxu0 0.0
  %2955 = vmatprep.subr.mxu0 0.0
  %2956 = vmatpush1.msra.mxu0 0.0
  %2957 = vmatprep.subr.mxu0 0.0
  %2958 = vmatpush1.msra.mxu0 0.0
  %2959 = vmatprep.subr.mxu0 0.0
  %2960 = vmatpush1.msra.mxu0 0.0
  %2961 = vmatprep.subr.mxu0 0.0
  %2962 = vmatpush1.msra.mxu0 0.0
  %2963 = vmatprep.subr.mxu0 0.0
  %2964 = vmatpush1.msra.mxu0 0.0
  %2965 = vmatprep.subr.mxu0 0.0
  %2966 = vmatpush1.msra.mxu0 0.0
  %2967 = vmatprep.subr.mxu0 0.0
  %2968 = vmatpush1.msra.mxu0 0.0
  %2969 = vmatprep.subr.mxu0 0.0
  %2970 = vmatpush1.msra.mxu0 0.0
  %2971 = vmatprep.subr.mxu0 0.0
  %2972 = vmatpush1.msra.mxu0 0.0
  %2973 = vmatprep.subr.mxu0 0.0
  %2974 = vmatpush1.msra.mxu0 0.0
  %2975 = vmatprep.subr.mxu0 0.0
  %2976 = vmatpush1.msra.mxu0 0.0
  %2977 = vmatprep.subr.mxu0 0.0
  %2978 = vmatpush1.msra.mxu0 %v2821
  %2979 = vmatprep.subr.mxu0 0.0
  %2980 = vmatpush1.msra.mxu0 %v2816
  %2981 = vmatprep.subr.mxu0 0.0
  %2982 = vmatpush2.msra.mxu0 0.0
  %2983 = vmatprep.subr.mxu0 0.0
  %2984 = vmatpush2.msra.mxu0 0.0
  %2985 = vmatprep.subr.mxu0 0.0
  %2986 = vmatpush2.msra.mxu0 0.0
  %2987 = vmatprep.subr.mxu0 0.0
  %2988 = vmatpush2.msra.mxu0 0.0
  %2989 = vmatprep.subr.mxu0 0.0
  %2990 = vmatpush2.msra.mxu0 0.0
  %2991 = vmatprep.subr.mxu0 0.0
  %2992 = vmatpush2.msra.mxu0 0.0
  %2993 = vmatprep.subr.mxu0 0.0
  %2994 = vmatpush2.msra.mxu0 0.0
  %2995 = vmatprep.subr.mxu0 0.0
  %2996 = vmatpush2.msra.mxu0 0.0
  %2997 = vmatprep.subr.mxu0 0.0
  %2998 = vmatpush2.msra.mxu0 0.0
  %2999 = vmatprep.subr.mxu0 0.0
  %3000 = vmatpush2.msra.mxu0 0.0
  %3001 = vmatprep.subr.mxu0 0.0
  %3002 = vmatpush2.msra.mxu0 0.0
  %3003 = vmatprep.subr.mxu0 0.0
  %3004 = vmatpush2.msra.mxu0 0.0
  %3005 = vmatprep.subr.mxu0 0.0
  %3006 = vmatpush2.msra.mxu0 0.0
  %3007 = vmatprep.subr.mxu0 0.0
  %3008 = vmatpush2.msra.mxu0 0.0
  %3009 = vmatprep.subr.mxu0 0.0
  %3010 = vmatpush2.msra.mxu0 0.0
  %3011 = vmatprep.subr.mxu0 0.0
  %3012 = vmatpush2.msra.mxu0 0.0
  %3013 = vmatprep.mubr.f32.mxu0 0.0
  %3014 = vmatmul.mubr.f32.gmra.mxu0 %v2944
  %v3015 = vpop.f32.mrf.mxu0
  %v3016 = vadd.f32 0.0, %v3015
  %v3017 = vpop.f32.mrf.mxu0
  %3018 = vmatprep.mubr.f32.mxu0 0.0
  %3019 = vmatmul.mubr.f32.gmra.mxu0 %v2947
  %v3020 = vpop.f32.mrf.mxu0
  %v3021 = vadd.f32 0.0, %v3020
  %v3022 = vpop.f32.mrf.mxu0
  %3023 = vdwg.mxu0
  %v3025 = vsel %vm553, %v2640, 0
  %v3028 = vsel %vm553, %v2645, 0
  %v3031 = vsel %vm553, %v2733, 0
  %v3034 = vsel %vm553, %v2738, 0
  %3036 = vmatprep.subr.mxu0 0.0
  %3037 = vmatpush1.xpose.msra.mxu0 0.0
  %3038 = vmatprep.subr.mxu0 0.0
  %3039 = vmatpush1.xpose.msra.mxu0 0.0
  %3040 = vmatprep.subr.mxu0 0.0
  %3041 = vmatpush1.xpose.msra.mxu0 0.0
  %3042 = vmatprep.subr.mxu0 0.0
  %3043 = vmatpush1.xpose.msra.mxu0 0.0
  %3044 = vmatprep.subr.mxu0 0.0
  %3045 = vmatpush1.xpose.msra.mxu0 0.0
  %3046 = vmatprep.subr.mxu0 0.0
  %3047 = vmatpush1.xpose.msra.mxu0 0.0
  %3048 = vmatprep.subr.mxu0 0.0
  %3049 = vmatpush1.xpose.msra.mxu0 0.0
  %3050 = vmatprep.subr.mxu0 0.0
  %3051 = vmatpush1.xpose.msra.mxu0 0.0
  %3052 = vmatprep.subr.mxu0 0.0
  %3053 = vmatpush1.xpose.msra.mxu0 0.0
  %3054 = vmatprep.subr.mxu0 0.0
  %3055 = vmatpush1.xpose.msra.mxu0 0.0
  %3056 = vmatprep.subr.mxu0 0.0
  %3057 = vmatpush1.xpose.msra.mxu0 0.0
  %3058 = vmatprep.subr.mxu0 0.0
  %3059 = vmatpush1.xpose.msra.mxu0 0.0
  %3060 = vmatprep.subr.mxu0 0.0
  %3061 = vmatpush1.xpose.msra.mxu0 0.0
  %3062 = vmatprep.subr.mxu0 0.0
  %3063 = vmatpush1.xpose.msra.mxu0 0.0
  %3064 = vmatprep.subr.mxu0 0.0
  %3065 = vmatpush1.xpose.msra.mxu0 %v3034
  %3066 = vmatprep.subr.mxu0 0.0
  %3067 = vmatpush1.xpose.msra.mxu0 %v3031
  %3068 = vmatprep.subr.mxu0 0.0
  %3069 = vmatpush2.xpose.msra.mxu0 0.0
  %3070 = vmatprep.subr.mxu0 0.0
  %3071 = vmatpush2.xpose.msra.mxu0 0.0
  %3072 = vmatprep.subr.mxu0 0.0
  %3073 = vmatpush2.xpose.msra.mxu0 0.0
  %3074 = vmatprep.subr.mxu0 0.0
  %3075 = vmatpush2.xpose.msra.mxu0 0.0
  %3076 = vmatprep.subr.mxu0 0.0
  %3077 = vmatpush2.xpose.msra.mxu0 0.0
  %3078 = vmatprep.subr.mxu0 0.0
  %3079 = vmatpush2.xpose.msra.mxu0 0.0
  %3080 = vmatprep.subr.mxu0 0.0
  %3081 = vmatpush2.xpose.msra.mxu0 0.0
  %3082 = vmatprep.subr.mxu0 0.0
  %3083 = vmatpush2.xpose.msra.mxu0 0.0
  %3084 = vmatprep.subr.mxu0 0.0
  %3085 = vmatpush2.xpose.msra.mxu0 0.0
  %3086 = vmatprep.subr.mxu0 0.0
  %3087 = vmatpush2.xpose.msra.mxu0 0.0
  %3088 = vmatprep.subr.mxu0 0.0
  %3089 = vmatpush2.xpose.msra.mxu0 0.0
  %3090 = vmatprep.subr.mxu0 0.0
  %3091 = vmatpush2.xpose.msra.mxu0 0.0
  %3092 = vmatprep.subr.mxu0 0.0
  %3093 = vmatpush2.xpose.msra.mxu0 0.0
  %3094 = vmatprep.subr.mxu0 0.0
  %3095 = vmatpush2.xpose.msra.mxu0 0.0
  %3096 = vmatprep.subr.mxu0 0.0
  %3097 = vmatpush2.xpose.msra.mxu0 0.0
  %3098 = vmatprep.subr.mxu0 0.0
  %3099 = vmatpush2.xpose.msra.mxu0 0.0
  %3100 = vmatprep.mubr.f32.mxu0 0.0
  %3101 = vmatmul.mubr.f32.gmra.mxu0 %v3025
  %v3102 = vpop.f32.mrf.mxu0
  %v3103 = vadd.f32 0.0, %v3102
  %v3104 = vpop.f32.mrf.mxu0
  %3105 = vmatprep.mubr.f32.mxu0 0.0
  %3106 = vmatmul.mubr.f32.gmra.mxu0 %v3028
  %v3107 = vpop.f32.mrf.mxu0
  %v3108 = vadd.f32 0.0, %v3107
  %v3109 = vpop.f32.mrf.mxu0
  %3110 = vdwg.mxu0
  %v3111 = vsel %vm158, %v3103, -inf
  %3112 = vmax.xlane.f32.xlu0 %v3111
  %v3113 = vpop.xlane.xlu0 %3112
  %v3114 = vsel %vm158, %v3108, -inf
  %3115 = vmax.xlane.f32.xlu0 %v3114
  %v3116 = vpop.xlane.xlu0 %3115
  %v3117 = vsub.f32 %v3103, %v3113
  %v3118 = vsub.f32 %v3108, %v3116
  %v3119 = vmul.f32 %v3117, 1.442695
  %v3120 = vpow.pop %v3119
  %v3121 = vmul.f32 %v3118, 1.442695
  %v3122 = vpow.pop %v3121
  %v3123 = vsel %vm158, %v3120, 0.0
  %3124 = vadd.xlane.f32.xlu0 %v3123
  %v3125 = vpop.xlane.xlu0 %3124
  %v3126 = vsel %vm158, %v3122, 0.0
  %3127 = vadd.xlane.f32.xlu0 %v3126
  %v3128 = vpop.xlane.xlu0 %3127
  %v3129 = vrcp.pop %v3125
  %v3130 = vrcp.pop %v3128
  %v3131 = vmul.f32 %v3120, %v3129
  %v3132 = vmul.f32 %v3122, %v3130
  %v3134 = vsel %vm158, %v3131, 0
  %v3137 = vsel %vm158, %v3132, 0
  %3139 = vmatprep.subr.mxu0 0.0
  %3140 = vmatpush1.msra.mxu0 0.0
  %3141 = vmatprep.subr.mxu0 0.0
  %3142 = vmatpush1.msra.mxu0 0.0
  %3143 = vmatprep.subr.mxu0 0.0
  %3144 = vmatpush1.msra.mxu0 0.0
  %3145 = vmatprep.subr.mxu0 0.0
  %3146 = vmatpush1.msra.mxu0 0.0
  %3147 = vmatprep.subr.mxu0 0.0
  %3148 = vmatpush1.msra.mxu0 0.0
  %3149 = vmatprep.subr.mxu0 0.0
  %3150 = vmatpush1.msra.mxu0 0.0
  %3151 = vmatprep.subr.mxu0 0.0
  %3152 = vmatpush1.msra.mxu0 0.0
  %3153 = vmatprep.subr.mxu0 0.0
  %3154 = vmatpush1.msra.mxu0 0.0
  %3155 = vmatprep.subr.mxu0 0.0
  %3156 = vmatpush1.msra.mxu0 0.0
  %3157 = vmatprep.subr.mxu0 0.0
  %3158 = vmatpush1.msra.mxu0 0.0
  %3159 = vmatprep.subr.mxu0 0.0
  %3160 = vmatpush1.msra.mxu0 0.0
  %3161 = vmatprep.subr.mxu0 0.0
  %3162 = vmatpush1.msra.mxu0 0.0
  %3163 = vmatprep.subr.mxu0 0.0
  %3164 = vmatpush1.msra.mxu0 0.0
  %3165 = vmatprep.subr.mxu0 0.0
  %3166 = vmatpush1.msra.mxu0 0.0
  %3167 = vmatprep.subr.mxu0 0.0
  %3168 = vmatpush1.msra.mxu0 %v2831
  %3169 = vmatprep.subr.mxu0 0.0
  %3170 = vmatpush1.msra.mxu0 %v2826
  %3171 = vmatprep.subr.mxu0 0.0
  %3172 = vmatpush2.msra.mxu0 0.0
  %3173 = vmatprep.subr.mxu0 0.0
  %3174 = vmatpush2.msra.mxu0 0.0
  %3175 = vmatprep.subr.mxu0 0.0
  %3176 = vmatpush2.msra.mxu0 0.0
  %3177 = vmatprep.subr.mxu0 0.0
  %3178 = vmatpush2.msra.mxu0 0.0
  %3179 = vmatprep.subr.mxu0 0.0
  %3180 = vmatpush2.msra.mxu0 0.0
  %3181 = vmatprep.subr.mxu0 0.0
  %3182 = vmatpush2.msra.mxu0 0.0
  %3183 = vmatprep.subr.mxu0 0.0
  %3184 = vmatpush2.msra.mxu0 0.0
  %3185 = vmatprep.subr.mxu0 0.0
  %3186 = vmatpush2.msra.mxu0 0.0
  %3187 = vmatprep.subr.mxu0 0.0
  %3188 = vmatpush2.msra.mxu0 0.0
  %3189 = vmatprep.subr.mxu0 0.0
  %3190 = vmatpush2.msra.mxu0 0.0
  %3191 = vmatprep.subr.mxu0 0.0
  %3192 = vmatpush2.msra.mxu0 0.0
  %3193 = vmatprep.subr.mxu0 0.0
  %3194 = vmatpush2.msra.mxu0 0.0
  %3195 = vmatprep.subr.mxu0 0.0
  %3196 = vmatpush2.msra.mxu0 0.0
  %3197 = vmatprep.subr.mxu0 0.0
  %3198 = vmatpush2.msra.mxu0 0.0
  %3199 = vmatprep.subr.mxu0 0.0
  %3200 = vmatpush2.msra.mxu0 0.0
  %3201 = vmatprep.subr.mxu0 0.0
  %3202 = vmatpush2.msra.mxu0 0.0
  %3203 = vmatprep.mubr.f32.mxu0 0.0
  %3204 = vmatmul.mubr.f32.gmra.mxu0 %v3134
  %v3205 = vpop.f32.mrf.mxu0
  %v3206 = vadd.f32 0.0, %v3205
  %v3207 = vpop.f32.mrf.mxu0
  %3208 = vmatprep.mubr.f32.mxu0 0.0
  %3209 = vmatmul.mubr.f32.gmra.mxu0 %v3137
  %v3210 = vpop.f32.mrf.mxu0
  %v3211 = vadd.f32 0.0, %v3210
  %v3212 = vpop.f32.mrf.mxu0
  %3213 = vdwg.mxu0
  %s3214 = scalar_lea.vmem %s4, 24
  %v3215 = vld [vmem:[%s3214] sm:$0xff]
  %v3217 = vsel %vm553, %v3016, 0
  %v3220 = vsel %vm553, %v3021, 0
  %v3223 = vsel %vm553, %v3206, 0
  %v3226 = vsel %vm553, %v3211, 0
  %3228 = vmatprep.subr.mxu0 0.0
  %3229 = vmatpush1.msra.mxu0 0.0
  %3230 = vmatprep.subr.mxu0 0.0
  %3231 = vmatpush1.msra.mxu0 0.0
  %3232 = vmatprep.subr.mxu0 0.0
  %3233 = vmatpush1.msra.mxu0 0.0
  %3234 = vmatprep.subr.mxu0 0.0
  %3235 = vmatpush1.msra.mxu0 0.0
  %3236 = vmatprep.subr.mxu0 0.0
  %3237 = vmatpush1.msra.mxu0 0.0
  %3238 = vmatprep.subr.mxu0 0.0
  %3239 = vmatpush1.msra.mxu0 0.0
  %3240 = vmatprep.subr.mxu0 0.0
  %3241 = vmatpush1.msra.mxu0 0.0
  %3242 = vmatprep.subr.mxu0 0.0
  %3243 = vmatpush1.msra.mxu0 0.0
  %3244 = vmatprep.subr.mxu0 0.0
  %3245 = vmatpush1.msra.mxu0 0.0
  %3246 = vmatprep.subr.mxu0 0.0
  %3247 = vmatpush1.msra.mxu0 0.0
  %3248 = vmatprep.subr.mxu0 0.0
  %3249 = vmatpush1.msra.mxu0 0.0
  %3250 = vmatprep.subr.mxu0 0.0
  %3251 = vmatpush1.msra.mxu0 0.0
  %3252 = vmatprep.subr.mxu0 0.0
  %3253 = vmatpush1.msra.mxu0 0.0
  %3254 = vmatprep.subr.mxu0 0.0
  %3255 = vmatpush1.msra.mxu0 0.0
  %3256 = vmatprep.subr.mxu0 0.0
  %3257 = vmatpush1.msra.mxu0 0.0
  %3258 = vmatprep.subr.mxu0 0.0
  %3259 = vmatpush1.msra.mxu0 %v3215
  %3260 = vmatprep.subr.mxu0 0.0
  %3261 = vmatpush2.msra.mxu0 0.0
  %3262 = vmatprep.subr.mxu0 0.0
  %3263 = vmatpush2.msra.mxu0 0.0
  %3264 = vmatprep.subr.mxu0 0.0
  %3265 = vmatpush2.msra.mxu0 0.0
  %3266 = vmatprep.subr.mxu0 0.0
  %3267 = vmatpush2.msra.mxu0 0.0
  %3268 = vmatprep.subr.mxu0 0.0
  %3269 = vmatpush2.msra.mxu0 0.0
  %3270 = vmatprep.subr.mxu0 0.0
  %3271 = vmatpush2.msra.mxu0 0.0
  %3272 = vmatprep.subr.mxu0 0.0
  %3273 = vmatpush2.msra.mxu0 0.0
  %3274 = vmatprep.subr.mxu0 0.0
  %3275 = vmatpush2.msra.mxu0 0.0
  %3276 = vmatprep.subr.mxu0 0.0
  %3277 = vmatpush2.msra.mxu0 0.0
  %3278 = vmatprep.subr.mxu0 0.0
  %3279 = vmatpush2.msra.mxu0 0.0
  %3280 = vmatprep.subr.mxu0 0.0
  %3281 = vmatpush2.msra.mxu0 0.0
  %3282 = vmatprep.subr.mxu0 0.0
  %3283 = vmatpush2.msra.mxu0 0.0
  %3284 = vmatprep.subr.mxu0 0.0
  %3285 = vmatpush2.msra.mxu0 0.0
  %3286 = vmatprep.subr.mxu0 0.0
  %3287 = vmatpush2.msra.mxu0 0.0
  %3288 = vmatprep.subr.mxu0 0.0
  %3289 = vmatpush2.msra.mxu0 0.0
  %3290 = vmatprep.subr.mxu0 0.0
  %3291 = vmatpush2.msra.mxu0 0.0
  %3292 = vmatprep.mubr.f32.mxu0 0.0
  %3293 = vmatmul.mubr.f32.gmra.mxu0 %v3217
  %v3294 = vpop.f32.mrf.mxu0
  %v3295 = vadd.f32 0.0, %v3294
  %v3296 = vpop.f32.mrf.mxu0
  %3297 = vmatprep.mubr.f32.mxu0 0.0
  %3298 = vmatmul.mubr.f32.gmra.mxu0 %v3220
  %v3299 = vpop.f32.mrf.mxu0
  %v3300 = vadd.f32 0.0, %v3299
  %v3301 = vpop.f32.mrf.mxu0
  %3302 = vmatprep.mubr.f32.mxu0 0.0
  %3303 = vmatmul.mubr.f32.gmra.mxu0 %v3223
  %v3304 = vpop.f32.mrf.mxu0
  %v3305 = vadd.f32 0.0, %v3304
  %v3306 = vpop.f32.mrf.mxu0
  %3307 = vmatprep.mubr.f32.mxu0 0.0
  %3308 = vmatmul.mubr.f32.gmra.mxu0 %v3226
  %v3309 = vpop.f32.mrf.mxu0
  %v3310 = vadd.f32 0.0, %v3309
  %v3311 = vpop.f32.mrf.mxu0
  %3312 = vdwg.mxu0
  %v3313 = vadd.f32 %v2551, %v3295
  %v3314 = vadd.f32 %v2552, %v3300
  %v3315 = vadd.f32 %v2553, %v3305
  %v3316 = vadd.f32 %v2554, %v3310
  %v3317 = vld [vmem:[%s9 + $0x5] sm:$0x1]
  %v3318 = vlaneseq
  %v3319 = vshrl.u32 %v3318, 7
  %v3320 = vsub.s32 0, %v3319
  %v3321 = vrot.slane %v3317, %v3320
  %v3322 = vadd.f32 %v3313, %v3321
  %v3323 = vadd.f32 %v3314, %v3321
  %v3324 = vadd.f32 %v3315, %v3321
  %v3325 = vadd.f32 %v3316, %v3321
  %v3326 = vld [vmem:[%s5] sm:$0xff]
  %v3327 = vld [vmem:[%s5 + $0x8] sm:$0xff]
  %v3328 = vld [vmem:[%s5 + $0x10] sm:$0xff]
  %v3329 = vld [vmem:[%s5 + $0x18] sm:$0xff]
  %v3330 = vld [vmem:[%s9 + $0x6] sm:$0x1]
  %v3331 = vlaneseq
  %v3332 = vshrl.u32 %v3331, 7
  %v3333 = vsub.s32 0, %v3332
  %v3334 = vrot.slane %v3330, %v3333
  %v3336 = vsel %vm265, %v3322, 0
  %v3339 = vsel %vm265, %v3323, 0
  %v3342 = vsel %vm265, %v3324, 0
  %v3345 = vsel %vm265, %v3325, 0
  %3347 = vmatprep.subr.mxu0 0.0
  %3348 = vmatpush1.msra.mxu0 0.0
  %3349 = vmatprep.subr.mxu0 0.0
  %3350 = vmatpush1.msra.mxu0 0.0
  %3351 = vmatprep.subr.mxu0 0.0
  %3352 = vmatpush1.msra.mxu0 0.0
  %3353 = vmatprep.subr.mxu0 0.0
  %3354 = vmatpush1.msra.mxu0 0.0
  %3355 = vmatprep.subr.mxu0 0.0
  %3356 = vmatpush1.msra.mxu0 0.0
  %3357 = vmatprep.subr.mxu0 0.0
  %3358 = vmatpush1.msra.mxu0 0.0
  %3359 = vmatprep.subr.mxu0 0.0
  %3360 = vmatpush1.msra.mxu0 0.0
  %3361 = vmatprep.subr.mxu0 0.0
  %3362 = vmatpush1.msra.mxu0 0.0
  %3363 = vmatprep.subr.mxu0 0.0
  %3364 = vmatpush1.msra.mxu0 0.0
  %3365 = vmatprep.subr.mxu0 0.0
  %3366 = vmatpush1.msra.mxu0 0.0
  %3367 = vmatprep.subr.mxu0 0.0
  %3368 = vmatpush1.msra.mxu0 0.0
  %3369 = vmatprep.subr.mxu0 0.0
  %3370 = vmatpush1.msra.mxu0 0.0
  %3371 = vmatprep.subr.mxu0 0.0
  %3372 = vmatpush1.msra.mxu0 %v3329
  %3373 = vmatprep.subr.mxu0 0.0
  %3374 = vmatpush1.msra.mxu0 %v3328
  %3375 = vmatprep.subr.mxu0 0.0
  %3376 = vmatpush1.msra.mxu0 %v3327
  %3377 = vmatprep.subr.mxu0 0.0
  %3378 = vmatpush1.msra.mxu0 %v3326
  %3379 = vmatprep.subr.mxu0 0.0
  %3380 = vmatpush2.msra.mxu0 0.0
  %3381 = vmatprep.subr.mxu0 0.0
  %3382 = vmatpush2.msra.mxu0 0.0
  %3383 = vmatprep.subr.mxu0 0.0
  %3384 = vmatpush2.msra.mxu0 0.0
  %3385 = vmatprep.subr.mxu0 0.0
  %3386 = vmatpush2.msra.mxu0 0.0
  %3387 = vmatprep.subr.mxu0 0.0
  %3388 = vmatpush2.msra.mxu0 0.0
  %3389 = vmatprep.subr.mxu0 0.0
  %3390 = vmatpush2.msra.mxu0 0.0
  %3391 = vmatprep.subr.mxu0 0.0
  %3392 = vmatpush2.msra.mxu0 0.0
  %3393 = vmatprep.subr.mxu0 0.0
  %3394 = vmatpush2.msra.mxu0 0.0
  %3395 = vmatprep.subr.mxu0 0.0
  %3396 = vmatpush2.msra.mxu0 0.0
  %3397 = vmatprep.subr.mxu0 0.0
  %3398 = vmatpush2.msra.mxu0 0.0
  %3399 = vmatprep.subr.mxu0 0.0
  %3400 = vmatpush2.msra.mxu0 0.0
  %3401 = vmatprep.subr.mxu0 0.0
  %3402 = vmatpush2.msra.mxu0 0.0
  %3403 = vmatprep.subr.mxu0 0.0
  %3404 = vmatpush2.msra.mxu0 0.0
  %3405 = vmatprep.subr.mxu0 0.0
  %3406 = vmatpush2.msra.mxu0 0.0
  %3407 = vmatprep.subr.mxu0 0.0
  %3408 = vmatpush2.msra.mxu0 0.0
  %3409 = vmatprep.subr.mxu0 0.0
  %3410 = vmatpush2.msra.mxu0 0.0
  %3411 = vmatprep.mubr.f32.mxu0 0.0
  %3412 = vmatmul.mubr.f32.gmra.mxu0 %v3336
  %v3413 = vpop.f32.mrf.mxu0
  %v3414 = vadd.f32 %v3334, %v3413
  %v3415 = vpop.f32.mrf.mxu0
  %3416 = vmatprep.mubr.f32.mxu0 0.0
  %3417 = vmatmul.mubr.f32.gmra.mxu0 %v3339
  %v3418 = vpop.f32.mrf.mxu0
  %v3419 = vadd.f32 %v3334, %v3418
  %v3420 = vpop.f32.mrf.mxu0
  %3421 = vmatprep.mubr.f32.mxu0 0.0
  %3422 = vmatmul.mubr.f32.gmra.mxu0 %v3342
  %v3423 = vpop.f32.mrf.mxu0
  %v3424 = vadd.f32 %v3334, %v3423
  %v3425 = vpop.f32.mrf.mxu0
  %3426 = vmatprep.mubr.f32.mxu0 0.0
  %3427 = vmatmul.mubr.f32.gmra.mxu0 %v3345
  %v3428 = vpop.f32.mrf.mxu0
  %v3429 = vadd.f32 %v3334, %v3428
  %v3430 = vpop.f32.mrf.mxu0
  %3431 = vdwg.mxu0
  %v3432 = vmax.f32 %v3414, 0.0
  %v3433 = vmax.f32 %v3419, 0.0
  %v3434 = vmax.f32 %v3424, 0.0
  %v3435 = vmax.f32 %v3429, 0.0
  %v3436 = vld [vmem:[%s6] sm:$0xff]
  %v3437 = vld [vmem:[%s6 + $0x8] sm:$0xff]
  %v3438 = vld [vmem:[%s6 + $0x10] sm:$0xff]
  %v3439 = vld [vmem:[%s6 + $0x18] sm:$0xff]
  %v3440 = vld [vmem:[%s6 + $0x20] sm:$0xff]
  %v3441 = vld [vmem:[%s6 + $0x28] sm:$0xff]
  %v3442 = vld [vmem:[%s6 + $0x30] sm:$0xff]
  %v3443 = vld [vmem:[%s6 + $0x38] sm:$0xff]
  %v3444 = vld [vmem:[%s9 + $0x7] sm:$0x1]
  %v3445 = vlaneseq
  %v3446 = vshrl.u32 %v3445, 7
  %v3447 = vsub.s32 0, %v3446
  %v3448 = vrot.slane %v3444, %v3447
  %vm3449 = vcmask 523264
  %v3451 = vsel %vm3449, %v3432, 0
  %v3454 = vsel %vm3449, %v3433, 0
  %v3457 = vsel %vm3449, %v3434, 0
  %v3460 = vsel %vm3449, %v3435, 0
  %3462 = vmatprep.subr.mxu0 0.0
  %3463 = vmatpush1.msra.mxu0 0.0
  %3464 = vmatprep.subr.mxu0 0.0
  %3465 = vmatpush1.msra.mxu0 0.0
  %3466 = vmatprep.subr.mxu0 0.0
  %3467 = vmatpush1.msra.mxu0 0.0
  %3468 = vmatprep.subr.mxu0 0.0
  %3469 = vmatpush1.msra.mxu0 0.0
  %3470 = vmatprep.subr.mxu0 0.0
  %3471 = vmatpush1.msra.mxu0 0.0
  %3472 = vmatprep.subr.mxu0 0.0
  %3473 = vmatpush1.msra.mxu0 0.0
  %3474 = vmatprep.subr.mxu0 0.0
  %3475 = vmatpush1.msra.mxu0 0.0
  %3476 = vmatprep.subr.mxu0 0.0
  %3477 = vmatpush1.msra.mxu0 0.0
  %3478 = vmatprep.subr.mxu0 0.0
  %3479 = vmatpush1.msra.mxu0 %v3443
  %3480 = vmatprep.subr.mxu0 0.0
  %3481 = vmatpush1.msra.mxu0 %v3442
  %3482 = vmatprep.subr.mxu0 0.0
  %3483 = vmatpush1.msra.mxu0 %v3441
  %3484 = vmatprep.subr.mxu0 0.0
  %3485 = vmatpush1.msra.mxu0 %v3440
  %3486 = vmatprep.subr.mxu0 0.0
  %3487 = vmatpush1.msra.mxu0 %v3439
  %3488 = vmatprep.subr.mxu0 0.0
  %3489 = vmatpush1.msra.mxu0 %v3438
  %3490 = vmatprep.subr.mxu0 0.0
  %3491 = vmatpush1.msra.mxu0 %v3437
  %3492 = vmatprep.subr.mxu0 0.0
  %3493 = vmatpush1.msra.mxu0 %v3436
  %3494 = vmatprep.subr.mxu0 0.0
  %3495 = vmatpush2.msra.mxu0 0.0
  %3496 = vmatprep.subr.mxu0 0.0
  %3497 = vmatpush2.msra.mxu0 0.0
  %3498 = vmatprep.subr.mxu0 0.0
  %3499 = vmatpush2.msra.mxu0 0.0
  %3500 = vmatprep.subr.mxu0 0.0
  %3501 = vmatpush2.msra.mxu0 0.0
  %3502 = vmatprep.subr.mxu0 0.0
  %3503 = vmatpush2.msra.mxu0 0.0
  %3504 = vmatprep.subr.mxu0 0.0
  %3505 = vmatpush2.msra.mxu0 0.0
  %3506 = vmatprep.subr.mxu0 0.0
  %3507 = vmatpush2.msra.mxu0 0.0
  %3508 = vmatprep.subr.mxu0 0.0
  %3509 = vmatpush2.msra.mxu0 0.0
  %3510 = vmatprep.subr.mxu0 0.0
  %3511 = vmatpush2.msra.mxu0 0.0
  %3512 = vmatprep.subr.mxu0 0.0
  %3513 = vmatpush2.msra.mxu0 0.0
  %3514 = vmatprep.subr.mxu0 0.0
  %3515 = vmatpush2.msra.mxu0 0.0
  %3516 = vmatprep.subr.mxu0 0.0
  %3517 = vmatpush2.msra.mxu0 0.0
  %3518 = vmatprep.subr.mxu0 0.0
  %3519 = vmatpush2.msra.mxu0 0.0
  %3520 = vmatprep.subr.mxu0 0.0
  %3521 = vmatpush2.msra.mxu0 0.0
  %3522 = vmatprep.subr.mxu0 0.0
  %3523 = vmatpush2.msra.mxu0 0.0
  %3524 = vmatprep.subr.mxu0 0.0
  %3525 = vmatpush2.msra.mxu0 0.0
  %3526 = vmatprep.mubr.f32.mxu0 0.0
  %3527 = vmatmul.mubr.f32.gmra.mxu0 %v3451
  %v3528 = vpop.f32.mrf.mxu0
  %v3529 = vadd.f32 %v3448, %v3528
  %v3530 = vpop.f32.mrf.mxu0
  %3531 = vmatprep.mubr.f32.mxu0 0.0
  %3532 = vmatmul.mubr.f32.gmra.mxu0 %v3454
  %v3533 = vpop.f32.mrf.mxu0
  %v3534 = vadd.f32 %v3448, %v3533
  %v3535 = vpop.f32.mrf.mxu0
  %3536 = vmatprep.mubr.f32.mxu0 0.0
  %3537 = vmatmul.mubr.f32.gmra.mxu0 %v3457
  %v3538 = vpop.f32.mrf.mxu0
  %v3539 = vadd.f32 %v3448, %v3538
  %v3540 = vpop.f32.mrf.mxu0
  %3541 = vmatprep.mubr.f32.mxu0 0.0
  %3542 = vmatmul.mubr.f32.gmra.mxu0 %v3460
  %v3543 = vpop.f32.mrf.mxu0
  %v3544 = vadd.f32 %v3448, %v3543
  %v3545 = vpop.f32.mrf.mxu0
  %3546 = vdwg.mxu0
  %v3547 = vadd.f32 %v3529, %v3322
  %v3548 = vadd.f32 %v3534, %v3323
  %v3549 = vadd.f32 %v3539, %v3324
  %v3550 = vadd.f32 %v3544, %v3325
  %s3551 = scalar_lea.vmem %s3, 384
  %v3552 = vld [vmem:[%s3551] sm:$0xff]
  %v3553 = vld [vmem:[%s3551 + $0x8] sm:$0xff]
  %v3554 = vld [vmem:[%s3551 + $0x10] sm:$0xff]
  %v3555 = vld [vmem:[%s3551 + $0x18] sm:$0xff]
  %v3556 = vld [vmem:[%s9 + $0x8] sm:$0x1]
  %v3557 = vlaneseq
  %v3558 = vshrl.u32 %v3557, 7
  %v3559 = vsub.s32 0, %v3558
  %v3560 = vrot.slane %v3556, %v3559
  %v3562 = vsel %vm265, %v3547, 0
  %v3565 = vsel %vm265, %v3548, 0
  %v3568 = vsel %vm265, %v3549, 0
  %v3571 = vsel %vm265, %v3550, 0
  %3573 = vmatprep.subr.mxu0 0.0
  %3574 = vmatpush1.msra.mxu0 0.0
  %3575 = vmatprep.subr.mxu0 0.0
  %3576 = vmatpush1.msra.mxu0 0.0
  %3577 = vmatprep.subr.mxu0 0.0
  %3578 = vmatpush1.msra.mxu0 0.0
  %3579 = vmatprep.subr.mxu0 0.0
  %3580 = vmatpush1.msra.mxu0 0.0
  %3581 = vmatprep.subr.mxu0 0.0
  %3582 = vmatpush1.msra.mxu0 0.0
  %3583 = vmatprep.subr.mxu0 0.0
  %3584 = vmatpush1.msra.mxu0 0.0
  %3585 = vmatprep.subr.mxu0 0.0
  %3586 = vmatpush1.msra.mxu0 0.0
  %3587 = vmatprep.subr.mxu0 0.0
  %3588 = vmatpush1.msra.mxu0 0.0
  %3589 = vmatprep.subr.mxu0 0.0
  %3590 = vmatpush1.msra.mxu0 0.0
  %3591 = vmatprep.subr.mxu0 0.0
  %3592 = vmatpush1.msra.mxu0 0.0
  %3593 = vmatprep.subr.mxu0 0.0
  %3594 = vmatpush1.msra.mxu0 0.0
  %3595 = vmatprep.subr.mxu0 0.0
  %3596 = vmatpush1.msra.mxu0 0.0
  %3597 = vmatprep.subr.mxu0 0.0
  %3598 = vmatpush1.msra.mxu0 %v3555
  %3599 = vmatprep.subr.mxu0 0.0
  %3600 = vmatpush1.msra.mxu0 %v3554
  %3601 = vmatprep.subr.mxu0 0.0
  %3602 = vmatpush1.msra.mxu0 %v3553
  %3603 = vmatprep.subr.mxu0 0.0
  %3604 = vmatpush1.msra.mxu0 %v3552
  %3605 = vmatprep.subr.mxu0 0.0
  %3606 = vmatpush2.msra.mxu0 0.0
  %3607 = vmatprep.subr.mxu0 0.0
  %3608 = vmatpush2.msra.mxu0 0.0
  %3609 = vmatprep.subr.mxu0 0.0
  %3610 = vmatpush2.msra.mxu0 0.0
  %3611 = vmatprep.subr.mxu0 0.0
  %3612 = vmatpush2.msra.mxu0 0.0
  %3613 = vmatprep.subr.mxu0 0.0
  %3614 = vmatpush2.msra.mxu0 0.0
  %3615 = vmatprep.subr.mxu0 0.0
  %3616 = vmatpush2.msra.mxu0 0.0
  %3617 = vmatprep.subr.mxu0 0.0
  %3618 = vmatpush2.msra.mxu0 0.0
  %3619 = vmatprep.subr.mxu0 0.0
  %3620 = vmatpush2.msra.mxu0 0.0
  %3621 = vmatprep.subr.mxu0 0.0
  %3622 = vmatpush2.msra.mxu0 0.0
  %3623 = vmatprep.subr.mxu0 0.0
  %3624 = vmatpush2.msra.mxu0 0.0
  %3625 = vmatprep.subr.mxu0 0.0
  %3626 = vmatpush2.msra.mxu0 0.0
  %3627 = vmatprep.subr.mxu0 0.0
  %3628 = vmatpush2.msra.mxu0 0.0
  %3629 = vmatprep.subr.mxu0 0.0
  %3630 = vmatpush2.msra.mxu0 0.0
  %3631 = vmatprep.subr.mxu0 0.0
  %3632 = vmatpush2.msra.mxu0 0.0
  %3633 = vmatprep.subr.mxu0 0.0
  %3634 = vmatpush2.msra.mxu0 0.0
  %3635 = vmatprep.subr.mxu0 0.0
  %3636 = vmatpush2.msra.mxu0 0.0
  %3637 = vmatprep.mubr.f32.mxu0 0.0
  %3638 = vmatmul.mubr.f32.gmra.mxu0 %v3562
  %v3639 = vpop.f32.mrf.mxu0
  %v3640 = vadd.f32 %v3560, %v3639
  %v3641 = vpop.f32.mrf.mxu0
  %3642 = vmatprep.mubr.f32.mxu0 0.0
  %3643 = vmatmul.mubr.f32.gmra.mxu0 %v3565
  %v3644 = vpop.f32.mrf.mxu0
  %v3645 = vadd.f32 %v3560, %v3644
  %v3646 = vpop.f32.mrf.mxu0
  %3647 = vmatprep.mubr.f32.mxu0 0.0
  %3648 = vmatmul.mubr.f32.gmra.mxu0 %v3568
  %v3649 = vpop.f32.mrf.mxu0
  %v3650 = vadd.f32 %v3560, %v3649
  %v3651 = vpop.f32.mrf.mxu0
  %3652 = vmatprep.mubr.f32.mxu0 0.0
  %3653 = vmatmul.mubr.f32.gmra.mxu0 %v3571
  %v3654 = vpop.f32.mrf.mxu0
  %v3655 = vadd.f32 %v3560, %v3654
  %v3656 = vpop.f32.mrf.mxu0
  %3657 = vdwg.mxu0
  %s3658 = scalar_lea.vmem %s3, 512
  %v3659 = vld [vmem:[%s3658] sm:$0xff]
  %v3660 = vld [vmem:[%s3658 + $0x8] sm:$0xff]
  %v3661 = vld [vmem:[%s3658 + $0x10] sm:$0xff]
  %v3662 = vld [vmem:[%s3658 + $0x18] sm:$0xff]
  %v3663 = vld [vmem:[%s9 + $0x9] sm:$0x1]
  %v3664 = vlaneseq
  %v3665 = vshrl.u32 %v3664, 7
  %v3666 = vsub.s32 0, %v3665
  %v3667 = vrot.slane %v3663, %v3666
  %3668 = vmatprep.subr.mxu0 0.0
  %3669 = vmatpush1.msra.mxu0 0.0
  %3670 = vmatprep.subr.mxu0 0.0
  %3671 = vmatpush1.msra.mxu0 0.0
  %3672 = vmatprep.subr.mxu0 0.0
  %3673 = vmatpush1.msra.mxu0 0.0
  %3674 = vmatprep.subr.mxu0 0.0
  %3675 = vmatpush1.msra.mxu0 0.0
  %3676 = vmatprep.subr.mxu0 0.0
  %3677 = vmatpush1.msra.mxu0 0.0
  %3678 = vmatprep.subr.mxu0 0.0
  %3679 = vmatpush1.msra.mxu0 0.0
  %3680 = vmatprep.subr.mxu0 0.0
  %3681 = vmatpush1.msra.mxu0 0.0
  %3682 = vmatprep.subr.mxu0 0.0
  %3683 = vmatpush1.msra.mxu0 0.0
  %3684 = vmatprep.subr.mxu0 0.0
  %3685 = vmatpush1.msra.mxu0 0.0
  %3686 = vmatprep.subr.mxu0 0.0
  %3687 = vmatpush1.msra.mxu0 0.0
  %3688 = vmatprep.subr.mxu0 0.0
  %3689 = vmatpush1.msra.mxu0 0.0
  %3690 = vmatprep.subr.mxu0 0.0
  %3691 = vmatpush1.msra.mxu0 0.0
  %3692 = vmatprep.subr.mxu0 0.0
  %3693 = vmatpush1.msra.mxu0 %v3662
  %3694 = vmatprep.subr.mxu0 0.0
  %3695 = vmatpush1.msra.mxu0 %v3661
  %3696 = vmatprep.subr.mxu0 0.0
  %3697 = vmatpush1.msra.mxu0 %v3660
  %3698 = vmatprep.subr.mxu0 0.0
  %3699 = vmatpush1.msra.mxu0 %v3659
  %3700 = vmatprep.subr.mxu0 0.0
  %3701 = vmatpush2.msra.mxu0 0.0
  %3702 = vmatprep.subr.mxu0 0.0
  %3703 = vmatpush2.msra.mxu0 0.0
  %3704 = vmatprep.subr.mxu0 0.0
  %3705 = vmatpush2.msra.mxu0 0.0
  %3706 = vmatprep.subr.mxu0 0.0
  %3707 = vmatpush2.msra.mxu0 0.0
  %3708 = vmatprep.subr.mxu0 0.0
  %3709 = vmatpush2.msra.mxu0 0.0
  %3710 = vmatprep.subr.mxu0 0.0
  %3711 = vmatpush2.msra.mxu0 0.0
  %3712 = vmatprep.subr.mxu0 0.0
  %3713 = vmatpush2.msra.mxu0 0.0
  %3714 = vmatprep.subr.mxu0 0.0
  %3715 = vmatpush2.msra.mxu0 0.0
  %3716 = vmatprep.subr.mxu0 0.0
  %3717 = vmatpush2.msra.mxu0 0.0
  %3718 = vmatprep.subr.mxu0 0.0
  %3719 = vmatpush2.msra.mxu0 0.0
  %3720 = vmatprep.subr.mxu0 0.0
  %3721 = vmatpush2.msra.mxu0 0.0
  %3722 = vmatprep.subr.mxu0 0.0
  %3723 = vmatpush2.msra.mxu0 0.0
  %3724 = vmatprep.subr.mxu0 0.0
  %3725 = vmatpush2.msra.mxu0 0.0
  %3726 = vmatprep.subr.mxu0 0.0
  %3727 = vmatpush2.msra.mxu0 0.0
  %3728 = vmatprep.subr.mxu0 0.0
  %3729 = vmatpush2.msra.mxu0 0.0
  %3730 = vmatprep.subr.mxu0 0.0
  %3731 = vmatpush2.msra.mxu0 0.0
  %3732 = vmatprep.mubr.f32.mxu0 0.0
  %3733 = vmatmul.mubr.f32.gmra.mxu0 %v3562
  %v3734 = vpop.f32.mrf.mxu0
  %v3735 = vadd.f32 %v3667, %v3734
  %v3736 = vpop.f32.mrf.mxu0
  %3737 = vmatprep.mubr.f32.mxu0 0.0
  %3738 = vmatmul.mubr.f32.gmra.mxu0 %v3565
  %v3739 = vpop.f32.mrf.mxu0
  %v3740 = vadd.f32 %v3667, %v3739
  %v3741 = vpop.f32.mrf.mxu0
  %3742 = vmatprep.mubr.f32.mxu0 0.0
  %3743 = vmatmul.mubr.f32.gmra.mxu0 %v3568
  %v3744 = vpop.f32.mrf.mxu0
  %v3745 = vadd.f32 %v3667, %v3744
  %v3746 = vpop.f32.mrf.mxu0
  %3747 = vmatprep.mubr.f32.mxu0 0.0
  %3748 = vmatmul.mubr.f32.gmra.mxu0 %v3571
  %v3749 = vpop.f32.mrf.mxu0
  %v3750 = vadd.f32 %v3667, %v3749
  %v3751 = vpop.f32.mrf.mxu0
  %3752 = vdwg.mxu0
  %s3753 = scalar_lea.vmem %s3, 640
  %v3754 = vld [vmem:[%s3753] sm:$0xff]
  %v3755 = vld [vmem:[%s3753 + $0x8] sm:$0xff]
  %v3756 = vld [vmem:[%s3753 + $0x10] sm:$0xff]
  %v3757 = vld [vmem:[%s3753 + $0x18] sm:$0xff]
  %v3758 = vld [vmem:[%s9 + $0xa] sm:$0x1]
  %v3759 = vlaneseq
  %v3760 = vshrl.u32 %v3759, 7
  %v3761 = vsub.s32 0, %v3760
  %v3762 = vrot.slane %v3758, %v3761
  %3763 = vmatprep.subr.mxu0 0.0
  %3764 = vmatpush1.msra.mxu0 0.0
  %3765 = vmatprep.subr.mxu0 0.0
  %3766 = vmatpush1.msra.mxu0 0.0
  %3767 = vmatprep.subr.mxu0 0.0
  %3768 = vmatpush1.msra.mxu0 0.0
  %3769 = vmatprep.subr.mxu0 0.0
  %3770 = vmatpush1.msra.mxu0 0.0
  %3771 = vmatprep.subr.mxu0 0.0
  %3772 = vmatpush1.msra.mxu0 0.0
  %3773 = vmatprep.subr.mxu0 0.0
  %3774 = vmatpush1.msra.mxu0 0.0
  %3775 = vmatprep.subr.mxu0 0.0
  %3776 = vmatpush1.msra.mxu0 0.0
  %3777 = vmatprep.subr.mxu0 0.0
  %3778 = vmatpush1.msra.mxu0 0.0
  %3779 = vmatprep.subr.mxu0 0.0
  %3780 = vmatpush1.msra.mxu0 0.0
  %3781 = vmatprep.subr.mxu0 0.0
  %3782 = vmatpush1.msra.mxu0 0.0
  %3783 = vmatprep.subr.mxu0 0.0
  %3784 = vmatpush1.msra.mxu0 0.0
  %3785 = vmatprep.subr.mxu0 0.0
  %3786 = vmatpush1.msra.mxu0 0.0
  %3787 = vmatprep.subr.mxu0 0.0
  %3788 = vmatpush1.msra.mxu0 %v3757
  %3789 = vmatprep.subr.mxu0 0.0
  %3790 = vmatpush1.msra.mxu0 %v3756
  %3791 = vmatprep.subr.mxu0 0.0
  %3792 = vmatpush1.msra.mxu0 %v3755
  %3793 = vmatprep.subr.mxu0 0.0
  %3794 = vmatpush1.msra.mxu0 %v3754
  %3795 = vmatprep.subr.mxu0 0.0
  %3796 = vmatpush2.msra.mxu0 0.0
  %3797 = vmatprep.subr.mxu0 0.0
  %3798 = vmatpush2.msra.mxu0 0.0
  %3799 = vmatprep.subr.mxu0 0.0
  %3800 = vmatpush2.msra.mxu0 0.0
  %3801 = vmatprep.subr.mxu0 0.0
  %3802 = vmatpush2.msra.mxu0 0.0
  %3803 = vmatprep.subr.mxu0 0.0
  %3804 = vmatpush2.msra.mxu0 0.0
  %3805 = vmatprep.subr.mxu0 0.0
  %3806 = vmatpush2.msra.mxu0 0.0
  %3807 = vmatprep.subr.mxu0 0.0
  %3808 = vmatpush2.msra.mxu0 0.0
  %3809 = vmatprep.subr.mxu0 0.0
  %3810 = vmatpush2.msra.mxu0 0.0
  %3811 = vmatprep.subr.mxu0 0.0
  %3812 = vmatpush2.msra.mxu0 0.0
  %3813 = vmatprep.subr.mxu0 0.0
  %3814 = vmatpush2.msra.mxu0 0.0
  %3815 = vmatprep.subr.mxu0 0.0
  %3816 = vmatpush2.msra.mxu0 0.0
  %3817 = vmatprep.subr.mxu0 0.0
  %3818 = vmatpush2.msra.mxu0 0.0
  %3819 = vmatprep.subr.mxu0 0.0
  %3820 = vmatpush2.msra.mxu0 0.0
  %3821 = vmatprep.subr.mxu0 0.0
  %3822 = vmatpush2.msra.mxu0 0.0
  %3823 = vmatprep.subr.mxu0 0.0
  %3824 = vmatpush2.msra.mxu0 0.0
  %3825 = vmatprep.subr.mxu0 0.0
  %3826 = vmatpush2.msra.mxu0 0.0
  %3827 = vmatprep.mubr.f32.mxu0 0.0
  %3828 = vmatmul.mubr.f32.gmra.mxu0 %v3562
  %v3829 = vpop.f32.mrf.mxu0
  %v3830 = vadd.f32 %v3762, %v3829
  %v3831 = vpop.f32.mrf.mxu0
  %3832 = vmatprep.mubr.f32.mxu0 0.0
  %3833 = vmatmul.mubr.f32.gmra.mxu0 %v3565
  %v3834 = vpop.f32.mrf.mxu0
  %v3835 = vadd.f32 %v3762, %v3834
  %v3836 = vpop.f32.mrf.mxu0
  %3837 = vmatprep.mubr.f32.mxu0 0.0
  %3838 = vmatmul.mubr.f32.gmra.mxu0 %v3568
  %v3839 = vpop.f32.mrf.mxu0
  %v3840 = vadd.f32 %v3762, %v3839
  %v3841 = vpop.f32.mrf.mxu0
  %3842 = vmatprep.mubr.f32.mxu0 0.0
  %3843 = vmatmul.mubr.f32.gmra.mxu0 %v3571
  %v3844 = vpop.f32.mrf.mxu0
  %v3845 = vadd.f32 %v3762, %v3844
  %v3846 = vpop.f32.mrf.mxu0
  %3847 = vdwg.mxu0
  %v3849 = vsel %vm553, %v3640, 0
  %v3852 = vsel %vm553, %v3645, 0
  %v3855 = vsel %vm553, %v3735, 0
  %v3858 = vsel %vm553, %v3740, 0
  %3860 = vmatprep.subr.mxu0 0.0
  %3861 = vmatpush1.xpose.msra.mxu0 0.0
  %3862 = vmatprep.subr.mxu0 0.0
  %3863 = vmatpush1.xpose.msra.mxu0 0.0
  %3864 = vmatprep.subr.mxu0 0.0
  %3865 = vmatpush1.xpose.msra.mxu0 0.0
  %3866 = vmatprep.subr.mxu0 0.0
  %3867 = vmatpush1.xpose.msra.mxu0 0.0
  %3868 = vmatprep.subr.mxu0 0.0
  %3869 = vmatpush1.xpose.msra.mxu0 0.0
  %3870 = vmatprep.subr.mxu0 0.0
  %3871 = vmatpush1.xpose.msra.mxu0 0.0
  %3872 = vmatprep.subr.mxu0 0.0
  %3873 = vmatpush1.xpose.msra.mxu0 0.0
  %3874 = vmatprep.subr.mxu0 0.0
  %3875 = vmatpush1.xpose.msra.mxu0 0.0
  %3876 = vmatprep.subr.mxu0 0.0
  %3877 = vmatpush1.xpose.msra.mxu0 0.0
  %3878 = vmatprep.subr.mxu0 0.0
  %3879 = vmatpush1.xpose.msra.mxu0 0.0
  %3880 = vmatprep.subr.mxu0 0.0
  %3881 = vmatpush1.xpose.msra.mxu0 0.0
  %3882 = vmatprep.subr.mxu0 0.0
  %3883 = vmatpush1.xpose.msra.mxu0 0.0
  %3884 = vmatprep.subr.mxu0 0.0
  %3885 = vmatpush1.xpose.msra.mxu0 0.0
  %3886 = vmatprep.subr.mxu0 0.0
  %3887 = vmatpush1.xpose.msra.mxu0 0.0
  %3888 = vmatprep.subr.mxu0 0.0
  %3889 = vmatpush1.xpose.msra.mxu0 %v3858
  %3890 = vmatprep.subr.mxu0 0.0
  %3891 = vmatpush1.xpose.msra.mxu0 %v3855
  %3892 = vmatprep.subr.mxu0 0.0
  %3893 = vmatpush2.xpose.msra.mxu0 0.0
  %3894 = vmatprep.subr.mxu0 0.0
  %3895 = vmatpush2.xpose.msra.mxu0 0.0
  %3896 = vmatprep.subr.mxu0 0.0
  %3897 = vmatpush2.xpose.msra.mxu0 0.0
  %3898 = vmatprep.subr.mxu0 0.0
  %3899 = vmatpush2.xpose.msra.mxu0 0.0
  %3900 = vmatprep.subr.mxu0 0.0
  %3901 = vmatpush2.xpose.msra.mxu0 0.0
  %3902 = vmatprep.subr.mxu0 0.0
  %3903 = vmatpush2.xpose.msra.mxu0 0.0
  %3904 = vmatprep.subr.mxu0 0.0
  %3905 = vmatpush2.xpose.msra.mxu0 0.0
  %3906 = vmatprep.subr.mxu0 0.0
  %3907 = vmatpush2.xpose.msra.mxu0 0.0
  %3908 = vmatprep.subr.mxu0 0.0
  %3909 = vmatpush2.xpose.msra.mxu0 0.0
  %3910 = vmatprep.subr.mxu0 0.0
  %3911 = vmatpush2.xpose.msra.mxu0 0.0
  %3912 = vmatprep.subr.mxu0 0.0
  %3913 = vmatpush2.xpose.msra.mxu0 0.0
  %3914 = vmatprep.subr.mxu0 0.0
  %3915 = vmatpush2.xpose.msra.mxu0 0.0
  %3916 = vmatprep.subr.mxu0 0.0
  %3917 = vmatpush2.xpose.msra.mxu0 0.0
  %3918 = vmatprep.subr.mxu0 0.0
  %3919 = vmatpush2.xpose.msra.mxu0 0.0
  %3920 = vmatprep.subr.mxu0 0.0
  %3921 = vmatpush2.xpose.msra.mxu0 0.0
  %3922 = vmatprep.subr.mxu0 0.0
  %3923 = vmatpush2.xpose.msra.mxu0 0.0
  %3924 = vmatprep.mubr.f32.mxu0 0.0
  %3925 = vmatmul.mubr.f32.gmra.mxu0 %v3849
  %v3926 = vpop.f32.mrf.mxu0
  %v3927 = vadd.f32 0.0, %v3926
  %v3928 = vpop.f32.mrf.mxu0
  %3929 = vmatprep.mubr.f32.mxu0 0.0
  %3930 = vmatmul.mubr.f32.gmra.mxu0 %v3852
  %v3931 = vpop.f32.mrf.mxu0
  %v3932 = vadd.f32 0.0, %v3931
  %v3933 = vpop.f32.mrf.mxu0
  %3934 = vdwg.mxu0
  %v3935 = vsel %vm158, %v3927, -inf
  %3936 = vmax.xlane.f32.xlu0 %v3935
  %v3937 = vpop.xlane.xlu0 %3936
  %v3938 = vsel %vm158, %v3932, -inf
  %3939 = vmax.xlane.f32.xlu0 %v3938
  %v3940 = vpop.xlane.xlu0 %3939
  %v3941 = vsub.f32 %v3927, %v3937
  %v3942 = vsub.f32 %v3932, %v3940
  %v3943 = vmul.f32 %v3941, 1.442695
  %v3944 = vpow.pop %v3943
  %v3945 = vmul.f32 %v3942, 1.442695
  %v3946 = vpow.pop %v3945
  %v3947 = vsel %vm158, %v3944, 0.0
  %3948 = vadd.xlane.f32.xlu0 %v3947
  %v3949 = vpop.xlane.xlu0 %3948
  %v3950 = vsel %vm158, %v3946, 0.0
  %3951 = vadd.xlane.f32.xlu0 %v3950
  %v3952 = vpop.xlane.xlu0 %3951
  %v3953 = vrcp.pop %v3949
  %v3954 = vrcp.pop %v3952
  %v3955 = vmul.f32 %v3944, %v3953
  %v3956 = vmul.f32 %v3946, %v3954
  %v3958 = vsel %vm158, %v3955, 0
  %v3961 = vsel %vm158, %v3956, 0
  %3963 = vmatprep.subr.mxu0 0.0
  %3964 = vmatpush1.msra.mxu0 0.0
  %3965 = vmatprep.subr.mxu0 0.0
  %3966 = vmatpush1.msra.mxu0 0.0
  %3967 = vmatprep.subr.mxu0 0.0
  %3968 = vmatpush1.msra.mxu0 0.0
  %3969 = vmatprep.subr.mxu0 0.0
  %3970 = vmatpush1.msra.mxu0 0.0
  %3971 = vmatprep.subr.mxu0 0.0
  %3972 = vmatpush1.msra.mxu0 0.0
  %3973 = vmatprep.subr.mxu0 0.0
  %3974 = vmatpush1.msra.mxu0 0.0
  %3975 = vmatprep.subr.mxu0 0.0
  %3976 = vmatpush1.msra.mxu0 0.0
  %3977 = vmatprep.subr.mxu0 0.0
  %3978 = vmatpush1.msra.mxu0 0.0
  %3979 = vmatprep.subr.mxu0 0.0
  %3980 = vmatpush1.msra.mxu0 0.0
  %3981 = vmatprep.subr.mxu0 0.0
  %3982 = vmatpush1.msra.mxu0 0.0
  %3983 = vmatprep.subr.mxu0 0.0
  %3984 = vmatpush1.msra.mxu0 0.0
  %3985 = vmatprep.subr.mxu0 0.0
  %3986 = vmatpush1.msra.mxu0 0.0
  %3987 = vmatprep.subr.mxu0 0.0
  %3988 = vmatpush1.msra.mxu0 0.0
  %3989 = vmatprep.subr.mxu0 0.0
  %3990 = vmatpush1.msra.mxu0 0.0
  %3991 = vmatprep.subr.mxu0 0.0
  %3992 = vmatpush1.msra.mxu0 %v3835
  %3993 = vmatprep.subr.mxu0 0.0
  %3994 = vmatpush1.msra.mxu0 %v3830
  %3995 = vmatprep.subr.mxu0 0.0
  %3996 = vmatpush2.msra.mxu0 0.0
  %3997 = vmatprep.subr.mxu0 0.0
  %3998 = vmatpush2.msra.mxu0 0.0
  %3999 = vmatprep.subr.mxu0 0.0
  %4000 = vmatpush2.msra.mxu0 0.0
  %4001 = vmatprep.subr.mxu0 0.0
  %4002 = vmatpush2.msra.mxu0 0.0
  %4003 = vmatprep.subr.mxu0 0.0
  %4004 = vmatpush2.msra.mxu0 0.0
  %4005 = vmatprep.subr.mxu0 0.0
  %4006 = vmatpush2.msra.mxu0 0.0
  %4007 = vmatprep.subr.mxu0 0.0
  %4008 = vmatpush2.msra.mxu0 0.0
  %4009 = vmatprep.subr.mxu0 0.0
  %4010 = vmatpush2.msra.mxu0 0.0
  %4011 = vmatprep.subr.mxu0 0.0
  %4012 = vmatpush2.msra.mxu0 0.0
  %4013 = vmatprep.subr.mxu0 0.0
  %4014 = vmatpush2.msra.mxu0 0.0
  %4015 = vmatprep.subr.mxu0 0.0
  %4016 = vmatpush2.msra.mxu0 0.0
  %4017 = vmatprep.subr.mxu0 0.0
  %4018 = vmatpush2.msra.mxu0 0.0
  %4019 = vmatprep.subr.mxu0 0.0
  %4020 = vmatpush2.msra.mxu0 0.0
  %4021 = vmatprep.subr.mxu0 0.0
  %4022 = vmatpush2.msra.mxu0 0.0
  %4023 = vmatprep.subr.mxu0 0.0
  %4024 = vmatpush2.msra.mxu0 0.0
  %4025 = vmatprep.subr.mxu0 0.0
  %4026 = vmatpush2.msra.mxu0 0.0
  %4027 = vmatprep.mubr.f32.mxu0 0.0
  %4028 = vmatmul.mubr.f32.gmra.mxu0 %v3958
  %v4029 = vpop.f32.mrf.mxu0
  %v4030 = vadd.f32 0.0, %v4029
  %v4031 = vpop.f32.mrf.mxu0
  %4032 = vmatprep.mubr.f32.mxu0 0.0
  %4033 = vmatmul.mubr.f32.gmra.mxu0 %v3961
  %v4034 = vpop.f32.mrf.mxu0
  %v4035 = vadd.f32 0.0, %v4034
  %v4036 = vpop.f32.mrf.mxu0
  %4037 = vdwg.mxu0
  %v4039 = vsel %vm553, %v3650, 0
  %v4042 = vsel %vm553, %v3655, 0
  %v4045 = vsel %vm553, %v3745, 0
  %v4048 = vsel %vm553, %v3750, 0
  %4050 = vmatprep.subr.mxu0 0.0
  %4051 = vmatpush1.xpose.msra.mxu0 0.0
  %4052 = vmatprep.subr.mxu0 0.0
  %4053 = vmatpush1.xpose.msra.mxu0 0.0
  %4054 = vmatprep.subr.mxu0 0.0
  %4055 = vmatpush1.xpose.msra.mxu0 0.0
  %4056 = vmatprep.subr.mxu0 0.0
  %4057 = vmatpush1.xpose.msra.mxu0 0.0
  %4058 = vmatprep.subr.mxu0 0.0
  %4059 = vmatpush1.xpose.msra.mxu0 0.0
  %4060 = vmatprep.subr.mxu0 0.0
  %4061 = vmatpush1.xpose.msra.mxu0 0.0
  %4062 = vmatprep.subr.mxu0 0.0
  %4063 = vmatpush1.xpose.msra.mxu0 0.0
  %4064 = vmatprep.subr.mxu0 0.0
  %4065 = vmatpush1.xpose.msra.mxu0 0.0
  %4066 = vmatprep.subr.mxu0 0.0
  %4067 = vmatpush1.xpose.msra.mxu0 0.0
  %4068 = vmatprep.subr.mxu0 0.0
  %4069 = vmatpush1.xpose.msra.mxu0 0.0
  %4070 = vmatprep.subr.mxu0 0.0
  %4071 = vmatpush1.xpose.msra.mxu0 0.0
  %4072 = vmatprep.subr.mxu0 0.0
  %4073 = vmatpush1.xpose.msra.mxu0 0.0
  %4074 = vmatprep.subr.mxu0 0.0
  %4075 = vmatpush1.xpose.msra.mxu0 0.0
  %4076 = vmatprep.subr.mxu0 0.0
  %4077 = vmatpush1.xpose.msra.mxu0 0.0
  %4078 = vmatprep.subr.mxu0 0.0
  %4079 = vmatpush1.xpose.msra.mxu0 %v4048
  %4080 = vmatprep.subr.mxu0 0.0
  %4081 = vmatpush1.xpose.msra.mxu0 %v4045
  %4082 = vmatprep.subr.mxu0 0.0
  %4083 = vmatpush2.xpose.msra.mxu0 0.0
  %4084 = vmatprep.subr.mxu0 0.0
  %4085 = vmatpush2.xpose.msra.mxu0 0.0
  %4086 = vmatprep.subr.mxu0 0.0
  %4087 = vmatpush2.xpose.msra.mxu0 0.0
  %4088 = vmatprep.subr.mxu0 0.0
  %4089 = vmatpush2.xpose.msra.mxu0 0.0
  %4090 = vmatprep.subr.mxu0 0.0
  %4091 = vmatpush2.xpose.msra.mxu0 0.0
  %4092 = vmatprep.subr.mxu0 0.0
  %4093 = vmatpush2.xpose.msra.mxu0 0.0
  %4094 = vmatprep.subr.mxu0 0.0
  %4095 = vmatpush2.xpose.msra.mxu0 0.0
  %4096 = vmatprep.subr.mxu0 0.0
  %4097 = vmatpush2.xpose.msra.mxu0 0.0
  %4098 = vmatprep.subr.mxu0 0.0
  %4099 = vmatpush2.xpose.msra.mxu0 0.0
  %4100 = vmatprep.subr.mxu0 0.0
  %4101 = vmatpush2.xpose.msra.mxu0 0.0
  %4102 = vmatprep.subr.mxu0 0.0
  %4103 = vmatpush2.xpose.msra.mxu0 0.0
  %4104 = vmatprep.subr.mxu0 0.0
  %4105 = vmatpush2.xpose.msra.mxu0 0.0
  %4106 = vmatprep.subr.mxu0 0.0
  %4107 = vmatpush2.xpose.msra.mxu0 0.0
  %4108 = vmatprep.subr.mxu0 0.0
  %4109 = vmatpush2.xpose.msra.mxu0 0.0
  %4110 = vmatprep.subr.mxu0 0.0
  %4111 = vmatpush2.xpose.msra.mxu0 0.0
  %4112 = vmatprep.subr.mxu0 0.0
  %4113 = vmatpush2.xpose.msra.mxu0 0.0
  %4114 = vmatprep.mubr.f32.mxu0 0.0
  %4115 = vmatmul.mubr.f32.gmra.mxu0 %v4039
  %v4116 = vpop.f32.mrf.mxu0
  %v4117 = vadd.f32 0.0, %v4116
  %v4118 = vpop.f32.mrf.mxu0
  %4119 = vmatprep.mubr.f32.mxu0 0.0
  %4120 = vmatmul.mubr.f32.gmra.mxu0 %v4042
  %v4121 = vpop.f32.mrf.mxu0
  %v4122 = vadd.f32 0.0, %v4121
  %v4123 = vpop.f32.mrf.mxu0
  %4124 = vdwg.mxu0
  %v4125 = vsel %vm158, %v4117, -inf
  %4126 = vmax.xlane.f32.xlu0 %v4125
  %v4127 = vpop.xlane.xlu0 %4126
  %v4128 = vsel %vm158, %v4122, -inf
  %4129 = vmax.xlane.f32.xlu0 %v4128
  %v4130 = vpop.xlane.xlu0 %4129
  %v4131 = vsub.f32 %v4117, %v4127
  %v4132 = vsub.f32 %v4122, %v4130
  %v4133 = vmul.f32 %v4131, 1.442695
  %v4134 = vpow.pop %v4133
  %v4135 = vmul.f32 %v4132, 1.442695
  %v4136 = vpow.pop %v4135
  %v4137 = vsel %vm158, %v4134, 0.0
  %4138 = vadd.xlane.f32.xlu0 %v4137
  %v4139 = vpop.xlane.xlu0 %4138
  %v4140 = vsel %vm158, %v4136, 0.0
  %4141 = vadd.xlane.f32.xlu0 %v4140
  %v4142 = vpop.xlane.xlu0 %4141
  %v4143 = vrcp.pop %v4139
  %v4144 = vrcp.pop %v4142
  %v4145 = vmul.f32 %v4134, %v4143
  %v4146 = vmul.f32 %v4136, %v4144
  %v4148 = vsel %vm158, %v4145, 0
  %v4151 = vsel %vm158, %v4146, 0
  %4153 = vmatprep.subr.mxu0 0.0
  %4154 = vmatpush1.msra.mxu0 0.0
  %4155 = vmatprep.subr.mxu0 0.0
  %4156 = vmatpush1.msra.mxu0 0.0
  %4157 = vmatprep.subr.mxu0 0.0
  %4158 = vmatpush1.msra.mxu0 0.0
  %4159 = vmatprep.subr.mxu0 0.0
  %4160 = vmatpush1.msra.mxu0 0.0
  %4161 = vmatprep.subr.mxu0 0.0
  %4162 = vmatpush1.msra.mxu0 0.0
  %4163 = vmatprep.subr.mxu0 0.0
  %4164 = vmatpush1.msra.mxu0 0.0
  %4165 = vmatprep.subr.mxu0 0.0
  %4166 = vmatpush1.msra.mxu0 0.0
  %4167 = vmatprep.subr.mxu0 0.0
  %4168 = vmatpush1.msra.mxu0 0.0
  %4169 = vmatprep.subr.mxu0 0.0
  %4170 = vmatpush1.msra.mxu0 0.0
  %4171 = vmatprep.subr.mxu0 0.0
  %4172 = vmatpush1.msra.mxu0 0.0
  %4173 = vmatprep.subr.mxu0 0.0
  %4174 = vmatpush1.msra.mxu0 0.0
  %4175 = vmatprep.subr.mxu0 0.0
  %4176 = vmatpush1.msra.mxu0 0.0
  %4177 = vmatprep.subr.mxu0 0.0
  %4178 = vmatpush1.msra.mxu0 0.0
  %4179 = vmatprep.subr.mxu0 0.0
  %4180 = vmatpush1.msra.mxu0 0.0
  %4181 = vmatprep.subr.mxu0 0.0
  %4182 = vmatpush1.msra.mxu0 %v3845
  %4183 = vmatprep.subr.mxu0 0.0
  %4184 = vmatpush1.msra.mxu0 %v3840
  %4185 = vmatprep.subr.mxu0 0.0
  %4186 = vmatpush2.msra.mxu0 0.0
  %4187 = vmatprep.subr.mxu0 0.0
  %4188 = vmatpush2.msra.mxu0 0.0
  %4189 = vmatprep.subr.mxu0 0.0
  %4190 = vmatpush2.msra.mxu0 0.0
  %4191 = vmatprep.subr.mxu0 0.0
  %4192 = vmatpush2.msra.mxu0 0.0
  %4193 = vmatprep.subr.mxu0 0.0
  %4194 = vmatpush2.msra.mxu0 0.0
  %4195 = vmatprep.subr.mxu0 0.0
  %4196 = vmatpush2.msra.mxu0 0.0
  %4197 = vmatprep.subr.mxu0 0.0
  %4198 = vmatpush2.msra.mxu0 0.0
  %4199 = vmatprep.subr.mxu0 0.0
  %4200 = vmatpush2.msra.mxu0 0.0
  %4201 = vmatprep.subr.mxu0 0.0
  %4202 = vmatpush2.msra.mxu0 0.0
  %4203 = vmatprep.subr.mxu0 0.0
  %4204 = vmatpush2.msra.mxu0 0.0
  %4205 = vmatprep.subr.mxu0 0.0
  %4206 = vmatpush2.msra.mxu0 0.0
  %4207 = vmatprep.subr.mxu0 0.0
  %4208 = vmatpush2.msra.mxu0 0.0
  %4209 = vmatprep.subr.mxu0 0.0
  %4210 = vmatpush2.msra.mxu0 0.0
  %4211 = vmatprep.subr.mxu0 0.0
  %4212 = vmatpush2.msra.mxu0 0.0
  %4213 = vmatprep.subr.mxu0 0.0
  %4214 = vmatpush2.msra.mxu0 0.0
  %4215 = vmatprep.subr.mxu0 0.0
  %4216 = vmatpush2.msra.mxu0 0.0
  %4217 = vmatprep.mubr.f32.mxu0 0.0
  %4218 = vmatmul.mubr.f32.gmra.mxu0 %v4148
  %v4219 = vpop.f32.mrf.mxu0
  %v4220 = vadd.f32 0.0, %v4219
  %v4221 = vpop.f32.mrf.mxu0
  %4222 = vmatprep.mubr.f32.mxu0 0.0
  %4223 = vmatmul.mubr.f32.gmra.mxu0 %v4151
  %v4224 = vpop.f32.mrf.mxu0
  %v4225 = vadd.f32 0.0, %v4224
  %v4226 = vpop.f32.mrf.mxu0
  %4227 = vdwg.mxu0
  %s4228 = scalar_lea.vmem %s4, 32
  %v4229 = vld [vmem:[%s4228] sm:$0xff]
  %s4230 = scalar_lea.vmem %s3, 416
  %v4231 = vld [vmem:[%s4230] sm:$0xff]
  %v4232 = vld [vmem:[%s4230 + $0x8] sm:$0xff]
  %v4233 = vld [vmem:[%s4230 + $0x10] sm:$0xff]
  %v4234 = vld [vmem:[%s4230 + $0x18] sm:$0xff]
  %4236 = vrot.lane.b32.xlu0 %v3560, 120
  %v4237 = vpop.permute.xlu0 %4236
  %4239 = vmatprep.subr.mxu0 0.0
  %4240 = vmatpush1.msra.mxu0 0.0
  %4241 = vmatprep.subr.mxu0 0.0
  %4242 = vmatpush1.msra.mxu0 0.0
  %4243 = vmatprep.subr.mxu0 0.0
  %4244 = vmatpush1.msra.mxu0 0.0
  %4245 = vmatprep.subr.mxu0 0.0
  %4246 = vmatpush1.msra.mxu0 0.0
  %4247 = vmatprep.subr.mxu0 0.0
  %4248 = vmatpush1.msra.mxu0 0.0
  %4249 = vmatprep.subr.mxu0 0.0
  %4250 = vmatpush1.msra.mxu0 0.0
  %4251 = vmatprep.subr.mxu0 0.0
  %4252 = vmatpush1.msra.mxu0 0.0
  %4253 = vmatprep.subr.mxu0 0.0
  %4254 = vmatpush1.msra.mxu0 0.0
  %4255 = vmatprep.subr.mxu0 0.0
  %4256 = vmatpush1.msra.mxu0 0.0
  %4257 = vmatprep.subr.mxu0 0.0
  %4258 = vmatpush1.msra.mxu0 0.0
  %4259 = vmatprep.subr.mxu0 0.0
  %4260 = vmatpush1.msra.mxu0 0.0
  %4261 = vmatprep.subr.mxu0 0.0
  %4262 = vmatpush1.msra.mxu0 0.0
  %4263 = vmatprep.subr.mxu0 0.0
  %4264 = vmatpush1.msra.mxu0 %v4234
  %4265 = vmatprep.subr.mxu0 0.0
  %4266 = vmatpush1.msra.mxu0 %v4233
  %4267 = vmatprep.subr.mxu0 0.0
  %4268 = vmatpush1.msra.mxu0 %v4232
  %4269 = vmatprep.subr.mxu0 0.0
  %4270 = vmatpush1.msra.mxu0 %v4231
  %4271 = vmatprep.subr.mxu0 0.0
  %4272 = vmatpush2.msra.mxu0 0.0
  %4273 = vmatprep.subr.mxu0 0.0
  %4274 = vmatpush2.msra.mxu0 0.0
  %4275 = vmatprep.subr.mxu0 0.0
  %4276 = vmatpush2.msra.mxu0 0.0
  %4277 = vmatprep.subr.mxu0 0.0
  %4278 = vmatpush2.msra.mxu0 0.0
  %4279 = vmatprep.subr.mxu0 0.0
  %4280 = vmatpush2.msra.mxu0 0.0
  %4281 = vmatprep.subr.mxu0 0.0
  %4282 = vmatpush2.msra.mxu0 0.0
  %4283 = vmatprep.subr.mxu0 0.0
  %4284 = vmatpush2.msra.mxu0 0.0
  %4285 = vmatprep.subr.mxu0 0.0
  %4286 = vmatpush2.msra.mxu0 0.0
  %4287 = vmatprep.subr.mxu0 0.0
  %4288 = vmatpush2.msra.mxu0 0.0
  %4289 = vmatprep.subr.mxu0 0.0
  %4290 = vmatpush2.msra.mxu0 0.0
  %4291 = vmatprep.subr.mxu0 0.0
  %4292 = vmatpush2.msra.mxu0 0.0
  %4293 = vmatprep.subr.mxu0 0.0
  %4294 = vmatpush2.msra.mxu0 0.0
  %4295 = vmatprep.subr.mxu0 0.0
  %4296 = vmatpush2.msra.mxu0 0.0
  %4297 = vmatprep.subr.mxu0 0.0
  %4298 = vmatpush2.msra.mxu0 0.0
  %4299 = vmatprep.subr.mxu0 0.0
  %4300 = vmatpush2.msra.mxu0 0.0
  %4301 = vmatprep.subr.mxu0 0.0
  %4302 = vmatpush2.msra.mxu0 0.0
  %4303 = vmatprep.mubr.f32.mxu0 0.0
  %4304 = vmatmul.mubr.f32.gmra.mxu0 %v3562
  %v4305 = vpop.f32.mrf.mxu0
  %v4306 = vadd.f32 %v4237, %v4305
  %v4307 = vpop.f32.mrf.mxu0
  %4308 = vmatprep.mubr.f32.mxu0 0.0
  %4309 = vmatmul.mubr.f32.gmra.mxu0 %v3565
  %v4310 = vpop.f32.mrf.mxu0
  %v4311 = vadd.f32 %v4237, %v4310
  %v4312 = vpop.f32.mrf.mxu0
  %4313 = vmatprep.mubr.f32.mxu0 0.0
  %4314 = vmatmul.mubr.f32.gmra.mxu0 %v3568
  %v4315 = vpop.f32.mrf.mxu0
  %v4316 = vadd.f32 %v4237, %v4315
  %v4317 = vpop.f32.mrf.mxu0
  %4318 = vmatprep.mubr.f32.mxu0 0.0
  %4319 = vmatmul.mubr.f32.gmra.mxu0 %v3571
  %v4320 = vpop.f32.mrf.mxu0
  %v4321 = vadd.f32 %v4237, %v4320
  %v4322 = vpop.f32.mrf.mxu0
  %4323 = vdwg.mxu0
  %s4324 = scalar_lea.vmem %s3, 544
  %v4325 = vld [vmem:[%s4324] sm:$0xff]
  %v4326 = vld [vmem:[%s4324 + $0x8] sm:$0xff]
  %v4327 = vld [vmem:[%s4324 + $0x10] sm:$0xff]
  %v4328 = vld [vmem:[%s4324 + $0x18] sm:$0xff]
  %4330 = vrot.lane.b32.xlu0 %v3667, 120
  %v4331 = vpop.permute.xlu0 %4330
  %4333 = vmatprep.subr.mxu0 0.0
  %4334 = vmatpush1.msra.mxu0 0.0
  %4335 = vmatprep.subr.mxu0 0.0
  %4336 = vmatpush1.msra.mxu0 0.0
  %4337 = vmatprep.subr.mxu0 0.0
  %4338 = vmatpush1.msra.mxu0 0.0
  %4339 = vmatprep.subr.mxu0 0.0
  %4340 = vmatpush1.msra.mxu0 0.0
  %4341 = vmatprep.subr.mxu0 0.0
  %4342 = vmatpush1.msra.mxu0 0.0
  %4343 = vmatprep.subr.mxu0 0.0
  %4344 = vmatpush1.msra.mxu0 0.0
  %4345 = vmatprep.subr.mxu0 0.0
  %4346 = vmatpush1.msra.mxu0 0.0
  %4347 = vmatprep.subr.mxu0 0.0
  %4348 = vmatpush1.msra.mxu0 0.0
  %4349 = vmatprep.subr.mxu0 0.0
  %4350 = vmatpush1.msra.mxu0 0.0
  %4351 = vmatprep.subr.mxu0 0.0
  %4352 = vmatpush1.msra.mxu0 0.0
  %4353 = vmatprep.subr.mxu0 0.0
  %4354 = vmatpush1.msra.mxu0 0.0
  %4355 = vmatprep.subr.mxu0 0.0
  %4356 = vmatpush1.msra.mxu0 0.0
  %4357 = vmatprep.subr.mxu0 0.0
  %4358 = vmatpush1.msra.mxu0 %v4328
  %4359 = vmatprep.subr.mxu0 0.0
  %4360 = vmatpush1.msra.mxu0 %v4327
  %4361 = vmatprep.subr.mxu0 0.0
  %4362 = vmatpush1.msra.mxu0 %v4326
  %4363 = vmatprep.subr.mxu0 0.0
  %4364 = vmatpush1.msra.mxu0 %v4325
  %4365 = vmatprep.subr.mxu0 0.0
  %4366 = vmatpush2.msra.mxu0 0.0
  %4367 = vmatprep.subr.mxu0 0.0
  %4368 = vmatpush2.msra.mxu0 0.0
  %4369 = vmatprep.subr.mxu0 0.0
  %4370 = vmatpush2.msra.mxu0 0.0
  %4371 = vmatprep.subr.mxu0 0.0
  %4372 = vmatpush2.msra.mxu0 0.0
  %4373 = vmatprep.subr.mxu0 0.0
  %4374 = vmatpush2.msra.mxu0 0.0
  %4375 = vmatprep.subr.mxu0 0.0
  %4376 = vmatpush2.msra.mxu0 0.0
  %4377 = vmatprep.subr.mxu0 0.0
  %4378 = vmatpush2.msra.mxu0 0.0
  %4379 = vmatprep.subr.mxu0 0.0
  %4380 = vmatpush2.msra.mxu0 0.0
  %4381 = vmatprep.subr.mxu0 0.0
  %4382 = vmatpush2.msra.mxu0 0.0
  %4383 = vmatprep.subr.mxu0 0.0
  %4384 = vmatpush2.msra.mxu0 0.0
  %4385 = vmatprep.subr.mxu0 0.0
  %4386 = vmatpush2.msra.mxu0 0.0
  %4387 = vmatprep.subr.mxu0 0.0
  %4388 = vmatpush2.msra.mxu0 0.0
  %4389 = vmatprep.subr.mxu0 0.0
  %4390 = vmatpush2.msra.mxu0 0.0
  %4391 = vmatprep.subr.mxu0 0.0
  %4392 = vmatpush2.msra.mxu0 0.0
  %4393 = vmatprep.subr.mxu0 0.0
  %4394 = vmatpush2.msra.mxu0 0.0
  %4395 = vmatprep.subr.mxu0 0.0
  %4396 = vmatpush2.msra.mxu0 0.0
  %4397 = vmatprep.mubr.f32.mxu0 0.0
  %4398 = vmatmul.mubr.f32.gmra.mxu0 %v3562
  %v4399 = vpop.f32.mrf.mxu0
  %v4400 = vadd.f32 %v4331, %v4399
  %v4401 = vpop.f32.mrf.mxu0
  %4402 = vmatprep.mubr.f32.mxu0 0.0
  %4403 = vmatmul.mubr.f32.gmra.mxu0 %v3565
  %v4404 = vpop.f32.mrf.mxu0
  %v4405 = vadd.f32 %v4331, %v4404
  %v4406 = vpop.f32.mrf.mxu0
  %4407 = vmatprep.mubr.f32.mxu0 0.0
  %4408 = vmatmul.mubr.f32.gmra.mxu0 %v3568
  %v4409 = vpop.f32.mrf.mxu0
  %v4410 = vadd.f32 %v4331, %v4409
  %v4411 = vpop.f32.mrf.mxu0
  %4412 = vmatprep.mubr.f32.mxu0 0.0
  %4413 = vmatmul.mubr.f32.gmra.mxu0 %v3571
  %v4414 = vpop.f32.mrf.mxu0
  %v4415 = vadd.f32 %v4331, %v4414
  %v4416 = vpop.f32.mrf.mxu0
  %4417 = vdwg.mxu0
  %s4418 = scalar_lea.vmem %s3, 672
  %v4419 = vld [vmem:[%s4418] sm:$0xff]
  %v4420 = vld [vmem:[%s4418 + $0x8] sm:$0xff]
  %v4421 = vld [vmem:[%s4418 + $0x10] sm:$0xff]
  %v4422 = vld [vmem:[%s4418 + $0x18] sm:$0xff]
  %4424 = vrot.lane.b32.xlu0 %v3762, 120
  %v4425 = vpop.permute.xlu0 %4424
  %4427 = vmatprep.subr.mxu0 0.0
  %4428 = vmatpush1.msra.mxu0 0.0
  %4429 = vmatprep.subr.mxu0 0.0
  %4430 = vmatpush1.msra.mxu0 0.0
  %4431 = vmatprep.subr.mxu0 0.0
  %4432 = vmatpush1.msra.mxu0 0.0
  %4433 = vmatprep.subr.mxu0 0.0
  %4434 = vmatpush1.msra.mxu0 0.0
  %4435 = vmatprep.subr.mxu0 0.0
  %4436 = vmatpush1.msra.mxu0 0.0
  %4437 = vmatprep.subr.mxu0 0.0
  %4438 = vmatpush1.msra.mxu0 0.0
  %4439 = vmatprep.subr.mxu0 0.0
  %4440 = vmatpush1.msra.mxu0 0.0
  %4441 = vmatprep.subr.mxu0 0.0
  %4442 = vmatpush1.msra.mxu0 0.0
  %4443 = vmatprep.subr.mxu0 0.0
  %4444 = vmatpush1.msra.mxu0 0.0
  %4445 = vmatprep.subr.mxu0 0.0
  %4446 = vmatpush1.msra.mxu0 0.0
  %4447 = vmatprep.subr.mxu0 0.0
  %4448 = vmatpush1.msra.mxu0 0.0
  %4449 = vmatprep.subr.mxu0 0.0
  %4450 = vmatpush1.msra.mxu0 0.0
  %4451 = vmatprep.subr.mxu0 0.0
  %4452 = vmatpush1.msra.mxu0 %v4422
  %4453 = vmatprep.subr.mxu0 0.0
  %4454 = vmatpush1.msra.mxu0 %v4421
  %4455 = vmatprep.subr.mxu0 0.0
  %4456 = vmatpush1.msra.mxu0 %v4420
  %4457 = vmatprep.subr.mxu0 0.0
  %4458 = vmatpush1.msra.mxu0 %v4419
  %4459 = vmatprep.subr.mxu0 0.0
  %4460 = vmatpush2.msra.mxu0 0.0
  %4461 = vmatprep.subr.mxu0 0.0
  %4462 = vmatpush2.msra.mxu0 0.0
  %4463 = vmatprep.subr.mxu0 0.0
  %4464 = vmatpush2.msra.mxu0 0.0
  %4465 = vmatprep.subr.mxu0 0.0
  %4466 = vmatpush2.msra.mxu0 0.0
  %4467 = vmatprep.subr.mxu0 0.0
  %4468 = vmatpush2.msra.mxu0 0.0
  %4469 = vmatprep.subr.mxu0 0.0
  %4470 = vmatpush2.msra.mxu0 0.0
  %4471 = vmatprep.subr.mxu0 0.0
  %4472 = vmatpush2.msra.mxu0 0.0
  %4473 = vmatprep.subr.mxu0 0.0
  %4474 = vmatpush2.msra.mxu0 0.0
  %4475 = vmatprep.subr.mxu0 0.0
  %4476 = vmatpush2.msra.mxu0 0.0
  %4477 = vmatprep.subr.mxu0 0.0
  %4478 = vmatpush2.msra.mxu0 0.0
  %4479 = vmatprep.subr.mxu0 0.0
  %4480 = vmatpush2.msra.mxu0 0.0
  %4481 = vmatprep.subr.mxu0 0.0
  %4482 = vmatpush2.msra.mxu0 0.0
  %4483 = vmatprep.subr.mxu0 0.0
  %4484 = vmatpush2.msra.mxu0 0.0
  %4485 = vmatprep.subr.mxu0 0.0
  %4486 = vmatpush2.msra.mxu0 0.0
  %4487 = vmatprep.subr.mxu0 0.0
  %4488 = vmatpush2.msra.mxu0 0.0
  %4489 = vmatprep.subr.mxu0 0.0
  %4490 = vmatpush2.msra.mxu0 0.0
  %4491 = vmatprep.mubr.f32.mxu0 0.0
  %4492 = vmatmul.mubr.f32.gmra.mxu0 %v3562
  %v4493 = vpop.f32.mrf.mxu0
  %v4494 = vadd.f32 %v4425, %v4493
  %v4495 = vpop.f32.mrf.mxu0
  %4496 = vmatprep.mubr.f32.mxu0 0.0
  %4497 = vmatmul.mubr.f32.gmra.mxu0 %v3565
  %v4498 = vpop.f32.mrf.mxu0
  %v4499 = vadd.f32 %v4425, %v4498
  %v4500 = vpop.f32.mrf.mxu0
  %4501 = vmatprep.mubr.f32.mxu0 0.0
  %4502 = vmatmul.mubr.f32.gmra.mxu0 %v3568
  %v4503 = vpop.f32.mrf.mxu0
  %v4504 = vadd.f32 %v4425, %v4503
  %v4505 = vpop.f32.mrf.mxu0
  %4506 = vmatprep.mubr.f32.mxu0 0.0
  %4507 = vmatmul.mubr.f32.gmra.mxu0 %v3571
  %v4508 = vpop.f32.mrf.mxu0
  %v4509 = vadd.f32 %v4425, %v4508
  %v4510 = vpop.f32.mrf.mxu0
  %4511 = vdwg.mxu0
  %v4513 = vsel %vm553, %v4306, 0
  %v4516 = vsel %vm553, %v4311, 0
  %v4519 = vsel %vm553, %v4400, 0
  %v4522 = vsel %vm553, %v4405, 0
  %4524 = vmatprep.subr.mxu0 0.0
  %4525 = vmatpush1.xpose.msra.mxu0 0.0
  %4526 = vmatprep.subr.mxu0 0.0
  %4527 = vmatpush1.xpose.msra.mxu0 0.0
  %4528 = vmatprep.subr.mxu0 0.0
  %4529 = vmatpush1.xpose.msra.mxu0 0.0
  %4530 = vmatprep.subr.mxu0 0.0
  %4531 = vmatpush1.xpose.msra.mxu0 0.0
  %4532 = vmatprep.subr.mxu0 0.0
  %4533 = vmatpush1.xpose.msra.mxu0 0.0
  %4534 = vmatprep.subr.mxu0 0.0
  %4535 = vmatpush1.xpose.msra.mxu0 0.0
  %4536 = vmatprep.subr.mxu0 0.0
  %4537 = vmatpush1.xpose.msra.mxu0 0.0
  %4538 = vmatprep.subr.mxu0 0.0
  %4539 = vmatpush1.xpose.msra.mxu0 0.0
  %4540 = vmatprep.subr.mxu0 0.0
  %4541 = vmatpush1.xpose.msra.mxu0 0.0
  %4542 = vmatprep.subr.mxu0 0.0
  %4543 = vmatpush1.xpose.msra.mxu0 0.0
  %4544 = vmatprep.subr.mxu0 0.0
  %4545 = vmatpush1.xpose.msra.mxu0 0.0
  %4546 = vmatprep.subr.mxu0 0.0
  %4547 = vmatpush1.xpose.msra.mxu0 0.0
  %4548 = vmatprep.subr.mxu0 0.0
  %4549 = vmatpush1.xpose.msra.mxu0 0.0
  %4550 = vmatprep.subr.mxu0 0.0
  %4551 = vmatpush1.xpose.msra.mxu0 0.0
  %4552 = vmatprep.subr.mxu0 0.0
  %4553 = vmatpush1.xpose.msra.mxu0 %v4522
  %4554 = vmatprep.subr.mxu0 0.0
  %4555 = vmatpush1.xpose.msra.mxu0 %v4519
  %4556 = vmatprep.subr.mxu0 0.0
  %4557 = vmatpush2.xpose.msra.mxu0 0.0
  %4558 = vmatprep.subr.mxu0 0.0
  %4559 = vmatpush2.xpose.msra.mxu0 0.0
  %4560 = vmatprep.subr.mxu0 0.0
  %4561 = vmatpush2.xpose.msra.mxu0 0.0
  %4562 = vmatprep.subr.mxu0 0.0
  %4563 = vmatpush2.xpose.msra.mxu0 0.0
  %4564 = vmatprep.subr.mxu0 0.0
  %4565 = vmatpush2.xpose.msra.mxu0 0.0
  %4566 = vmatprep.subr.mxu0 0.0
  %4567 = vmatpush2.xpose.msra.mxu0 0.0
  %4568 = vmatprep.subr.mxu0 0.0
  %4569 = vmatpush2.xpose.msra.mxu0 0.0
  %4570 = vmatprep.subr.mxu0 0.0
  %4571 = vmatpush2.xpose.msra.mxu0 0.0
  %4572 = vmatprep.subr.mxu0 0.0
  %4573 = vmatpush2.xpose.msra.mxu0 0.0
  %4574 = vmatprep.subr.mxu0 0.0
  %4575 = vmatpush2.xpose.msra.mxu0 0.0
  %4576 = vmatprep.subr.mxu0 0.0
  %4577 = vmatpush2.xpose.msra.mxu0 0.0
  %4578 = vmatprep.subr.mxu0 0.0
  %4579 = vmatpush2.xpose.msra.mxu0 0.0
  %4580 = vmatprep.subr.mxu0 0.0
  %4581 = vmatpush2.xpose.msra.mxu0 0.0
  %4582 = vmatprep.subr.mxu0 0.0
  %4583 = vmatpush2.xpose.msra.mxu0 0.0
  %4584 = vmatprep.subr.mxu0 0.0
  %4585 = vmatpush2.xpose.msra.mxu0 0.0
  %4586 = vmatprep.subr.mxu0 0.0
  %4587 = vmatpush2.xpose.msra.mxu0 0.0
  %4588 = vmatprep.mubr.f32.mxu0 0.0
  %4589 = vmatmul.mubr.f32.gmra.mxu0 %v4513
  %v4590 = vpop.f32.mrf.mxu0
  %v4591 = vadd.f32 0.0, %v4590
  %v4592 = vpop.f32.mrf.mxu0
  %4593 = vmatprep.mubr.f32.mxu0 0.0
  %4594 = vmatmul.mubr.f32.gmra.mxu0 %v4516
  %v4595 = vpop.f32.mrf.mxu0
  %v4596 = vadd.f32 0.0, %v4595
  %v4597 = vpop.f32.mrf.mxu0
  %4598 = vdwg.mxu0
  %v4599 = vsel %vm158, %v4591, -inf
  %4600 = vmax.xlane.f32.xlu0 %v4599
  %v4601 = vpop.xlane.xlu0 %4600
  %v4602 = vsel %vm158, %v4596, -inf
  %4603 = vmax.xlane.f32.xlu0 %v4602
  %v4604 = vpop.xlane.xlu0 %4603
  %v4605 = vsub.f32 %v4591, %v4601
  %v4606 = vsub.f32 %v4596, %v4604
  %v4607 = vmul.f32 %v4605, 1.442695
  %v4608 = vpow.pop %v4607
  %v4609 = vmul.f32 %v4606, 1.442695
  %v4610 = vpow.pop %v4609
  %v4611 = vsel %vm158, %v4608, 0.0
  %4612 = vadd.xlane.f32.xlu0 %v4611
  %v4613 = vpop.xlane.xlu0 %4612
  %v4614 = vsel %vm158, %v4610, 0.0
  %4615 = vadd.xlane.f32.xlu0 %v4614
  %v4616 = vpop.xlane.xlu0 %4615
  %v4617 = vrcp.pop %v4613
  %v4618 = vrcp.pop %v4616
  %v4619 = vmul.f32 %v4608, %v4617
  %v4620 = vmul.f32 %v4610, %v4618
  %v4622 = vsel %vm158, %v4619, 0
  %v4625 = vsel %vm158, %v4620, 0
  %4627 = vmatprep.subr.mxu0 0.0
  %4628 = vmatpush1.msra.mxu0 0.0
  %4629 = vmatprep.subr.mxu0 0.0
  %4630 = vmatpush1.msra.mxu0 0.0
  %4631 = vmatprep.subr.mxu0 0.0
  %4632 = vmatpush1.msra.mxu0 0.0
  %4633 = vmatprep.subr.mxu0 0.0
  %4634 = vmatpush1.msra.mxu0 0.0
  %4635 = vmatprep.subr.mxu0 0.0
  %4636 = vmatpush1.msra.mxu0 0.0
  %4637 = vmatprep.subr.mxu0 0.0
  %4638 = vmatpush1.msra.mxu0 0.0
  %4639 = vmatprep.subr.mxu0 0.0
  %4640 = vmatpush1.msra.mxu0 0.0
  %4641 = vmatprep.subr.mxu0 0.0
  %4642 = vmatpush1.msra.mxu0 0.0
  %4643 = vmatprep.subr.mxu0 0.0
  %4644 = vmatpush1.msra.mxu0 0.0
  %4645 = vmatprep.subr.mxu0 0.0
  %4646 = vmatpush1.msra.mxu0 0.0
  %4647 = vmatprep.subr.mxu0 0.0
  %4648 = vmatpush1.msra.mxu0 0.0
  %4649 = vmatprep.subr.mxu0 0.0
  %4650 = vmatpush1.msra.mxu0 0.0
  %4651 = vmatprep.subr.mxu0 0.0
  %4652 = vmatpush1.msra.mxu0 0.0
  %4653 = vmatprep.subr.mxu0 0.0
  %4654 = vmatpush1.msra.mxu0 0.0
  %4655 = vmatprep.subr.mxu0 0.0
  %4656 = vmatpush1.msra.mxu0 %v4499
  %4657 = vmatprep.subr.mxu0 0.0
  %4658 = vmatpush1.msra.mxu0 %v4494
  %4659 = vmatprep.subr.mxu0 0.0
  %4660 = vmatpush2.msra.mxu0 0.0
  %4661 = vmatprep.subr.mxu0 0.0
  %4662 = vmatpush2.msra.mxu0 0.0
  %4663 = vmatprep.subr.mxu0 0.0
  %4664 = vmatpush2.msra.mxu0 0.0
  %4665 = vmatprep.subr.mxu0 0.0
  %4666 = vmatpush2.msra.mxu0 0.0
  %4667 = vmatprep.subr.mxu0 0.0
  %4668 = vmatpush2.msra.mxu0 0.0
  %4669 = vmatprep.subr.mxu0 0.0
  %4670 = vmatpush2.msra.mxu0 0.0
  %4671 = vmatprep.subr.mxu0 0.0
  %4672 = vmatpush2.msra.mxu0 0.0
  %4673 = vmatprep.subr.mxu0 0.0
  %4674 = vmatpush2.msra.mxu0 0.0
  %4675 = vmatprep.subr.mxu0 0.0
  %4676 = vmatpush2.msra.mxu0 0.0
  %4677 = vmatprep.subr.mxu0 0.0
  %4678 = vmatpush2.msra.mxu0 0.0
  %4679 = vmatprep.subr.mxu0 0.0
  %4680 = vmatpush2.msra.mxu0 0.0
  %4681 = vmatprep.subr.mxu0 0.0
  %4682 = vmatpush2.msra.mxu0 0.0
  %4683 = vmatprep.subr.mxu0 0.0
  %4684 = vmatpush2.msra.mxu0 0.0
  %4685 = vmatprep.subr.mxu0 0.0
  %4686 = vmatpush2.msra.mxu0 0.0
  %4687 = vmatprep.subr.mxu0 0.0
  %4688 = vmatpush2.msra.mxu0 0.0
  %4689 = vmatprep.subr.mxu0 0.0
  %4690 = vmatpush2.msra.mxu0 0.0
  %4691 = vmatprep.mubr.f32.mxu0 0.0
  %4692 = vmatmul.mubr.f32.gmra.mxu0 %v4622
  %v4693 = vpop.f32.mrf.mxu0
  %v4694 = vadd.f32 0.0, %v4693
  %v4695 = vpop.f32.mrf.mxu0
  %4696 = vmatprep.mubr.f32.mxu0 0.0
  %4697 = vmatmul.mubr.f32.gmra.mxu0 %v4625
  %v4698 = vpop.f32.mrf.mxu0
  %v4699 = vadd.f32 0.0, %v4698
  %v4700 = vpop.f32.mrf.mxu0
  %4701 = vdwg.mxu0
  %v4703 = vsel %vm553, %v4316, 0
  %v4706 = vsel %vm553, %v4321, 0
  %v4709 = vsel %vm553, %v4410, 0
  %v4712 = vsel %vm553, %v4415, 0
  %4714 = vmatprep.subr.mxu0 0.0
  %4715 = vmatpush1.xpose.msra.mxu0 0.0
  %4716 = vmatprep.subr.mxu0 0.0
  %4717 = vmatpush1.xpose.msra.mxu0 0.0
  %4718 = vmatprep.subr.mxu0 0.0
  %4719 = vmatpush1.xpose.msra.mxu0 0.0
  %4720 = vmatprep.subr.mxu0 0.0
  %4721 = vmatpush1.xpose.msra.mxu0 0.0
  %4722 = vmatprep.subr.mxu0 0.0
  %4723 = vmatpush1.xpose.msra.mxu0 0.0
  %4724 = vmatprep.subr.mxu0 0.0
  %4725 = vmatpush1.xpose.msra.mxu0 0.0
  %4726 = vmatprep.subr.mxu0 0.0
  %4727 = vmatpush1.xpose.msra.mxu0 0.0
  %4728 = vmatprep.subr.mxu0 0.0
  %4729 = vmatpush1.xpose.msra.mxu0 0.0
  %4730 = vmatprep.subr.mxu0 0.0
  %4731 = vmatpush1.xpose.msra.mxu0 0.0
  %4732 = vmatprep.subr.mxu0 0.0
  %4733 = vmatpush1.xpose.msra.mxu0 0.0
  %4734 = vmatprep.subr.mxu0 0.0
  %4735 = vmatpush1.xpose.msra.mxu0 0.0
  %4736 = vmatprep.subr.mxu0 0.0
  %4737 = vmatpush1.xpose.msra.mxu0 0.0
  %4738 = vmatprep.subr.mxu0 0.0
  %4739 = vmatpush1.xpose.msra.mxu0 0.0
  %4740 = vmatprep.subr.mxu0 0.0
  %4741 = vmatpush1.xpose.msra.mxu0 0.0
  %4742 = vmatprep.subr.mxu0 0.0
  %4743 = vmatpush1.xpose.msra.mxu0 %v4712
  %4744 = vmatprep.subr.mxu0 0.0
  %4745 = vmatpush1.xpose.msra.mxu0 %v4709
  %4746 = vmatprep.subr.mxu0 0.0
  %4747 = vmatpush2.xpose.msra.mxu0 0.0
  %4748 = vmatprep.subr.mxu0 0.0
  %4749 = vmatpush2.xpose.msra.mxu0 0.0
  %4750 = vmatprep.subr.mxu0 0.0
  %4751 = vmatpush2.xpose.msra.mxu0 0.0
  %4752 = vmatprep.subr.mxu0 0.0
  %4753 = vmatpush2.xpose.msra.mxu0 0.0
  %4754 = vmatprep.subr.mxu0 0.0
  %4755 = vmatpush2.xpose.msra.mxu0 0.0
  %4756 = vmatprep.subr.mxu0 0.0
  %4757 = vmatpush2.xpose.msra.mxu0 0.0
  %4758 = vmatprep.subr.mxu0 0.0
  %4759 = vmatpush2.xpose.msra.mxu0 0.0
  %4760 = vmatprep.subr.mxu0 0.0
  %4761 = vmatpush2.xpose.msra.mxu0 0.0
  %4762 = vmatprep.subr.mxu0 0.0
  %4763 = vmatpush2.xpose.msra.mxu0 0.0
  %4764 = vmatprep.subr.mxu0 0.0
  %4765 = vmatpush2.xpose.msra.mxu0 0.0
  %4766 = vmatprep.subr.mxu0 0.0
  %4767 = vmatpush2.xpose.msra.mxu0 0.0
  %4768 = vmatprep.subr.mxu0 0.0
  %4769 = vmatpush2.xpose.msra.mxu0 0.0
  %4770 = vmatprep.subr.mxu0 0.0
  %4771 = vmatpush2.xpose.msra.mxu0 0.0
  %4772 = vmatprep.subr.mxu0 0.0
  %4773 = vmatpush2.xpose.msra.mxu0 0.0
  %4774 = vmatprep.subr.mxu0 0.0
  %4775 = vmatpush2.xpose.msra.mxu0 0.0
  %4776 = vmatprep.subr.mxu0 0.0
  %4777 = vmatpush2.xpose.msra.mxu0 0.0
  %4778 = vmatprep.mubr.f32.mxu0 0.0
  %4779 = vmatmul.mubr.f32.gmra.mxu0 %v4703
  %v4780 = vpop.f32.mrf.mxu0
  %v4781 = vadd.f32 0.0, %v4780
  %v4782 = vpop.f32.mrf.mxu0
  %4783 = vmatprep.mubr.f32.mxu0 0.0
  %4784 = vmatmul.mubr.f32.gmra.mxu0 %v4706
  %v4785 = vpop.f32.mrf.mxu0
  %v4786 = vadd.f32 0.0, %v4785
  %v4787 = vpop.f32.mrf.mxu0
  %4788 = vdwg.mxu0
  %v4789 = vsel %vm158, %v4781, -inf
  %4790 = vmax.xlane.f32.xlu0 %v4789
  %v4791 = vpop.xlane.xlu0 %4790
  %v4792 = vsel %vm158, %v4786, -inf
  %4793 = vmax.xlane.f32.xlu0 %v4792
  %v4794 = vpop.xlane.xlu0 %4793
  %v4795 = vsub.f32 %v4781, %v4791
  %v4796 = vsub.f32 %v4786, %v4794
  %v4797 = vmul.f32 %v4795, 1.442695
  %v4798 = vpow.pop %v4797
  %v4799 = vmul.f32 %v4796, 1.442695
  %v4800 = vpow.pop %v4799
  %v4801 = vsel %vm158, %v4798, 0.0
  %4802 = vadd.xlane.f32.xlu0 %v4801
  %v4803 = vpop.xlane.xlu0 %4802
  %v4804 = vsel %vm158, %v4800, 0.0
  %4805 = vadd.xlane.f32.xlu0 %v4804
  %v4806 = vpop.xlane.xlu0 %4805
  %v4807 = vrcp.pop %v4803
  %v4808 = vrcp.pop %v4806
  %v4809 = vmul.f32 %v4798, %v4807
  %v4810 = vmul.f32 %v4800, %v4808
  %v4812 = vsel %vm158, %v4809, 0
  %v4815 = vsel %vm158, %v4810, 0
  %4817 = vmatprep.subr.mxu0 0.0
  %4818 = vmatpush1.msra.mxu0 0.0
  %4819 = vmatprep.subr.mxu0 0.0
  %4820 = vmatpush1.msra.mxu0 0.0
  %4821 = vmatprep.subr.mxu0 0.0
  %4822 = vmatpush1.msra.mxu0 0.0
  %4823 = vmatprep.subr.mxu0 0.0
  %4824 = vmatpush1.msra.mxu0 0.0
  %4825 = vmatprep.subr.mxu0 0.0
  %4826 = vmatpush1.msra.mxu0 0.0
  %4827 = vmatprep.subr.mxu0 0.0
  %4828 = vmatpush1.msra.mxu0 0.0
  %4829 = vmatprep.subr.mxu0 0.0
  %4830 = vmatpush1.msra.mxu0 0.0
  %4831 = vmatprep.subr.mxu0 0.0
  %4832 = vmatpush1.msra.mxu0 0.0
  %4833 = vmatprep.subr.mxu0 0.0
  %4834 = vmatpush1.msra.mxu0 0.0
  %4835 = vmatprep.subr.mxu0 0.0
  %4836 = vmatpush1.msra.mxu0 0.0
  %4837 = vmatprep.subr.mxu0 0.0
  %4838 = vmatpush1.msra.mxu0 0.0
  %4839 = vmatprep.subr.mxu0 0.0
  %4840 = vmatpush1.msra.mxu0 0.0
  %4841 = vmatprep.subr.mxu0 0.0
  %4842 = vmatpush1.msra.mxu0 0.0
  %4843 = vmatprep.subr.mxu0 0.0
  %4844 = vmatpush1.msra.mxu0 0.0
  %4845 = vmatprep.subr.mxu0 0.0
  %4846 = vmatpush1.msra.mxu0 %v4509
  %4847 = vmatprep.subr.mxu0 0.0
  %4848 = vmatpush1.msra.mxu0 %v4504
  %4849 = vmatprep.subr.mxu0 0.0
  %4850 = vmatpush2.msra.mxu0 0.0
  %4851 = vmatprep.subr.mxu0 0.0
  %4852 = vmatpush2.msra.mxu0 0.0
  %4853 = vmatprep.subr.mxu0 0.0
  %4854 = vmatpush2.msra.mxu0 0.0
  %4855 = vmatprep.subr.mxu0 0.0
  %4856 = vmatpush2.msra.mxu0 0.0
  %4857 = vmatprep.subr.mxu0 0.0
  %4858 = vmatpush2.msra.mxu0 0.0
  %4859 = vmatprep.subr.mxu0 0.0
  %4860 = vmatpush2.msra.mxu0 0.0
  %4861 = vmatprep.subr.mxu0 0.0
  %4862 = vmatpush2.msra.mxu0 0.0
  %4863 = vmatprep.subr.mxu0 0.0
  %4864 = vmatpush2.msra.mxu0 0.0
  %4865 = vmatprep.subr.mxu0 0.0
  %4866 = vmatpush2.msra.mxu0 0.0
  %4867 = vmatprep.subr.mxu0 0.0
  %4868 = vmatpush2.msra.mxu0 0.0
  %4869 = vmatprep.subr.mxu0 0.0
  %4870 = vmatpush2.msra.mxu0 0.0
  %4871 = vmatprep.subr.mxu0 0.0
  %4872 = vmatpush2.msra.mxu0 0.0
  %4873 = vmatprep.subr.mxu0 0.0
  %4874 = vmatpush2.msra.mxu0 0.0
  %4875 = vmatprep.subr.mxu0 0.0
  %4876 = vmatpush2.msra.mxu0 0.0
  %4877 = vmatprep.subr.mxu0 0.0
  %4878 = vmatpush2.msra.mxu0 0.0
  %4879 = vmatprep.subr.mxu0 0.0
  %4880 = vmatpush2.msra.mxu0 0.0
  %4881 = vmatprep.mubr.f32.mxu0 0.0
  %4882 = vmatmul.mubr.f32.gmra.mxu0 %v4812
  %v4883 = vpop.f32.mrf.mxu0
  %v4884 = vadd.f32 0.0, %v4883
  %v4885 = vpop.f32.mrf.mxu0
  %4886 = vmatprep.mubr.f32.mxu0 0.0
  %4887 = vmatmul.mubr.f32.gmra.mxu0 %v4815
  %v4888 = vpop.f32.mrf.mxu0
  %v4889 = vadd.f32 0.0, %v4888
  %v4890 = vpop.f32.mrf.mxu0
  %4891 = vdwg.mxu0
  %s4892 = scalar_lea.vmem %s4, 40
  %v4893 = vld [vmem:[%s4892] sm:$0xff]
  %v4895 = vsel %vm553, %v4694, 0
  %v4898 = vsel %vm553, %v4699, 0
  %v4901 = vsel %vm553, %v4884, 0
  %v4904 = vsel %vm553, %v4889, 0
  %4906 = vmatprep.subr.mxu0 0.0
  %4907 = vmatpush1.msra.mxu0 0.0
  %4908 = vmatprep.subr.mxu0 0.0
  %4909 = vmatpush1.msra.mxu0 0.0
  %4910 = vmatprep.subr.mxu0 0.0
  %4911 = vmatpush1.msra.mxu0 0.0
  %4912 = vmatprep.subr.mxu0 0.0
  %4913 = vmatpush1.msra.mxu0 0.0
  %4914 = vmatprep.subr.mxu0 0.0
  %4915 = vmatpush1.msra.mxu0 0.0
  %4916 = vmatprep.subr.mxu0 0.0
  %4917 = vmatpush1.msra.mxu0 0.0
  %4918 = vmatprep.subr.mxu0 0.0
  %4919 = vmatpush1.msra.mxu0 0.0
  %4920 = vmatprep.subr.mxu0 0.0
  %4921 = vmatpush1.msra.mxu0 0.0
  %4922 = vmatprep.subr.mxu0 0.0
  %4923 = vmatpush1.msra.mxu0 0.0
  %4924 = vmatprep.subr.mxu0 0.0
  %4925 = vmatpush1.msra.mxu0 0.0
  %4926 = vmatprep.subr.mxu0 0.0
  %4927 = vmatpush1.msra.mxu0 0.0
  %4928 = vmatprep.subr.mxu0 0.0
  %4929 = vmatpush1.msra.mxu0 0.0
  %4930 = vmatprep.subr.mxu0 0.0
  %4931 = vmatpush1.msra.mxu0 0.0
  %4932 = vmatprep.subr.mxu0 0.0
  %4933 = vmatpush1.msra.mxu0 0.0
  %4934 = vmatprep.subr.mxu0 0.0
  %4935 = vmatpush1.msra.mxu0 0.0
  %4936 = vmatprep.subr.mxu0 0.0
  %4937 = vmatpush1.msra.mxu0 %v4893
  %4938 = vmatprep.subr.mxu0 0.0
  %4939 = vmatpush2.msra.mxu0 0.0
  %4940 = vmatprep.subr.mxu0 0.0
  %4941 = vmatpush2.msra.mxu0 0.0
  %4942 = vmatprep.subr.mxu0 0.0
  %4943 = vmatpush2.msra.mxu0 0.0
  %4944 = vmatprep.subr.mxu0 0.0
  %4945 = vmatpush2.msra.mxu0 0.0
  %4946 = vmatprep.subr.mxu0 0.0
  %4947 = vmatpush2.msra.mxu0 0.0
  %4948 = vmatprep.subr.mxu0 0.0
  %4949 = vmatpush2.msra.mxu0 0.0
  %4950 = vmatprep.subr.mxu0 0.0
  %4951 = vmatpush2.msra.mxu0 0.0
  %4952 = vmatprep.subr.mxu0 0.0
  %4953 = vmatpush2.msra.mxu0 0.0
  %4954 = vmatprep.subr.mxu0 0.0
  %4955 = vmatpush2.msra.mxu0 0.0
  %4956 = vmatprep.subr.mxu0 0.0
  %4957 = vmatpush2.msra.mxu0 0.0
  %4958 = vmatprep.subr.mxu0 0.0
  %4959 = vmatpush2.msra.mxu0 0.0
  %4960 = vmatprep.subr.mxu0 0.0
  %4961 = vmatpush2.msra.mxu0 0.0
  %4962 = vmatprep.subr.mxu0 0.0
  %4963 = vmatpush2.msra.mxu0 0.0
  %4964 = vmatprep.subr.mxu0 0.0
  %4965 = vmatpush2.msra.mxu0 0.0
  %4966 = vmatprep.subr.mxu0 0.0
  %4967 = vmatpush2.msra.mxu0 0.0
  %4968 = vmatprep.subr.mxu0 0.0
  %4969 = vmatpush2.msra.mxu0 0.0
  %4970 = vmatprep.mubr.f32.mxu0 0.0
  %4971 = vmatmul.mubr.f32.gmra.mxu0 %v4895
  %v4972 = vpop.f32.mrf.mxu0
  %v4973 = vadd.f32 0.0, %v4972
  %v4974 = vpop.f32.mrf.mxu0
  %4975 = vmatprep.mubr.f32.mxu0 0.0
  %4976 = vmatmul.mubr.f32.gmra.mxu0 %v4898
  %v4977 = vpop.f32.mrf.mxu0
  %v4978 = vadd.f32 0.0, %v4977
  %v4979 = vpop.f32.mrf.mxu0
  %4980 = vmatprep.mubr.f32.mxu0 0.0
  %4981 = vmatmul.mubr.f32.gmra.mxu0 %v4901
  %v4982 = vpop.f32.mrf.mxu0
  %v4983 = vadd.f32 0.0, %v4982
  %v4984 = vpop.f32.mrf.mxu0
  %4985 = vmatprep.mubr.f32.mxu0 0.0
  %4986 = vmatmul.mubr.f32.gmra.mxu0 %v4904
  %v4987 = vpop.f32.mrf.mxu0
  %v4988 = vadd.f32 0.0, %v4987
  %v4989 = vpop.f32.mrf.mxu0
  %4990 = vdwg.mxu0
  %v4992 = vsel %vm553, %v4030, 0
  %v4995 = vsel %vm553, %v4035, 0
  %v4998 = vsel %vm553, %v4220, 0
  %v5001 = vsel %vm553, %v4225, 0
  %5003 = vmatprep.subr.mxu0 0.0
  %5004 = vmatpush1.msra.mxu0 0.0
  %5005 = vmatprep.subr.mxu0 0.0
  %5006 = vmatpush1.msra.mxu0 0.0
  %5007 = vmatprep.subr.mxu0 0.0
  %5008 = vmatpush1.msra.mxu0 0.0
  %5009 = vmatprep.subr.mxu0 0.0
  %5010 = vmatpush1.msra.mxu0 0.0
  %5011 = vmatprep.subr.mxu0 0.0
  %5012 = vmatpush1.msra.mxu0 0.0
  %5013 = vmatprep.subr.mxu0 0.0
  %5014 = vmatpush1.msra.mxu0 0.0
  %5015 = vmatprep.subr.mxu0 0.0
  %5016 = vmatpush1.msra.mxu0 0.0
  %5017 = vmatprep.subr.mxu0 0.0
  %5018 = vmatpush1.msra.mxu0 0.0
  %5019 = vmatprep.subr.mxu0 0.0
  %5020 = vmatpush1.msra.mxu0 0.0
  %5021 = vmatprep.subr.mxu0 0.0
  %5022 = vmatpush1.msra.mxu0 0.0
  %5023 = vmatprep.subr.mxu0 0.0
  %5024 = vmatpush1.msra.mxu0 0.0
  %5025 = vmatprep.subr.mxu0 0.0
  %5026 = vmatpush1.msra.mxu0 0.0
  %5027 = vmatprep.subr.mxu0 0.0
  %5028 = vmatpush1.msra.mxu0 0.0
  %5029 = vmatprep.subr.mxu0 0.0
  %5030 = vmatpush1.msra.mxu0 0.0
  %5031 = vmatprep.subr.mxu0 0.0
  %5032 = vmatpush1.msra.mxu0 0.0
  %5033 = vmatprep.subr.mxu0 0.0
  %5034 = vmatpush1.msra.mxu0 %v4229
  %5035 = vmatprep.subr.mxu0 0.0
  %5036 = vmatpush2.msra.mxu0 0.0
  %5037 = vmatprep.subr.mxu0 0.0
  %5038 = vmatpush2.msra.mxu0 0.0
  %5039 = vmatprep.subr.mxu0 0.0
  %5040 = vmatpush2.msra.mxu0 0.0
  %5041 = vmatprep.subr.mxu0 0.0
  %5042 = vmatpush2.msra.mxu0 0.0
  %5043 = vmatprep.subr.mxu0 0.0
  %5044 = vmatpush2.msra.mxu0 0.0
  %5045 = vmatprep.subr.mxu0 0.0
  %5046 = vmatpush2.msra.mxu0 0.0
  %5047 = vmatprep.subr.mxu0 0.0
  %5048 = vmatpush2.msra.mxu0 0.0
  %5049 = vmatprep.subr.mxu0 0.0
  %5050 = vmatpush2.msra.mxu0 0.0
  %5051 = vmatprep.subr.mxu0 0.0
  %5052 = vmatpush2.msra.mxu0 0.0
  %5053 = vmatprep.subr.mxu0 0.0
  %5054 = vmatpush2.msra.mxu0 0.0
  %5055 = vmatprep.subr.mxu0 0.0
  %5056 = vmatpush2.msra.mxu0 0.0
  %5057 = vmatprep.subr.mxu0 0.0
  %5058 = vmatpush2.msra.mxu0 0.0
  %5059 = vmatprep.subr.mxu0 0.0
  %5060 = vmatpush2.msra.mxu0 0.0
  %5061 = vmatprep.subr.mxu0 0.0
  %5062 = vmatpush2.msra.mxu0 0.0
  %5063 = vmatprep.subr.mxu0 0.0
  %5064 = vmatpush2.msra.mxu0 0.0
  %5065 = vmatprep.subr.mxu0 0.0
  %5066 = vmatpush2.msra.mxu0 0.0
  %5067 = vmatprep.mubr.f32.mxu0 0.0
  %5068 = vmatmul.mubr.f32.gmra.mxu0 %v4992
  %v5069 = vpop.f32.mrf.mxu0
  %v5070 = vadd.f32 %v4973, %v5069
  %v5071 = vpop.f32.mrf.mxu0
  %5072 = vmatprep.mubr.f32.mxu0 0.0
  %5073 = vmatmul.mubr.f32.gmra.mxu0 %v4995
  %v5074 = vpop.f32.mrf.mxu0
  %v5075 = vadd.f32 %v4978, %v5074
  %v5076 = vpop.f32.mrf.mxu0
  %5077 = vmatprep.mubr.f32.mxu0 0.0
  %5078 = vmatmul.mubr.f32.gmra.mxu0 %v4998
  %v5079 = vpop.f32.mrf.mxu0
  %v5080 = vadd.f32 %v4983, %v5079
  %v5081 = vpop.f32.mrf.mxu0
  %5082 = vmatprep.mubr.f32.mxu0 0.0
  %5083 = vmatmul.mubr.f32.gmra.mxu0 %v5001
  %v5084 = vpop.f32.mrf.mxu0
  %v5085 = vadd.f32 %v4988, %v5084
  %v5086 = vpop.f32.mrf.mxu0
  %5087 = vdwg.mxu0
  %s5088 = scalar_lea.vmem %s3, 448
  %v5089 = vld [vmem:[%s5088] sm:$0xff]
  %v5090 = vld [vmem:[%s5088 + $0x8] sm:$0xff]
  %v5091 = vld [vmem:[%s5088 + $0x10] sm:$0xff]
  %v5092 = vld [vmem:[%s5088 + $0x18] sm:$0xff]
  %5093 = vrot.lane.b32.xlu0 %v3560, 112
  %v5094 = vpop.permute.xlu0 %5093
  %5096 = vmatprep.subr.mxu0 0.0
  %5097 = vmatpush1.msra.mxu0 0.0
  %5098 = vmatprep.subr.mxu0 0.0
  %5099 = vmatpush1.msra.mxu0 0.0
  %5100 = vmatprep.subr.mxu0 0.0
  %5101 = vmatpush1.msra.mxu0 0.0
  %5102 = vmatprep.subr.mxu0 0.0
  %5103 = vmatpush1.msra.mxu0 0.0
  %5104 = vmatprep.subr.mxu0 0.0
  %5105 = vmatpush1.msra.mxu0 0.0
  %5106 = vmatprep.subr.mxu0 0.0
  %5107 = vmatpush1.msra.mxu0 0.0
  %5108 = vmatprep.subr.mxu0 0.0
  %5109 = vmatpush1.msra.mxu0 0.0
  %5110 = vmatprep.subr.mxu0 0.0
  %5111 = vmatpush1.msra.mxu0 0.0
  %5112 = vmatprep.subr.mxu0 0.0
  %5113 = vmatpush1.msra.mxu0 0.0
  %5114 = vmatprep.subr.mxu0 0.0
  %5115 = vmatpush1.msra.mxu0 0.0
  %5116 = vmatprep.subr.mxu0 0.0
  %5117 = vmatpush1.msra.mxu0 0.0
  %5118 = vmatprep.subr.mxu0 0.0
  %5119 = vmatpush1.msra.mxu0 0.0
  %5120 = vmatprep.subr.mxu0 0.0
  %5121 = vmatpush1.msra.mxu0 %v5092
  %5122 = vmatprep.subr.mxu0 0.0
  %5123 = vmatpush1.msra.mxu0 %v5091
  %5124 = vmatprep.subr.mxu0 0.0
  %5125 = vmatpush1.msra.mxu0 %v5090
  %5126 = vmatprep.subr.mxu0 0.0
  %5127 = vmatpush1.msra.mxu0 %v5089
  %5128 = vmatprep.subr.mxu0 0.0
  %5129 = vmatpush2.msra.mxu0 0.0
  %5130 = vmatprep.subr.mxu0 0.0
  %5131 = vmatpush2.msra.mxu0 0.0
  %5132 = vmatprep.subr.mxu0 0.0
  %5133 = vmatpush2.msra.mxu0 0.0
  %5134 = vmatprep.subr.mxu0 0.0
  %5135 = vmatpush2.msra.mxu0 0.0
  %5136 = vmatprep.subr.mxu0 0.0
  %5137 = vmatpush2.msra.mxu0 0.0
  %5138 = vmatprep.subr.mxu0 0.0
  %5139 = vmatpush2.msra.mxu0 0.0
  %5140 = vmatprep.subr.mxu0 0.0
  %5141 = vmatpush2.msra.mxu0 0.0
  %5142 = vmatprep.subr.mxu0 0.0
  %5143 = vmatpush2.msra.mxu0 0.0
  %5144 = vmatprep.subr.mxu0 0.0
  %5145 = vmatpush2.msra.mxu0 0.0
  %5146 = vmatprep.subr.mxu0 0.0
  %5147 = vmatpush2.msra.mxu0 0.0
  %5148 = vmatprep.subr.mxu0 0.0
  %5149 = vmatpush2.msra.mxu0 0.0
  %5150 = vmatprep.subr.mxu0 0.0
  %5151 = vmatpush2.msra.mxu0 0.0
  %5152 = vmatprep.subr.mxu0 0.0
  %5153 = vmatpush2.msra.mxu0 0.0
  %5154 = vmatprep.subr.mxu0 0.0
  %5155 = vmatpush2.msra.mxu0 0.0
  %5156 = vmatprep.subr.mxu0 0.0
  %5157 = vmatpush2.msra.mxu0 0.0
  %5158 = vmatprep.subr.mxu0 0.0
  %5159 = vmatpush2.msra.mxu0 0.0
  %5160 = vmatprep.mubr.f32.mxu0 0.0
  %5161 = vmatmul.mubr.f32.gmra.mxu0 %v3562
  %v5162 = vpop.f32.mrf.mxu0
  %v5163 = vadd.f32 %v5094, %v5162
  %v5164 = vpop.f32.mrf.mxu0
  %5165 = vmatprep.mubr.f32.mxu0 0.0
  %5166 = vmatmul.mubr.f32.gmra.mxu0 %v3565
  %v5167 = vpop.f32.mrf.mxu0
  %v5168 = vadd.f32 %v5094, %v5167
  %v5169 = vpop.f32.mrf.mxu0
  %5170 = vmatprep.mubr.f32.mxu0 0.0
  %5171 = vmatmul.mubr.f32.gmra.mxu0 %v3568
  %v5172 = vpop.f32.mrf.mxu0
  %v5173 = vadd.f32 %v5094, %v5172
  %v5174 = vpop.f32.mrf.mxu0
  %5175 = vmatprep.mubr.f32.mxu0 0.0
  %5176 = vmatmul.mubr.f32.gmra.mxu0 %v3571
  %v5177 = vpop.f32.mrf.mxu0
  %v5178 = vadd.f32 %v5094, %v5177
  %v5179 = vpop.f32.mrf.mxu0
  %5180 = vdwg.mxu0
  %s5181 = scalar_lea.vmem %s3, 576
  %v5182 = vld [vmem:[%s5181] sm:$0xff]
  %v5183 = vld [vmem:[%s5181 + $0x8] sm:$0xff]
  %v5184 = vld [vmem:[%s5181 + $0x10] sm:$0xff]
  %v5185 = vld [vmem:[%s5181 + $0x18] sm:$0xff]
  %5186 = vrot.lane.b32.xlu0 %v3667, 112
  %v5187 = vpop.permute.xlu0 %5186
  %5189 = vmatprep.subr.mxu0 0.0
  %5190 = vmatpush1.msra.mxu0 0.0
  %5191 = vmatprep.subr.mxu0 0.0
  %5192 = vmatpush1.msra.mxu0 0.0
  %5193 = vmatprep.subr.mxu0 0.0
  %5194 = vmatpush1.msra.mxu0 0.0
  %5195 = vmatprep.subr.mxu0 0.0
  %5196 = vmatpush1.msra.mxu0 0.0
  %5197 = vmatprep.subr.mxu0 0.0
  %5198 = vmatpush1.msra.mxu0 0.0
  %5199 = vmatprep.subr.mxu0 0.0
  %5200 = vmatpush1.msra.mxu0 0.0
  %5201 = vmatprep.subr.mxu0 0.0
  %5202 = vmatpush1.msra.mxu0 0.0
  %5203 = vmatprep.subr.mxu0 0.0
  %5204 = vmatpush1.msra.mxu0 0.0
  %5205 = vmatprep.subr.mxu0 0.0
  %5206 = vmatpush1.msra.mxu0 0.0
  %5207 = vmatprep.subr.mxu0 0.0
  %5208 = vmatpush1.msra.mxu0 0.0
  %5209 = vmatprep.subr.mxu0 0.0
  %5210 = vmatpush1.msra.mxu0 0.0
  %5211 = vmatprep.subr.mxu0 0.0
  %5212 = vmatpush1.msra.mxu0 0.0
  %5213 = vmatprep.subr.mxu0 0.0
  %5214 = vmatpush1.msra.mxu0 %v5185
  %5215 = vmatprep.subr.mxu0 0.0
  %5216 = vmatpush1.msra.mxu0 %v5184
  %5217 = vmatprep.subr.mxu0 0.0
  %5218 = vmatpush1.msra.mxu0 %v5183
  %5219 = vmatprep.subr.mxu0 0.0
  %5220 = vmatpush1.msra.mxu0 %v5182
  %5221 = vmatprep.subr.mxu0 0.0
  %5222 = vmatpush2.msra.mxu0 0.0
  %5223 = vmatprep.subr.mxu0 0.0
  %5224 = vmatpush2.msra.mxu0 0.0
  %5225 = vmatprep.subr.mxu0 0.0
  %5226 = vmatpush2.msra.mxu0 0.0
  %5227 = vmatprep.subr.mxu0 0.0
  %5228 = vmatpush2.msra.mxu0 0.0
  %5229 = vmatprep.subr.mxu0 0.0
  %5230 = vmatpush2.msra.mxu0 0.0
  %5231 = vmatprep.subr.mxu0 0.0
  %5232 = vmatpush2.msra.mxu0 0.0
  %5233 = vmatprep.subr.mxu0 0.0
  %5234 = vmatpush2.msra.mxu0 0.0
  %5235 = vmatprep.subr.mxu0 0.0
  %5236 = vmatpush2.msra.mxu0 0.0
  %5237 = vmatprep.subr.mxu0 0.0
  %5238 = vmatpush2.msra.mxu0 0.0
  %5239 = vmatprep.subr.mxu0 0.0
  %5240 = vmatpush2.msra.mxu0 0.0
  %5241 = vmatprep.subr.mxu0 0.0
  %5242 = vmatpush2.msra.mxu0 0.0
  %5243 = vmatprep.subr.mxu0 0.0
  %5244 = vmatpush2.msra.mxu0 0.0
  %5245 = vmatprep.subr.mxu0 0.0
  %5246 = vmatpush2.msra.mxu0 0.0
  %5247 = vmatprep.subr.mxu0 0.0
  %5248 = vmatpush2.msra.mxu0 0.0
  %5249 = vmatprep.subr.mxu0 0.0
  %5250 = vmatpush2.msra.mxu0 0.0
  %5251 = vmatprep.subr.mxu0 0.0
  %5252 = vmatpush2.msra.mxu0 0.0
  %5253 = vmatprep.mubr.f32.mxu0 0.0
  %5254 = vmatmul.mubr.f32.gmra.mxu0 %v3562
  %v5255 = vpop.f32.mrf.mxu0
  %v5256 = vadd.f32 %v5187, %v5255
  %v5257 = vpop.f32.mrf.mxu0
  %5258 = vmatprep.mubr.f32.mxu0 0.0
  %5259 = vmatmul.mubr.f32.gmra.mxu0 %v3565
  %v5260 = vpop.f32.mrf.mxu0
  %v5261 = vadd.f32 %v5187, %v5260
  %v5262 = vpop.f32.mrf.mxu0
  %5263 = vmatprep.mubr.f32.mxu0 0.0
  %5264 = vmatmul.mubr.f32.gmra.mxu0 %v3568
  %v5265 = vpop.f32.mrf.mxu0
  %v5266 = vadd.f32 %v5187, %v5265
  %v5267 = vpop.f32.mrf.mxu0
  %5268 = vmatprep.mubr.f32.mxu0 0.0
  %5269 = vmatmul.mubr.f32.gmra.mxu0 %v3571
  %v5270 = vpop.f32.mrf.mxu0
  %v5271 = vadd.f32 %v5187, %v5270
  %v5272 = vpop.f32.mrf.mxu0
  %5273 = vdwg.mxu0
  %s5274 = scalar_lea.vmem %s3, 704
  %v5275 = vld [vmem:[%s5274] sm:$0xff]
  %v5276 = vld [vmem:[%s5274 + $0x8] sm:$0xff]
  %v5277 = vld [vmem:[%s5274 + $0x10] sm:$0xff]
  %v5278 = vld [vmem:[%s5274 + $0x18] sm:$0xff]
  %5279 = vrot.lane.b32.xlu0 %v3762, 112
  %v5280 = vpop.permute.xlu0 %5279
  %5282 = vmatprep.subr.mxu0 0.0
  %5283 = vmatpush1.msra.mxu0 0.0
  %5284 = vmatprep.subr.mxu0 0.0
  %5285 = vmatpush1.msra.mxu0 0.0
  %5286 = vmatprep.subr.mxu0 0.0
  %5287 = vmatpush1.msra.mxu0 0.0
  %5288 = vmatprep.subr.mxu0 0.0
  %5289 = vmatpush1.msra.mxu0 0.0
  %5290 = vmatprep.subr.mxu0 0.0
  %5291 = vmatpush1.msra.mxu0 0.0
  %5292 = vmatprep.subr.mxu0 0.0
  %5293 = vmatpush1.msra.mxu0 0.0
  %5294 = vmatprep.subr.mxu0 0.0
  %5295 = vmatpush1.msra.mxu0 0.0
  %5296 = vmatprep.subr.mxu0 0.0
  %5297 = vmatpush1.msra.mxu0 0.0
  %5298 = vmatprep.subr.mxu0 0.0
  %5299 = vmatpush1.msra.mxu0 0.0
  %5300 = vmatprep.subr.mxu0 0.0
  %5301 = vmatpush1.msra.mxu0 0.0
  %5302 = vmatprep.subr.mxu0 0.0
  %5303 = vmatpush1.msra.mxu0 0.0
  %5304 = vmatprep.subr.mxu0 0.0
  %5305 = vmatpush1.msra.mxu0 0.0
  %5306 = vmatprep.subr.mxu0 0.0
  %5307 = vmatpush1.msra.mxu0 %v5278
  %5308 = vmatprep.subr.mxu0 0.0
  %5309 = vmatpush1.msra.mxu0 %v5277
  %5310 = vmatprep.subr.mxu0 0.0
  %5311 = vmatpush1.msra.mxu0 %v5276
  %5312 = vmatprep.subr.mxu0 0.0
  %5313 = vmatpush1.msra.mxu0 %v5275
  %5314 = vmatprep.subr.mxu0 0.0
  %5315 = vmatpush2.msra.mxu0 0.0
  %5316 = vmatprep.subr.mxu0 0.0
  %5317 = vmatpush2.msra.mxu0 0.0
  %5318 = vmatprep.subr.mxu0 0.0
  %5319 = vmatpush2.msra.mxu0 0.0
  %5320 = vmatprep.subr.mxu0 0.0
  %5321 = vmatpush2.msra.mxu0 0.0
  %5322 = vmatprep.subr.mxu0 0.0
  %5323 = vmatpush2.msra.mxu0 0.0
  %5324 = vmatprep.subr.mxu0 0.0
  %5325 = vmatpush2.msra.mxu0 0.0
  %5326 = vmatprep.subr.mxu0 0.0
  %5327 = vmatpush2.msra.mxu0 0.0
  %5328 = vmatprep.subr.mxu0 0.0
  %5329 = vmatpush2.msra.mxu0 0.0
  %5330 = vmatprep.subr.mxu0 0.0
  %5331 = vmatpush2.msra.mxu0 0.0
  %5332 = vmatprep.subr.mxu0 0.0
  %5333 = vmatpush2.msra.mxu0 0.0
  %5334 = vmatprep.subr.mxu0 0.0
  %5335 = vmatpush2.msra.mxu0 0.0
  %5336 = vmatprep.subr.mxu0 0.0
  %5337 = vmatpush2.msra.mxu0 0.0
  %5338 = vmatprep.subr.mxu0 0.0
  %5339 = vmatpush2.msra.mxu0 0.0
  %5340 = vmatprep.subr.mxu0 0.0
  %5341 = vmatpush2.msra.mxu0 0.0
  %5342 = vmatprep.subr.mxu0 0.0
  %5343 = vmatpush2.msra.mxu0 0.0
  %5344 = vmatprep.subr.mxu0 0.0
  %5345 = vmatpush2.msra.mxu0 0.0
  %5346 = vmatprep.mubr.f32.mxu0 0.0
  %5347 = vmatmul.mubr.f32.gmra.mxu0 %v3562
  %v5348 = vpop.f32.mrf.mxu0
  %v5349 = vadd.f32 %v5280, %v5348
  %v5350 = vpop.f32.mrf.mxu0
  %5351 = vmatprep.mubr.f32.mxu0 0.0
  %5352 = vmatmul.mubr.f32.gmra.mxu0 %v3565
  %v5353 = vpop.f32.mrf.mxu0
  %v5354 = vadd.f32 %v5280, %v5353
  %v5355 = vpop.f32.mrf.mxu0
  %5356 = vmatprep.mubr.f32.mxu0 0.0
  %5357 = vmatmul.mubr.f32.gmra.mxu0 %v3568
  %v5358 = vpop.f32.mrf.mxu0
  %v5359 = vadd.f32 %v5280, %v5358
  %v5360 = vpop.f32.mrf.mxu0
  %5361 = vmatprep.mubr.f32.mxu0 0.0
  %5362 = vmatmul.mubr.f32.gmra.mxu0 %v3571
  %v5363 = vpop.f32.mrf.mxu0
  %v5364 = vadd.f32 %v5280, %v5363
  %v5365 = vpop.f32.mrf.mxu0
  %5366 = vdwg.mxu0
  %v5368 = vsel %vm553, %v5163, 0
  %v5371 = vsel %vm553, %v5168, 0
  %v5374 = vsel %vm553, %v5256, 0
  %v5377 = vsel %vm553, %v5261, 0
  %5379 = vmatprep.subr.mxu0 0.0
  %5380 = vmatpush1.xpose.msra.mxu0 0.0
  %5381 = vmatprep.subr.mxu0 0.0
  %5382 = vmatpush1.xpose.msra.mxu0 0.0
  %5383 = vmatprep.subr.mxu0 0.0
  %5384 = vmatpush1.xpose.msra.mxu0 0.0
  %5385 = vmatprep.subr.mxu0 0.0
  %5386 = vmatpush1.xpose.msra.mxu0 0.0
  %5387 = vmatprep.subr.mxu0 0.0
  %5388 = vmatpush1.xpose.msra.mxu0 0.0
  %5389 = vmatprep.subr.mxu0 0.0
  %5390 = vmatpush1.xpose.msra.mxu0 0.0
  %5391 = vmatprep.subr.mxu0 0.0
  %5392 = vmatpush1.xpose.msra.mxu0 0.0
  %5393 = vmatprep.subr.mxu0 0.0
  %5394 = vmatpush1.xpose.msra.mxu0 0.0
  %5395 = vmatprep.subr.mxu0 0.0
  %5396 = vmatpush1.xpose.msra.mxu0 0.0
  %5397 = vmatprep.subr.mxu0 0.0
  %5398 = vmatpush1.xpose.msra.mxu0 0.0
  %5399 = vmatprep.subr.mxu0 0.0
  %5400 = vmatpush1.xpose.msra.mxu0 0.0
  %5401 = vmatprep.subr.mxu0 0.0
  %5402 = vmatpush1.xpose.msra.mxu0 0.0
  %5403 = vmatprep.subr.mxu0 0.0
  %5404 = vmatpush1.xpose.msra.mxu0 0.0
  %5405 = vmatprep.subr.mxu0 0.0
  %5406 = vmatpush1.xpose.msra.mxu0 0.0
  %5407 = vmatprep.subr.mxu0 0.0
  %5408 = vmatpush1.xpose.msra.mxu0 %v5377
  %5409 = vmatprep.subr.mxu0 0.0
  %5410 = vmatpush1.xpose.msra.mxu0 %v5374
  %5411 = vmatprep.subr.mxu0 0.0
  %5412 = vmatpush2.xpose.msra.mxu0 0.0
  %5413 = vmatprep.subr.mxu0 0.0
  %5414 = vmatpush2.xpose.msra.mxu0 0.0
  %5415 = vmatprep.subr.mxu0 0.0
  %5416 = vmatpush2.xpose.msra.mxu0 0.0
  %5417 = vmatprep.subr.mxu0 0.0
  %5418 = vmatpush2.xpose.msra.mxu0 0.0
  %5419 = vmatprep.subr.mxu0 0.0
  %5420 = vmatpush2.xpose.msra.mxu0 0.0
  %5421 = vmatprep.subr.mxu0 0.0
  %5422 = vmatpush2.xpose.msra.mxu0 0.0
  %5423 = vmatprep.subr.mxu0 0.0
  %5424 = vmatpush2.xpose.msra.mxu0 0.0
  %5425 = vmatprep.subr.mxu0 0.0
  %5426 = vmatpush2.xpose.msra.mxu0 0.0
  %5427 = vmatprep.subr.mxu0 0.0
  %5428 = vmatpush2.xpose.msra.mxu0 0.0
  %5429 = vmatprep.subr.mxu0 0.0
  %5430 = vmatpush2.xpose.msra.mxu0 0.0
  %5431 = vmatprep.subr.mxu0 0.0
  %5432 = vmatpush2.xpose.msra.mxu0 0.0
  %5433 = vmatprep.subr.mxu0 0.0
  %5434 = vmatpush2.xpose.msra.mxu0 0.0
  %5435 = vmatprep.subr.mxu0 0.0
  %5436 = vmatpush2.xpose.msra.mxu0 0.0
  %5437 = vmatprep.subr.mxu0 0.0
  %5438 = vmatpush2.xpose.msra.mxu0 0.0
  %5439 = vmatprep.subr.mxu0 0.0
  %5440 = vmatpush2.xpose.msra.mxu0 0.0
  %5441 = vmatprep.subr.mxu0 0.0
  %5442 = vmatpush2.xpose.msra.mxu0 0.0
  %5443 = vmatprep.mubr.f32.mxu0 0.0
  %5444 = vmatmul.mubr.f32.gmra.mxu0 %v5368
  %v5445 = vpop.f32.mrf.mxu0
  %v5446 = vadd.f32 0.0, %v5445
  %v5447 = vpop.f32.mrf.mxu0
  %5448 = vmatprep.mubr.f32.mxu0 0.0
  %5449 = vmatmul.mubr.f32.gmra.mxu0 %v5371
  %v5450 = vpop.f32.mrf.mxu0
  %v5451 = vadd.f32 0.0, %v5450
  %v5452 = vpop.f32.mrf.mxu0
  %5453 = vdwg.mxu0
  %v5454 = vsel %vm158, %v5446, -inf
  %5455 = vmax.xlane.f32.xlu0 %v5454
  %v5456 = vpop.xlane.xlu0 %5455
  %v5457 = vsel %vm158, %v5451, -inf
  %5458 = vmax.xlane.f32.xlu0 %v5457
  %v5459 = vpop.xlane.xlu0 %5458
  %v5460 = vsub.f32 %v5446, %v5456
  %v5461 = vsub.f32 %v5451, %v5459
  %v5462 = vmul.f32 %v5460, 1.442695
  %v5463 = vpow.pop %v5462
  %v5464 = vmul.f32 %v5461, 1.442695
  %v5465 = vpow.pop %v5464
  %v5466 = vsel %vm158, %v5463, 0.0
  %5467 = vadd.xlane.f32.xlu0 %v5466
  %v5468 = vpop.xlane.xlu0 %5467
  %v5469 = vsel %vm158, %v5465, 0.0
  %5470 = vadd.xlane.f32.xlu0 %v5469
  %v5471 = vpop.xlane.xlu0 %5470
  %v5472 = vrcp.pop %v5468
  %v5473 = vrcp.pop %v5471
  %v5474 = vmul.f32 %v5463, %v5472
  %v5475 = vmul.f32 %v5465, %v5473
  %v5477 = vsel %vm158, %v5474, 0
  %v5480 = vsel %vm158, %v5475, 0
  %5482 = vmatprep.subr.mxu0 0.0
  %5483 = vmatpush1.msra.mxu0 0.0
  %5484 = vmatprep.subr.mxu0 0.0
  %5485 = vmatpush1.msra.mxu0 0.0
  %5486 = vmatprep.subr.mxu0 0.0
  %5487 = vmatpush1.msra.mxu0 0.0
  %5488 = vmatprep.subr.mxu0 0.0
  %5489 = vmatpush1.msra.mxu0 0.0
  %5490 = vmatprep.subr.mxu0 0.0
  %5491 = vmatpush1.msra.mxu0 0.0
  %5492 = vmatprep.subr.mxu0 0.0
  %5493 = vmatpush1.msra.mxu0 0.0
  %5494 = vmatprep.subr.mxu0 0.0
  %5495 = vmatpush1.msra.mxu0 0.0
  %5496 = vmatprep.subr.mxu0 0.0
  %5497 = vmatpush1.msra.mxu0 0.0
  %5498 = vmatprep.subr.mxu0 0.0
  %5499 = vmatpush1.msra.mxu0 0.0
  %5500 = vmatprep.subr.mxu0 0.0
  %5501 = vmatpush1.msra.mxu0 0.0
  %5502 = vmatprep.subr.mxu0 0.0
  %5503 = vmatpush1.msra.mxu0 0.0
  %5504 = vmatprep.subr.mxu0 0.0
  %5505 = vmatpush1.msra.mxu0 0.0
  %5506 = vmatprep.subr.mxu0 0.0
  %5507 = vmatpush1.msra.mxu0 0.0
  %5508 = vmatprep.subr.mxu0 0.0
  %5509 = vmatpush1.msra.mxu0 0.0
  %5510 = vmatprep.subr.mxu0 0.0
  %5511 = vmatpush1.msra.mxu0 %v5354
  %5512 = vmatprep.subr.mxu0 0.0
  %5513 = vmatpush1.msra.mxu0 %v5349
  %5514 = vmatprep.subr.mxu0 0.0
  %5515 = vmatpush2.msra.mxu0 0.0
  %5516 = vmatprep.subr.mxu0 0.0
  %5517 = vmatpush2.msra.mxu0 0.0
  %5518 = vmatprep.subr.mxu0 0.0
  %5519 = vmatpush2.msra.mxu0 0.0
  %5520 = vmatprep.subr.mxu0 0.0
  %5521 = vmatpush2.msra.mxu0 0.0
  %5522 = vmatprep.subr.mxu0 0.0
  %5523 = vmatpush2.msra.mxu0 0.0
  %5524 = vmatprep.subr.mxu0 0.0
  %5525 = vmatpush2.msra.mxu0 0.0
  %5526 = vmatprep.subr.mxu0 0.0
  %5527 = vmatpush2.msra.mxu0 0.0
  %5528 = vmatprep.subr.mxu0 0.0
  %5529 = vmatpush2.msra.mxu0 0.0
  %5530 = vmatprep.subr.mxu0 0.0
  %5531 = vmatpush2.msra.mxu0 0.0
  %5532 = vmatprep.subr.mxu0 0.0
  %5533 = vmatpush2.msra.mxu0 0.0
  %5534 = vmatprep.subr.mxu0 0.0
  %5535 = vmatpush2.msra.mxu0 0.0
  %5536 = vmatprep.subr.mxu0 0.0
  %5537 = vmatpush2.msra.mxu0 0.0
  %5538 = vmatprep.subr.mxu0 0.0
  %5539 = vmatpush2.msra.mxu0 0.0
  %5540 = vmatprep.subr.mxu0 0.0
  %5541 = vmatpush2.msra.mxu0 0.0
  %5542 = vmatprep.subr.mxu0 0.0
  %5543 = vmatpush2.msra.mxu0 0.0
  %5544 = vmatprep.subr.mxu0 0.0
  %5545 = vmatpush2.msra.mxu0 0.0
  %5546 = vmatprep.mubr.f32.mxu0 0.0
  %5547 = vmatmul.mubr.f32.gmra.mxu0 %v5477
  %v5548 = vpop.f32.mrf.mxu0
  %v5549 = vadd.f32 0.0, %v5548
  %v5550 = vpop.f32.mrf.mxu0
  %5551 = vmatprep.mubr.f32.mxu0 0.0
  %5552 = vmatmul.mubr.f32.gmra.mxu0 %v5480
  %v5553 = vpop.f32.mrf.mxu0
  %v5554 = vadd.f32 0.0, %v5553
  %v5555 = vpop.f32.mrf.mxu0
  %5556 = vdwg.mxu0
  %v5558 = vsel %vm553, %v5173, 0
  %v5561 = vsel %vm553, %v5178, 0
  %v5564 = vsel %vm553, %v5266, 0
  %v5567 = vsel %vm553, %v5271, 0
  %5569 = vmatprep.subr.mxu0 0.0
  %5570 = vmatpush1.xpose.msra.mxu0 0.0
  %5571 = vmatprep.subr.mxu0 0.0
  %5572 = vmatpush1.xpose.msra.mxu0 0.0
  %5573 = vmatprep.subr.mxu0 0.0
  %5574 = vmatpush1.xpose.msra.mxu0 0.0
  %5575 = vmatprep.subr.mxu0 0.0
  %5576 = vmatpush1.xpose.msra.mxu0 0.0
  %5577 = vmatprep.subr.mxu0 0.0
  %5578 = vmatpush1.xpose.msra.mxu0 0.0
  %5579 = vmatprep.subr.mxu0 0.0
  %5580 = vmatpush1.xpose.msra.mxu0 0.0
  %5581 = vmatprep.subr.mxu0 0.0
  %5582 = vmatpush1.xpose.msra.mxu0 0.0
  %5583 = vmatprep.subr.mxu0 0.0
  %5584 = vmatpush1.xpose.msra.mxu0 0.0
  %5585 = vmatprep.subr.mxu0 0.0
  %5586 = vmatpush1.xpose.msra.mxu0 0.0
  %5587 = vmatprep.subr.mxu0 0.0
  %5588 = vmatpush1.xpose.msra.mxu0 0.0
  %5589 = vmatprep.subr.mxu0 0.0
  %5590 = vmatpush1.xpose.msra.mxu0 0.0
  %5591 = vmatprep.subr.mxu0 0.0
  %5592 = vmatpush1.xpose.msra.mxu0 0.0
  %5593 = vmatprep.subr.mxu0 0.0
  %5594 = vmatpush1.xpose.msra.mxu0 0.0
  %5595 = vmatprep.subr.mxu0 0.0
  %5596 = vmatpush1.xpose.msra.mxu0 0.0
  %5597 = vmatprep.subr.mxu0 0.0
  %5598 = vmatpush1.xpose.msra.mxu0 %v5567
  %5599 = vmatprep.subr.mxu0 0.0
  %5600 = vmatpush1.xpose.msra.mxu0 %v5564
  %5601 = vmatprep.subr.mxu0 0.0
  %5602 = vmatpush2.xpose.msra.mxu0 0.0
  %5603 = vmatprep.subr.mxu0 0.0
  %5604 = vmatpush2.xpose.msra.mxu0 0.0
  %5605 = vmatprep.subr.mxu0 0.0
  %5606 = vmatpush2.xpose.msra.mxu0 0.0
  %5607 = vmatprep.subr.mxu0 0.0
  %5608 = vmatpush2.xpose.msra.mxu0 0.0
  %5609 = vmatprep.subr.mxu0 0.0
  %5610 = vmatpush2.xpose.msra.mxu0 0.0
  %5611 = vmatprep.subr.mxu0 0.0
  %5612 = vmatpush2.xpose.msra.mxu0 0.0
  %5613 = vmatprep.subr.mxu0 0.0
  %5614 = vmatpush2.xpose.msra.mxu0 0.0
  %5615 = vmatprep.subr.mxu0 0.0
  %5616 = vmatpush2.xpose.msra.mxu0 0.0
  %5617 = vmatprep.subr.mxu0 0.0
  %5618 = vmatpush2.xpose.msra.mxu0 0.0
  %5619 = vmatprep.subr.mxu0 0.0
  %5620 = vmatpush2.xpose.msra.mxu0 0.0
  %5621 = vmatprep.subr.mxu0 0.0
  %5622 = vmatpush2.xpose.msra.mxu0 0.0
  %5623 = vmatprep.subr.mxu0 0.0
  %5624 = vmatpush2.xpose.msra.mxu0 0.0
  %5625 = vmatprep.subr.mxu0 0.0
  %5626 = vmatpush2.xpose.msra.mxu0 0.0
  %5627 = vmatprep.subr.mxu0 0.0
  %5628 = vmatpush2.xpose.msra.mxu0 0.0
  %5629 = vmatprep.subr.mxu0 0.0
  %5630 = vmatpush2.xpose.msra.mxu0 0.0
  %5631 = vmatprep.subr.mxu0 0.0
  %5632 = vmatpush2.xpose.msra.mxu0 0.0
  %5633 = vmatprep.mubr.f32.mxu0 0.0
  %5634 = vmatmul.mubr.f32.gmra.mxu0 %v5558
  %v5635 = vpop.f32.mrf.mxu0
  %v5636 = vadd.f32 0.0, %v5635
  %v5637 = vpop.f32.mrf.mxu0
  %5638 = vmatprep.mubr.f32.mxu0 0.0
  %5639 = vmatmul.mubr.f32.gmra.mxu0 %v5561
  %v5640 = vpop.f32.mrf.mxu0
  %v5641 = vadd.f32 0.0, %v5640
  %v5642 = vpop.f32.mrf.mxu0
  %5643 = vdwg.mxu0
  %v5644 = vsel %vm158, %v5636, -inf
  %5645 = vmax.xlane.f32.xlu0 %v5644
  %v5646 = vpop.xlane.xlu0 %5645
  %v5647 = vsel %vm158, %v5641, -inf
  %5648 = vmax.xlane.f32.xlu0 %v5647
  %v5649 = vpop.xlane.xlu0 %5648
  %v5650 = vsub.f32 %v5636, %v5646
  %v5651 = vsub.f32 %v5641, %v5649
  %v5652 = vmul.f32 %v5650, 1.442695
  %v5653 = vpow.pop %v5652
  %v5654 = vmul.f32 %v5651, 1.442695
  %v5655 = vpow.pop %v5654
  %v5656 = vsel %vm158, %v5653, 0.0
  %5657 = vadd.xlane.f32.xlu0 %v5656
  %v5658 = vpop.xlane.xlu0 %5657
  %v5659 = vsel %vm158, %v5655, 0.0
  %5660 = vadd.xlane.f32.xlu0 %v5659
  %v5661 = vpop.xlane.xlu0 %5660
  %v5662 = vrcp.pop %v5658
  %v5663 = vrcp.pop %v5661
  %v5664 = vmul.f32 %v5653, %v5662
  %v5665 = vmul.f32 %v5655, %v5663
  %v5667 = vsel %vm158, %v5664, 0
  %v5670 = vsel %vm158, %v5665, 0
  %5672 = vmatprep.subr.mxu0 0.0
  %5673 = vmatpush1.msra.mxu0 0.0
  %5674 = vmatprep.subr.mxu0 0.0
  %5675 = vmatpush1.msra.mxu0 0.0
  %5676 = vmatprep.subr.mxu0 0.0
  %5677 = vmatpush1.msra.mxu0 0.0
  %5678 = vmatprep.subr.mxu0 0.0
  %5679 = vmatpush1.msra.mxu0 0.0
  %5680 = vmatprep.subr.mxu0 0.0
  %5681 = vmatpush1.msra.mxu0 0.0
  %5682 = vmatprep.subr.mxu0 0.0
  %5683 = vmatpush1.msra.mxu0 0.0
  %5684 = vmatprep.subr.mxu0 0.0
  %5685 = vmatpush1.msra.mxu0 0.0
  %5686 = vmatprep.subr.mxu0 0.0
  %5687 = vmatpush1.msra.mxu0 0.0
  %5688 = vmatprep.subr.mxu0 0.0
  %5689 = vmatpush1.msra.mxu0 0.0
  %5690 = vmatprep.subr.mxu0 0.0
  %5691 = vmatpush1.msra.mxu0 0.0
  %5692 = vmatprep.subr.mxu0 0.0
  %5693 = vmatpush1.msra.mxu0 0.0
  %5694 = vmatprep.subr.mxu0 0.0
  %5695 = vmatpush1.msra.mxu0 0.0
  %5696 = vmatprep.subr.mxu0 0.0
  %5697 = vmatpush1.msra.mxu0 0.0
  %5698 = vmatprep.subr.mxu0 0.0
  %5699 = vmatpush1.msra.mxu0 0.0
  %5700 = vmatprep.subr.mxu0 0.0
  %5701 = vmatpush1.msra.mxu0 %v5364
  %5702 = vmatprep.subr.mxu0 0.0
  %5703 = vmatpush1.msra.mxu0 %v5359
  %5704 = vmatprep.subr.mxu0 0.0
  %5705 = vmatpush2.msra.mxu0 0.0
  %5706 = vmatprep.subr.mxu0 0.0
  %5707 = vmatpush2.msra.mxu0 0.0
  %5708 = vmatprep.subr.mxu0 0.0
  %5709 = vmatpush2.msra.mxu0 0.0
  %5710 = vmatprep.subr.mxu0 0.0
  %5711 = vmatpush2.msra.mxu0 0.0
  %5712 = vmatprep.subr.mxu0 0.0
  %5713 = vmatpush2.msra.mxu0 0.0
  %5714 = vmatprep.subr.mxu0 0.0
  %5715 = vmatpush2.msra.mxu0 0.0
  %5716 = vmatprep.subr.mxu0 0.0
  %5717 = vmatpush2.msra.mxu0 0.0
  %5718 = vmatprep.subr.mxu0 0.0
  %5719 = vmatpush2.msra.mxu0 0.0
  %5720 = vmatprep.subr.mxu0 0.0
  %5721 = vmatpush2.msra.mxu0 0.0
  %5722 = vmatprep.subr.mxu0 0.0
  %5723 = vmatpush2.msra.mxu0 0.0
  %5724 = vmatprep.subr.mxu0 0.0
  %5725 = vmatpush2.msra.mxu0 0.0
  %5726 = vmatprep.subr.mxu0 0.0
  %5727 = vmatpush2.msra.mxu0 0.0
  %5728 = vmatprep.subr.mxu0 0.0
  %5729 = vmatpush2.msra.mxu0 0.0
  %5730 = vmatprep.subr.mxu0 0.0
  %5731 = vmatpush2.msra.mxu0 0.0
  %5732 = vmatprep.subr.mxu0 0.0
  %5733 = vmatpush2.msra.mxu0 0.0
  %5734 = vmatprep.subr.mxu0 0.0
  %5735 = vmatpush2.msra.mxu0 0.0
  %5736 = vmatprep.mubr.f32.mxu0 0.0
  %5737 = vmatmul.mubr.f32.gmra.mxu0 %v5667
  %v5738 = vpop.f32.mrf.mxu0
  %v5739 = vadd.f32 0.0, %v5738
  %v5740 = vpop.f32.mrf.mxu0
  %5741 = vmatprep.mubr.f32.mxu0 0.0
  %5742 = vmatmul.mubr.f32.gmra.mxu0 %v5670
  %v5743 = vpop.f32.mrf.mxu0
  %v5744 = vadd.f32 0.0, %v5743
  %v5745 = vpop.f32.mrf.mxu0
  %5746 = vdwg.mxu0
  %s5747 = scalar_lea.vmem %s4, 48
  %v5748 = vld [vmem:[%s5747] sm:$0xff]
  %v5750 = vsel %vm553, %v5549, 0
  %v5753 = vsel %vm553, %v5554, 0
  %v5756 = vsel %vm553, %v5739, 0
  %v5759 = vsel %vm553, %v5744, 0
  %5761 = vmatprep.subr.mxu0 0.0
  %5762 = vmatpush1.msra.mxu0 0.0
  %5763 = vmatprep.subr.mxu0 0.0
  %5764 = vmatpush1.msra.mxu0 0.0
  %5765 = vmatprep.subr.mxu0 0.0
  %5766 = vmatpush1.msra.mxu0 0.0
  %5767 = vmatprep.subr.mxu0 0.0
  %5768 = vmatpush1.msra.mxu0 0.0
  %5769 = vmatprep.subr.mxu0 0.0
  %5770 = vmatpush1.msra.mxu0 0.0
  %5771 = vmatprep.subr.mxu0 0.0
  %5772 = vmatpush1.msra.mxu0 0.0
  %5773 = vmatprep.subr.mxu0 0.0
  %5774 = vmatpush1.msra.mxu0 0.0
  %5775 = vmatprep.subr.mxu0 0.0
  %5776 = vmatpush1.msra.mxu0 0.0
  %5777 = vmatprep.subr.mxu0 0.0
  %5778 = vmatpush1.msra.mxu0 0.0
  %5779 = vmatprep.subr.mxu0 0.0
  %5780 = vmatpush1.msra.mxu0 0.0
  %5781 = vmatprep.subr.mxu0 0.0
  %5782 = vmatpush1.msra.mxu0 0.0
  %5783 = vmatprep.subr.mxu0 0.0
  %5784 = vmatpush1.msra.mxu0 0.0
  %5785 = vmatprep.subr.mxu0 0.0
  %5786 = vmatpush1.msra.mxu0 0.0
  %5787 = vmatprep.subr.mxu0 0.0
  %5788 = vmatpush1.msra.mxu0 0.0
  %5789 = vmatprep.subr.mxu0 0.0
  %5790 = vmatpush1.msra.mxu0 0.0
  %5791 = vmatprep.subr.mxu0 0.0
  %5792 = vmatpush1.msra.mxu0 %v5748
  %5793 = vmatprep.subr.mxu0 0.0
  %5794 = vmatpush2.msra.mxu0 0.0
  %5795 = vmatprep.subr.mxu0 0.0
  %5796 = vmatpush2.msra.mxu0 0.0
  %5797 = vmatprep.subr.mxu0 0.0
  %5798 = vmatpush2.msra.mxu0 0.0
  %5799 = vmatprep.subr.mxu0 0.0
  %5800 = vmatpush2.msra.mxu0 0.0
  %5801 = vmatprep.subr.mxu0 0.0
  %5802 = vmatpush2.msra.mxu0 0.0
  %5803 = vmatprep.subr.mxu0 0.0
  %5804 = vmatpush2.msra.mxu0 0.0
  %5805 = vmatprep.subr.mxu0 0.0
  %5806 = vmatpush2.msra.mxu0 0.0
  %5807 = vmatprep.subr.mxu0 0.0
  %5808 = vmatpush2.msra.mxu0 0.0
  %5809 = vmatprep.subr.mxu0 0.0
  %5810 = vmatpush2.msra.mxu0 0.0
  %5811 = vmatprep.subr.mxu0 0.0
  %5812 = vmatpush2.msra.mxu0 0.0
  %5813 = vmatprep.subr.mxu0 0.0
  %5814 = vmatpush2.msra.mxu0 0.0
  %5815 = vmatprep.subr.mxu0 0.0
  %5816 = vmatpush2.msra.mxu0 0.0
  %5817 = vmatprep.subr.mxu0 0.0
  %5818 = vmatpush2.msra.mxu0 0.0
  %5819 = vmatprep.subr.mxu0 0.0
  %5820 = vmatpush2.msra.mxu0 0.0
  %5821 = vmatprep.subr.mxu0 0.0
  %5822 = vmatpush2.msra.mxu0 0.0
  %5823 = vmatprep.subr.mxu0 0.0
  %5824 = vmatpush2.msra.mxu0 0.0
  %5825 = vmatprep.mubr.f32.mxu0 0.0
  %5826 = vmatmul.mubr.f32.gmra.mxu0 %v5750
  %v5827 = vpop.f32.mrf.mxu0
  %v5828 = vadd.f32 0.0, %v5827
  %v5829 = vpop.f32.mrf.mxu0
  %5830 = vmatprep.mubr.f32.mxu0 0.0
  %5831 = vmatmul.mubr.f32.gmra.mxu0 %v5753
  %v5832 = vpop.f32.mrf.mxu0
  %v5833 = vadd.f32 0.0, %v5832
  %v5834 = vpop.f32.mrf.mxu0
  %5835 = vmatprep.mubr.f32.mxu0 0.0
  %5836 = vmatmul.mubr.f32.gmra.mxu0 %v5756
  %v5837 = vpop.f32.mrf.mxu0
  %v5838 = vadd.f32 0.0, %v5837
  %v5839 = vpop.f32.mrf.mxu0
  %5840 = vmatprep.mubr.f32.mxu0 0.0
  %5841 = vmatmul.mubr.f32.gmra.mxu0 %v5759
  %v5842 = vpop.f32.mrf.mxu0
  %v5843 = vadd.f32 0.0, %v5842
  %v5844 = vpop.f32.mrf.mxu0
  %5845 = vdwg.mxu0
  %v5846 = vadd.f32 %v5070, %v5828
  %v5847 = vadd.f32 %v5075, %v5833
  %v5848 = vadd.f32 %v5080, %v5838
  %v5849 = vadd.f32 %v5085, %v5843
  %s5850 = scalar_lea.vmem %s3, 480
  %v5851 = vld [vmem:[%s5850] sm:$0xff]
  %v5852 = vld [vmem:[%s5850 + $0x8] sm:$0xff]
  %v5853 = vld [vmem:[%s5850 + $0x10] sm:$0xff]
  %v5854 = vld [vmem:[%s5850 + $0x18] sm:$0xff]
  %5855 = vrot.lane.b32.xlu0 %v3560, 104
  %v5856 = vpop.permute.xlu0 %5855
  %5858 = vmatprep.subr.mxu0 0.0
  %5859 = vmatpush1.msra.mxu0 0.0
  %5860 = vmatprep.subr.mxu0 0.0
  %5861 = vmatpush1.msra.mxu0 0.0
  %5862 = vmatprep.subr.mxu0 0.0
  %5863 = vmatpush1.msra.mxu0 0.0
  %5864 = vmatprep.subr.mxu0 0.0
  %5865 = vmatpush1.msra.mxu0 0.0
  %5866 = vmatprep.subr.mxu0 0.0
  %5867 = vmatpush1.msra.mxu0 0.0
  %5868 = vmatprep.subr.mxu0 0.0
  %5869 = vmatpush1.msra.mxu0 0.0
  %5870 = vmatprep.subr.mxu0 0.0
  %5871 = vmatpush1.msra.mxu0 0.0
  %5872 = vmatprep.subr.mxu0 0.0
  %5873 = vmatpush1.msra.mxu0 0.0
  %5874 = vmatprep.subr.mxu0 0.0
  %5875 = vmatpush1.msra.mxu0 0.0
  %5876 = vmatprep.subr.mxu0 0.0
  %5877 = vmatpush1.msra.mxu0 0.0
  %5878 = vmatprep.subr.mxu0 0.0
  %5879 = vmatpush1.msra.mxu0 0.0
  %5880 = vmatprep.subr.mxu0 0.0
  %5881 = vmatpush1.msra.mxu0 0.0
  %5882 = vmatprep.subr.mxu0 0.0
  %5883 = vmatpush1.msra.mxu0 %v5854
  %5884 = vmatprep.subr.mxu0 0.0
  %5885 = vmatpush1.msra.mxu0 %v5853
  %5886 = vmatprep.subr.mxu0 0.0
  %5887 = vmatpush1.msra.mxu0 %v5852
  %5888 = vmatprep.subr.mxu0 0.0
  %5889 = vmatpush1.msra.mxu0 %v5851
  %5890 = vmatprep.subr.mxu0 0.0
  %5891 = vmatpush2.msra.mxu0 0.0
  %5892 = vmatprep.subr.mxu0 0.0
  %5893 = vmatpush2.msra.mxu0 0.0
  %5894 = vmatprep.subr.mxu0 0.0
  %5895 = vmatpush2.msra.mxu0 0.0
  %5896 = vmatprep.subr.mxu0 0.0
  %5897 = vmatpush2.msra.mxu0 0.0
  %5898 = vmatprep.subr.mxu0 0.0
  %5899 = vmatpush2.msra.mxu0 0.0
  %5900 = vmatprep.subr.mxu0 0.0
  %5901 = vmatpush2.msra.mxu0 0.0
  %5902 = vmatprep.subr.mxu0 0.0
  %5903 = vmatpush2.msra.mxu0 0.0
  %5904 = vmatprep.subr.mxu0 0.0
  %5905 = vmatpush2.msra.mxu0 0.0
  %5906 = vmatprep.subr.mxu0 0.0
  %5907 = vmatpush2.msra.mxu0 0.0
  %5908 = vmatprep.subr.mxu0 0.0
  %5909 = vmatpush2.msra.mxu0 0.0
  %5910 = vmatprep.subr.mxu0 0.0
  %5911 = vmatpush2.msra.mxu0 0.0
  %5912 = vmatprep.subr.mxu0 0.0
  %5913 = vmatpush2.msra.mxu0 0.0
  %5914 = vmatprep.subr.mxu0 0.0
  %5915 = vmatpush2.msra.mxu0 0.0
  %5916 = vmatprep.subr.mxu0 0.0
  %5917 = vmatpush2.msra.mxu0 0.0
  %5918 = vmatprep.subr.mxu0 0.0
  %5919 = vmatpush2.msra.mxu0 0.0
  %5920 = vmatprep.subr.mxu0 0.0
  %5921 = vmatpush2.msra.mxu0 0.0
  %5922 = vmatprep.mubr.f32.mxu0 0.0
  %5923 = vmatmul.mubr.f32.gmra.mxu0 %v3562
  %v5924 = vpop.f32.mrf.mxu0
  %v5925 = vadd.f32 %v5856, %v5924
  %v5926 = vpop.f32.mrf.mxu0
  %5927 = vmatprep.mubr.f32.mxu0 0.0
  %5928 = vmatmul.mubr.f32.gmra.mxu0 %v3565
  %v5929 = vpop.f32.mrf.mxu0
  %v5930 = vadd.f32 %v5856, %v5929
  %v5931 = vpop.f32.mrf.mxu0
  %5932 = vmatprep.mubr.f32.mxu0 0.0
  %5933 = vmatmul.mubr.f32.gmra.mxu0 %v3568
  %v5934 = vpop.f32.mrf.mxu0
  %v5935 = vadd.f32 %v5856, %v5934
  %v5936 = vpop.f32.mrf.mxu0
  %5937 = vmatprep.mubr.f32.mxu0 0.0
  %5938 = vmatmul.mubr.f32.gmra.mxu0 %v3571
  %v5939 = vpop.f32.mrf.mxu0
  %v5940 = vadd.f32 %v5856, %v5939
  %v5941 = vpop.f32.mrf.mxu0
  %5942 = vdwg.mxu0
  %s5943 = scalar_lea.vmem %s3, 608
  %v5944 = vld [vmem:[%s5943] sm:$0xff]
  %v5945 = vld [vmem:[%s5943 + $0x8] sm:$0xff]
  %v5946 = vld [vmem:[%s5943 + $0x10] sm:$0xff]
  %v5947 = vld [vmem:[%s5943 + $0x18] sm:$0xff]
  %5948 = vrot.lane.b32.xlu0 %v3667, 104
  %v5949 = vpop.permute.xlu0 %5948
  %5951 = vmatprep.subr.mxu0 0.0
  %5952 = vmatpush1.msra.mxu0 0.0
  %5953 = vmatprep.subr.mxu0 0.0
  %5954 = vmatpush1.msra.mxu0 0.0
  %5955 = vmatprep.subr.mxu0 0.0
  %5956 = vmatpush1.msra.mxu0 0.0
  %5957 = vmatprep.subr.mxu0 0.0
  %5958 = vmatpush1.msra.mxu0 0.0
  %5959 = vmatprep.subr.mxu0 0.0
  %5960 = vmatpush1.msra.mxu0 0.0
  %5961 = vmatprep.subr.mxu0 0.0
  %5962 = vmatpush1.msra.mxu0 0.0
  %5963 = vmatprep.subr.mxu0 0.0
  %5964 = vmatpush1.msra.mxu0 0.0
  %5965 = vmatprep.subr.mxu0 0.0
  %5966 = vmatpush1.msra.mxu0 0.0
  %5967 = vmatprep.subr.mxu0 0.0
  %5968 = vmatpush1.msra.mxu0 0.0
  %5969 = vmatprep.subr.mxu0 0.0
  %5970 = vmatpush1.msra.mxu0 0.0
  %5971 = vmatprep.subr.mxu0 0.0
  %5972 = vmatpush1.msra.mxu0 0.0
  %5973 = vmatprep.subr.mxu0 0.0
  %5974 = vmatpush1.msra.mxu0 0.0
  %5975 = vmatprep.subr.mxu0 0.0
  %5976 = vmatpush1.msra.mxu0 %v5947
  %5977 = vmatprep.subr.mxu0 0.0
  %5978 = vmatpush1.msra.mxu0 %v5946
  %5979 = vmatprep.subr.mxu0 0.0
  %5980 = vmatpush1.msra.mxu0 %v5945
  %5981 = vmatprep.subr.mxu0 0.0
  %5982 = vmatpush1.msra.mxu0 %v5944
  %5983 = vmatprep.subr.mxu0 0.0
  %5984 = vmatpush2.msra.mxu0 0.0
  %5985 = vmatprep.subr.mxu0 0.0
  %5986 = vmatpush2.msra.mxu0 0.0
  %5987 = vmatprep.subr.mxu0 0.0
  %5988 = vmatpush2.msra.mxu0 0.0
  %5989 = vmatprep.subr.mxu0 0.0
  %5990 = vmatpush2.msra.mxu0 0.0
  %5991 = vmatprep.subr.mxu0 0.0
  %5992 = vmatpush2.msra.mxu0 0.0
  %5993 = vmatprep.subr.mxu0 0.0
  %5994 = vmatpush2.msra.mxu0 0.0
  %5995 = vmatprep.subr.mxu0 0.0
  %5996 = vmatpush2.msra.mxu0 0.0
  %5997 = vmatprep.subr.mxu0 0.0
  %5998 = vmatpush2.msra.mxu0 0.0
  %5999 = vmatprep.subr.mxu0 0.0
  %6000 = vmatpush2.msra.mxu0 0.0
  %6001 = vmatprep.subr.mxu0 0.0
  %6002 = vmatpush2.msra.mxu0 0.0
  %6003 = vmatprep.subr.mxu0 0.0
  %6004 = vmatpush2.msra.mxu0 0.0
  %6005 = vmatprep.subr.mxu0 0.0
  %6006 = vmatpush2.msra.mxu0 0.0
  %6007 = vmatprep.subr.mxu0 0.0
  %6008 = vmatpush2.msra.mxu0 0.0
  %6009 = vmatprep.subr.mxu0 0.0
  %6010 = vmatpush2.msra.mxu0 0.0
  %6011 = vmatprep.subr.mxu0 0.0
  %6012 = vmatpush2.msra.mxu0 0.0
  %6013 = vmatprep.subr.mxu0 0.0
  %6014 = vmatpush2.msra.mxu0 0.0
  %6015 = vmatprep.mubr.f32.mxu0 0.0
  %6016 = vmatmul.mubr.f32.gmra.mxu0 %v3562
  %v6017 = vpop.f32.mrf.mxu0
  %v6018 = vadd.f32 %v5949, %v6017
  %v6019 = vpop.f32.mrf.mxu0
  %6020 = vmatprep.mubr.f32.mxu0 0.0
  %6021 = vmatmul.mubr.f32.gmra.mxu0 %v3565
  %v6022 = vpop.f32.mrf.mxu0
  %v6023 = vadd.f32 %v5949, %v6022
  %v6024 = vpop.f32.mrf.mxu0
  %6025 = vmatprep.mubr.f32.mxu0 0.0
  %6026 = vmatmul.mubr.f32.gmra.mxu0 %v3568
  %v6027 = vpop.f32.mrf.mxu0
  %v6028 = vadd.f32 %v5949, %v6027
  %v6029 = vpop.f32.mrf.mxu0
  %6030 = vmatprep.mubr.f32.mxu0 0.0
  %6031 = vmatmul.mubr.f32.gmra.mxu0 %v3571
  %v6032 = vpop.f32.mrf.mxu0
  %v6033 = vadd.f32 %v5949, %v6032
  %v6034 = vpop.f32.mrf.mxu0
  %6035 = vdwg.mxu0
  %s6036 = scalar_lea.vmem %s3, 736
  %v6037 = vld [vmem:[%s6036] sm:$0xff]
  %v6038 = vld [vmem:[%s6036 + $0x8] sm:$0xff]
  %v6039 = vld [vmem:[%s6036 + $0x10] sm:$0xff]
  %v6040 = vld [vmem:[%s6036 + $0x18] sm:$0xff]
  %6041 = vrot.lane.b32.xlu0 %v3762, 104
  %v6042 = vpop.permute.xlu0 %6041
  %6044 = vmatprep.subr.mxu0 0.0
  %6045 = vmatpush1.msra.mxu0 0.0
  %6046 = vmatprep.subr.mxu0 0.0
  %6047 = vmatpush1.msra.mxu0 0.0
  %6048 = vmatprep.subr.mxu0 0.0
  %6049 = vmatpush1.msra.mxu0 0.0
  %6050 = vmatprep.subr.mxu0 0.0
  %6051 = vmatpush1.msra.mxu0 0.0
  %6052 = vmatprep.subr.mxu0 0.0
  %6053 = vmatpush1.msra.mxu0 0.0
  %6054 = vmatprep.subr.mxu0 0.0
  %6055 = vmatpush1.msra.mxu0 0.0
  %6056 = vmatprep.subr.mxu0 0.0
  %6057 = vmatpush1.msra.mxu0 0.0
  %6058 = vmatprep.subr.mxu0 0.0
  %6059 = vmatpush1.msra.mxu0 0.0
  %6060 = vmatprep.subr.mxu0 0.0
  %6061 = vmatpush1.msra.mxu0 0.0
  %6062 = vmatprep.subr.mxu0 0.0
  %6063 = vmatpush1.msra.mxu0 0.0
  %6064 = vmatprep.subr.mxu0 0.0
  %6065 = vmatpush1.msra.mxu0 0.0
  %6066 = vmatprep.subr.mxu0 0.0
  %6067 = vmatpush1.msra.mxu0 0.0
  %6068 = vmatprep.subr.mxu0 0.0
  %6069 = vmatpush1.msra.mxu0 %v6040
  %6070 = vmatprep.subr.mxu0 0.0
  %6071 = vmatpush1.msra.mxu0 %v6039
  %6072 = vmatprep.subr.mxu0 0.0
  %6073 = vmatpush1.msra.mxu0 %v6038
  %6074 = vmatprep.subr.mxu0 0.0
  %6075 = vmatpush1.msra.mxu0 %v6037
  %6076 = vmatprep.subr.mxu0 0.0
  %6077 = vmatpush2.msra.mxu0 0.0
  %6078 = vmatprep.subr.mxu0 0.0
  %6079 = vmatpush2.msra.mxu0 0.0
  %6080 = vmatprep.subr.mxu0 0.0
  %6081 = vmatpush2.msra.mxu0 0.0
  %6082 = vmatprep.subr.mxu0 0.0
  %6083 = vmatpush2.msra.mxu0 0.0
  %6084 = vmatprep.subr.mxu0 0.0
  %6085 = vmatpush2.msra.mxu0 0.0
  %6086 = vmatprep.subr.mxu0 0.0
  %6087 = vmatpush2.msra.mxu0 0.0
  %6088 = vmatprep.subr.mxu0 0.0
  %6089 = vmatpush2.msra.mxu0 0.0
  %6090 = vmatprep.subr.mxu0 0.0
  %6091 = vmatpush2.msra.mxu0 0.0
  %6092 = vmatprep.subr.mxu0 0.0
  %6093 = vmatpush2.msra.mxu0 0.0
  %6094 = vmatprep.subr.mxu0 0.0
  %6095 = vmatpush2.msra.mxu0 0.0
  %6096 = vmatprep.subr.mxu0 0.0
  %6097 = vmatpush2.msra.mxu0 0.0
  %6098 = vmatprep.subr.mxu0 0.0
  %6099 = vmatpush2.msra.mxu0 0.0
  %6100 = vmatprep.subr.mxu0 0.0
  %6101 = vmatpush2.msra.mxu0 0.0
  %6102 = vmatprep.subr.mxu0 0.0
  %6103 = vmatpush2.msra.mxu0 0.0
  %6104 = vmatprep.subr.mxu0 0.0
  %6105 = vmatpush2.msra.mxu0 0.0
  %6106 = vmatprep.subr.mxu0 0.0
  %6107 = vmatpush2.msra.mxu0 0.0
  %6108 = vmatprep.mubr.f32.mxu0 0.0
  %6109 = vmatmul.mubr.f32.gmra.mxu0 %v3562
  %v6110 = vpop.f32.mrf.mxu0
  %v6111 = vadd.f32 %v6042, %v6110
  %v6112 = vpop.f32.mrf.mxu0
  %6113 = vmatprep.mubr.f32.mxu0 0.0
  %6114 = vmatmul.mubr.f32.gmra.mxu0 %v3565
  %v6115 = vpop.f32.mrf.mxu0
  %v6116 = vadd.f32 %v6042, %v6115
  %v6117 = vpop.f32.mrf.mxu0
  %6118 = vmatprep.mubr.f32.mxu0 0.0
  %6119 = vmatmul.mubr.f32.gmra.mxu0 %v3568
  %v6120 = vpop.f32.mrf.mxu0
  %v6121 = vadd.f32 %v6042, %v6120
  %v6122 = vpop.f32.mrf.mxu0
  %6123 = vmatprep.mubr.f32.mxu0 0.0
  %6124 = vmatmul.mubr.f32.gmra.mxu0 %v3571
  %v6125 = vpop.f32.mrf.mxu0
  %v6126 = vadd.f32 %v6042, %v6125
  %v6127 = vpop.f32.mrf.mxu0
  %6128 = vdwg.mxu0
  %v6130 = vsel %vm553, %v5925, 0
  %v6133 = vsel %vm553, %v5930, 0
  %v6136 = vsel %vm553, %v6018, 0
  %v6139 = vsel %vm553, %v6023, 0
  %6141 = vmatprep.subr.mxu0 0.0
  %6142 = vmatpush1.xpose.msra.mxu0 0.0
  %6143 = vmatprep.subr.mxu0 0.0
  %6144 = vmatpush1.xpose.msra.mxu0 0.0
  %6145 = vmatprep.subr.mxu0 0.0
  %6146 = vmatpush1.xpose.msra.mxu0 0.0
  %6147 = vmatprep.subr.mxu0 0.0
  %6148 = vmatpush1.xpose.msra.mxu0 0.0
  %6149 = vmatprep.subr.mxu0 0.0
  %6150 = vmatpush1.xpose.msra.mxu0 0.0
  %6151 = vmatprep.subr.mxu0 0.0
  %6152 = vmatpush1.xpose.msra.mxu0 0.0
  %6153 = vmatprep.subr.mxu0 0.0
  %6154 = vmatpush1.xpose.msra.mxu0 0.0
  %6155 = vmatprep.subr.mxu0 0.0
  %6156 = vmatpush1.xpose.msra.mxu0 0.0
  %6157 = vmatprep.subr.mxu0 0.0
  %6158 = vmatpush1.xpose.msra.mxu0 0.0
  %6159 = vmatprep.subr.mxu0 0.0
  %6160 = vmatpush1.xpose.msra.mxu0 0.0
  %6161 = vmatprep.subr.mxu0 0.0
  %6162 = vmatpush1.xpose.msra.mxu0 0.0
  %6163 = vmatprep.subr.mxu0 0.0
  %6164 = vmatpush1.xpose.msra.mxu0 0.0
  %6165 = vmatprep.subr.mxu0 0.0
  %6166 = vmatpush1.xpose.msra.mxu0 0.0
  %6167 = vmatprep.subr.mxu0 0.0
  %6168 = vmatpush1.xpose.msra.mxu0 0.0
  %6169 = vmatprep.subr.mxu0 0.0
  %6170 = vmatpush1.xpose.msra.mxu0 %v6139
  %6171 = vmatprep.subr.mxu0 0.0
  %6172 = vmatpush1.xpose.msra.mxu0 %v6136
  %6173 = vmatprep.subr.mxu0 0.0
  %6174 = vmatpush2.xpose.msra.mxu0 0.0
  %6175 = vmatprep.subr.mxu0 0.0
  %6176 = vmatpush2.xpose.msra.mxu0 0.0
  %6177 = vmatprep.subr.mxu0 0.0
  %6178 = vmatpush2.xpose.msra.mxu0 0.0
  %6179 = vmatprep.subr.mxu0 0.0
  %6180 = vmatpush2.xpose.msra.mxu0 0.0
  %6181 = vmatprep.subr.mxu0 0.0
  %6182 = vmatpush2.xpose.msra.mxu0 0.0
  %6183 = vmatprep.subr.mxu0 0.0
  %6184 = vmatpush2.xpose.msra.mxu0 0.0
  %6185 = vmatprep.subr.mxu0 0.0
  %6186 = vmatpush2.xpose.msra.mxu0 0.0
  %6187 = vmatprep.subr.mxu0 0.0
  %6188 = vmatpush2.xpose.msra.mxu0 0.0
  %6189 = vmatprep.subr.mxu0 0.0
  %6190 = vmatpush2.xpose.msra.mxu0 0.0
  %6191 = vmatprep.subr.mxu0 0.0
  %6192 = vmatpush2.xpose.msra.mxu0 0.0
  %6193 = vmatprep.subr.mxu0 0.0
  %6194 = vmatpush2.xpose.msra.mxu0 0.0
  %6195 = vmatprep.subr.mxu0 0.0
  %6196 = vmatpush2.xpose.msra.mxu0 0.0
  %6197 = vmatprep.subr.mxu0 0.0
  %6198 = vmatpush2.xpose.msra.mxu0 0.0
  %6199 = vmatprep.subr.mxu0 0.0
  %6200 = vmatpush2.xpose.msra.mxu0 0.0
  %6201 = vmatprep.subr.mxu0 0.0
  %6202 = vmatpush2.xpose.msra.mxu0 0.0
  %6203 = vmatprep.subr.mxu0 0.0
  %6204 = vmatpush2.xpose.msra.mxu0 0.0
  %6205 = vmatprep.mubr.f32.mxu0 0.0
  %6206 = vmatmul.mubr.f32.gmra.mxu0 %v6130
  %v6207 = vpop.f32.mrf.mxu0
  %v6208 = vadd.f32 0.0, %v6207
  %v6209 = vpop.f32.mrf.mxu0
  %6210 = vmatprep.mubr.f32.mxu0 0.0
  %6211 = vmatmul.mubr.f32.gmra.mxu0 %v6133
  %v6212 = vpop.f32.mrf.mxu0
  %v6213 = vadd.f32 0.0, %v6212
  %v6214 = vpop.f32.mrf.mxu0
  %6215 = vdwg.mxu0
  %v6216 = vsel %vm158, %v6208, -inf
  %6217 = vmax.xlane.f32.xlu0 %v6216
  %v6218 = vpop.xlane.xlu0 %6217
  %v6219 = vsel %vm158, %v6213, -inf
  %6220 = vmax.xlane.f32.xlu0 %v6219
  %v6221 = vpop.xlane.xlu0 %6220
  %v6222 = vsub.f32 %v6208, %v6218
  %v6223 = vsub.f32 %v6213, %v6221
  %v6224 = vmul.f32 %v6222, 1.442695
  %v6225 = vpow.pop %v6224
  %v6226 = vmul.f32 %v6223, 1.442695
  %v6227 = vpow.pop %v6226
  %v6228 = vsel %vm158, %v6225, 0.0
  %6229 = vadd.xlane.f32.xlu0 %v6228
  %v6230 = vpop.xlane.xlu0 %6229
  %v6231 = vsel %vm158, %v6227, 0.0
  %6232 = vadd.xlane.f32.xlu0 %v6231
  %v6233 = vpop.xlane.xlu0 %6232
  %v6234 = vrcp.pop %v6230
  %v6235 = vrcp.pop %v6233
  %v6236 = vmul.f32 %v6225, %v6234
  %v6237 = vmul.f32 %v6227, %v6235
  %v6239 = vsel %vm158, %v6236, 0
  %v6242 = vsel %vm158, %v6237, 0
  %6244 = vmatprep.subr.mxu0 0.0
  %6245 = vmatpush1.msra.mxu0 0.0
  %6246 = vmatprep.subr.mxu0 0.0
  %6247 = vmatpush1.msra.mxu0 0.0
  %6248 = vmatprep.subr.mxu0 0.0
  %6249 = vmatpush1.msra.mxu0 0.0
  %6250 = vmatprep.subr.mxu0 0.0
  %6251 = vmatpush1.msra.mxu0 0.0
  %6252 = vmatprep.subr.mxu0 0.0
  %6253 = vmatpush1.msra.mxu0 0.0
  %6254 = vmatprep.subr.mxu0 0.0
  %6255 = vmatpush1.msra.mxu0 0.0
  %6256 = vmatprep.subr.mxu0 0.0
  %6257 = vmatpush1.msra.mxu0 0.0
  %6258 = vmatprep.subr.mxu0 0.0
  %6259 = vmatpush1.msra.mxu0 0.0
  %6260 = vmatprep.subr.mxu0 0.0
  %6261 = vmatpush1.msra.mxu0 0.0
  %6262 = vmatprep.subr.mxu0 0.0
  %6263 = vmatpush1.msra.mxu0 0.0
  %6264 = vmatprep.subr.mxu0 0.0
  %6265 = vmatpush1.msra.mxu0 0.0
  %6266 = vmatprep.subr.mxu0 0.0
  %6267 = vmatpush1.msra.mxu0 0.0
  %6268 = vmatprep.subr.mxu0 0.0
  %6269 = vmatpush1.msra.mxu0 0.0
  %6270 = vmatprep.subr.mxu0 0.0
  %6271 = vmatpush1.msra.mxu0 0.0
  %6272 = vmatprep.subr.mxu0 0.0
  %6273 = vmatpush1.msra.mxu0 %v6116
  %6274 = vmatprep.subr.mxu0 0.0
  %6275 = vmatpush1.msra.mxu0 %v6111
  %6276 = vmatprep.subr.mxu0 0.0
  %6277 = vmatpush2.msra.mxu0 0.0
  %6278 = vmatprep.subr.mxu0 0.0
  %6279 = vmatpush2.msra.mxu0 0.0
  %6280 = vmatprep.subr.mxu0 0.0
  %6281 = vmatpush2.msra.mxu0 0.0
  %6282 = vmatprep.subr.mxu0 0.0
  %6283 = vmatpush2.msra.mxu0 0.0
  %6284 = vmatprep.subr.mxu0 0.0
  %6285 = vmatpush2.msra.mxu0 0.0
  %6286 = vmatprep.subr.mxu0 0.0
  %6287 = vmatpush2.msra.mxu0 0.0
  %6288 = vmatprep.subr.mxu0 0.0
  %6289 = vmatpush2.msra.mxu0 0.0
  %6290 = vmatprep.subr.mxu0 0.0
  %6291 = vmatpush2.msra.mxu0 0.0
  %6292 = vmatprep.subr.mxu0 0.0
  %6293 = vmatpush2.msra.mxu0 0.0
  %6294 = vmatprep.subr.mxu0 0.0
  %6295 = vmatpush2.msra.mxu0 0.0
  %6296 = vmatprep.subr.mxu0 0.0
  %6297 = vmatpush2.msra.mxu0 0.0
  %6298 = vmatprep.subr.mxu0 0.0
  %6299 = vmatpush2.msra.mxu0 0.0
  %6300 = vmatprep.subr.mxu0 0.0
  %6301 = vmatpush2.msra.mxu0 0.0
  %6302 = vmatprep.subr.mxu0 0.0
  %6303 = vmatpush2.msra.mxu0 0.0
  %6304 = vmatprep.subr.mxu0 0.0
  %6305 = vmatpush2.msra.mxu0 0.0
  %6306 = vmatprep.subr.mxu0 0.0
  %6307 = vmatpush2.msra.mxu0 0.0
  %6308 = vmatprep.mubr.f32.mxu0 0.0
  %6309 = vmatmul.mubr.f32.gmra.mxu0 %v6239
  %v6310 = vpop.f32.mrf.mxu0
  %v6311 = vadd.f32 0.0, %v6310
  %v6312 = vpop.f32.mrf.mxu0
  %6313 = vmatprep.mubr.f32.mxu0 0.0
  %6314 = vmatmul.mubr.f32.gmra.mxu0 %v6242
  %v6315 = vpop.f32.mrf.mxu0
  %v6316 = vadd.f32 0.0, %v6315
  %v6317 = vpop.f32.mrf.mxu0
  %6318 = vdwg.mxu0
  %v6320 = vsel %vm553, %v5935, 0
  %v6323 = vsel %vm553, %v5940, 0
  %v6326 = vsel %vm553, %v6028, 0
  %v6329 = vsel %vm553, %v6033, 0
  %6331 = vmatprep.subr.mxu0 0.0
  %6332 = vmatpush1.xpose.msra.mxu0 0.0
  %6333 = vmatprep.subr.mxu0 0.0
  %6334 = vmatpush1.xpose.msra.mxu0 0.0
  %6335 = vmatprep.subr.mxu0 0.0
  %6336 = vmatpush1.xpose.msra.mxu0 0.0
  %6337 = vmatprep.subr.mxu0 0.0
  %6338 = vmatpush1.xpose.msra.mxu0 0.0
  %6339 = vmatprep.subr.mxu0 0.0
  %6340 = vmatpush1.xpose.msra.mxu0 0.0
  %6341 = vmatprep.subr.mxu0 0.0
  %6342 = vmatpush1.xpose.msra.mxu0 0.0
  %6343 = vmatprep.subr.mxu0 0.0
  %6344 = vmatpush1.xpose.msra.mxu0 0.0
  %6345 = vmatprep.subr.mxu0 0.0
  %6346 = vmatpush1.xpose.msra.mxu0 0.0
  %6347 = vmatprep.subr.mxu0 0.0
  %6348 = vmatpush1.xpose.msra.mxu0 0.0
  %6349 = vmatprep.subr.mxu0 0.0
  %6350 = vmatpush1.xpose.msra.mxu0 0.0
  %6351 = vmatprep.subr.mxu0 0.0
  %6352 = vmatpush1.xpose.msra.mxu0 0.0
  %6353 = vmatprep.subr.mxu0 0.0
  %6354 = vmatpush1.xpose.msra.mxu0 0.0
  %6355 = vmatprep.subr.mxu0 0.0
  %6356 = vmatpush1.xpose.msra.mxu0 0.0
  %6357 = vmatprep.subr.mxu0 0.0
  %6358 = vmatpush1.xpose.msra.mxu0 0.0
  %6359 = vmatprep.subr.mxu0 0.0
  %6360 = vmatpush1.xpose.msra.mxu0 %v6329
  %6361 = vmatprep.subr.mxu0 0.0
  %6362 = vmatpush1.xpose.msra.mxu0 %v6326
  %6363 = vmatprep.subr.mxu0 0.0
  %6364 = vmatpush2.xpose.msra.mxu0 0.0
  %6365 = vmatprep.subr.mxu0 0.0
  %6366 = vmatpush2.xpose.msra.mxu0 0.0
  %6367 = vmatprep.subr.mxu0 0.0
  %6368 = vmatpush2.xpose.msra.mxu0 0.0
  %6369 = vmatprep.subr.mxu0 0.0
  %6370 = vmatpush2.xpose.msra.mxu0 0.0
  %6371 = vmatprep.subr.mxu0 0.0
  %6372 = vmatpush2.xpose.msra.mxu0 0.0
  %6373 = vmatprep.subr.mxu0 0.0
  %6374 = vmatpush2.xpose.msra.mxu0 0.0
  %6375 = vmatprep.subr.mxu0 0.0
  %6376 = vmatpush2.xpose.msra.mxu0 0.0
  %6377 = vmatprep.subr.mxu0 0.0
  %6378 = vmatpush2.xpose.msra.mxu0 0.0
  %6379 = vmatprep.subr.mxu0 0.0
  %6380 = vmatpush2.xpose.msra.mxu0 0.0
  %6381 = vmatprep.subr.mxu0 0.0
  %6382 = vmatpush2.xpose.msra.mxu0 0.0
  %6383 = vmatprep.subr.mxu0 0.0
  %6384 = vmatpush2.xpose.msra.mxu0 0.0
  %6385 = vmatprep.subr.mxu0 0.0
  %6386 = vmatpush2.xpose.msra.mxu0 0.0
  %6387 = vmatprep.subr.mxu0 0.0
  %6388 = vmatpush2.xpose.msra.mxu0 0.0
  %6389 = vmatprep.subr.mxu0 0.0
  %6390 = vmatpush2.xpose.msra.mxu0 0.0
  %6391 = vmatprep.subr.mxu0 0.0
  %6392 = vmatpush2.xpose.msra.mxu0 0.0
  %6393 = vmatprep.subr.mxu0 0.0
  %6394 = vmatpush2.xpose.msra.mxu0 0.0
  %6395 = vmatprep.mubr.f32.mxu0 0.0
  %6396 = vmatmul.mubr.f32.gmra.mxu0 %v6320
  %v6397 = vpop.f32.mrf.mxu0
  %v6398 = vadd.f32 0.0, %v6397
  %v6399 = vpop.f32.mrf.mxu0
  %6400 = vmatprep.mubr.f32.mxu0 0.0
  %6401 = vmatmul.mubr.f32.gmra.mxu0 %v6323
  %v6402 = vpop.f32.mrf.mxu0
  %v6403 = vadd.f32 0.0, %v6402
  %v6404 = vpop.f32.mrf.mxu0
  %6405 = vdwg.mxu0
  %v6406 = vsel %vm158, %v6398, -inf
  %6407 = vmax.xlane.f32.xlu0 %v6406
  %v6408 = vpop.xlane.xlu0 %6407
  %v6409 = vsel %vm158, %v6403, -inf
  %6410 = vmax.xlane.f32.xlu0 %v6409
  %v6411 = vpop.xlane.xlu0 %6410
  %v6412 = vsub.f32 %v6398, %v6408
  %v6413 = vsub.f32 %v6403, %v6411
  %v6414 = vmul.f32 %v6412, 1.442695
  %v6415 = vpow.pop %v6414
  %v6416 = vmul.f32 %v6413, 1.442695
  %v6417 = vpow.pop %v6416
  %v6418 = vsel %vm158, %v6415, 0.0
  %6419 = vadd.xlane.f32.xlu0 %v6418
  %v6420 = vpop.xlane.xlu0 %6419
  %v6421 = vsel %vm158, %v6417, 0.0
  %6422 = vadd.xlane.f32.xlu0 %v6421
  %v6423 = vpop.xlane.xlu0 %6422
  %v6424 = vrcp.pop %v6420
  %v6425 = vrcp.pop %v6423
  %v6426 = vmul.f32 %v6415, %v6424
  %v6427 = vmul.f32 %v6417, %v6425
  %v6429 = vsel %vm158, %v6426, 0
  %v6432 = vsel %vm158, %v6427, 0
  %6434 = vmatprep.subr.mxu0 0.0
  %6435 = vmatpush1.msra.mxu0 0.0
  %6436 = vmatprep.subr.mxu0 0.0
  %6437 = vmatpush1.msra.mxu0 0.0
  %6438 = vmatprep.subr.mxu0 0.0
  %6439 = vmatpush1.msra.mxu0 0.0
  %6440 = vmatprep.subr.mxu0 0.0
  %6441 = vmatpush1.msra.mxu0 0.0
  %6442 = vmatprep.subr.mxu0 0.0
  %6443 = vmatpush1.msra.mxu0 0.0
  %6444 = vmatprep.subr.mxu0 0.0
  %6445 = vmatpush1.msra.mxu0 0.0
  %6446 = vmatprep.subr.mxu0 0.0
  %6447 = vmatpush1.msra.mxu0 0.0
  %6448 = vmatprep.subr.mxu0 0.0
  %6449 = vmatpush1.msra.mxu0 0.0
  %6450 = vmatprep.subr.mxu0 0.0
  %6451 = vmatpush1.msra.mxu0 0.0
  %6452 = vmatprep.subr.mxu0 0.0
  %6453 = vmatpush1.msra.mxu0 0.0
  %6454 = vmatprep.subr.mxu0 0.0
  %6455 = vmatpush1.msra.mxu0 0.0
  %6456 = vmatprep.subr.mxu0 0.0
  %6457 = vmatpush1.msra.mxu0 0.0
  %6458 = vmatprep.subr.mxu0 0.0
  %6459 = vmatpush1.msra.mxu0 0.0
  %6460 = vmatprep.subr.mxu0 0.0
  %6461 = vmatpush1.msra.mxu0 0.0
  %6462 = vmatprep.subr.mxu0 0.0
  %6463 = vmatpush1.msra.mxu0 %v6126
  %6464 = vmatprep.subr.mxu0 0.0
  %6465 = vmatpush1.msra.mxu0 %v6121
  %6466 = vmatprep.subr.mxu0 0.0
  %6467 = vmatpush2.msra.mxu0 0.0
  %6468 = vmatprep.subr.mxu0 0.0
  %6469 = vmatpush2.msra.mxu0 0.0
  %6470 = vmatprep.subr.mxu0 0.0
  %6471 = vmatpush2.msra.mxu0 0.0
  %6472 = vmatprep.subr.mxu0 0.0
  %6473 = vmatpush2.msra.mxu0 0.0
  %6474 = vmatprep.subr.mxu0 0.0
  %6475 = vmatpush2.msra.mxu0 0.0
  %6476 = vmatprep.subr.mxu0 0.0
  %6477 = vmatpush2.msra.mxu0 0.0
  %6478 = vmatprep.subr.mxu0 0.0
  %6479 = vmatpush2.msra.mxu0 0.0
  %6480 = vmatprep.subr.mxu0 0.0
  %6481 = vmatpush2.msra.mxu0 0.0
  %6482 = vmatprep.subr.mxu0 0.0
  %6483 = vmatpush2.msra.mxu0 0.0
  %6484 = vmatprep.subr.mxu0 0.0
  %6485 = vmatpush2.msra.mxu0 0.0
  %6486 = vmatprep.subr.mxu0 0.0
  %6487 = vmatpush2.msra.mxu0 0.0
  %6488 = vmatprep.subr.mxu0 0.0
  %6489 = vmatpush2.msra.mxu0 0.0
  %6490 = vmatprep.subr.mxu0 0.0
  %6491 = vmatpush2.msra.mxu0 0.0
  %6492 = vmatprep.subr.mxu0 0.0
  %6493 = vmatpush2.msra.mxu0 0.0
  %6494 = vmatprep.subr.mxu0 0.0
  %6495 = vmatpush2.msra.mxu0 0.0
  %6496 = vmatprep.subr.mxu0 0.0
  %6497 = vmatpush2.msra.mxu0 0.0
  %6498 = vmatprep.mubr.f32.mxu0 0.0
  %6499 = vmatmul.mubr.f32.gmra.mxu0 %v6429
  %v6500 = vpop.f32.mrf.mxu0
  %v6501 = vadd.f32 0.0, %v6500
  %v6502 = vpop.f32.mrf.mxu0
  %6503 = vmatprep.mubr.f32.mxu0 0.0
  %6504 = vmatmul.mubr.f32.gmra.mxu0 %v6432
  %v6505 = vpop.f32.mrf.mxu0
  %v6506 = vadd.f32 0.0, %v6505
  %v6507 = vpop.f32.mrf.mxu0
  %6508 = vdwg.mxu0
  %s6509 = scalar_lea.vmem %s4, 56
  %v6510 = vld [vmem:[%s6509] sm:$0xff]
  %v6512 = vsel %vm553, %v6311, 0
  %v6515 = vsel %vm553, %v6316, 0
  %v6518 = vsel %vm553, %v6501, 0
  %v6521 = vsel %vm553, %v6506, 0
  %6523 = vmatprep.subr.mxu0 0.0
  %6524 = vmatpush1.msra.mxu0 0.0
  %6525 = vmatprep.subr.mxu0 0.0
  %6526 = vmatpush1.msra.mxu0 0.0
  %6527 = vmatprep.subr.mxu0 0.0
  %6528 = vmatpush1.msra.mxu0 0.0
  %6529 = vmatprep.subr.mxu0 0.0
  %6530 = vmatpush1.msra.mxu0 0.0
  %6531 = vmatprep.subr.mxu0 0.0
  %6532 = vmatpush1.msra.mxu0 0.0
  %6533 = vmatprep.subr.mxu0 0.0
  %6534 = vmatpush1.msra.mxu0 0.0
  %6535 = vmatprep.subr.mxu0 0.0
  %6536 = vmatpush1.msra.mxu0 0.0
  %6537 = vmatprep.subr.mxu0 0.0
  %6538 = vmatpush1.msra.mxu0 0.0
  %6539 = vmatprep.subr.mxu0 0.0
  %6540 = vmatpush1.msra.mxu0 0.0
  %6541 = vmatprep.subr.mxu0 0.0
  %6542 = vmatpush1.msra.mxu0 0.0
  %6543 = vmatprep.subr.mxu0 0.0
  %6544 = vmatpush1.msra.mxu0 0.0
  %6545 = vmatprep.subr.mxu0 0.0
  %6546 = vmatpush1.msra.mxu0 0.0
  %6547 = vmatprep.subr.mxu0 0.0
  %6548 = vmatpush1.msra.mxu0 0.0
  %6549 = vmatprep.subr.mxu0 0.0
  %6550 = vmatpush1.msra.mxu0 0.0
  %6551 = vmatprep.subr.mxu0 0.0
  %6552 = vmatpush1.msra.mxu0 0.0
  %6553 = vmatprep.subr.mxu0 0.0
  %6554 = vmatpush1.msra.mxu0 %v6510
  %6555 = vmatprep.subr.mxu0 0.0
  %6556 = vmatpush2.msra.mxu0 0.0
  %6557 = vmatprep.subr.mxu0 0.0
  %6558 = vmatpush2.msra.mxu0 0.0
  %6559 = vmatprep.subr.mxu0 0.0
  %6560 = vmatpush2.msra.mxu0 0.0
  %6561 = vmatprep.subr.mxu0 0.0
  %6562 = vmatpush2.msra.mxu0 0.0
  %6563 = vmatprep.subr.mxu0 0.0
  %6564 = vmatpush2.msra.mxu0 0.0
  %6565 = vmatprep.subr.mxu0 0.0
  %6566 = vmatpush2.msra.mxu0 0.0
  %6567 = vmatprep.subr.mxu0 0.0
  %6568 = vmatpush2.msra.mxu0 0.0
  %6569 = vmatprep.subr.mxu0 0.0
  %6570 = vmatpush2.msra.mxu0 0.0
  %6571 = vmatprep.subr.mxu0 0.0
  %6572 = vmatpush2.msra.mxu0 0.0
  %6573 = vmatprep.subr.mxu0 0.0
  %6574 = vmatpush2.msra.mxu0 0.0
  %6575 = vmatprep.subr.mxu0 0.0
  %6576 = vmatpush2.msra.mxu0 0.0
  %6577 = vmatprep.subr.mxu0 0.0
  %6578 = vmatpush2.msra.mxu0 0.0
  %6579 = vmatprep.subr.mxu0 0.0
  %6580 = vmatpush2.msra.mxu0 0.0
  %6581 = vmatprep.subr.mxu0 0.0
  %6582 = vmatpush2.msra.mxu0 0.0
  %6583 = vmatprep.subr.mxu0 0.0
  %6584 = vmatpush2.msra.mxu0 0.0
  %6585 = vmatprep.subr.mxu0 0.0
  %6586 = vmatpush2.msra.mxu0 0.0
  %6587 = vmatprep.mubr.f32.mxu0 0.0
  %6588 = vmatmul.mubr.f32.gmra.mxu0 %v6512
  %v6589 = vpop.f32.mrf.mxu0
  %v6590 = vadd.f32 0.0, %v6589
  %v6591 = vpop.f32.mrf.mxu0
  %6592 = vmatprep.mubr.f32.mxu0 0.0
  %6593 = vmatmul.mubr.f32.gmra.mxu0 %v6515
  %v6594 = vpop.f32.mrf.mxu0
  %v6595 = vadd.f32 0.0, %v6594
  %v6596 = vpop.f32.mrf.mxu0
  %6597 = vmatprep.mubr.f32.mxu0 0.0
  %6598 = vmatmul.mubr.f32.gmra.mxu0 %v6518
  %v6599 = vpop.f32.mrf.mxu0
  %v6600 = vadd.f32 0.0, %v6599
  %v6601 = vpop.f32.mrf.mxu0
  %6602 = vmatprep.mubr.f32.mxu0 0.0
  %6603 = vmatmul.mubr.f32.gmra.mxu0 %v6521
  %v6604 = vpop.f32.mrf.mxu0
  %v6605 = vadd.f32 0.0, %v6604
  %v6606 = vpop.f32.mrf.mxu0
  %6607 = vdwg.mxu0
  %v6608 = vadd.f32 %v5846, %v6590
  %v6609 = vadd.f32 %v5847, %v6595
  %v6610 = vadd.f32 %v5848, %v6600
  %v6611 = vadd.f32 %v5849, %v6605
  %v6612 = vld [vmem:[%s9 + $0xb] sm:$0x1]
  %v6613 = vlaneseq
  %v6614 = vshrl.u32 %v6613, 7
  %v6615 = vsub.s32 0, %v6614
  %v6616 = vrot.slane %v6612, %v6615
  %v6617 = vadd.f32 %v6608, %v6616
  %v6618 = vadd.f32 %v6609, %v6616
  %v6619 = vadd.f32 %v6610, %v6616
  %v6620 = vadd.f32 %v6611, %v6616
  %s6621 = scalar_lea.vmem %s5, 32
  %v6622 = vld [vmem:[%s6621] sm:$0xff]
  %v6623 = vld [vmem:[%s6621 + $0x8] sm:$0xff]
  %v6624 = vld [vmem:[%s6621 + $0x10] sm:$0xff]
  %v6625 = vld [vmem:[%s6621 + $0x18] sm:$0xff]
  %v6626 = vld [vmem:[%s9 + $0xc] sm:$0x1]
  %v6627 = vlaneseq
  %v6628 = vshrl.u32 %v6627, 7
  %v6629 = vsub.s32 0, %v6628
  %v6630 = vrot.slane %v6626, %v6629
  %v6632 = vsel %vm265, %v6617, 0
  %v6635 = vsel %vm265, %v6618, 0
  %v6638 = vsel %vm265, %v6619, 0
  %v6641 = vsel %vm265, %v6620, 0
  %6643 = vmatprep.subr.mxu0 0.0
  %6644 = vmatpush1.msra.mxu0 0.0
  %6645 = vmatprep.subr.mxu0 0.0
  %6646 = vmatpush1.msra.mxu0 0.0
  %6647 = vmatprep.subr.mxu0 0.0
  %6648 = vmatpush1.msra.mxu0 0.0
  %6649 = vmatprep.subr.mxu0 0.0
  %6650 = vmatpush1.msra.mxu0 0.0
  %6651 = vmatprep.subr.mxu0 0.0
  %6652 = vmatpush1.msra.mxu0 0.0
  %6653 = vmatprep.subr.mxu0 0.0
  %6654 = vmatpush1.msra.mxu0 0.0
  %6655 = vmatprep.subr.mxu0 0.0
  %6656 = vmatpush1.msra.mxu0 0.0
  %6657 = vmatprep.subr.mxu0 0.0
  %6658 = vmatpush1.msra.mxu0 0.0
  %6659 = vmatprep.subr.mxu0 0.0
  %6660 = vmatpush1.msra.mxu0 0.0
  %6661 = vmatprep.subr.mxu0 0.0
  %6662 = vmatpush1.msra.mxu0 0.0
  %6663 = vmatprep.subr.mxu0 0.0
  %6664 = vmatpush1.msra.mxu0 0.0
  %6665 = vmatprep.subr.mxu0 0.0
  %6666 = vmatpush1.msra.mxu0 0.0
  %6667 = vmatprep.subr.mxu0 0.0
  %6668 = vmatpush1.msra.mxu0 %v6625
  %6669 = vmatprep.subr.mxu0 0.0
  %6670 = vmatpush1.msra.mxu0 %v6624
  %6671 = vmatprep.subr.mxu0 0.0
  %6672 = vmatpush1.msra.mxu0 %v6623
  %6673 = vmatprep.subr.mxu0 0.0
  %6674 = vmatpush1.msra.mxu0 %v6622
  %6675 = vmatprep.subr.mxu0 0.0
  %6676 = vmatpush2.msra.mxu0 0.0
  %6677 = vmatprep.subr.mxu0 0.0
  %6678 = vmatpush2.msra.mxu0 0.0
  %6679 = vmatprep.subr.mxu0 0.0
  %6680 = vmatpush2.msra.mxu0 0.0
  %6681 = vmatprep.subr.mxu0 0.0
  %6682 = vmatpush2.msra.mxu0 0.0
  %6683 = vmatprep.subr.mxu0 0.0
  %6684 = vmatpush2.msra.mxu0 0.0
  %6685 = vmatprep.subr.mxu0 0.0
  %6686 = vmatpush2.msra.mxu0 0.0
  %6687 = vmatprep.subr.mxu0 0.0
  %6688 = vmatpush2.msra.mxu0 0.0
  %6689 = vmatprep.subr.mxu0 0.0
  %6690 = vmatpush2.msra.mxu0 0.0
  %6691 = vmatprep.subr.mxu0 0.0
  %6692 = vmatpush2.msra.mxu0 0.0
  %6693 = vmatprep.subr.mxu0 0.0
  %6694 = vmatpush2.msra.mxu0 0.0
  %6695 = vmatprep.subr.mxu0 0.0
  %6696 = vmatpush2.msra.mxu0 0.0
  %6697 = vmatprep.subr.mxu0 0.0
  %6698 = vmatpush2.msra.mxu0 0.0
  %6699 = vmatprep.subr.mxu0 0.0
  %6700 = vmatpush2.msra.mxu0 0.0
  %6701 = vmatprep.subr.mxu0 0.0
  %6702 = vmatpush2.msra.mxu0 0.0
  %6703 = vmatprep.subr.mxu0 0.0
  %6704 = vmatpush2.msra.mxu0 0.0
  %6705 = vmatprep.subr.mxu0 0.0
  %6706 = vmatpush2.msra.mxu0 0.0
  %6707 = vmatprep.mubr.f32.mxu0 0.0
  %6708 = vmatmul.mubr.f32.gmra.mxu0 %v6632
  %v6709 = vpop.f32.mrf.mxu0
  %v6710 = vadd.f32 %v6630, %v6709
  %v6711 = vpop.f32.mrf.mxu0
  %6712 = vmatprep.mubr.f32.mxu0 0.0
  %6713 = vmatmul.mubr.f32.gmra.mxu0 %v6635
  %v6714 = vpop.f32.mrf.mxu0
  %v6715 = vadd.f32 %v6630, %v6714
  %v6716 = vpop.f32.mrf.mxu0
  %6717 = vmatprep.mubr.f32.mxu0 0.0
  %6718 = vmatmul.mubr.f32.gmra.mxu0 %v6638
  %v6719 = vpop.f32.mrf.mxu0
  %v6720 = vadd.f32 %v6630, %v6719
  %v6721 = vpop.f32.mrf.mxu0
  %6722 = vmatprep.mubr.f32.mxu0 0.0
  %6723 = vmatmul.mubr.f32.gmra.mxu0 %v6641
  %v6724 = vpop.f32.mrf.mxu0
  %v6725 = vadd.f32 %v6630, %v6724
  %v6726 = vpop.f32.mrf.mxu0
  %6727 = vdwg.mxu0
  %v6728 = vmax.f32 %v6710, 0.0
  %v6729 = vmax.f32 %v6715, 0.0
  %v6730 = vmax.f32 %v6720, 0.0
  %v6731 = vmax.f32 %v6725, 0.0
  %s6732 = scalar_lea.vmem %s6, 64
  %v6733 = vld [vmem:[%s6732] sm:$0xff]
  %v6734 = vld [vmem:[%s6732 + $0x8] sm:$0xff]
  %v6735 = vld [vmem:[%s6732 + $0x10] sm:$0xff]
  %v6736 = vld [vmem:[%s6732 + $0x18] sm:$0xff]
  %v6737 = vld [vmem:[%s6732 + $0x20] sm:$0xff]
  %v6738 = vld [vmem:[%s6732 + $0x28] sm:$0xff]
  %v6739 = vld [vmem:[%s6732 + $0x30] sm:$0xff]
  %v6740 = vld [vmem:[%s6732 + $0x38] sm:$0xff]
  %v6741 = vld [vmem:[%s9 + $0xd] sm:$0x1]
  %v6742 = vlaneseq
  %v6743 = vshrl.u32 %v6742, 7
  %v6744 = vsub.s32 0, %v6743
  %v6745 = vrot.slane %v6741, %v6744
  %v6747 = vsel %vm3449, %v6728, 0
  %v6750 = vsel %vm3449, %v6729, 0
  %v6753 = vsel %vm3449, %v6730, 0
  %v6756 = vsel %vm3449, %v6731, 0
  %6758 = vmatprep.subr.mxu0 0.0
  %6759 = vmatpush1.msra.mxu0 0.0
  %6760 = vmatprep.subr.mxu0 0.0
  %6761 = vmatpush1.msra.mxu0 0.0
  %6762 = vmatprep.subr.mxu0 0.0
  %6763 = vmatpush1.msra.mxu0 0.0
  %6764 = vmatprep.subr.mxu0 0.0
  %6765 = vmatpush1.msra.mxu0 0.0
  %6766 = vmatprep.subr.mxu0 0.0
  %6767 = vmatpush1.msra.mxu0 0.0
  %6768 = vmatprep.subr.mxu0 0.0
  %6769 = vmatpush1.msra.mxu0 0.0
  %6770 = vmatprep.subr.mxu0 0.0
  %6771 = vmatpush1.msra.mxu0 0.0
  %6772 = vmatprep.subr.mxu0 0.0
  %6773 = vmatpush1.msra.mxu0 0.0
  %6774 = vmatprep.subr.mxu0 0.0
  %6775 = vmatpush1.msra.mxu0 %v6740
  %6776 = vmatprep.subr.mxu0 0.0
  %6777 = vmatpush1.msra.mxu0 %v6739
  %6778 = vmatprep.subr.mxu0 0.0
  %6779 = vmatpush1.msra.mxu0 %v6738
  %6780 = vmatprep.subr.mxu0 0.0
  %6781 = vmatpush1.msra.mxu0 %v6737
  %6782 = vmatprep.subr.mxu0 0.0
  %6783 = vmatpush1.msra.mxu0 %v6736
  %6784 = vmatprep.subr.mxu0 0.0
  %6785 = vmatpush1.msra.mxu0 %v6735
  %6786 = vmatprep.subr.mxu0 0.0
  %6787 = vmatpush1.msra.mxu0 %v6734
  %6788 = vmatprep.subr.mxu0 0.0
  %6789 = vmatpush1.msra.mxu0 %v6733
  %6790 = vmatprep.subr.mxu0 0.0
  %6791 = vmatpush2.msra.mxu0 0.0
  %6792 = vmatprep.subr.mxu0 0.0
  %6793 = vmatpush2.msra.mxu0 0.0
  %6794 = vmatprep.subr.mxu0 0.0
  %6795 = vmatpush2.msra.mxu0 0.0
  %6796 = vmatprep.subr.mxu0 0.0
  %6797 = vmatpush2.msra.mxu0 0.0
  %6798 = vmatprep.subr.mxu0 0.0
  %6799 = vmatpush2.msra.mxu0 0.0
  %6800 = vmatprep.subr.mxu0 0.0
  %6801 = vmatpush2.msra.mxu0 0.0
  %6802 = vmatprep.subr.mxu0 0.0
  %6803 = vmatpush2.msra.mxu0 0.0
  %6804 = vmatprep.subr.mxu0 0.0
  %6805 = vmatpush2.msra.mxu0 0.0
  %6806 = vmatprep.subr.mxu0 0.0
  %6807 = vmatpush2.msra.mxu0 0.0
  %6808 = vmatprep.subr.mxu0 0.0
  %6809 = vmatpush2.msra.mxu0 0.0
  %6810 = vmatprep.subr.mxu0 0.0
  %6811 = vmatpush2.msra.mxu0 0.0
  %6812 = vmatprep.subr.mxu0 0.0
  %6813 = vmatpush2.msra.mxu0 0.0
  %6814 = vmatprep.subr.mxu0 0.0
  %6815 = vmatpush2.msra.mxu0 0.0
  %6816 = vmatprep.subr.mxu0 0.0
  %6817 = vmatpush2.msra.mxu0 0.0
  %6818 = vmatprep.subr.mxu0 0.0
  %6819 = vmatpush2.msra.mxu0 0.0
  %6820 = vmatprep.subr.mxu0 0.0
  %6821 = vmatpush2.msra.mxu0 0.0
  %6822 = vmatprep.mubr.f32.mxu0 0.0
  %6823 = vmatmul.mubr.f32.gmra.mxu0 %v6747
  %v6824 = vpop.f32.mrf.mxu0
  %v6825 = vadd.f32 %v6745, %v6824
  %v6826 = vpop.f32.mrf.mxu0
  %6827 = vmatprep.mubr.f32.mxu0 0.0
  %6828 = vmatmul.mubr.f32.gmra.mxu0 %v6750
  %v6829 = vpop.f32.mrf.mxu0
  %v6830 = vadd.f32 %v6745, %v6829
  %v6831 = vpop.f32.mrf.mxu0
  %6832 = vmatprep.mubr.f32.mxu0 0.0
  %6833 = vmatmul.mubr.f32.gmra.mxu0 %v6753
  %v6834 = vpop.f32.mrf.mxu0
  %v6835 = vadd.f32 %v6745, %v6834
  %v6836 = vpop.f32.mrf.mxu0
  %6837 = vmatprep.mubr.f32.mxu0 0.0
  %6838 = vmatmul.mubr.f32.gmra.mxu0 %v6756
  %v6839 = vpop.f32.mrf.mxu0
  %v6840 = vadd.f32 %v6745, %v6839
  %v6841 = vpop.f32.mrf.mxu0
  %6842 = vdwg.mxu0
  %v6843 = vadd.f32 %v6825, %v6617
  %v6844 = vadd.f32 %v6830, %v6618
  %v6845 = vadd.f32 %v6835, %v6619
  %v6846 = vadd.f32 %v6840, %v6620
  %v6847 = vld [vmem:[%s7] sm:$0xff]
  %v6848 = vld [vmem:[%s7 + $0x8] sm:$0xff]
  %v6849 = vld [vmem:[%s7 + $0x10] sm:$0xff]
  %v6850 = vld [vmem:[%s7 + $0x18] sm:$0xff]
  %v6851 = vld [vmem:[%s9 + $0xe] sm:$0x1]
  %v6852 = vlaneseq
  %v6853 = vshrl.u32 %v6852, 7
  %v6854 = vsub.s32 0, %v6853
  %v6855 = vrot.slane %v6851, %v6854
  %v6857 = vsel %vm265, %v6843, 0
  %v6860 = vsel %vm265, %v6844, 0
  %v6863 = vsel %vm265, %v6845, 0
  %v6866 = vsel %vm265, %v6846, 0
  %6868 = vmatprep.subr.mxu0 0.0
  %6869 = vmatpush1.msra.mxu0 0.0
  %6870 = vmatprep.subr.mxu0 0.0
  %6871 = vmatpush1.msra.mxu0 0.0
  %6872 = vmatprep.subr.mxu0 0.0
  %6873 = vmatpush1.msra.mxu0 0.0
  %6874 = vmatprep.subr.mxu0 0.0
  %6875 = vmatpush1.msra.mxu0 0.0
  %6876 = vmatprep.subr.mxu0 0.0
  %6877 = vmatpush1.msra.mxu0 0.0
  %6878 = vmatprep.subr.mxu0 0.0
  %6879 = vmatpush1.msra.mxu0 0.0
  %6880 = vmatprep.subr.mxu0 0.0
  %6881 = vmatpush1.msra.mxu0 0.0
  %6882 = vmatprep.subr.mxu0 0.0
  %6883 = vmatpush1.msra.mxu0 0.0
  %6884 = vmatprep.subr.mxu0 0.0
  %6885 = vmatpush1.msra.mxu0 0.0
  %6886 = vmatprep.subr.mxu0 0.0
  %6887 = vmatpush1.msra.mxu0 0.0
  %6888 = vmatprep.subr.mxu0 0.0
  %6889 = vmatpush1.msra.mxu0 0.0
  %6890 = vmatprep.subr.mxu0 0.0
  %6891 = vmatpush1.msra.mxu0 0.0
  %6892 = vmatprep.subr.mxu0 0.0
  %6893 = vmatpush1.msra.mxu0 %v6850
  %6894 = vmatprep.subr.mxu0 0.0
  %6895 = vmatpush1.msra.mxu0 %v6849
  %6896 = vmatprep.subr.mxu0 0.0
  %6897 = vmatpush1.msra.mxu0 %v6848
  %6898 = vmatprep.subr.mxu0 0.0
  %6899 = vmatpush1.msra.mxu0 %v6847
  %6900 = vmatprep.subr.mxu0 0.0
  %6901 = vmatpush2.msra.mxu0 0.0
  %6902 = vmatprep.subr.mxu0 0.0
  %6903 = vmatpush2.msra.mxu0 0.0
  %6904 = vmatprep.subr.mxu0 0.0
  %6905 = vmatpush2.msra.mxu0 0.0
  %6906 = vmatprep.subr.mxu0 0.0
  %6907 = vmatpush2.msra.mxu0 0.0
  %6908 = vmatprep.subr.mxu0 0.0
  %6909 = vmatpush2.msra.mxu0 0.0
  %6910 = vmatprep.subr.mxu0 0.0
  %6911 = vmatpush2.msra.mxu0 0.0
  %6912 = vmatprep.subr.mxu0 0.0
  %6913 = vmatpush2.msra.mxu0 0.0
  %6914 = vmatprep.subr.mxu0 0.0
  %6915 = vmatpush2.msra.mxu0 0.0
  %6916 = vmatprep.subr.mxu0 0.0
  %6917 = vmatpush2.msra.mxu0 0.0
  %6918 = vmatprep.subr.mxu0 0.0
  %6919 = vmatpush2.msra.mxu0 0.0
  %6920 = vmatprep.subr.mxu0 0.0
  %6921 = vmatpush2.msra.mxu0 0.0
  %6922 = vmatprep.subr.mxu0 0.0
  %6923 = vmatpush2.msra.mxu0 0.0
  %6924 = vmatprep.subr.mxu0 0.0
  %6925 = vmatpush2.msra.mxu0 0.0
  %6926 = vmatprep.subr.mxu0 0.0
  %6927 = vmatpush2.msra.mxu0 0.0
  %6928 = vmatprep.subr.mxu0 0.0
  %6929 = vmatpush2.msra.mxu0 0.0
  %6930 = vmatprep.subr.mxu0 0.0
  %6931 = vmatpush2.msra.mxu0 0.0
  %6932 = vmatprep.mubr.f32.mxu0 0.0
  %6933 = vmatmul.mubr.f32.gmra.mxu0 %v6857
  %v6934 = vpop.f32.mrf.mxu0
  %v6935 = vadd.f32 %v6855, %v6934
  %v6936 = vpop.f32.mrf.mxu0
  %6937 = vmatprep.mubr.f32.mxu0 0.0
  %6938 = vmatmul.mubr.f32.gmra.mxu0 %v6860
  %v6939 = vpop.f32.mrf.mxu0
  %v6940 = vadd.f32 %v6855, %v6939
  %v6941 = vpop.f32.mrf.mxu0
  %6942 = vmatprep.mubr.f32.mxu0 0.0
  %6943 = vmatmul.mubr.f32.gmra.mxu0 %v6863
  %v6944 = vpop.f32.mrf.mxu0
  %v6945 = vadd.f32 %v6855, %v6944
  %v6946 = vpop.f32.mrf.mxu0
  %6947 = vmatprep.mubr.f32.mxu0 0.0
  %6948 = vmatmul.mubr.f32.gmra.mxu0 %v6866
  %v6949 = vpop.f32.mrf.mxu0
  %v6950 = vadd.f32 %v6855, %v6949
  %v6951 = vpop.f32.mrf.mxu0
  %6952 = vdwg.mxu0
  %v6953 = vmax.f32 %v6935, 0.0
  %v6954 = vmax.f32 %v6940, 0.0
  %v6955 = vmax.f32 %v6945, 0.0
  %v6956 = vmax.f32 %v6950, 0.0
  %v6957 = vld [vmem:[%s8] sm:$0xff]
  %v6958 = vld [vmem:[%s8 + $0x8] sm:$0xff]
  %v6959 = vld [vmem:[%s8 + $0x10] sm:$0xff]
  %v6960 = vld [vmem:[%s8 + $0x18] sm:$0xff]
  %v6961 = vld [vmem:[%s9 + $0xf] sm:$0x1]
  %v6962 = vlaneseq
  %v6963 = vshrl.u32 %v6962, 7
  %v6964 = vsub.s32 0, %v6963
  %v6965 = vrot.slane %v6961, %v6964
  %v6967 = vsel %vm265, %v6953, 0
  %v6970 = vsel %vm265, %v6954, 0
  %v6973 = vsel %vm265, %v6955, 0
  %v6976 = vsel %vm265, %v6956, 0
  %6978 = vmatprep.subr.mxu0 0.0
  %6979 = vmatpush1.msra.mxu0 0.0
  %6980 = vmatprep.subr.mxu0 0.0
  %6981 = vmatpush1.msra.mxu0 0.0
  %6982 = vmatprep.subr.mxu0 0.0
  %6983 = vmatpush1.msra.mxu0 0.0
  %6984 = vmatprep.subr.mxu0 0.0
  %6985 = vmatpush1.msra.mxu0 0.0
  %6986 = vmatprep.subr.mxu0 0.0
  %6987 = vmatpush1.msra.mxu0 0.0
  %6988 = vmatprep.subr.mxu0 0.0
  %6989 = vmatpush1.msra.mxu0 0.0
  %6990 = vmatprep.subr.mxu0 0.0
  %6991 = vmatpush1.msra.mxu0 0.0
  %6992 = vmatprep.subr.mxu0 0.0
  %6993 = vmatpush1.msra.mxu0 0.0
  %6994 = vmatprep.subr.mxu0 0.0
  %6995 = vmatpush1.msra.mxu0 0.0
  %6996 = vmatprep.subr.mxu0 0.0
  %6997 = vmatpush1.msra.mxu0 0.0
  %6998 = vmatprep.subr.mxu0 0.0
  %6999 = vmatpush1.msra.mxu0 0.0
  %7000 = vmatprep.subr.mxu0 0.0
  %7001 = vmatpush1.msra.mxu0 0.0
  %7002 = vmatprep.subr.mxu0 0.0
  %7003 = vmatpush1.msra.mxu0 %v6960
  %7004 = vmatprep.subr.mxu0 0.0
  %7005 = vmatpush1.msra.mxu0 %v6959
  %7006 = vmatprep.subr.mxu0 0.0
  %7007 = vmatpush1.msra.mxu0 %v6958
  %7008 = vmatprep.subr.mxu0 0.0
  %7009 = vmatpush1.msra.mxu0 %v6957
  %7010 = vmatprep.subr.mxu0 0.0
  %7011 = vmatpush2.msra.mxu0 0.0
  %7012 = vmatprep.subr.mxu0 0.0
  %7013 = vmatpush2.msra.mxu0 0.0
  %7014 = vmatprep.subr.mxu0 0.0
  %7015 = vmatpush2.msra.mxu0 0.0
  %7016 = vmatprep.subr.mxu0 0.0
  %7017 = vmatpush2.msra.mxu0 0.0
  %7018 = vmatprep.subr.mxu0 0.0
  %7019 = vmatpush2.msra.mxu0 0.0
  %7020 = vmatprep.subr.mxu0 0.0
  %7021 = vmatpush2.msra.mxu0 0.0
  %7022 = vmatprep.subr.mxu0 0.0
  %7023 = vmatpush2.msra.mxu0 0.0
  %7024 = vmatprep.subr.mxu0 0.0
  %7025 = vmatpush2.msra.mxu0 0.0
  %7026 = vmatprep.subr.mxu0 0.0
  %7027 = vmatpush2.msra.mxu0 0.0
  %7028 = vmatprep.subr.mxu0 0.0
  %7029 = vmatpush2.msra.mxu0 0.0
  %7030 = vmatprep.subr.mxu0 0.0
  %7031 = vmatpush2.msra.mxu0 0.0
  %7032 = vmatprep.subr.mxu0 0.0
  %7033 = vmatpush2.msra.mxu0 0.0
  %7034 = vmatprep.subr.mxu0 0.0
  %7035 = vmatpush2.msra.mxu0 0.0
  %7036 = vmatprep.subr.mxu0 0.0
  %7037 = vmatpush2.msra.mxu0 0.0
  %7038 = vmatprep.subr.mxu0 0.0
  %7039 = vmatpush2.msra.mxu0 0.0
  %7040 = vmatprep.subr.mxu0 0.0
  %7041 = vmatpush2.msra.mxu0 0.0
  %7042 = vmatprep.mubr.f32.mxu0 0.0
  %7043 = vmatmul.mubr.f32.gmra.mxu0 %v6967
  %v7044 = vpop.f32.mrf.mxu0
  %v7045 = vadd.f32 %v6965, %v7044
  %v7046 = vpop.f32.mrf.mxu0
  %7047 = vmatprep.mubr.f32.mxu0 0.0
  %7048 = vmatmul.mubr.f32.gmra.mxu0 %v6970
  %v7049 = vpop.f32.mrf.mxu0
  %v7050 = vadd.f32 %v6965, %v7049
  %v7051 = vpop.f32.mrf.mxu0
  %7052 = vmatprep.mubr.f32.mxu0 0.0
  %7053 = vmatmul.mubr.f32.gmra.mxu0 %v6973
  %v7054 = vpop.f32.mrf.mxu0
  %v7055 = vadd.f32 %v6965, %v7054
  %v7056 = vpop.f32.mrf.mxu0
  %7057 = vmatprep.mubr.f32.mxu0 0.0
  %7058 = vmatmul.mubr.f32.gmra.mxu0 %v6976
  %v7059 = vpop.f32.mrf.mxu0
  %v7060 = vadd.f32 %v6965, %v7059
  %v7061 = vpop.f32.mrf.mxu0
  %7062 = vdwg.mxu0
  %v7063 = vlaneseq
  %v7064 = vand.u32 %v7063, 127
  %vm7065 = vcmp.ge.s32.totalorder %v7064, 1
  %v7066 = vtanh.pop %v7045
  %v7067 = vtanh.pop %v7050
  %v7068 = vtanh.pop %v7055
  %v7069 = vtanh.pop %v7060
  %v7070 = vsel %vm7065, %v7066, %v7045
  %v7071 = vsel %vm7065, %v7067, %v7050
  %v7072 = vsel %vm7065, %v7068, %v7055
  %v7073 = vsel %vm7065, %v7069, %v7060
  %7074 = vst.msk [vmem:[%s10] sm:$0xff] %vm45, %v7070
  %7075 = vst.msk [vmem:[%s10 + $0x8] sm:$0xff] %vm45, %v7071
  %7076 = vst.msk [vmem:[%s10 + $0x10] sm:$0xff] %vm45, %v7072
  %7077 = vst.msk [vmem:[%s10 + $0x18] sm:$0xff] %vm45, %v7073
  // Predicated region
  $region42: #{dagger_forward.1} parent=0 // pred_check
    _
  $region43: #{dagger_forward.1} parent=0 // pred_check_branch
    %7079 = sbr.rel (0) target = $region45
  $region44: #{dagger_forward.1} parent=0 // pred_region
    _
  $region45: #{dagger_forward.1} parent=0 // pred_fallthru
    _
  // Predicated region
  $region46: #{dagger_forward.1} parent=0 // pred_check
    _
  $region47: #{dagger_forward.1} parent=0 // pred_check_branch
    %7081 = sbr.rel (0) target = $region49
  $region48: #{dagger_forward.1} parent=0 // pred_region
    _
  $region49: #{dagger_forward.1} parent=0 // pred_fallthru
    _

</llo_original>
